<compile_context>
chip_gen: v7x
topology: tpu7x:2x2x1
jax: 0.10.0
libtpu: 0.0.40
codegen_flags: <defaults>
</compile_context>

<pallas_src>
import functools

import jax
import jax.numpy as jnp
from jax.experimental import pallas as pl
from jax.experimental.pallas import tpu as pltpu


def _round_up(x, m):
    return ((x + m - 1) // m) * m


def _num_tensorcores():
    # 2 on v7x (megacore), 1 on v5e/v6e. Default to 1 if the attribute is missing.
    try:
        n = getattr(jax.devices()[0], "num_cores", None)
        return int(n) if n else 1
    except Exception:
        return 1


_NUM_TC = _num_tensorcores()


# ----------------------------- Pallas kernels -------------------------------

def _conv_pool_kernel(p_ref, w_ref, b_ref, o_ref):
    # p_ref: (4, tm, K) bf16 -- im2col patches for the 4 taps of each 2x2 pool window.
    # w_ref: (K, 128) bf16, b_ref: (1, 128) f32, o_ref: (tm, 128) bf16 (lane-dense).
    taps, tm, K = p_ref.shape
    # Stack the 4 taps along M (layout no-op: tm is a multiple of 16) -> one MXU pass.
    lhs = p_ref[...].reshape(taps * tm, K)
    acc = jnp.dot(lhs, w_ref[...], preferred_element_type=jnp.float32)  # (4*tm, 128) f32
    # Pairwise max over the 4 pool taps (tile-aligned 2D slices, no relayout).
    a = jnp.maximum(jnp.maximum(acc[0 * tm:1 * tm], acc[1 * tm:2 * tm]),
                    jnp.maximum(acc[2 * tm:3 * tm], acc[3 * tm:4 * tm]))
    # max over pool taps commutes with +bias and ReLU (both monotone).
    o_ref[...] = jnp.maximum(a + b_ref[...], 0.0).astype(o_ref.dtype)


def _classifier_kernel(x_ref, w1_ref, b1_ref, w2_ref, b2_ref, w3_ref, b3_ref, o_ref):
    # x_ref: (Bp, 1152) bf16; weights bf16, biases f32; o_ref: (Bp, 128) f32.
    h = jnp.dot(x_ref[...], w1_ref[...], preferred_element_type=jnp.float32)
    h = jnp.maximum(h + b1_ref[...], 0.0)
    h = jnp.dot(h.astype(jnp.bfloat16), w2_ref[...], preferred_element_type=jnp.float32)
    h = jnp.maximum(h + b2_ref[...], 0.0)
    o = jnp.dot(h.astype(jnp.bfloat16), w3_ref[...], preferred_element_type=jnp.float32)
    o_ref[...] = (o + b3_ref[...]).astype(o_ref.dtype)


# ----------------------------- Pallas wrappers -------------------------------

def _im2col_pooled(x, kh, kw):
    """x: (B, H, W, C) NHWC. Returns (4, B*PH*PW, kh*kw*C) patch taps for
    conv(kh,kw, stride 1, valid) followed by a 2x2/2 max pool, plus (PH, PW).
    K ordering is (i, j, c) -- matched by the weight prep below."""
    B, H, W, C = x.shape
    OH, OW = H - kh + 1, W - kw + 1
    PH, PW = OH // 2, OW // 2
    taps = []
    for di in (0, 1):
        for dj in (0, 1):
            cols = []
            for i in range(kh):
                for j in range(kw):
                    r0, c0 = di + i, dj + j
                    cols.append(x[:, r0:r0 + 2 * PH:2, c0:c0 + 2 * PW:2, :])
            tap = jnp.concatenate(cols, axis=-1)              # (B, PH, PW, kh*kw*C)
            taps.append(tap.reshape(B * PH * PW, kh * kw * C))
    return jnp.stack(taps, axis=0), PH, PW


def conv_relu_pool(x, w, b, ksize):
    """Fused Conv2d(valid, stride 1) + ReLU + MaxPool2d(2).
    x: (B, H, W, C) NHWC bf16; w: (Kpad, 128) bf16 in (i, j, ci) order; b: (1, 128) f32.
    Returns (B, PH, PW, 128) bf16 (real channels first, padded channels are zero)."""
    B = x.shape[0]
    patches, PH, PW = _im2col_pooled(x, ksize, ksize)
    Mp, K0 = patches.shape[1], patches.shape[2]
    Kpad, N = w.shape

    # Grid split only pays off with 2 TensorCores (v7x megacore); on single-TC
    # v5e/v6e a grid is a serial loop, so use one step. tm is a multiple of 16
    # (bf16 sublane packing) and divides Mpad exactly.
    if _NUM_TC >= 2 and Mp >= 128:
        Mpad = _round_up(Mp, 32)
        tm = Mpad // 2
        grid = (2,)
    else:
        Mpad = _round_up(Mp, 16)
        tm = Mpad
        grid = (1,)
    patches = jnp.pad(patches, ((0, 0), (0, Mpad - Mp), (0, Kpad - K0)))

    out = pl.pallas_call(
        _conv_pool_kernel,
        out_shape=jax.ShapeDtypeStruct((Mpad, N), jnp.bfloat16),
        grid=grid,
        in_specs=[
            pl.BlockSpec((4, tm, Kpad), lambda m: (0, m, 0)),
            pl.BlockSpec((Kpad, N), lambda m: (0, 0)),
            pl.BlockSpec((1, N), lambda m: (0, 0)),
        ],
        out_specs=pl.BlockSpec((tm, N), lambda m: (m, 0)),
        compiler_params=pltpu.CompilerParams(dimension_semantics=("parallel",)),
    )(patches, w, b)
    return out[:Mp].reshape(B, PH, PW, N)


def classifier(x, w1, b1, w2, b2, w3, b3):
    """Fused fc1+ReLU+fc2+ReLU+fc3. x: (B, 1152). Returns (Bp, 128) f32 logits."""
    B = x.shape[0]
    Bp = _round_up(max(B, 16), 16)       # full bf16 sublane tile (16 rows)
    xp = jnp.pad(x.astype(jnp.bfloat16), ((0, Bp - B), (0, 0)))
    return pl.pallas_call(
        _classifier_kernel,
        out_shape=jax.ShapeDtypeStruct((Bp, w3.shape[1]), jnp.float32),
    )(xp, w1, b1, w2, b2, w3, b3)


# ----------------------------- Params ----------------------------------------

def init_params(key, num_classes):
    """Random params in the original PyTorch layout."""
    ks = jax.random.split(key, 12)
    s = 0.05
    return {
        "conv1_w": jax.random.normal(ks[0], (32, 3, 5, 5), jnp.float32) * s,
        "conv1_b": jax.random.normal(ks[1], (32,), jnp.float32) * s,
        "conv2_w": jax.random.normal(ks[2], (64, 32, 3, 3), jnp.float32) * s,
        "conv2_b": jax.random.normal(ks[3], (64,), jnp.float32) * s,
        "conv3_w": jax.random.normal(ks[4], (128, 64, 3, 3), jnp.float32) * s,
        "conv3_b": jax.random.normal(ks[5], (128,), jnp.float32) * s,
        "fc1_w": jax.random.normal(ks[6], (512, 128 * 3 * 3), jnp.float32) * s,
        "fc1_b": jax.random.normal(ks[7], (512,), jnp.float32) * s,
        "fc2_w": jax.random.normal(ks[8], (512, 512), jnp.float32) * s,
        "fc2_b": jax.random.normal(ks[9], (512,), jnp.float32) * s,
        "fc3_w": jax.random.normal(ks[10], (num_classes, 512), jnp.float32) * s,
        "fc3_b": jax.random.normal(ks[11], (num_classes,), jnp.float32) * s,
    }


def prepare_params(p, num_classes):
    """One-time weight prep: Cin/Cout padding to lane-dense 128, transposes, K padding,
    bf16 casts (all hoisted out of the forward pass)."""
    def prep_conv(w, b, cin_pad, cout_pad):
        co, ci, kh, kw = w.shape
        wp_ = jnp.pad(w, ((0, cout_pad - co), (0, cin_pad - ci), (0, 0), (0, 0)))
        wm = wp_.transpose(2, 3, 1, 0).reshape(kh * kw * cin_pad, cout_pad)  # (i,j,ci) x co
        kpad = _round_up(wm.shape[0], 128)
        wm = jnp.pad(wm, ((0, kpad - wm.shape[0]), (0, 0))).astype(jnp.bfloat16)
        bm = jnp.pad(b, (0, cout_pad - co)).reshape(1, cout_pad).astype(jnp.float32)
        return wm, bm

    wp = {}
    # conv1: 3 real input channels (K = 75 -> padded to 128); Cout 32 -> 128 lanes.
    wp["conv1_w"], wp["conv1_b"] = prep_conv(p["conv1_w"], p["conv1_b"], 3, 128)
    # conv2/conv3 consume the carried-forward 128-channel (zero-padded) activations:
    # Cin padded to 128 with zero weight rows, K = 3*3*128 = 1152 (already 128-aligned).
    wp["conv2_w"], wp["conv2_b"] = prep_conv(p["conv2_w"], p["conv2_b"], 128, 128)
    wp["conv3_w"], wp["conv3_b"] = prep_conv(p["conv3_w"], p["conv3_b"], 128, 128)

    # fc1: reorder input dim from PyTorch's (c, h, w) flatten order to our NHWC (h, w, c).
    c, hh, ww = 128, 3, 3
    w1 = p["fc1_w"].reshape(-1, c, hh, ww).transpose(0, 2, 3, 1).reshape(-1, c * hh * ww)
    wp["fc1_w"] = w1.T.astype(jnp.bfloat16)                          # (1152, 512)
    wp["fc1_b"] = p["fc1_b"].reshape(1, -1).astype(jnp.float32)
    wp["fc2_w"] = p["fc2_w"].T.astype(jnp.bfloat16)                  # (512, 512)
    wp["fc2_b"] = p["fc2_b"].reshape(1, -1).astype(jnp.float32)
    # fc3: pad num_classes -> 128 lane-dense output columns (sliced off at the end).
    npad = _round_up(num_classes, 128)
    w3 = p["fc3_w"].T                                                # (512, nc)
    wp["fc3_w"] = jnp.pad(w3, ((0, 0), (0, npad - num_classes))).astype(jnp.bfloat16)
    wp["fc3_b"] = jnp.pad(p["fc3_b"], (0, npad - num_classes)).reshape(1, npad).astype(jnp.float32)
    return wp


# ----------------------------- Model ----------------------------------------

@functools.partial(jax.jit, static_argnames=("num_classes",))
def alexnet_forward(x_nchw, wp, *, num_classes):
    # Convert the PyTorch NCHW input to NHWC once; everything internal is NHWC bf16
    # with a lane-dense 128-channel layout (padded channels are zero).
    x = jnp.transpose(x_nchw, (0, 2, 3, 1)).astype(jnp.bfloat16)
    x = conv_relu_pool(x, wp["conv1_w"], wp["conv1_b"], 5)   # (B, 18, 18, 128) [32 real]
    x = conv_relu_pool(x, wp["conv2_w"], wp["conv2_b"], 3)   # (B, 8, 8, 128)   [64 real]
    x = conv_relu_pool(x, wp["conv3_w"], wp["conv3_b"], 3)   # (B, 3, 3, 128)
    B = x.shape[0]
    x = x.reshape(B, -1)                                     # (B, 1152), (h, w, c) order
    logits = classifier(x, wp["fc1_w"], wp["fc1_b"], wp["fc2_w"], wp["fc2_b"],
                        wp["fc3_w"], wp["fc3_b"])            # (Bp, 128) f32
    return logits[:B, :num_classes]


if __name__ == "__main__":
    num_classes = 10
    key = jax.random.PRNGKey(0)
    kx, kp = jax.random.split(key)
    # 40x40 input -> 3x3 spatial after the feature stack (matches 128*3*3 classifier).
    x = jax.random.normal(kx, (2, 3, 40, 40), jnp.float32)
    params = init_params(kp, num_classes)
    wp = prepare_params(params, num_classes)

    out = alexnet_forward(x, wp, num_classes=num_classes)
    jax.block_until_ready(out)
    assert out.shape == (2, num_classes), out.shape
    assert out.dtype == jnp.float32
    print("KERNEL_OK")
</pallas_src>

<mosaic_0001>
module attributes {stable_mosaic.version = 11 : i64} {
  func.func @_conv_pool_kernel(%arg0: i32, %arg1: memref<4x656x128xbf16, #tpu.memory_space<vmem>>, %arg2: memref<128x128xbf16, #tpu.memory_space<vmem>>, %arg3: memref<1x128xf32, #tpu.memory_space<vmem>>, %arg4: memref<656x128xbf16, #tpu.memory_space<vmem>>) attributes {dimension_semantics = [#tpu.dimension_semantics<parallel>], iteration_bounds = array<i64: 1>, scalar_prefetch = 0 : i64, scratch_operands = 0 : i64, tpu.core_type = #tpu.core_type<tc>, window_params = [{transform_indices = @transform_0, window_bounds = array<i64: 4, 656, 128>}, {pipeline_mode = #tpu.pipeline_mode<synchronous>, transform_indices = @transform_1, window_bounds = array<i64: 128, 128>}, {pipeline_mode = #tpu.pipeline_mode<synchronous>, transform_indices = @transform_2, window_bounds = array<i64: 1, 128>}, {transform_indices = @transform_3, window_bounds = array<i64: 656, 128>}]} {
    %c0 = arith.constant 0 : index
    %c0_0 = arith.constant 0 : index
    %c0_1 = arith.constant 0 : index
    %0 = vector.load %arg1[%c0, %c0_0, %c0_1] : memref<4x656x128xbf16, #tpu.memory_space<vmem>>, vector<4x656x128xbf16>
    %1 = vector.shape_cast %0 : vector<4x656x128xbf16> to vector<2624x128xbf16>
    %c0_2 = arith.constant 0 : index
    %c0_3 = arith.constant 0 : index
    %2 = vector.load %arg2[%c0_2, %c0_3] : memref<128x128xbf16, #tpu.memory_space<vmem>>, vector<128x128xbf16>
    %cst = arith.constant dense<0.000000e+00> : vector<2624x128xf32>
    %3 = tpu.matmul %1, %2, %cst {dimension_numbers = #tpu.dot_dimension_numbers<[1], [0], [0], [1], [0, 0, 1, 1], [], []>} : vector<2624x128xbf16>, vector<128x128xbf16>, vector<2624x128xf32> -> vector<2624x128xf32>
    %4 = vector.extract_strided_slice %3 {offsets = [0, 0], sizes = [656, 128], strides = [1, 1]} : vector<2624x128xf32> to vector<656x128xf32>
    %5 = vector.extract_strided_slice %3 {offsets = [656, 0], sizes = [656, 128], strides = [1, 1]} : vector<2624x128xf32> to vector<656x128xf32>
    %6 = arith.maximumf %4, %5 : vector<656x128xf32>
    %7 = vector.extract_strided_slice %3 {offsets = [1312, 0], sizes = [656, 128], strides = [1, 1]} : vector<2624x128xf32> to vector<656x128xf32>
    %8 = vector.extract_strided_slice %3 {offsets = [1968, 0], sizes = [656, 128], strides = [1, 1]} : vector<2624x128xf32> to vector<656x128xf32>
    %9 = arith.maximumf %7, %8 : vector<656x128xf32>
    %10 = arith.maximumf %6, %9 : vector<656x128xf32>
    %c0_4 = arith.constant 0 : index
    %c0_5 = arith.constant 0 : index
    %11 = vector.load %arg3[%c0_4, %c0_5] : memref<1x128xf32, #tpu.memory_space<vmem>>, vector<1x128xf32>
    %12 = vector.broadcast %11 : vector<1x128xf32> to vector<656x128xf32>
    %13 = arith.addf %10, %12 : vector<656x128xf32>
    %cst_6 = arith.constant 0.000000e+00 : f32
    %14 = vector.broadcast %cst_6 : f32 to vector<656x128xf32>
    %15 = arith.maximumf %13, %14 : vector<656x128xf32>
    %16 = arith.truncf %15 : vector<656x128xf32> to vector<656x128xbf16>
    %c0_7 = arith.constant 0 : index
    %c0_8 = arith.constant 0 : index
    %17 = vector.load %arg4[%c0_7, %c0_8] : memref<656x128xbf16, #tpu.memory_space<vmem>>, vector<656x128xbf16>
    tpu.vector_store %arg4[%c0_7, %c0_8], %16 {strides = array<i32>} : memref<656x128xbf16, #tpu.memory_space<vmem>>, vector<656x128xbf16>,
    return
  }
  func.func @transform_0(%arg0: i32) -> (i32, i32, i32) {
    %c0_i32 = arith.constant 0 : i32
    %c0_i32_0 = arith.constant 0 : i32
    %c0_i32_1 = arith.constant 0 : i32
    return %c0_i32, %arg0, %c0_i32_0 : i32, i32, i32
  }
  func.func @transform_1(%arg0: i32) -> (i32, i32) {
    %c0_i32 = arith.constant 0 : i32
    %c0_i32_0 = arith.constant 0 : i32
    %c0_i32_1 = arith.constant 0 : i32
    return %c0_i32, %c0_i32_0 : i32, i32
  }
  func.func @transform_2(%arg0: i32) -> (i32, i32) {
    %c0_i32 = arith.constant 0 : i32
    %c0_i32_0 = arith.constant 0 : i32
    %c0_i32_1 = arith.constant 0 : i32
    return %c0_i32, %c0_i32_0 : i32, i32
  }
  func.func @transform_3(%arg0: i32) -> (i32, i32) {
    %c0_i32 = arith.constant 0 : i32
    %c0_i32_0 = arith.constant 0 : i32
    return %arg0, %c0_i32 : i32, i32
  }
}

module attributes {stable_mosaic.version = 11 : i64} {
  func.func @_conv_pool_kernel(%arg0: i32, %arg1: memref<4x128x1152xbf16, #tpu.memory_space<vmem>>, %arg2: memref<1152x128xbf16, #tpu.memory_space<vmem>>, %arg3: memref<1x128xf32, #tpu.memory_space<vmem>>, %arg4: memref<128x128xbf16, #tpu.memory_space<vmem>>) attributes {dimension_semantics = [#tpu.dimension_semantics<parallel>], iteration_bounds = array<i64: 1>, scalar_prefetch = 0 : i64, scratch_operands = 0 : i64, tpu.core_type = #tpu.core_type<tc>, window_params = [{transform_indices = @transform_0, window_bounds = array<i64: 4, 128, 1152>}, {pipeline_mode = #tpu.pipeline_mode<synchronous>, transform_indices = @transform_1, window_bounds = array<i64: 1152, 128>}, {pipeline_mode = #tpu.pipeline_mode<synchronous>, transform_indices = @transform_2, window_bounds = array<i64: 1, 128>}, {transform_indices = @transform_3, window_bounds = array<i64: 128, 128>}]} {
    %c0 = arith.constant 0 : index
    %c0_0 = arith.constant 0 : index
    %c0_1 = arith.constant 0 : index
    %0 = vector.load %arg1[%c0, %c0_0, %c0_1] : memref<4x128x1152xbf16, #tpu.memory_space<vmem>>, vector<4x128x1152xbf16>
    %1 = vector.shape_cast %0 : vector<4x128x1152xbf16> to vector<512x1152xbf16>
    %c0_2 = arith.constant 0 : index
    %c0_3 = arith.constant 0 : index
    %2 = vector.load %arg2[%c0_2, %c0_3] : memref<1152x128xbf16, #tpu.memory_space<vmem>>, vector<1152x128xbf16>
    %cst = arith.constant dense<0.000000e+00> : vector<512x128xf32>
    %3 = tpu.matmul %1, %2, %cst {dimension_numbers = #tpu.dot_dimension_numbers<[1], [0], [0], [1], [0, 0, 1, 1], [], []>} : vector<512x1152xbf16>, vector<1152x128xbf16>, vector<512x128xf32> -> vector<512x128xf32>
    %4 = vector.extract_strided_slice %3 {offsets = [0, 0], sizes = [128, 128], strides = [1, 1]} : vector<512x128xf32> to vector<128x128xf32>
    %5 = vector.extract_strided_slice %3 {offsets = [128, 0], sizes = [128, 128], strides = [1, 1]} : vector<512x128xf32> to vector<128x128xf32>
    %6 = arith.maximumf %4, %5 : vector<128x128xf32>
    %7 = vector.extract_strided_slice %3 {offsets = [256, 0], sizes = [128, 128], strides = [1, 1]} : vector<512x128xf32> to vector<128x128xf32>
    %8 = vector.extract_strided_slice %3 {offsets = [384, 0], sizes = [128, 128], strides = [1, 1]} : vector<512x128xf32> to vector<128x128xf32>
    %9 = arith.maximumf %7, %8 : vector<128x128xf32>
    %10 = arith.maximumf %6, %9 : vector<128x128xf32>
    %c0_4 = arith.constant 0 : index
    %c0_5 = arith.constant 0 : index
    %11 = vector.load %arg3[%c0_4, %c0_5] : memref<1x128xf32, #tpu.memory_space<vmem>>, vector<1x128xf32>
    %12 = vector.broadcast %11 : vector<1x128xf32> to vector<128x128xf32>
    %13 = arith.addf %10, %12 : vector<128x128xf32>
    %cst_6 = arith.constant 0.000000e+00 : f32
    %14 = vector.broadcast %cst_6 : f32 to vector<128x128xf32>
    %15 = arith.maximumf %13, %14 : vector<128x128xf32>
    %16 = arith.truncf %15 : vector<128x128xf32> to vector<128x128xbf16>
    %c0_7 = arith.constant 0 : index
    %c0_8 = arith.constant 0 : index
    %17 = vector.load %arg4[%c0_7, %c0_8] : memref<128x128xbf16, #tpu.memory_space<vmem>>, vector<128x128xbf16>
    tpu.vector_store %arg4[%c0_7, %c0_8], %16 {strides = array<i32>} : memref<128x128xbf16, #tpu.memory_space<vmem>>, vector<128x128xbf16>,
    return
  }
  func.func @transform_0(%arg0: i32) -> (i32, i32, i32) {
    %c0_i32 = arith.constant 0 : i32
    %c0_i32_0 = arith.constant 0 : i32
    %c0_i32_1 = arith.constant 0 : i32
    return %c0_i32, %arg0, %c0_i32_0 : i32, i32, i32
  }
  func.func @transform_1(%arg0: i32) -> (i32, i32) {
    %c0_i32 = arith.constant 0 : i32
    %c0_i32_0 = arith.constant 0 : i32
    %c0_i32_1 = arith.constant 0 : i32
    return %c0_i32, %c0_i32_0 : i32, i32
  }
  func.func @transform_2(%arg0: i32) -> (i32, i32) {
    %c0_i32 = arith.constant 0 : i32
    %c0_i32_0 = arith.constant 0 : i32
    %c0_i32_1 = arith.constant 0 : i32
    return %c0_i32, %c0_i32_0 : i32, i32
  }
  func.func @transform_3(%arg0: i32) -> (i32, i32) {
    %c0_i32 = arith.constant 0 : i32
    %c0_i32_0 = arith.constant 0 : i32
    return %arg0, %c0_i32 : i32, i32
  }
}

module attributes {stable_mosaic.version = 11 : i64} {
  func.func @_conv_pool_kernel(%arg0: i32, %arg1: memref<4x32x1152xbf16, #tpu.memory_space<vmem>>, %arg2: memref<1152x128xbf16, #tpu.memory_space<vmem>>, %arg3: memref<1x128xf32, #tpu.memory_space<vmem>>, %arg4: memref<32x128xbf16, #tpu.memory_space<vmem>>) attributes {dimension_semantics = [#tpu.dimension_semantics<parallel>], iteration_bounds = array<i64: 1>, scalar_prefetch = 0 : i64, scratch_operands = 0 : i64, tpu.core_type = #tpu.core_type<tc>, window_params = [{transform_indices = @transform_0, window_bounds = array<i64: 4, 32, 1152>}, {pipeline_mode = #tpu.pipeline_mode<synchronous>, transform_indices = @transform_1, window_bounds = array<i64: 1152, 128>}, {pipeline_mode = #tpu.pipeline_mode<synchronous>, transform_indices = @transform_2, window_bounds = array<i64: 1, 128>}, {transform_indices = @transform_3, window_bounds = array<i64: 32, 128>}]} {
    %c0 = arith.constant 0 : index
    %c0_0 = arith.constant 0 : index
    %c0_1 = arith.constant 0 : index
    %0 = vector.load %arg1[%c0, %c0_0, %c0_1] : memref<4x32x1152xbf16, #tpu.memory_space<vmem>>, vector<4x32x1152xbf16>
    %1 = vector.shape_cast %0 : vector<4x32x1152xbf16> to vector<128x1152xbf16>
    %c0_2 = arith.constant 0 : index
    %c0_3 = arith.constant 0 : index
    %2 = vector.load %arg2[%c0_2, %c0_3] : memref<1152x128xbf16, #tpu.memory_space<vmem>>, vector<1152x128xbf16>
    %cst = arith.constant dense<0.000000e+00> : vector<128x128xf32>
    %3 = tpu.matmul %1, %2, %cst {dimension_numbers = #tpu.dot_dimension_numbers<[1], [0], [0], [1], [0, 0, 1, 1], [], []>} : vector<128x1152xbf16>, vector<1152x128xbf16>, vector<128x128xf32> -> vector<128x128xf32>
    %4 = vector.extract_strided_slice %3 {offsets = [0, 0], sizes = [32, 128], strides = [1, 1]} : vector<128x128xf32> to vector<32x128xf32>
    %5 = vector.extract_strided_slice %3 {offsets = [32, 0], sizes = [32, 128], strides = [1, 1]} : vector<128x128xf32> to vector<32x128xf32>
    %6 = arith.maximumf %4, %5 : vector<32x128xf32>
    %7 = vector.extract_strided_slice %3 {offsets = [64, 0], sizes = [32, 128], strides = [1, 1]} : vector<128x128xf32> to vector<32x128xf32>
    %8 = vector.extract_strided_slice %3 {offsets = [96, 0], sizes = [32, 128], strides = [1, 1]} : vector<128x128xf32> to vector<32x128xf32>
    %9 = arith.maximumf %7, %8 : vector<32x128xf32>
    %10 = arith.maximumf %6, %9 : vector<32x128xf32>
    %c0_4 = arith.constant 0 : index
    %c0_5 = arith.constant 0 : index
    %11 = vector.load %arg3[%c0_4, %c0_5] : memref<1x128xf32, #tpu.memory_space<vmem>>, vector<1x128xf32>
    %12 = vector.broadcast %11 : vector<1x128xf32> to vector<32x128xf32>
    %13 = arith.addf %10, %12 : vector<32x128xf32>
    %cst_6 = arith.constant 0.000000e+00 : f32
    %14 = vector.broadcast %cst_6 : f32 to vector<32x128xf32>
    %15 = arith.maximumf %13, %14 : vector<32x128xf32>
    %16 = arith.truncf %15 : vector<32x128xf32> to vector<32x128xbf16>
    %c0_7 = arith.constant 0 : index
    %c0_8 = arith.constant 0 : index
    %17 = vector.load %arg4[%c0_7, %c0_8] : memref<32x128xbf16, #tpu.memory_space<vmem>>, vector<32x128xbf16>
    tpu.vector_store %arg4[%c0_7, %c0_8], %16 {strides = array<i32>} : memref<32x128xbf16, #tpu.memory_space<vmem>>, vector<32x128xbf16>,
    return
  }
  func.func @transform_0(%arg0: i32) -> (i32, i32, i32) {
    %c0_i32 = arith.constant 0 : i32
    %c0_i32_0 = arith.constant 0 : i32
    %c0_i32_1 = arith.constant 0 : i32
    return %c0_i32, %arg0, %c0_i32_0 : i32, i32, i32
  }
  func.func @transform_1(%arg0: i32) -> (i32, i32) {
    %c0_i32 = arith.constant 0 : i32
    %c0_i32_0 = arith.constant 0 : i32
    %c0_i32_1 = arith.constant 0 : i32
    return %c0_i32, %c0_i32_0 : i32, i32
  }
  func.func @transform_2(%arg0: i32) -> (i32, i32) {
    %c0_i32 = arith.constant 0 : i32
    %c0_i32_0 = arith.constant 0 : i32
    %c0_i32_1 = arith.constant 0 : i32
    return %c0_i32, %c0_i32_0 : i32, i32
  }
  func.func @transform_3(%arg0: i32) -> (i32, i32) {
    %c0_i32 = arith.constant 0 : i32
    %c0_i32_0 = arith.constant 0 : i32
    return %arg0, %c0_i32 : i32, i32
  }
}

module attributes {stable_mosaic.version = 11 : i64} {
  func.func @_classifier_kernel(%arg0: memref<16x1152xbf16, #tpu.memory_space<vmem>>, %arg1: memref<1152x512xbf16, #tpu.memory_space<vmem>>, %arg2: memref<1x512xf32, #tpu.memory_space<vmem>>, %arg3: memref<512x512xbf16, #tpu.memory_space<vmem>>, %arg4: memref<1x512xf32, #tpu.memory_space<vmem>>, %arg5: memref<512x128xbf16, #tpu.memory_space<vmem>>, %arg6: memref<1x128xf32, #tpu.memory_space<vmem>>, %arg7: memref<16x128xf32, #tpu.memory_space<vmem>>) attributes {dimension_semantics = [], scalar_prefetch = 0 : i64, scratch_operands = 0 : i64, tpu.core_type = #tpu.core_type<tc>} {
    %c0 = arith.constant 0 : index
    %c0_0 = arith.constant 0 : index
    %0 = vector.load %arg0[%c0, %c0_0] : memref<16x1152xbf16, #tpu.memory_space<vmem>>, vector<16x1152xbf16>
    %c0_1 = arith.constant 0 : index
    %c0_2 = arith.constant 0 : index
    %1 = vector.load %arg1[%c0_1, %c0_2] : memref<1152x512xbf16, #tpu.memory_space<vmem>>, vector<1152x512xbf16>
    %cst = arith.constant dense<0.000000e+00> : vector<16x512xf32>
    %2 = tpu.matmul %0, %1, %cst {dimension_numbers = #tpu.dot_dimension_numbers<[1], [0], [0], [1], [0, 0, 1, 1], [], []>} : vector<16x1152xbf16>, vector<1152x512xbf16>, vector<16x512xf32> -> vector<16x512xf32>
    %c0_3 = arith.constant 0 : index
    %c0_4 = arith.constant 0 : index
    %3 = vector.load %arg2[%c0_3, %c0_4] : memref<1x512xf32, #tpu.memory_space<vmem>>, vector<1x512xf32>
    %4 = vector.broadcast %3 : vector<1x512xf32> to vector<16x512xf32>
    %5 = arith.addf %2, %4 : vector<16x512xf32>
    %cst_5 = arith.constant 0.000000e+00 : f32
    %6 = vector.broadcast %cst_5 : f32 to vector<16x512xf32>
    %7 = arith.maximumf %5, %6 : vector<16x512xf32>
    %8 = arith.truncf %7 : vector<16x512xf32> to vector<16x512xbf16>
    %c0_6 = arith.constant 0 : index
    %c0_7 = arith.constant 0 : index
    %9 = vector.load %arg3[%c0_6, %c0_7] : memref<512x512xbf16, #tpu.memory_space<vmem>>, vector<512x512xbf16>
    %cst_8 = arith.constant dense<0.000000e+00> : vector<16x512xf32>
    %10 = tpu.matmul %8, %9, %cst_8 {dimension_numbers = #tpu.dot_dimension_numbers<[1], [0], [0], [1], [0, 0, 1, 1], [], []>} : vector<16x512xbf16>, vector<512x512xbf16>, vector<16x512xf32> -> vector<16x512xf32>
    %c0_9 = arith.constant 0 : index
    %c0_10 = arith.constant 0 : index
    %11 = vector.load %arg4[%c0_9, %c0_10] : memref<1x512xf32, #tpu.memory_space<vmem>>, vector<1x512xf32>
    %12 = vector.broadcast %11 : vector<1x512xf32> to vector<16x512xf32>
    %13 = arith.addf %10, %12 : vector<16x512xf32>
    %cst_11 = arith.constant 0.000000e+00 : f32
    %14 = vector.broadcast %cst_11 : f32 to vector<16x512xf32>
    %15 = arith.maximumf %13, %14 : vector<16x512xf32>
    %16 = arith.truncf %15 : vector<16x512xf32> to vector<16x512xbf16>
    %c0_12 = arith.constant 0 : index
    %c0_13 = arith.constant 0 : index
    %17 = vector.load %arg5[%c0_12, %c0_13] : memref<512x128xbf16, #tpu.memory_space<vmem>>, vector<512x128xbf16>
    %cst_14 = arith.constant dense<0.000000e+00> : vector<16x128xf32>
    %18 = tpu.matmul %16, %17, %cst_14 {dimension_numbers = #tpu.dot_dimension_numbers<[1], [0], [0], [1], [0, 0, 1, 1], [], []>} : vector<16x512xbf16>, vector<512x128xbf16>, vector<16x128xf32> -> vector<16x128xf32>
    %c0_15 = arith.constant 0 : index
    %c0_16 = arith.constant 0 : index
    %19 = vector.load %arg6[%c0_15, %c0_16] : memref<1x128xf32, #tpu.memory_space<vmem>>, vector<1x128xf32>
    %20 = vector.broadcast %19 : vector<1x128xf32> to vector<16x128xf32>
    %21 = arith.addf %18, %20 : vector<16x128xf32>
    %c0_17 = arith.constant 0 : index
    %c0_18 = arith.constant 0 : index
    %22 = vector.load %arg7[%c0_17, %c0_18] : memref<16x128xf32, #tpu.memory_space<vmem>>, vector<16x128xf32>
    tpu.vector_store %arg7[%c0_17, %c0_18], %21 {strides = array<i32>} : memref<16x128xf32, #tpu.memory_space<vmem>>, vector<16x128xf32>,
    return
  }
}

</mosaic_0001>

<llo_original>
// kernel: alexnet_forward.4
$region0: #{alexnet_forward.4}
  #allocation0 [shape = 'u32[]', space=smem, size = 0x4, offset = 0x4, fixed_abs, tag = 'smem constant byte address 0x4 - core index']
  #allocation1 [shape = 'u32[144,128]{1,0:T(1,128)}', space=vmem, size = 0x12000, scoped, tag = 'internal scratch']
  %s0 = inlined_call_operand.vmem [shape: bf16[4,656,128], index: 0, kind: input, shape index: {}]
  %s1 = inlined_call_operand.vmem [shape: bf16[128,128], index: 1, kind: input, shape index: {}]
  %s2 = inlined_call_operand.vmem [shape: f32[1,128], index: 2, kind: input, shape index: {}]
  %s3 = inlined_call_operand.vmem [shape: bf16[656,128], index: 3, kind: output, shape index: {}]
  %s4 = sld [smem:[#allocation0]]
  $region22: #{alexnet_forward.4} parent=0
    _
  %s6 = ssub.s32 1, %s4
  %s7 = scalar_select 0, %s6, %s4
  // Predicated region
  $region2: #{alexnet_forward.4} parent=0 // pred_check
    _
  $region3: #{alexnet_forward.4} parent=0 // pred_check_branch
    %9 = sbr.rel (0) target = $region5
  $region4: #{alexnet_forward.4} parent=0 // pred_region
    _
  $region5: #{alexnet_forward.4} parent=0 // pred_fallthru
    _
  // Predicated region
  $region6: #{alexnet_forward.4} parent=0 // pred_check
    _
  $region7: #{alexnet_forward.4} parent=0 // pred_check_branch
    %11 = sbr.rel (0) target = $region9
  $region8: #{alexnet_forward.4} parent=0 // pred_region
    _
  $region9: #{alexnet_forward.4} parent=0 // pred_fallthru
    _
  // Predicated region
  $region10: #{alexnet_forward.4} parent=0 // pred_check
    _
  $region11: #{alexnet_forward.4} parent=0 // pred_check_branch
    %13 = sbr.rel (0) target = $region13
  $region12: #{alexnet_forward.4} parent=0 // pred_region
    _
  $region13: #{alexnet_forward.4} parent=0 // pred_fallthru
    _
  %v15 = vld [vmem:[%s0] sm:$0xf]
  %v16 = vld [vmem:[%s0 + $0x4] sm:$0xf]
  %v17 = vld [vmem:[%s0 + $0x8] sm:$0xf]
  %v18 = vld [vmem:[%s0 + $0xc] sm:$0xf]
  %v19 = vld [vmem:[%s0 + $0x10] sm:$0xf]
  %v20 = vld [vmem:[%s0 + $0x14] sm:$0xf]
  %v21 = vld [vmem:[%s0 + $0x18] sm:$0xf]
  %v22 = vld [vmem:[%s0 + $0x1c] sm:$0xf]
  %v23 = vld [vmem:[%s0 + $0x20] sm:$0xf]
  %v24 = vld [vmem:[%s0 + $0x24] sm:$0xf]
  %v25 = vld [vmem:[%s0 + $0x28] sm:$0xf]
  %v26 = vld [vmem:[%s0 + $0x2c] sm:$0xf]
  %v27 = vld [vmem:[%s0 + $0x30] sm:$0xf]
  %v28 = vld [vmem:[%s0 + $0x34] sm:$0xf]
  %v29 = vld [vmem:[%s0 + $0x38] sm:$0xf]
  %v30 = vld [vmem:[%s0 + $0x3c] sm:$0xf]
  %v31 = vld [vmem:[%s0 + $0x40] sm:$0xf]
  %v32 = vld [vmem:[%s0 + $0x44] sm:$0xf]
  %v33 = vld [vmem:[%s0 + $0x48] sm:$0xf]
  %v34 = vld [vmem:[%s0 + $0x4c] sm:$0xf]
  %v35 = vld [vmem:[%s0 + $0x50] sm:$0xf]
  %v36 = vld [vmem:[%s0 + $0x54] sm:$0xf]
  %v37 = vld [vmem:[%s0 + $0x58] sm:$0xf]
  %v38 = vld [vmem:[%s0 + $0x5c] sm:$0xf]
  %v39 = vld [vmem:[%s0 + $0x60] sm:$0xf]
  %v40 = vld [vmem:[%s0 + $0x64] sm:$0xf]
  %v41 = vld [vmem:[%s0 + $0x68] sm:$0xf]
  %v42 = vld [vmem:[%s0 + $0x6c] sm:$0xf]
  %v43 = vld [vmem:[%s0 + $0x70] sm:$0xf]
  %v44 = vld [vmem:[%s0 + $0x74] sm:$0xf]
  %v45 = vld [vmem:[%s0 + $0x78] sm:$0xf]
  %v46 = vld [vmem:[%s0 + $0x7c] sm:$0xf]
  %v47 = vld [vmem:[%s0 + $0x80] sm:$0xf]
  %v48 = vld [vmem:[%s0 + $0x84] sm:$0xf]
  %v49 = vld [vmem:[%s0 + $0x88] sm:$0xf]
  %v50 = vld [vmem:[%s0 + $0x8c] sm:$0xf]
  %v51 = vld [vmem:[%s0 + $0x90] sm:$0xf]
  %v52 = vld [vmem:[%s0 + $0x94] sm:$0xf]
  %v53 = vld [vmem:[%s0 + $0x98] sm:$0xf]
  %v54 = vld [vmem:[%s0 + $0x9c] sm:$0xf]
  %v55 = vld [vmem:[%s0 + $0xa0] sm:$0xf]
  %v56 = vld [vmem:[%s0 + $0xa4] sm:$0xf]
  %v57 = vld [vmem:[%s0 + $0xa8] sm:$0xf]
  %v58 = vld [vmem:[%s0 + $0xac] sm:$0xf]
  %v59 = vld [vmem:[%s0 + $0xb0] sm:$0xf]
  %v60 = vld [vmem:[%s0 + $0xb4] sm:$0xf]
  %v61 = vld [vmem:[%s0 + $0xb8] sm:$0xf]
  %v62 = vld [vmem:[%s0 + $0xbc] sm:$0xf]
  %v63 = vld [vmem:[%s0 + $0xc0] sm:$0xf]
  %v64 = vld [vmem:[%s0 + $0xc4] sm:$0xf]
  %v65 = vld [vmem:[%s0 + $0xc8] sm:$0xf]
  %v66 = vld [vmem:[%s0 + $0xcc] sm:$0xf]
  %v67 = vld [vmem:[%s0 + $0xd0] sm:$0xf]
  %v68 = vld [vmem:[%s0 + $0xd4] sm:$0xf]
  %v69 = vld [vmem:[%s0 + $0xd8] sm:$0xf]
  %v70 = vld [vmem:[%s0 + $0xdc] sm:$0xf]
  %v71 = vld [vmem:[%s0 + $0xe0] sm:$0xf]
  %v72 = vld [vmem:[%s0 + $0xe4] sm:$0xf]
  %v73 = vld [vmem:[%s0 + $0xe8] sm:$0xf]
  %v74 = vld [vmem:[%s0 + $0xec] sm:$0xf]
  %v75 = vld [vmem:[%s0 + $0xf0] sm:$0xf]
  %v76 = vld [vmem:[%s0 + $0xf4] sm:$0xf]
  %v77 = vld [vmem:[%s0 + $0xf8] sm:$0xf]
  %v78 = vld [vmem:[%s0 + $0xfc] sm:$0xf]
  %v79 = vld [vmem:[%s0 + $0x100] sm:$0xf]
  %v80 = vld [vmem:[%s0 + $0x104] sm:$0xf]
  %v81 = vld [vmem:[%s0 + $0x108] sm:$0xf]
  %v82 = vld [vmem:[%s0 + $0x10c] sm:$0xf]
  %v83 = vld [vmem:[%s0 + $0x110] sm:$0xf]
  %v84 = vld [vmem:[%s0 + $0x114] sm:$0xf]
  %v85 = vld [vmem:[%s0 + $0x118] sm:$0xf]
  %v86 = vld [vmem:[%s0 + $0x11c] sm:$0xf]
  %v87 = vld [vmem:[%s0 + $0x120] sm:$0xf]
  %v88 = vld [vmem:[%s0 + $0x124] sm:$0xf]
  %v89 = vld [vmem:[%s0 + $0x128] sm:$0xf]
  %v90 = vld [vmem:[%s0 + $0x12c] sm:$0xf]
  %v91 = vld [vmem:[%s0 + $0x130] sm:$0xf]
  %v92 = vld [vmem:[%s0 + $0x134] sm:$0xf]
  %v93 = vld [vmem:[%s0 + $0x138] sm:$0xf]
  %v94 = vld [vmem:[%s0 + $0x13c] sm:$0xf]
  %v95 = vld [vmem:[%s0 + $0x140] sm:$0xf]
  %v96 = vld [vmem:[%s0 + $0x144] sm:$0xf]
  %v97 = vld [vmem:[%s0 + $0x148] sm:$0xf]
  %v98 = vld [vmem:[%s0 + $0x14c] sm:$0xf]
  %v99 = vld [vmem:[%s0 + $0x150] sm:$0xf]
  %v100 = vld [vmem:[%s0 + $0x154] sm:$0xf]
  %v101 = vld [vmem:[%s0 + $0x158] sm:$0xf]
  %v102 = vld [vmem:[%s0 + $0x15c] sm:$0xf]
  %v103 = vld [vmem:[%s0 + $0x160] sm:$0xf]
  %v104 = vld [vmem:[%s0 + $0x164] sm:$0xf]
  %v105 = vld [vmem:[%s0 + $0x168] sm:$0xf]
  %v106 = vld [vmem:[%s0 + $0x16c] sm:$0xf]
  %v107 = vld [vmem:[%s0 + $0x170] sm:$0xf]
  %v108 = vld [vmem:[%s0 + $0x174] sm:$0xf]
  %v109 = vld [vmem:[%s0 + $0x178] sm:$0xf]
  %v110 = vld [vmem:[%s0 + $0x17c] sm:$0xf]
  %v111 = vld [vmem:[%s0 + $0x180] sm:$0xf]
  %v112 = vld [vmem:[%s0 + $0x184] sm:$0xf]
  %v113 = vld [vmem:[%s0 + $0x188] sm:$0xf]
  %v114 = vld [vmem:[%s0 + $0x18c] sm:$0xf]
  %v115 = vld [vmem:[%s0 + $0x190] sm:$0xf]
  %v116 = vld [vmem:[%s0 + $0x194] sm:$0xf]
  %v117 = vld [vmem:[%s0 + $0x198] sm:$0xf]
  %v118 = vld [vmem:[%s0 + $0x19c] sm:$0xf]
  %v119 = vld [vmem:[%s0 + $0x1a0] sm:$0xf]
  %v120 = vld [vmem:[%s0 + $0x1a4] sm:$0xf]
  %v121 = vld [vmem:[%s0 + $0x1a8] sm:$0xf]
  %v122 = vld [vmem:[%s0 + $0x1ac] sm:$0xf]
  %v123 = vld [vmem:[%s0 + $0x1b0] sm:$0xf]
  %v124 = vld [vmem:[%s0 + $0x1b4] sm:$0xf]
  %v125 = vld [vmem:[%s0 + $0x1b8] sm:$0xf]
  %v126 = vld [vmem:[%s0 + $0x1bc] sm:$0xf]
  %v127 = vld [vmem:[%s0 + $0x1c0] sm:$0xf]
  %v128 = vld [vmem:[%s0 + $0x1c4] sm:$0xf]
  %v129 = vld [vmem:[%s0 + $0x1c8] sm:$0xf]
  %v130 = vld [vmem:[%s0 + $0x1cc] sm:$0xf]
  %v131 = vld [vmem:[%s0 + $0x1d0] sm:$0xf]
  %v132 = vld [vmem:[%s0 + $0x1d4] sm:$0xf]
  %v133 = vld [vmem:[%s0 + $0x1d8] sm:$0xf]
  %v134 = vld [vmem:[%s0 + $0x1dc] sm:$0xf]
  %v135 = vld [vmem:[%s0 + $0x1e0] sm:$0xf]
  %v136 = vld [vmem:[%s0 + $0x1e4] sm:$0xf]
  %v137 = vld [vmem:[%s0 + $0x1e8] sm:$0xf]
  %v138 = vld [vmem:[%s0 + $0x1ec] sm:$0xf]
  %v139 = vld [vmem:[%s0 + $0x1f0] sm:$0xf]
  %v140 = vld [vmem:[%s0 + $0x1f4] sm:$0xf]
  %v141 = vld [vmem:[%s0 + $0x1f8] sm:$0xf]
  %v142 = vld [vmem:[%s0 + $0x1fc] sm:$0xf]
  %v143 = vld [vmem:[%s0 + $0x200] sm:$0xf]
  %v144 = vld [vmem:[%s0 + $0x204] sm:$0xf]
  %v145 = vld [vmem:[%s0 + $0x208] sm:$0xf]
  %v146 = vld [vmem:[%s0 + $0x20c] sm:$0xf]
  %v147 = vld [vmem:[%s0 + $0x210] sm:$0xf]
  %v148 = vld [vmem:[%s0 + $0x214] sm:$0xf]
  %v149 = vld [vmem:[%s0 + $0x218] sm:$0xf]
  %v150 = vld [vmem:[%s0 + $0x21c] sm:$0xf]
  %v151 = vld [vmem:[%s0 + $0x220] sm:$0xf]
  %v152 = vld [vmem:[%s0 + $0x224] sm:$0xf]
  %v153 = vld [vmem:[%s0 + $0x228] sm:$0xf]
  %v154 = vld [vmem:[%s0 + $0x22c] sm:$0xf]
  %v155 = vld [vmem:[%s0 + $0x230] sm:$0xf]
  %v156 = vld [vmem:[%s0 + $0x234] sm:$0xf]
  %v157 = vld [vmem:[%s0 + $0x238] sm:$0xf]
  %v158 = vld [vmem:[%s0 + $0x23c] sm:$0xf]
  %v159 = vld [vmem:[%s0 + $0x240] sm:$0xf]
  %v160 = vld [vmem:[%s0 + $0x244] sm:$0xf]
  %v161 = vld [vmem:[%s0 + $0x248] sm:$0xf]
  %v162 = vld [vmem:[%s0 + $0x24c] sm:$0xf]
  %v163 = vld [vmem:[%s0 + $0x250] sm:$0xf]
  %v164 = vld [vmem:[%s0 + $0x254] sm:$0xf]
  %v165 = vld [vmem:[%s0 + $0x258] sm:$0xf]
  %v166 = vld [vmem:[%s0 + $0x25c] sm:$0xf]
  %v167 = vld [vmem:[%s0 + $0x260] sm:$0xf]
  %v168 = vld [vmem:[%s0 + $0x264] sm:$0xf]
  %v169 = vld [vmem:[%s0 + $0x268] sm:$0xf]
  %v170 = vld [vmem:[%s0 + $0x26c] sm:$0xf]
  %v171 = vld [vmem:[%s0 + $0x270] sm:$0xf]
  %v172 = vld [vmem:[%s0 + $0x274] sm:$0xf]
  %v173 = vld [vmem:[%s0 + $0x278] sm:$0xf]
  %v174 = vld [vmem:[%s0 + $0x27c] sm:$0xf]
  %v175 = vld [vmem:[%s0 + $0x280] sm:$0xf]
  %v176 = vld [vmem:[%s0 + $0x284] sm:$0xf]
  %v177 = vld [vmem:[%s0 + $0x288] sm:$0xf]
  %v178 = vld [vmem:[%s0 + $0x28c] sm:$0xf]
  %v179 = vld [vmem:[%s0 + $0x290] sm:$0xf]
  %v180 = vld [vmem:[%s0 + $0x294] sm:$0xf]
  %v181 = vld [vmem:[%s0 + $0x298] sm:$0xf]
  %v182 = vld [vmem:[%s0 + $0x29c] sm:$0xf]
  %v183 = vld [vmem:[%s0 + $0x2a0] sm:$0xf]
  %v184 = vld [vmem:[%s0 + $0x2a4] sm:$0xf]
  %v185 = vld [vmem:[%s0 + $0x2a8] sm:$0xf]
  %v186 = vld [vmem:[%s0 + $0x2ac] sm:$0xf]
  %v187 = vld [vmem:[%s0 + $0x2b0] sm:$0xf]
  %v188 = vld [vmem:[%s0 + $0x2b4] sm:$0xf]
  %v189 = vld [vmem:[%s0 + $0x2b8] sm:$0xf]
  %v190 = vld [vmem:[%s0 + $0x2bc] sm:$0xf]
  %v191 = vld [vmem:[%s0 + $0x2c0] sm:$0xf]
  %v192 = vld [vmem:[%s0 + $0x2c4] sm:$0xf]
  %v193 = vld [vmem:[%s0 + $0x2c8] sm:$0xf]
  %v194 = vld [vmem:[%s0 + $0x2cc] sm:$0xf]
  %v195 = vld [vmem:[%s0 + $0x2d0] sm:$0xf]
  %v196 = vld [vmem:[%s0 + $0x2d4] sm:$0xf]
  %v197 = vld [vmem:[%s0 + $0x2d8] sm:$0xf]
  %v198 = vld [vmem:[%s0 + $0x2dc] sm:$0xf]
  %v199 = vld [vmem:[%s0 + $0x2e0] sm:$0xf]
  %v200 = vld [vmem:[%s0 + $0x2e4] sm:$0xf]
  %v201 = vld [vmem:[%s0 + $0x2e8] sm:$0xf]
  %v202 = vld [vmem:[%s0 + $0x2ec] sm:$0xf]
  %v203 = vld [vmem:[%s0 + $0x2f0] sm:$0xf]
  %v204 = vld [vmem:[%s0 + $0x2f4] sm:$0xf]
  %v205 = vld [vmem:[%s0 + $0x2f8] sm:$0xf]
  %v206 = vld [vmem:[%s0 + $0x2fc] sm:$0xf]
  %v207 = vld [vmem:[%s0 + $0x300] sm:$0xf]
  %v208 = vld [vmem:[%s0 + $0x304] sm:$0xf]
  %v209 = vld [vmem:[%s0 + $0x308] sm:$0xf]
  %v210 = vld [vmem:[%s0 + $0x30c] sm:$0xf]
  %v211 = vld [vmem:[%s0 + $0x310] sm:$0xf]
  %v212 = vld [vmem:[%s0 + $0x314] sm:$0xf]
  %v213 = vld [vmem:[%s0 + $0x318] sm:$0xf]
  %v214 = vld [vmem:[%s0 + $0x31c] sm:$0xf]
  %v215 = vld [vmem:[%s0 + $0x320] sm:$0xf]
  %v216 = vld [vmem:[%s0 + $0x324] sm:$0xf]
  %v217 = vld [vmem:[%s0 + $0x328] sm:$0xf]
  %v218 = vld [vmem:[%s0 + $0x32c] sm:$0xf]
  %v219 = vld [vmem:[%s0 + $0x330] sm:$0xf]
  %v220 = vld [vmem:[%s0 + $0x334] sm:$0xf]
  %v221 = vld [vmem:[%s0 + $0x338] sm:$0xf]
  %v222 = vld [vmem:[%s0 + $0x33c] sm:$0xf]
  %v223 = vld [vmem:[%s0 + $0x340] sm:$0xf]
  %v224 = vld [vmem:[%s0 + $0x344] sm:$0xf]
  %v225 = vld [vmem:[%s0 + $0x348] sm:$0xf]
  %v226 = vld [vmem:[%s0 + $0x34c] sm:$0xf]
  %v227 = vld [vmem:[%s0 + $0x350] sm:$0xf]
  %v228 = vld [vmem:[%s0 + $0x354] sm:$0xf]
  %v229 = vld [vmem:[%s0 + $0x358] sm:$0xf]
  %v230 = vld [vmem:[%s0 + $0x35c] sm:$0xf]
  %v231 = vld [vmem:[%s0 + $0x360] sm:$0xf]
  %v232 = vld [vmem:[%s0 + $0x364] sm:$0xf]
  %v233 = vld [vmem:[%s0 + $0x368] sm:$0xf]
  %v234 = vld [vmem:[%s0 + $0x36c] sm:$0xf]
  %v235 = vld [vmem:[%s0 + $0x370] sm:$0xf]
  %v236 = vld [vmem:[%s0 + $0x374] sm:$0xf]
  %v237 = vld [vmem:[%s0 + $0x378] sm:$0xf]
  %v238 = vld [vmem:[%s0 + $0x37c] sm:$0xf]
  %v239 = vld [vmem:[%s0 + $0x380] sm:$0xf]
  %v240 = vld [vmem:[%s0 + $0x384] sm:$0xf]
  %v241 = vld [vmem:[%s0 + $0x388] sm:$0xf]
  %v242 = vld [vmem:[%s0 + $0x38c] sm:$0xf]
  %v243 = vld [vmem:[%s0 + $0x390] sm:$0xf]
  %v244 = vld [vmem:[%s0 + $0x394] sm:$0xf]
  %v245 = vld [vmem:[%s0 + $0x398] sm:$0xf]
  %v246 = vld [vmem:[%s0 + $0x39c] sm:$0xf]
  %v247 = vld [vmem:[%s0 + $0x3a0] sm:$0xf]
  %v248 = vld [vmem:[%s0 + $0x3a4] sm:$0xf]
  %v249 = vld [vmem:[%s0 + $0x3a8] sm:$0xf]
  %v250 = vld [vmem:[%s0 + $0x3ac] sm:$0xf]
  %v251 = vld [vmem:[%s0 + $0x3b0] sm:$0xf]
  %v252 = vld [vmem:[%s0 + $0x3b4] sm:$0xf]
  %v253 = vld [vmem:[%s0 + $0x3b8] sm:$0xf]
  %v254 = vld [vmem:[%s0 + $0x3bc] sm:$0xf]
  %v255 = vld [vmem:[%s0 + $0x3c0] sm:$0xf]
  %v256 = vld [vmem:[%s0 + $0x3c4] sm:$0xf]
  %v257 = vld [vmem:[%s0 + $0x3c8] sm:$0xf]
  %v258 = vld [vmem:[%s0 + $0x3cc] sm:$0xf]
  %v259 = vld [vmem:[%s0 + $0x3d0] sm:$0xf]
  %v260 = vld [vmem:[%s0 + $0x3d4] sm:$0xf]
  %v261 = vld [vmem:[%s0 + $0x3d8] sm:$0xf]
  %v262 = vld [vmem:[%s0 + $0x3dc] sm:$0xf]
  %v263 = vld [vmem:[%s0 + $0x3e0] sm:$0xf]
  %v264 = vld [vmem:[%s0 + $0x3e4] sm:$0xf]
  %v265 = vld [vmem:[%s0 + $0x3e8] sm:$0xf]
  %v266 = vld [vmem:[%s0 + $0x3ec] sm:$0xf]
  %v267 = vld [vmem:[%s0 + $0x3f0] sm:$0xf]
  %v268 = vld [vmem:[%s0 + $0x3f4] sm:$0xf]
  %v269 = vld [vmem:[%s0 + $0x3f8] sm:$0xf]
  %v270 = vld [vmem:[%s0 + $0x3fc] sm:$0xf]
  %v271 = vld [vmem:[%s0 + $0x400] sm:$0xf]
  %v272 = vld [vmem:[%s0 + $0x404] sm:$0xf]
  %v273 = vld [vmem:[%s0 + $0x408] sm:$0xf]
  %v274 = vld [vmem:[%s0 + $0x40c] sm:$0xf]
  %v275 = vld [vmem:[%s0 + $0x410] sm:$0xf]
  %v276 = vld [vmem:[%s0 + $0x414] sm:$0xf]
  %v277 = vld [vmem:[%s0 + $0x418] sm:$0xf]
  %v278 = vld [vmem:[%s0 + $0x41c] sm:$0xf]
  %v279 = vld [vmem:[%s0 + $0x420] sm:$0xf]
  %v280 = vld [vmem:[%s0 + $0x424] sm:$0xf]
  %v281 = vld [vmem:[%s0 + $0x428] sm:$0xf]
  %v282 = vld [vmem:[%s0 + $0x42c] sm:$0xf]
  %v283 = vld [vmem:[%s0 + $0x430] sm:$0xf]
  %v284 = vld [vmem:[%s0 + $0x434] sm:$0xf]
  %v285 = vld [vmem:[%s0 + $0x438] sm:$0xf]
  %v286 = vld [vmem:[%s0 + $0x43c] sm:$0xf]
  %v287 = vld [vmem:[%s0 + $0x440] sm:$0xf]
  %v288 = vld [vmem:[%s0 + $0x444] sm:$0xf]
  %v289 = vld [vmem:[%s0 + $0x448] sm:$0xf]
  %v290 = vld [vmem:[%s0 + $0x44c] sm:$0xf]
  %v291 = vld [vmem:[%s0 + $0x450] sm:$0xf]
  %v292 = vld [vmem:[%s0 + $0x454] sm:$0xf]
  %v293 = vld [vmem:[%s0 + $0x458] sm:$0xf]
  %v294 = vld [vmem:[%s0 + $0x45c] sm:$0xf]
  %v295 = vld [vmem:[%s0 + $0x460] sm:$0xf]
  %v296 = vld [vmem:[%s0 + $0x464] sm:$0xf]
  %v297 = vld [vmem:[%s0 + $0x468] sm:$0xf]
  %v298 = vld [vmem:[%s0 + $0x46c] sm:$0xf]
  %v299 = vld [vmem:[%s0 + $0x470] sm:$0xf]
  %v300 = vld [vmem:[%s0 + $0x474] sm:$0xf]
  %v301 = vld [vmem:[%s0 + $0x478] sm:$0xf]
  %v302 = vld [vmem:[%s0 + $0x47c] sm:$0xf]
  %v303 = vld [vmem:[%s0 + $0x480] sm:$0xf]
  %v304 = vld [vmem:[%s0 + $0x484] sm:$0xf]
  %v305 = vld [vmem:[%s0 + $0x488] sm:$0xf]
  %v306 = vld [vmem:[%s0 + $0x48c] sm:$0xf]
  %v307 = vld [vmem:[%s0 + $0x490] sm:$0xf]
  %v308 = vld [vmem:[%s0 + $0x494] sm:$0xf]
  %v309 = vld [vmem:[%s0 + $0x498] sm:$0xf]
  %v310 = vld [vmem:[%s0 + $0x49c] sm:$0xf]
  %v311 = vld [vmem:[%s0 + $0x4a0] sm:$0xf]
  %v312 = vld [vmem:[%s0 + $0x4a4] sm:$0xf]
  %v313 = vld [vmem:[%s0 + $0x4a8] sm:$0xf]
  %v314 = vld [vmem:[%s0 + $0x4ac] sm:$0xf]
  %v315 = vld [vmem:[%s0 + $0x4b0] sm:$0xf]
  %v316 = vld [vmem:[%s0 + $0x4b4] sm:$0xf]
  %v317 = vld [vmem:[%s0 + $0x4b8] sm:$0xf]
  %v318 = vld [vmem:[%s0 + $0x4bc] sm:$0xf]
  %v319 = vld [vmem:[%s0 + $0x4c0] sm:$0xf]
  %v320 = vld [vmem:[%s0 + $0x4c4] sm:$0xf]
  %v321 = vld [vmem:[%s0 + $0x4c8] sm:$0xf]
  %v322 = vld [vmem:[%s0 + $0x4cc] sm:$0xf]
  %v323 = vld [vmem:[%s0 + $0x4d0] sm:$0xf]
  %v324 = vld [vmem:[%s0 + $0x4d4] sm:$0xf]
  %v325 = vld [vmem:[%s0 + $0x4d8] sm:$0xf]
  %v326 = vld [vmem:[%s0 + $0x4dc] sm:$0xf]
  %v327 = vld [vmem:[%s0 + $0x4e0] sm:$0xf]
  %v328 = vld [vmem:[%s0 + $0x4e4] sm:$0xf]
  %v329 = vld [vmem:[%s0 + $0x4e8] sm:$0xf]
  %v330 = vld [vmem:[%s0 + $0x4ec] sm:$0xf]
  %v331 = vld [vmem:[%s0 + $0x4f0] sm:$0xf]
  %v332 = vld [vmem:[%s0 + $0x4f4] sm:$0xf]
  %v333 = vld [vmem:[%s0 + $0x4f8] sm:$0xf]
  %v334 = vld [vmem:[%s0 + $0x4fc] sm:$0xf]
  %v335 = vld [vmem:[%s0 + $0x500] sm:$0xf]
  %v336 = vld [vmem:[%s0 + $0x504] sm:$0xf]
  %v337 = vld [vmem:[%s0 + $0x508] sm:$0xf]
  %v338 = vld [vmem:[%s0 + $0x50c] sm:$0xf]
  %v339 = vld [vmem:[%s0 + $0x510] sm:$0xf]
  %v340 = vld [vmem:[%s0 + $0x514] sm:$0xf]
  %v341 = vld [vmem:[%s0 + $0x518] sm:$0xf]
  %v342 = vld [vmem:[%s0 + $0x51c] sm:$0xf]
  %v343 = vld [vmem:[%s1] sm:$0xf]
  %v344 = vld [vmem:[%s1 + $0x4] sm:$0xf]
  %v345 = vld [vmem:[%s1 + $0x8] sm:$0xf]
  %v346 = vld [vmem:[%s1 + $0xc] sm:$0xf]
  %v347 = vld [vmem:[%s1 + $0x10] sm:$0xf]
  %v348 = vld [vmem:[%s1 + $0x14] sm:$0xf]
  %v349 = vld [vmem:[%s1 + $0x18] sm:$0xf]
  %v350 = vld [vmem:[%s1 + $0x1c] sm:$0xf]
  %v351 = vld [vmem:[%s1 + $0x20] sm:$0xf]
  %v352 = vld [vmem:[%s1 + $0x24] sm:$0xf]
  %v353 = vld [vmem:[%s1 + $0x28] sm:$0xf]
  %v354 = vld [vmem:[%s1 + $0x2c] sm:$0xf]
  %v355 = vld [vmem:[%s1 + $0x30] sm:$0xf]
  %v356 = vld [vmem:[%s1 + $0x34] sm:$0xf]
  %v357 = vld [vmem:[%s1 + $0x38] sm:$0xf]
  %v358 = vld [vmem:[%s1 + $0x3c] sm:$0xf]
  %v687 = vunpack.c.l.b16 %v15
  %v688 = vunpack.c.l.b16 %v16
  %v689 = vunpack.c.l.b16 %v17
  %v690 = vunpack.c.l.b16 %v18
  %v691 = vunpack.c.l.b16 %v19
  %v692 = vunpack.c.l.b16 %v20
  %v693 = vunpack.c.l.b16 %v21
  %v694 = vunpack.c.l.b16 %v22
  %v695 = vunpack.c.l.b16 %v23
  %v696 = vunpack.c.l.b16 %v24
  %v697 = vunpack.c.l.b16 %v25
  %v698 = vunpack.c.l.b16 %v26
  %v699 = vunpack.c.l.b16 %v27
  %v700 = vunpack.c.l.b16 %v28
  %v701 = vunpack.c.l.b16 %v29
  %v702 = vunpack.c.l.b16 %v30
  %v703 = vunpack.c.l.b16 %v31
  %v704 = vunpack.c.l.b16 %v32
  %v705 = vunpack.c.l.b16 %v33
  %v706 = vunpack.c.l.b16 %v34
  %v707 = vunpack.c.l.b16 %v35
  %v708 = vunpack.c.l.b16 %v36
  %v709 = vunpack.c.l.b16 %v37
  %v710 = vunpack.c.l.b16 %v38
  %v711 = vunpack.c.l.b16 %v39
  %v712 = vunpack.c.l.b16 %v40
  %v713 = vunpack.c.l.b16 %v41
  %v714 = vunpack.c.l.b16 %v42
  %v715 = vunpack.c.l.b16 %v43
  %v716 = vunpack.c.l.b16 %v44
  %v717 = vunpack.c.l.b16 %v45
  %v718 = vunpack.c.l.b16 %v46
  %v719 = vunpack.c.l.b16 %v47
  %v720 = vunpack.c.l.b16 %v48
  %v721 = vunpack.c.l.b16 %v49
  %v722 = vunpack.c.l.b16 %v50
  %v723 = vunpack.c.l.b16 %v51
  %v724 = vunpack.c.l.b16 %v52
  %v725 = vunpack.c.l.b16 %v53
  %v726 = vunpack.c.l.b16 %v54
  %v727 = vunpack.c.l.b16 %v55
  %v728 = vunpack.c.l.b16 %v56
  %v729 = vunpack.c.l.b16 %v57
  %v730 = vunpack.c.l.b16 %v58
  %v731 = vunpack.c.l.b16 %v59
  %v732 = vunpack.c.l.b16 %v60
  %v733 = vunpack.c.l.b16 %v61
  %v734 = vunpack.c.l.b16 %v62
  %v735 = vunpack.c.l.b16 %v63
  %v736 = vunpack.c.l.b16 %v64
  %v737 = vunpack.c.l.b16 %v65
  %v738 = vunpack.c.l.b16 %v66
  %v739 = vunpack.c.l.b16 %v67
  %v740 = vunpack.c.l.b16 %v68
  %v741 = vunpack.c.l.b16 %v69
  %v742 = vunpack.c.l.b16 %v70
  %v743 = vunpack.c.l.b16 %v71
  %v744 = vunpack.c.l.b16 %v72
  %v745 = vunpack.c.l.b16 %v73
  %v746 = vunpack.c.l.b16 %v74
  %v747 = vunpack.c.l.b16 %v75
  %v748 = vunpack.c.l.b16 %v76
  %v749 = vunpack.c.l.b16 %v77
  %v750 = vunpack.c.l.b16 %v78
  %v751 = vunpack.c.l.b16 %v79
  %v752 = vunpack.c.l.b16 %v80
  %v753 = vunpack.c.l.b16 %v81
  %v754 = vunpack.c.l.b16 %v82
  %v755 = vunpack.c.l.b16 %v83
  %v756 = vunpack.c.l.b16 %v84
  %v757 = vunpack.c.l.b16 %v85
  %v758 = vunpack.c.l.b16 %v86
  %v759 = vunpack.c.l.b16 %v87
  %v760 = vunpack.c.l.b16 %v88
  %v761 = vunpack.c.l.b16 %v89
  %v762 = vunpack.c.l.b16 %v90
  %v763 = vunpack.c.l.b16 %v91
  %v764 = vunpack.c.l.b16 %v92
  %v765 = vunpack.c.l.b16 %v93
  %v766 = vunpack.c.l.b16 %v94
  %v767 = vunpack.c.l.b16 %v95
  %v768 = vunpack.c.l.b16 %v96
  %v769 = vunpack.c.l.b16 %v97
  %v770 = vunpack.c.l.b16 %v98
  %v771 = vunpack.c.l.b16 %v99
  %v772 = vunpack.c.l.b16 %v100
  %v773 = vunpack.c.l.b16 %v101
  %v774 = vunpack.c.l.b16 %v102
  %v775 = vunpack.c.l.b16 %v103
  %v776 = vunpack.c.l.b16 %v104
  %v777 = vunpack.c.l.b16 %v105
  %v778 = vunpack.c.l.b16 %v106
  %v779 = vunpack.c.l.b16 %v107
  %v780 = vunpack.c.l.b16 %v108
  %v781 = vunpack.c.l.b16 %v109
  %v782 = vunpack.c.l.b16 %v110
  %v783 = vunpack.c.l.b16 %v111
  %v784 = vunpack.c.l.b16 %v112
  %v785 = vunpack.c.l.b16 %v113
  %v786 = vunpack.c.l.b16 %v114
  %v787 = vunpack.c.l.b16 %v115
  %v788 = vunpack.c.l.b16 %v116
  %v789 = vunpack.c.l.b16 %v117
  %v790 = vunpack.c.l.b16 %v118
  %v791 = vunpack.c.l.b16 %v119
  %v792 = vunpack.c.l.b16 %v120
  %v793 = vunpack.c.l.b16 %v121
  %v794 = vunpack.c.l.b16 %v122
  %v795 = vunpack.c.l.b16 %v123
  %v796 = vunpack.c.l.b16 %v124
  %v797 = vunpack.c.l.b16 %v125
  %v798 = vunpack.c.l.b16 %v126
  %v799 = vunpack.c.l.b16 %v127
  %v800 = vunpack.c.l.b16 %v128
  %v801 = vunpack.c.l.b16 %v129
  %v802 = vunpack.c.l.b16 %v130
  %v803 = vunpack.c.l.b16 %v131
  %v804 = vunpack.c.l.b16 %v132
  %v805 = vunpack.c.l.b16 %v133
  %v806 = vunpack.c.l.b16 %v134
  %v807 = vunpack.c.l.b16 %v135
  %v808 = vunpack.c.l.b16 %v136
  %v809 = vunpack.c.l.b16 %v137
  %v810 = vunpack.c.l.b16 %v138
  %v811 = vunpack.c.l.b16 %v139
  %v812 = vunpack.c.l.b16 %v140
  %v813 = vunpack.c.l.b16 %v141
  %v814 = vunpack.c.l.b16 %v142
  %v815 = vunpack.c.l.b16 %v143
  %v816 = vunpack.c.l.b16 %v144
  %v817 = vunpack.c.l.b16 %v145
  %v818 = vunpack.c.l.b16 %v146
  %v819 = vunpack.c.l.b16 %v147
  %v820 = vunpack.c.l.b16 %v148
  %v821 = vunpack.c.l.b16 %v149
  %v822 = vunpack.c.l.b16 %v150
  %v823 = vunpack.c.l.b16 %v151
  %v824 = vunpack.c.l.b16 %v152
  %v825 = vunpack.c.l.b16 %v153
  %v826 = vunpack.c.l.b16 %v154
  %v827 = vunpack.c.l.b16 %v155
  %v828 = vunpack.c.l.b16 %v156
  %v829 = vunpack.c.l.b16 %v157
  %v830 = vunpack.c.l.b16 %v158
  %v831 = vunpack.c.l.b16 %v159
  %v832 = vunpack.c.l.b16 %v160
  %v833 = vunpack.c.l.b16 %v161
  %v834 = vunpack.c.l.b16 %v162
  %v835 = vunpack.c.l.b16 %v163
  %v836 = vunpack.c.l.b16 %v164
  %v837 = vunpack.c.l.b16 %v165
  %v838 = vunpack.c.l.b16 %v166
  %v839 = vunpack.c.l.b16 %v167
  %v840 = vunpack.c.l.b16 %v168
  %v841 = vunpack.c.l.b16 %v169
  %v842 = vunpack.c.l.b16 %v170
  %v843 = vunpack.c.l.b16 %v171
  %v844 = vunpack.c.l.b16 %v172
  %v845 = vunpack.c.l.b16 %v173
  %v846 = vunpack.c.l.b16 %v174
  %v847 = vunpack.c.l.b16 %v175
  %v848 = vunpack.c.l.b16 %v176
  %v849 = vunpack.c.l.b16 %v177
  %v850 = vunpack.c.l.b16 %v178
  %v851 = vunpack.c.l.b16 %v179
  %v852 = vunpack.c.l.b16 %v180
  %v853 = vunpack.c.l.b16 %v181
  %v854 = vunpack.c.l.b16 %v182
  %v855 = vunpack.c.l.b16 %v183
  %v856 = vunpack.c.l.b16 %v184
  %v857 = vunpack.c.l.b16 %v185
  %v858 = vunpack.c.l.b16 %v186
  %v859 = vunpack.c.l.b16 %v187
  %v860 = vunpack.c.l.b16 %v188
  %v861 = vunpack.c.l.b16 %v189
  %v862 = vunpack.c.l.b16 %v190
  %v863 = vunpack.c.l.b16 %v191
  %v864 = vunpack.c.l.b16 %v192
  %v865 = vunpack.c.l.b16 %v193
  %v866 = vunpack.c.l.b16 %v194
  %v867 = vunpack.c.l.b16 %v195
  %v868 = vunpack.c.l.b16 %v196
  %v869 = vunpack.c.l.b16 %v197
  %v870 = vunpack.c.l.b16 %v198
  %v871 = vunpack.c.l.b16 %v199
  %v872 = vunpack.c.l.b16 %v200
  %v873 = vunpack.c.l.b16 %v201
  %v874 = vunpack.c.l.b16 %v202
  %v875 = vunpack.c.l.b16 %v203
  %v876 = vunpack.c.l.b16 %v204
  %v877 = vunpack.c.l.b16 %v205
  %v878 = vunpack.c.l.b16 %v206
  %v879 = vunpack.c.l.b16 %v207
  %v880 = vunpack.c.l.b16 %v208
  %v881 = vunpack.c.l.b16 %v209
  %v882 = vunpack.c.l.b16 %v210
  %v883 = vunpack.c.l.b16 %v211
  %v884 = vunpack.c.l.b16 %v212
  %v885 = vunpack.c.l.b16 %v213
  %v886 = vunpack.c.l.b16 %v214
  %v887 = vunpack.c.l.b16 %v215
  %v888 = vunpack.c.l.b16 %v216
  %v889 = vunpack.c.l.b16 %v217
  %v890 = vunpack.c.l.b16 %v218
  %v891 = vunpack.c.l.b16 %v219
  %v892 = vunpack.c.l.b16 %v220
  %v893 = vunpack.c.l.b16 %v221
  %v894 = vunpack.c.l.b16 %v222
  %v895 = vunpack.c.l.b16 %v223
  %v896 = vunpack.c.l.b16 %v224
  %v897 = vunpack.c.l.b16 %v225
  %v898 = vunpack.c.l.b16 %v226
  %v899 = vunpack.c.l.b16 %v227
  %v900 = vunpack.c.l.b16 %v228
  %v901 = vunpack.c.l.b16 %v229
  %v902 = vunpack.c.l.b16 %v230
  %v903 = vunpack.c.l.b16 %v231
  %v904 = vunpack.c.l.b16 %v232
  %v905 = vunpack.c.l.b16 %v233
  %v906 = vunpack.c.l.b16 %v234
  %v907 = vunpack.c.l.b16 %v235
  %v908 = vunpack.c.l.b16 %v236
  %v909 = vunpack.c.l.b16 %v237
  %v910 = vunpack.c.l.b16 %v238
  %v911 = vunpack.c.l.b16 %v239
  %v912 = vunpack.c.l.b16 %v240
  %v913 = vunpack.c.l.b16 %v241
  %v914 = vunpack.c.l.b16 %v242
  %v915 = vunpack.c.l.b16 %v243
  %v916 = vunpack.c.l.b16 %v244
  %v917 = vunpack.c.l.b16 %v245
  %v918 = vunpack.c.l.b16 %v246
  %v919 = vunpack.c.l.b16 %v247
  %v920 = vunpack.c.l.b16 %v248
  %v921 = vunpack.c.l.b16 %v249
  %v922 = vunpack.c.l.b16 %v250
  %v923 = vunpack.c.l.b16 %v251
  %v924 = vunpack.c.l.b16 %v252
  %v925 = vunpack.c.l.b16 %v253
  %v926 = vunpack.c.l.b16 %v254
  %v927 = vunpack.c.l.b16 %v255
  %v928 = vunpack.c.l.b16 %v256
  %v929 = vunpack.c.l.b16 %v257
  %v930 = vunpack.c.l.b16 %v258
  %v931 = vunpack.c.l.b16 %v259
  %v932 = vunpack.c.l.b16 %v260
  %v933 = vunpack.c.l.b16 %v261
  %v934 = vunpack.c.l.b16 %v262
  %v935 = vunpack.c.l.b16 %v263
  %v936 = vunpack.c.l.b16 %v264
  %v937 = vunpack.c.l.b16 %v265
  %v938 = vunpack.c.l.b16 %v266
  %v939 = vunpack.c.l.b16 %v267
  %v940 = vunpack.c.l.b16 %v268
  %v941 = vunpack.c.l.b16 %v269
  %v942 = vunpack.c.l.b16 %v270
  %v943 = vunpack.c.l.b16 %v271
  %v944 = vunpack.c.l.b16 %v272
  %v945 = vunpack.c.l.b16 %v273
  %v946 = vunpack.c.l.b16 %v274
  %v947 = vunpack.c.l.b16 %v275
  %v948 = vunpack.c.l.b16 %v276
  %v949 = vunpack.c.l.b16 %v277
  %v950 = vunpack.c.l.b16 %v278
  %v951 = vunpack.c.l.b16 %v279
  %v952 = vunpack.c.l.b16 %v280
  %v953 = vunpack.c.l.b16 %v281
  %v954 = vunpack.c.l.b16 %v282
  %v955 = vunpack.c.l.b16 %v283
  %v956 = vunpack.c.l.b16 %v284
  %v957 = vunpack.c.l.b16 %v285
  %v958 = vunpack.c.l.b16 %v286
  %v959 = vunpack.c.l.b16 %v287
  %v960 = vunpack.c.l.b16 %v288
  %v961 = vunpack.c.l.b16 %v289
  %v962 = vunpack.c.l.b16 %v290
  %v963 = vunpack.c.l.b16 %v291
  %v964 = vunpack.c.l.b16 %v292
  %v965 = vunpack.c.l.b16 %v293
  %v966 = vunpack.c.l.b16 %v294
  %v967 = vunpack.c.l.b16 %v295
  %v968 = vunpack.c.l.b16 %v296
  %v969 = vunpack.c.l.b16 %v297
  %v970 = vunpack.c.l.b16 %v298
  %v971 = vunpack.c.l.b16 %v299
  %v972 = vunpack.c.l.b16 %v300
  %v973 = vunpack.c.l.b16 %v301
  %v974 = vunpack.c.l.b16 %v302
  %v975 = vunpack.c.l.b16 %v303
  %v976 = vunpack.c.l.b16 %v304
  %v977 = vunpack.c.l.b16 %v305
  %v978 = vunpack.c.l.b16 %v306
  %v979 = vunpack.c.l.b16 %v307
  %v980 = vunpack.c.l.b16 %v308
  %v981 = vunpack.c.l.b16 %v309
  %v982 = vunpack.c.l.b16 %v310
  %v983 = vunpack.c.l.b16 %v311
  %v984 = vunpack.c.l.b16 %v312
  %v985 = vunpack.c.l.b16 %v313
  %v986 = vunpack.c.l.b16 %v314
  %v987 = vunpack.c.l.b16 %v315
  %v988 = vunpack.c.l.b16 %v316
  %v989 = vunpack.c.l.b16 %v317
  %v990 = vunpack.c.l.b16 %v318
  %v991 = vunpack.c.l.b16 %v319
  %v992 = vunpack.c.l.b16 %v320
  %v993 = vunpack.c.l.b16 %v321
  %v994 = vunpack.c.l.b16 %v322
  %v995 = vunpack.c.l.b16 %v323
  %v996 = vunpack.c.l.b16 %v324
  %v997 = vunpack.c.l.b16 %v325
  %v998 = vunpack.c.l.b16 %v326
  %v999 = vunpack.c.l.b16 %v327
  %v1000 = vunpack.c.l.b16 %v328
  %v1001 = vunpack.c.l.b16 %v329
  %v1002 = vunpack.c.l.b16 %v330
  %v1003 = vunpack.c.l.b16 %v331
  %v1004 = vunpack.c.l.b16 %v332
  %v1005 = vunpack.c.l.b16 %v333
  %v1006 = vunpack.c.l.b16 %v334
  %v1007 = vunpack.c.l.b16 %v335
  %v1008 = vunpack.c.l.b16 %v336
  %v1009 = vunpack.c.l.b16 %v337
  %v1010 = vunpack.c.l.b16 %v338
  %v1011 = vunpack.c.l.b16 %v339
  %v1012 = vunpack.c.l.b16 %v340
  %v1013 = vunpack.c.l.b16 %v341
  %v1014 = vunpack.c.l.b16 %v342
  %v1015 = vpack.c.b16 %v688, %v687
  %v1016 = vpack.c.b16 %v690, %v689
  %v1017 = vpack.c.b16 %v692, %v691
  %v1018 = vpack.c.b16 %v694, %v693
  %v1019 = vpack.c.b16 %v696, %v695
  %v1020 = vpack.c.b16 %v698, %v697
  %v1021 = vpack.c.b16 %v700, %v699
  %v1022 = vpack.c.b16 %v702, %v701
  %v1023 = vpack.c.b16 %v704, %v703
  %v1024 = vpack.c.b16 %v706, %v705
  %v1025 = vpack.c.b16 %v708, %v707
  %v1026 = vpack.c.b16 %v710, %v709
  %v1027 = vpack.c.b16 %v712, %v711
  %v1028 = vpack.c.b16 %v714, %v713
  %v1029 = vpack.c.b16 %v716, %v715
  %v1030 = vpack.c.b16 %v718, %v717
  %v1031 = vpack.c.b16 %v720, %v719
  %v1032 = vpack.c.b16 %v722, %v721
  %v1033 = vpack.c.b16 %v724, %v723
  %v1034 = vpack.c.b16 %v726, %v725
  %v1035 = vpack.c.b16 %v728, %v727
  %v1036 = vpack.c.b16 %v730, %v729
  %v1037 = vpack.c.b16 %v732, %v731
  %v1038 = vpack.c.b16 %v734, %v733
  %v1039 = vpack.c.b16 %v736, %v735
  %v1040 = vpack.c.b16 %v738, %v737
  %v1041 = vpack.c.b16 %v740, %v739
  %v1042 = vpack.c.b16 %v742, %v741
  %v1043 = vpack.c.b16 %v744, %v743
  %v1044 = vpack.c.b16 %v746, %v745
  %v1045 = vpack.c.b16 %v748, %v747
  %v1046 = vpack.c.b16 %v750, %v749
  %v1047 = vpack.c.b16 %v752, %v751
  %v1048 = vpack.c.b16 %v754, %v753
  %v1049 = vpack.c.b16 %v756, %v755
  %v1050 = vpack.c.b16 %v758, %v757
  %v1051 = vpack.c.b16 %v760, %v759
  %v1052 = vpack.c.b16 %v762, %v761
  %v1053 = vpack.c.b16 %v764, %v763
  %v1054 = vpack.c.b16 %v766, %v765
  %v1055 = vpack.c.b16 %v768, %v767
  %v1056 = vpack.c.b16 %v770, %v769
  %v1057 = vpack.c.b16 %v772, %v771
  %v1058 = vpack.c.b16 %v774, %v773
  %v1059 = vpack.c.b16 %v776, %v775
  %v1060 = vpack.c.b16 %v778, %v777
  %v1061 = vpack.c.b16 %v780, %v779
  %v1062 = vpack.c.b16 %v782, %v781
  %v1063 = vpack.c.b16 %v784, %v783
  %v1064 = vpack.c.b16 %v786, %v785
  %v1065 = vpack.c.b16 %v788, %v787
  %v1066 = vpack.c.b16 %v790, %v789
  %v1067 = vpack.c.b16 %v792, %v791
  %v1068 = vpack.c.b16 %v794, %v793
  %v1069 = vpack.c.b16 %v796, %v795
  %v1070 = vpack.c.b16 %v798, %v797
  %v1071 = vpack.c.b16 %v800, %v799
  %v1072 = vpack.c.b16 %v802, %v801
  %v1073 = vpack.c.b16 %v804, %v803
  %v1074 = vpack.c.b16 %v806, %v805
  %v1075 = vpack.c.b16 %v808, %v807
  %v1076 = vpack.c.b16 %v810, %v809
  %v1077 = vpack.c.b16 %v812, %v811
  %v1078 = vpack.c.b16 %v814, %v813
  %v1079 = vpack.c.b16 %v816, %v815
  %v1080 = vpack.c.b16 %v818, %v817
  %v1081 = vpack.c.b16 %v820, %v819
  %v1082 = vpack.c.b16 %v822, %v821
  %v1083 = vpack.c.b16 %v824, %v823
  %v1084 = vpack.c.b16 %v826, %v825
  %v1085 = vpack.c.b16 %v828, %v827
  %v1086 = vpack.c.b16 %v830, %v829
  %v1087 = vpack.c.b16 %v832, %v831
  %v1088 = vpack.c.b16 %v834, %v833
  %v1089 = vpack.c.b16 %v836, %v835
  %v1090 = vpack.c.b16 %v838, %v837
  %v1091 = vpack.c.b16 %v840, %v839
  %v1092 = vpack.c.b16 %v842, %v841
  %v1093 = vpack.c.b16 %v844, %v843
  %v1094 = vpack.c.b16 %v846, %v845
  %v1095 = vpack.c.b16 %v848, %v847
  %v1096 = vpack.c.b16 %v850, %v849
  %v1097 = vpack.c.b16 %v852, %v851
  %v1098 = vpack.c.b16 %v854, %v853
  %v1099 = vpack.c.b16 %v856, %v855
  %v1100 = vpack.c.b16 %v858, %v857
  %v1101 = vpack.c.b16 %v860, %v859
  %v1102 = vpack.c.b16 %v862, %v861
  %v1103 = vpack.c.b16 %v864, %v863
  %v1104 = vpack.c.b16 %v866, %v865
  %v1105 = vpack.c.b16 %v868, %v867
  %v1106 = vpack.c.b16 %v870, %v869
  %v1107 = vpack.c.b16 %v872, %v871
  %v1108 = vpack.c.b16 %v874, %v873
  %v1109 = vpack.c.b16 %v876, %v875
  %v1110 = vpack.c.b16 %v878, %v877
  %v1111 = vpack.c.b16 %v880, %v879
  %v1112 = vpack.c.b16 %v882, %v881
  %v1113 = vpack.c.b16 %v884, %v883
  %v1114 = vpack.c.b16 %v886, %v885
  %v1115 = vpack.c.b16 %v888, %v887
  %v1116 = vpack.c.b16 %v890, %v889
  %v1117 = vpack.c.b16 %v892, %v891
  %v1118 = vpack.c.b16 %v894, %v893
  %v1119 = vpack.c.b16 %v896, %v895
  %v1120 = vpack.c.b16 %v898, %v897
  %v1121 = vpack.c.b16 %v900, %v899
  %v1122 = vpack.c.b16 %v902, %v901
  %v1123 = vpack.c.b16 %v904, %v903
  %v1124 = vpack.c.b16 %v906, %v905
  %v1125 = vpack.c.b16 %v908, %v907
  %v1126 = vpack.c.b16 %v910, %v909
  %v1127 = vpack.c.b16 %v912, %v911
  %v1128 = vpack.c.b16 %v914, %v913
  %v1129 = vpack.c.b16 %v916, %v915
  %v1130 = vpack.c.b16 %v918, %v917
  %v1131 = vpack.c.b16 %v920, %v919
  %v1132 = vpack.c.b16 %v922, %v921
  %v1133 = vpack.c.b16 %v924, %v923
  %v1134 = vpack.c.b16 %v926, %v925
  %v1135 = vpack.c.b16 %v928, %v927
  %v1136 = vpack.c.b16 %v930, %v929
  %v1137 = vpack.c.b16 %v932, %v931
  %v1138 = vpack.c.b16 %v934, %v933
  %v1139 = vpack.c.b16 %v936, %v935
  %v1140 = vpack.c.b16 %v938, %v937
  %v1141 = vpack.c.b16 %v940, %v939
  %v1142 = vpack.c.b16 %v942, %v941
  %v1143 = vpack.c.b16 %v944, %v943
  %v1144 = vpack.c.b16 %v946, %v945
  %v1145 = vpack.c.b16 %v948, %v947
  %v1146 = vpack.c.b16 %v950, %v949
  %v1147 = vpack.c.b16 %v952, %v951
  %v1148 = vpack.c.b16 %v954, %v953
  %v1149 = vpack.c.b16 %v956, %v955
  %v1150 = vpack.c.b16 %v958, %v957
  %v1151 = vpack.c.b16 %v960, %v959
  %v1152 = vpack.c.b16 %v962, %v961
  %v1153 = vpack.c.b16 %v964, %v963
  %v1154 = vpack.c.b16 %v966, %v965
  %v1155 = vpack.c.b16 %v968, %v967
  %v1156 = vpack.c.b16 %v970, %v969
  %v1157 = vpack.c.b16 %v972, %v971
  %v1158 = vpack.c.b16 %v974, %v973
  %v1159 = vpack.c.b16 %v976, %v975
  %v1160 = vpack.c.b16 %v978, %v977
  %v1161 = vpack.c.b16 %v980, %v979
  %v1162 = vpack.c.b16 %v982, %v981
  %v1163 = vpack.c.b16 %v984, %v983
  %v1164 = vpack.c.b16 %v986, %v985
  %v1165 = vpack.c.b16 %v988, %v987
  %v1166 = vpack.c.b16 %v990, %v989
  %v1167 = vpack.c.b16 %v992, %v991
  %v1168 = vpack.c.b16 %v994, %v993
  %v1169 = vpack.c.b16 %v996, %v995
  %v1170 = vpack.c.b16 %v998, %v997
  %v1171 = vpack.c.b16 %v1000, %v999
  %v1172 = vpack.c.b16 %v1002, %v1001
  %v1173 = vpack.c.b16 %v1004, %v1003
  %v1174 = vpack.c.b16 %v1006, %v1005
  %v1175 = vpack.c.b16 %v1008, %v1007
  %v1176 = vpack.c.b16 %v1010, %v1009
  %v1177 = vpack.c.b16 %v1012, %v1011
  %v1178 = vpack.c.b16 %v1014, %v1013
  %v1359 = vunpack.c.l.b16 %v343
  %v1360 = vunpack.c.l.b16 %v344
  %v1361 = vunpack.c.l.b16 %v345
  %v1362 = vunpack.c.l.b16 %v346
  %v1363 = vunpack.c.l.b16 %v347
  %v1364 = vunpack.c.l.b16 %v348
  %v1365 = vunpack.c.l.b16 %v349
  %v1366 = vunpack.c.l.b16 %v350
  %v1367 = vunpack.c.l.b16 %v351
  %v1368 = vunpack.c.l.b16 %v352
  %v1369 = vunpack.c.l.b16 %v353
  %v1370 = vunpack.c.l.b16 %v354
  %v1371 = vunpack.c.l.b16 %v355
  %v1372 = vunpack.c.l.b16 %v356
  %v1373 = vunpack.c.l.b16 %v357
  %v1374 = vunpack.c.l.b16 %v358
  %v1375 = vpack.c.b16 %v1360, %v1359
  %v1376 = vpack.c.b16 %v1362, %v1361
  %v1377 = vpack.c.b16 %v1364, %v1363
  %v1378 = vpack.c.b16 %v1366, %v1365
  %v1379 = vpack.c.b16 %v1368, %v1367
  %v1380 = vpack.c.b16 %v1370, %v1369
  %v1381 = vpack.c.b16 %v1372, %v1371
  %v1382 = vpack.c.b16 %v1374, %v1373
  %1391 = vmatprep.subr.bf16.mxu0 0
  %1392 = vmatpush1.bf16.msra.mxu0 %v1375
  %1393 = vmatprep.subr.bf16.mxu0 0
  %1394 = vmatpush1.bf16.msra.mxu0 %v1376
  %1395 = vmatprep.subr.bf16.mxu0 0
  %1396 = vmatpush1.bf16.msra.mxu0 %v1377
  %1397 = vmatprep.subr.bf16.mxu0 0
  %1398 = vmatpush1.bf16.msra.mxu0 %v1378
  %1399 = vmatprep.subr.bf16.mxu0 0
  %1400 = vmatpush1.bf16.msra.mxu0 %v1379
  %1401 = vmatprep.subr.bf16.mxu0 0
  %1402 = vmatpush1.bf16.msra.mxu0 %v1380
  %1403 = vmatprep.subr.bf16.mxu0 0
  %1404 = vmatpush1.bf16.msra.mxu0 %v1381
  %1405 = vmatprep.subr.bf16.mxu0 0
  %1406 = vmatpush1.bf16.msra.mxu0 %v1382
  %1407 = vmatprep.subr.bf16.mxu0 0
  %1408 = vmatpush1.bf16.msra.mxu0 0
  %1409 = vmatprep.subr.bf16.mxu0 0
  %1410 = vmatpush1.bf16.msra.mxu0 0
  %1411 = vmatprep.subr.bf16.mxu0 0
  %1412 = vmatpush1.bf16.msra.mxu0 0
  %1413 = vmatprep.subr.bf16.mxu0 0
  %1414 = vmatpush1.bf16.msra.mxu0 0
  %1415 = vmatprep.subr.bf16.mxu0 0
  %1416 = vmatpush1.bf16.msra.mxu0 0
  %1417 = vmatprep.subr.bf16.mxu0 0
  %1418 = vmatpush1.bf16.msra.mxu0 0
  %1419 = vmatprep.subr.bf16.mxu0 0
  %1420 = vmatpush1.bf16.msra.mxu0 0
  %1421 = vmatprep.subr.bf16.mxu0 0
  %1422 = vmatpush1.bf16.msra.mxu0 0
  %1423 = vmatprep.mubr.bf16.mxu0 0
  %1424 = vmatmul.mubr.bf16.gmra.mrb[0].mxu0 %v1015
  %v1425 = vpop.f32.mrb[0].mxu0
  %v1426 = vadd.f32 0.0, %v1425
  %v1427 = vpop.f32.mrb[0].mxu0
  %v1428 = vpop.f32.mrb[0].mxu0
  %v1429 = vadd.f32 0.0, %v1428
  %v1430 = vpop.f32.mrb[0].mxu0
  %1431 = vmatprep.mubr.bf16.mxu0 0
  %1432 = vmatmul.mubr.bf16.gmra.mrb[0].mxu0 %v1016
  %v1433 = vpop.f32.mrb[0].mxu0
  %v1434 = vadd.f32 0.0, %v1433
  %v1435 = vpop.f32.mrb[0].mxu0
  %v1436 = vpop.f32.mrb[0].mxu0
  %v1437 = vadd.f32 0.0, %v1436
  %v1438 = vpop.f32.mrb[0].mxu0
  %1439 = vmatprep.mubr.bf16.mxu0 0
  %1440 = vmatmul.mubr.bf16.gmra.mrb[0].mxu0 %v1017
  %v1441 = vpop.f32.mrb[0].mxu0
  %v1442 = vadd.f32 0.0, %v1441
  %v1443 = vpop.f32.mrb[0].mxu0
  %v1444 = vpop.f32.mrb[0].mxu0
  %v1445 = vadd.f32 0.0, %v1444
  %v1446 = vpop.f32.mrb[0].mxu0
  %1447 = vmatprep.mubr.bf16.mxu0 0
  %1448 = vmatmul.mubr.bf16.gmra.mrb[0].mxu0 %v1018
  %v1449 = vpop.f32.mrb[0].mxu0
  %v1450 = vadd.f32 0.0, %v1449
  %v1451 = vpop.f32.mrb[0].mxu0
  %v1452 = vpop.f32.mrb[0].mxu0
  %v1453 = vadd.f32 0.0, %v1452
  %v1454 = vpop.f32.mrb[0].mxu0
  %1455 = vmatprep.mubr.bf16.mxu0 0
  %1456 = vmatmul.mubr.bf16.gmra.mrb[0].mxu0 %v1019
  %v1457 = vpop.f32.mrb[0].mxu0
  %v1458 = vadd.f32 0.0, %v1457
  %v1459 = vpop.f32.mrb[0].mxu0
  %v1460 = vpop.f32.mrb[0].mxu0
  %v1461 = vadd.f32 0.0, %v1460
  %v1462 = vpop.f32.mrb[0].mxu0
  %1463 = vmatprep.mubr.bf16.mxu0 0
  %1464 = vmatmul.mubr.bf16.gmra.mrb[0].mxu0 %v1020
  %v1465 = vpop.f32.mrb[0].mxu0
  %v1466 = vadd.f32 0.0, %v1465
  %v1467 = vpop.f32.mrb[0].mxu0
  %v1468 = vpop.f32.mrb[0].mxu0
  %v1469 = vadd.f32 0.0, %v1468
  %v1470 = vpop.f32.mrb[0].mxu0
  %1471 = vmatprep.mubr.bf16.mxu0 0
  %1472 = vmatmul.mubr.bf16.gmra.mrb[0].mxu0 %v1021
  %v1473 = vpop.f32.mrb[0].mxu0
  %v1474 = vadd.f32 0.0, %v1473
  %v1475 = vpop.f32.mrb[0].mxu0
  %v1476 = vpop.f32.mrb[0].mxu0
  %v1477 = vadd.f32 0.0, %v1476
  %v1478 = vpop.f32.mrb[0].mxu0
  %1479 = vmatprep.mubr.bf16.mxu0 0
  %1480 = vmatmul.mubr.bf16.gmra.mrb[0].mxu0 %v1022
  %v1481 = vpop.f32.mrb[0].mxu0
  %v1482 = vadd.f32 0.0, %v1481
  %v1483 = vpop.f32.mrb[0].mxu0
  %v1484 = vpop.f32.mrb[0].mxu0
  %v1485 = vadd.f32 0.0, %v1484
  %v1486 = vpop.f32.mrb[0].mxu0
  %1487 = vmatprep.mubr.bf16.mxu0 0
  %1488 = vmatmul.mubr.bf16.gmra.mrb[0].mxu0 %v1023
  %v1489 = vpop.f32.mrb[0].mxu0
  %v1490 = vadd.f32 0.0, %v1489
  %v1491 = vpop.f32.mrb[0].mxu0
  %v1492 = vpop.f32.mrb[0].mxu0
  %v1493 = vadd.f32 0.0, %v1492
  %v1494 = vpop.f32.mrb[0].mxu0
  %1495 = vmatprep.mubr.bf16.mxu0 0
  %1496 = vmatmul.mubr.bf16.gmra.mrb[0].mxu0 %v1024
  %v1497 = vpop.f32.mrb[0].mxu0
  %v1498 = vadd.f32 0.0, %v1497
  %v1499 = vpop.f32.mrb[0].mxu0
  %v1500 = vpop.f32.mrb[0].mxu0
  %v1501 = vadd.f32 0.0, %v1500
  %v1502 = vpop.f32.mrb[0].mxu0
  %1503 = vmatprep.mubr.bf16.mxu0 0
  %1504 = vmatmul.mubr.bf16.gmra.mrb[0].mxu0 %v1025
  %v1505 = vpop.f32.mrb[0].mxu0
  %v1506 = vadd.f32 0.0, %v1505
  %v1507 = vpop.f32.mrb[0].mxu0
  %v1508 = vpop.f32.mrb[0].mxu0
  %v1509 = vadd.f32 0.0, %v1508
  %v1510 = vpop.f32.mrb[0].mxu0
  %1511 = vmatprep.mubr.bf16.mxu0 0
  %1512 = vmatmul.mubr.bf16.gmra.mrb[0].mxu0 %v1026
  %v1513 = vpop.f32.mrb[0].mxu0
  %v1514 = vadd.f32 0.0, %v1513
  %v1515 = vpop.f32.mrb[0].mxu0
  %v1516 = vpop.f32.mrb[0].mxu0
  %v1517 = vadd.f32 0.0, %v1516
  %v1518 = vpop.f32.mrb[0].mxu0
  %1519 = vmatprep.mubr.bf16.mxu0 0
  %1520 = vmatmul.mubr.bf16.gmra.mrb[0].mxu0 %v1027
  %v1521 = vpop.f32.mrb[0].mxu0
  %v1522 = vadd.f32 0.0, %v1521
  %v1523 = vpop.f32.mrb[0].mxu0
  %v1524 = vpop.f32.mrb[0].mxu0
  %v1525 = vadd.f32 0.0, %v1524
  %v1526 = vpop.f32.mrb[0].mxu0
  %1527 = vmatprep.mubr.bf16.mxu0 0
  %1528 = vmatmul.mubr.bf16.gmra.mrb[0].mxu0 %v1028
  %v1529 = vpop.f32.mrb[0].mxu0
  %v1530 = vadd.f32 0.0, %v1529
  %v1531 = vpop.f32.mrb[0].mxu0
  %v1532 = vpop.f32.mrb[0].mxu0
  %v1533 = vadd.f32 0.0, %v1532
  %v1534 = vpop.f32.mrb[0].mxu0
  %1535 = vmatprep.mubr.bf16.mxu0 0
  %1536 = vmatmul.mubr.bf16.gmra.mrb[0].mxu0 %v1029
  %v1537 = vpop.f32.mrb[0].mxu0
  %v1538 = vadd.f32 0.0, %v1537
  %v1539 = vpop.f32.mrb[0].mxu0
  %v1540 = vpop.f32.mrb[0].mxu0
  %v1541 = vadd.f32 0.0, %v1540
  %v1542 = vpop.f32.mrb[0].mxu0
  %1543 = vmatprep.mubr.bf16.mxu0 0
  %1544 = vmatmul.mubr.bf16.gmra.mrb[0].mxu0 %v1030
  %v1545 = vpop.f32.mrb[0].mxu0
  %v1546 = vadd.f32 0.0, %v1545
  %v1547 = vpop.f32.mrb[0].mxu0
  %v1548 = vpop.f32.mrb[0].mxu0
  %v1549 = vadd.f32 0.0, %v1548
  %v1550 = vpop.f32.mrb[0].mxu0
  %1551 = vmatprep.mubr.bf16.mxu0 0
  %1552 = vmatmul.mubr.bf16.gmra.mrb[0].mxu0 %v1031
  %v1553 = vpop.f32.mrb[0].mxu0
  %v1554 = vadd.f32 0.0, %v1553
  %v1555 = vpop.f32.mrb[0].mxu0
  %v1556 = vpop.f32.mrb[0].mxu0
  %v1557 = vadd.f32 0.0, %v1556
  %v1558 = vpop.f32.mrb[0].mxu0
  %1559 = vmatprep.mubr.bf16.mxu0 0
  %1560 = vmatmul.mubr.bf16.gmra.mrb[0].mxu0 %v1032
  %v1561 = vpop.f32.mrb[0].mxu0
  %v1562 = vadd.f32 0.0, %v1561
  %v1563 = vpop.f32.mrb[0].mxu0
  %v1564 = vpop.f32.mrb[0].mxu0
  %v1565 = vadd.f32 0.0, %v1564
  %v1566 = vpop.f32.mrb[0].mxu0
  %1567 = vmatprep.mubr.bf16.mxu0 0
  %1568 = vmatmul.mubr.bf16.gmra.mrb[0].mxu0 %v1033
  %v1569 = vpop.f32.mrb[0].mxu0
  %v1570 = vadd.f32 0.0, %v1569
  %v1571 = vpop.f32.mrb[0].mxu0
  %v1572 = vpop.f32.mrb[0].mxu0
  %v1573 = vadd.f32 0.0, %v1572
  %v1574 = vpop.f32.mrb[0].mxu0
  %1575 = vmatprep.mubr.bf16.mxu0 0
  %1576 = vmatmul.mubr.bf16.gmra.mrb[0].mxu0 %v1034
  %v1577 = vpop.f32.mrb[0].mxu0
  %v1578 = vadd.f32 0.0, %v1577
  %v1579 = vpop.f32.mrb[0].mxu0
  %v1580 = vpop.f32.mrb[0].mxu0
  %v1581 = vadd.f32 0.0, %v1580
  %v1582 = vpop.f32.mrb[0].mxu0
  %1583 = vmatprep.mubr.bf16.mxu0 0
  %1584 = vmatmul.mubr.bf16.gmra.mrb[0].mxu0 %v1035
  %v1585 = vpop.f32.mrb[0].mxu0
  %v1586 = vadd.f32 0.0, %v1585
  %v1587 = vpop.f32.mrb[0].mxu0
  %v1588 = vpop.f32.mrb[0].mxu0
  %v1589 = vadd.f32 0.0, %v1588
  %v1590 = vpop.f32.mrb[0].mxu0
  %1591 = vmatprep.mubr.bf16.mxu0 0
  %1592 = vmatmul.mubr.bf16.gmra.mrb[0].mxu0 %v1036
  %v1593 = vpop.f32.mrb[0].mxu0
  %v1594 = vadd.f32 0.0, %v1593
  %v1595 = vpop.f32.mrb[0].mxu0
  %v1596 = vpop.f32.mrb[0].mxu0
  %v1597 = vadd.f32 0.0, %v1596
  %v1598 = vpop.f32.mrb[0].mxu0
  %1599 = vmatprep.mubr.bf16.mxu0 0
  %1600 = vmatmul.mubr.bf16.gmra.mrb[0].mxu0 %v1037
  %v1601 = vpop.f32.mrb[0].mxu0
  %v1602 = vadd.f32 0.0, %v1601
  %v1603 = vpop.f32.mrb[0].mxu0
  %v1604 = vpop.f32.mrb[0].mxu0
  %v1605 = vadd.f32 0.0, %v1604
  %v1606 = vpop.f32.mrb[0].mxu0
  %1607 = vmatprep.mubr.bf16.mxu0 0
  %1608 = vmatmul.mubr.bf16.gmra.mrb[0].mxu0 %v1038
  %v1609 = vpop.f32.mrb[0].mxu0
  %v1610 = vadd.f32 0.0, %v1609
  %v1611 = vpop.f32.mrb[0].mxu0
  %v1612 = vpop.f32.mrb[0].mxu0
  %v1613 = vadd.f32 0.0, %v1612
  %v1614 = vpop.f32.mrb[0].mxu0
  %1615 = vmatprep.mubr.bf16.mxu0 0
  %1616 = vmatmul.mubr.bf16.gmra.mrb[0].mxu0 %v1039
  %v1617 = vpop.f32.mrb[0].mxu0
  %v1618 = vadd.f32 0.0, %v1617
  %v1619 = vpop.f32.mrb[0].mxu0
  %v1620 = vpop.f32.mrb[0].mxu0
  %v1621 = vadd.f32 0.0, %v1620
  %v1622 = vpop.f32.mrb[0].mxu0
  %1623 = vmatprep.mubr.bf16.mxu0 0
  %1624 = vmatmul.mubr.bf16.gmra.mrb[0].mxu0 %v1040
  %v1625 = vpop.f32.mrb[0].mxu0
  %v1626 = vadd.f32 0.0, %v1625
  %v1627 = vpop.f32.mrb[0].mxu0
  %v1628 = vpop.f32.mrb[0].mxu0
  %v1629 = vadd.f32 0.0, %v1628
  %v1630 = vpop.f32.mrb[0].mxu0
  %1631 = vmatprep.mubr.bf16.mxu0 0
  %1632 = vmatmul.mubr.bf16.gmra.mrb[0].mxu0 %v1041
  %v1633 = vpop.f32.mrb[0].mxu0
  %v1634 = vadd.f32 0.0, %v1633
  %v1635 = vpop.f32.mrb[0].mxu0
  %v1636 = vpop.f32.mrb[0].mxu0
  %v1637 = vadd.f32 0.0, %v1636
  %v1638 = vpop.f32.mrb[0].mxu0
  %1639 = vmatprep.mubr.bf16.mxu0 0
  %1640 = vmatmul.mubr.bf16.gmra.mrb[0].mxu0 %v1042
  %v1641 = vpop.f32.mrb[0].mxu0
  %v1642 = vadd.f32 0.0, %v1641
  %v1643 = vpop.f32.mrb[0].mxu0
  %v1644 = vpop.f32.mrb[0].mxu0
  %v1645 = vadd.f32 0.0, %v1644
  %v1646 = vpop.f32.mrb[0].mxu0
  %1647 = vmatprep.mubr.bf16.mxu0 0
  %1648 = vmatmul.mubr.bf16.gmra.mrb[0].mxu0 %v1043
  %v1649 = vpop.f32.mrb[0].mxu0
  %v1650 = vadd.f32 0.0, %v1649
  %v1651 = vpop.f32.mrb[0].mxu0
  %v1652 = vpop.f32.mrb[0].mxu0
  %v1653 = vadd.f32 0.0, %v1652
  %v1654 = vpop.f32.mrb[0].mxu0
  %1655 = vmatprep.mubr.bf16.mxu0 0
  %1656 = vmatmul.mubr.bf16.gmra.mrb[0].mxu0 %v1044
  %v1657 = vpop.f32.mrb[0].mxu0
  %v1658 = vadd.f32 0.0, %v1657
  %v1659 = vpop.f32.mrb[0].mxu0
  %v1660 = vpop.f32.mrb[0].mxu0
  %v1661 = vadd.f32 0.0, %v1660
  %v1662 = vpop.f32.mrb[0].mxu0
  %1663 = vmatprep.mubr.bf16.mxu0 0
  %1664 = vmatmul.mubr.bf16.gmra.mrb[0].mxu0 %v1045
  %v1665 = vpop.f32.mrb[0].mxu0
  %v1666 = vadd.f32 0.0, %v1665
  %v1667 = vpop.f32.mrb[0].mxu0
  %v1668 = vpop.f32.mrb[0].mxu0
  %v1669 = vadd.f32 0.0, %v1668
  %v1670 = vpop.f32.mrb[0].mxu0
  %1671 = vmatprep.mubr.bf16.mxu0 0
  %1672 = vmatmul.mubr.bf16.gmra.mrb[0].mxu0 %v1046
  %v1673 = vpop.f32.mrb[0].mxu0
  %v1674 = vadd.f32 0.0, %v1673
  %v1675 = vpop.f32.mrb[0].mxu0
  %v1676 = vpop.f32.mrb[0].mxu0
  %v1677 = vadd.f32 0.0, %v1676
  %v1678 = vpop.f32.mrb[0].mxu0
  %1679 = vmatprep.mubr.bf16.mxu0 0
  %1680 = vmatmul.mubr.bf16.gmra.mrb[0].mxu0 %v1047
  %v1681 = vpop.f32.mrb[0].mxu0
  %v1682 = vadd.f32 0.0, %v1681
  %v1683 = vpop.f32.mrb[0].mxu0
  %v1684 = vpop.f32.mrb[0].mxu0
  %v1685 = vadd.f32 0.0, %v1684
  %v1686 = vpop.f32.mrb[0].mxu0
  %1687 = vmatprep.mubr.bf16.mxu0 0
  %1688 = vmatmul.mubr.bf16.gmra.mrb[0].mxu0 %v1048
  %v1689 = vpop.f32.mrb[0].mxu0
  %v1690 = vadd.f32 0.0, %v1689
  %v1691 = vpop.f32.mrb[0].mxu0
  %v1692 = vpop.f32.mrb[0].mxu0
  %v1693 = vadd.f32 0.0, %v1692
  %v1694 = vpop.f32.mrb[0].mxu0
  %1695 = vmatprep.mubr.bf16.mxu0 0
  %1696 = vmatmul.mubr.bf16.gmra.mrb[0].mxu0 %v1049
  %v1697 = vpop.f32.mrb[0].mxu0
  %v1698 = vadd.f32 0.0, %v1697
  %v1699 = vpop.f32.mrb[0].mxu0
  %v1700 = vpop.f32.mrb[0].mxu0
  %v1701 = vadd.f32 0.0, %v1700
  %v1702 = vpop.f32.mrb[0].mxu0
  %1703 = vmatprep.mubr.bf16.mxu0 0
  %1704 = vmatmul.mubr.bf16.gmra.mrb[0].mxu0 %v1050
  %v1705 = vpop.f32.mrb[0].mxu0
  %v1706 = vadd.f32 0.0, %v1705
  %v1707 = vpop.f32.mrb[0].mxu0
  %v1708 = vpop.f32.mrb[0].mxu0
  %v1709 = vadd.f32 0.0, %v1708
  %v1710 = vpop.f32.mrb[0].mxu0
  %1711 = vmatprep.mubr.bf16.mxu0 0
  %1712 = vmatmul.mubr.bf16.gmra.mrb[0].mxu0 %v1051
  %v1713 = vpop.f32.mrb[0].mxu0
  %v1714 = vadd.f32 0.0, %v1713
  %v1715 = vpop.f32.mrb[0].mxu0
  %v1716 = vpop.f32.mrb[0].mxu0
  %v1717 = vadd.f32 0.0, %v1716
  %v1718 = vpop.f32.mrb[0].mxu0
  %1719 = vmatprep.mubr.bf16.mxu0 0
  %1720 = vmatmul.mubr.bf16.gmra.mrb[0].mxu0 %v1052
  %v1721 = vpop.f32.mrb[0].mxu0
  %v1722 = vadd.f32 0.0, %v1721
  %v1723 = vpop.f32.mrb[0].mxu0
  %v1724 = vpop.f32.mrb[0].mxu0
  %v1725 = vadd.f32 0.0, %v1724
  %v1726 = vpop.f32.mrb[0].mxu0
  %1727 = vmatprep.mubr.bf16.mxu0 0
  %1728 = vmatmul.mubr.bf16.gmra.mrb[0].mxu0 %v1053
  %v1729 = vpop.f32.mrb[0].mxu0
  %v1730 = vadd.f32 0.0, %v1729
  %v1731 = vpop.f32.mrb[0].mxu0
  %v1732 = vpop.f32.mrb[0].mxu0
  %v1733 = vadd.f32 0.0, %v1732
  %v1734 = vpop.f32.mrb[0].mxu0
  %1735 = vmatprep.mubr.bf16.mxu0 0
  %1736 = vmatmul.mubr.bf16.gmra.mrb[0].mxu0 %v1054
  %v1737 = vpop.f32.mrb[0].mxu0
  %v1738 = vadd.f32 0.0, %v1737
  %v1739 = vpop.f32.mrb[0].mxu0
  %v1740 = vpop.f32.mrb[0].mxu0
  %v1741 = vadd.f32 0.0, %v1740
  %v1742 = vpop.f32.mrb[0].mxu0
  %1743 = vmatprep.mubr.bf16.mxu0 0
  %1744 = vmatmul.mubr.bf16.gmra.mrb[0].mxu0 %v1055
  %v1745 = vpop.f32.mrb[0].mxu0
  %v1746 = vadd.f32 0.0, %v1745
  %v1747 = vpop.f32.mrb[0].mxu0
  %v1748 = vpop.f32.mrb[0].mxu0
  %v1749 = vadd.f32 0.0, %v1748
  %v1750 = vpop.f32.mrb[0].mxu0
  %1751 = vmatprep.mubr.bf16.mxu0 0
  %1752 = vmatmul.mubr.bf16.gmra.mrb[0].mxu0 %v1056
  %v1753 = vpop.f32.mrb[0].mxu0
  %v1754 = vadd.f32 0.0, %v1753
  %v1755 = vpop.f32.mrb[0].mxu0
  %v1756 = vpop.f32.mrb[0].mxu0
  %v1757 = vadd.f32 0.0, %v1756
  %v1758 = vpop.f32.mrb[0].mxu0
  %1759 = vmatprep.mubr.bf16.mxu0 0
  %1760 = vmatmul.mubr.bf16.gmra.mrb[0].mxu0 %v1057
  %v1761 = vpop.f32.mrb[0].mxu0
  %v1762 = vadd.f32 0.0, %v1761
  %v1763 = vpop.f32.mrb[0].mxu0
  %v1764 = vpop.f32.mrb[0].mxu0
  %v1765 = vadd.f32 0.0, %v1764
  %v1766 = vpop.f32.mrb[0].mxu0
  %1767 = vmatprep.mubr.bf16.mxu0 0
  %1768 = vmatmul.mubr.bf16.gmra.mrb[0].mxu0 %v1058
  %v1769 = vpop.f32.mrb[0].mxu0
  %v1770 = vadd.f32 0.0, %v1769
  %v1771 = vpop.f32.mrb[0].mxu0
  %v1772 = vpop.f32.mrb[0].mxu0
  %v1773 = vadd.f32 0.0, %v1772
  %v1774 = vpop.f32.mrb[0].mxu0
  %1775 = vmatprep.mubr.bf16.mxu0 0
  %1776 = vmatmul.mubr.bf16.gmra.mrb[0].mxu0 %v1059
  %v1777 = vpop.f32.mrb[0].mxu0
  %v1778 = vadd.f32 0.0, %v1777
  %v1779 = vpop.f32.mrb[0].mxu0
  %v1780 = vpop.f32.mrb[0].mxu0
  %v1781 = vadd.f32 0.0, %v1780
  %v1782 = vpop.f32.mrb[0].mxu0
  %1783 = vmatprep.mubr.bf16.mxu0 0
  %1784 = vmatmul.mubr.bf16.gmra.mrb[0].mxu0 %v1060
  %v1785 = vpop.f32.mrb[0].mxu0
  %v1786 = vadd.f32 0.0, %v1785
  %v1787 = vpop.f32.mrb[0].mxu0
  %v1788 = vpop.f32.mrb[0].mxu0
  %v1789 = vadd.f32 0.0, %v1788
  %v1790 = vpop.f32.mrb[0].mxu0
  %1791 = vmatprep.mubr.bf16.mxu0 0
  %1792 = vmatmul.mubr.bf16.gmra.mrb[0].mxu0 %v1061
  %v1793 = vpop.f32.mrb[0].mxu0
  %v1794 = vadd.f32 0.0, %v1793
  %v1795 = vpop.f32.mrb[0].mxu0
  %v1796 = vpop.f32.mrb[0].mxu0
  %v1797 = vadd.f32 0.0, %v1796
  %v1798 = vpop.f32.mrb[0].mxu0
  %1799 = vmatprep.mubr.bf16.mxu0 0
  %1800 = vmatmul.mubr.bf16.gmra.mrb[0].mxu0 %v1062
  %v1801 = vpop.f32.mrb[0].mxu0
  %v1802 = vadd.f32 0.0, %v1801
  %v1803 = vpop.f32.mrb[0].mxu0
  %v1804 = vpop.f32.mrb[0].mxu0
  %v1805 = vadd.f32 0.0, %v1804
  %v1806 = vpop.f32.mrb[0].mxu0
  %1807 = vmatprep.mubr.bf16.mxu0 0
  %1808 = vmatmul.mubr.bf16.gmra.mrb[0].mxu0 %v1063
  %v1809 = vpop.f32.mrb[0].mxu0
  %v1810 = vadd.f32 0.0, %v1809
  %v1811 = vpop.f32.mrb[0].mxu0
  %v1812 = vpop.f32.mrb[0].mxu0
  %v1813 = vadd.f32 0.0, %v1812
  %v1814 = vpop.f32.mrb[0].mxu0
  %1815 = vmatprep.mubr.bf16.mxu0 0
  %1816 = vmatmul.mubr.bf16.gmra.mrb[0].mxu0 %v1064
  %v1817 = vpop.f32.mrb[0].mxu0
  %v1818 = vadd.f32 0.0, %v1817
  %v1819 = vpop.f32.mrb[0].mxu0
  %v1820 = vpop.f32.mrb[0].mxu0
  %v1821 = vadd.f32 0.0, %v1820
  %v1822 = vpop.f32.mrb[0].mxu0
  %1823 = vmatprep.mubr.bf16.mxu0 0
  %1824 = vmatmul.mubr.bf16.gmra.mrb[0].mxu0 %v1065
  %v1825 = vpop.f32.mrb[0].mxu0
  %v1826 = vadd.f32 0.0, %v1825
  %v1827 = vpop.f32.mrb[0].mxu0
  %v1828 = vpop.f32.mrb[0].mxu0
  %v1829 = vadd.f32 0.0, %v1828
  %v1830 = vpop.f32.mrb[0].mxu0
  %1831 = vmatprep.mubr.bf16.mxu0 0
  %1832 = vmatmul.mubr.bf16.gmra.mrb[0].mxu0 %v1066
  %v1833 = vpop.f32.mrb[0].mxu0
  %v1834 = vadd.f32 0.0, %v1833
  %v1835 = vpop.f32.mrb[0].mxu0
  %v1836 = vpop.f32.mrb[0].mxu0
  %v1837 = vadd.f32 0.0, %v1836
  %v1838 = vpop.f32.mrb[0].mxu0
  %1839 = vmatprep.mubr.bf16.mxu0 0
  %1840 = vmatmul.mubr.bf16.gmra.mrb[0].mxu0 %v1067
  %v1841 = vpop.f32.mrb[0].mxu0
  %v1842 = vadd.f32 0.0, %v1841
  %v1843 = vpop.f32.mrb[0].mxu0
  %v1844 = vpop.f32.mrb[0].mxu0
  %v1845 = vadd.f32 0.0, %v1844
  %v1846 = vpop.f32.mrb[0].mxu0
  %1847 = vmatprep.mubr.bf16.mxu0 0
  %1848 = vmatmul.mubr.bf16.gmra.mrb[0].mxu0 %v1068
  %v1849 = vpop.f32.mrb[0].mxu0
  %v1850 = vadd.f32 0.0, %v1849
  %v1851 = vpop.f32.mrb[0].mxu0
  %v1852 = vpop.f32.mrb[0].mxu0
  %v1853 = vadd.f32 0.0, %v1852
  %v1854 = vpop.f32.mrb[0].mxu0
  %1855 = vmatprep.mubr.bf16.mxu0 0
  %1856 = vmatmul.mubr.bf16.gmra.mrb[0].mxu0 %v1069
  %v1857 = vpop.f32.mrb[0].mxu0
  %v1858 = vadd.f32 0.0, %v1857
  %v1859 = vpop.f32.mrb[0].mxu0
  %v1860 = vpop.f32.mrb[0].mxu0
  %v1861 = vadd.f32 0.0, %v1860
  %v1862 = vpop.f32.mrb[0].mxu0
  %1863 = vmatprep.mubr.bf16.mxu0 0
  %1864 = vmatmul.mubr.bf16.gmra.mrb[0].mxu0 %v1070
  %v1865 = vpop.f32.mrb[0].mxu0
  %v1866 = vadd.f32 0.0, %v1865
  %v1867 = vpop.f32.mrb[0].mxu0
  %v1868 = vpop.f32.mrb[0].mxu0
  %v1869 = vadd.f32 0.0, %v1868
  %v1870 = vpop.f32.mrb[0].mxu0
  %1871 = vmatprep.mubr.bf16.mxu0 0
  %1872 = vmatmul.mubr.bf16.gmra.mrb[0].mxu0 %v1071
  %v1873 = vpop.f32.mrb[0].mxu0
  %v1874 = vadd.f32 0.0, %v1873
  %v1875 = vpop.f32.mrb[0].mxu0
  %v1876 = vpop.f32.mrb[0].mxu0
  %v1877 = vadd.f32 0.0, %v1876
  %v1878 = vpop.f32.mrb[0].mxu0
  %1879 = vmatprep.mubr.bf16.mxu0 0
  %1880 = vmatmul.mubr.bf16.gmra.mrb[0].mxu0 %v1072
  %v1881 = vpop.f32.mrb[0].mxu0
  %v1882 = vadd.f32 0.0, %v1881
  %v1883 = vpop.f32.mrb[0].mxu0
  %v1884 = vpop.f32.mrb[0].mxu0
  %v1885 = vadd.f32 0.0, %v1884
  %v1886 = vpop.f32.mrb[0].mxu0
  %1887 = vmatprep.mubr.bf16.mxu0 0
  %1888 = vmatmul.mubr.bf16.gmra.mrb[0].mxu0 %v1073
  %v1889 = vpop.f32.mrb[0].mxu0
  %v1890 = vadd.f32 0.0, %v1889
  %v1891 = vpop.f32.mrb[0].mxu0
  %v1892 = vpop.f32.mrb[0].mxu0
  %v1893 = vadd.f32 0.0, %v1892
  %v1894 = vpop.f32.mrb[0].mxu0
  %1895 = vmatprep.mubr.bf16.mxu0 0
  %1896 = vmatmul.mubr.bf16.gmra.mrb[0].mxu0 %v1074
  %v1897 = vpop.f32.mrb[0].mxu0
  %v1898 = vadd.f32 0.0, %v1897
  %v1899 = vpop.f32.mrb[0].mxu0
  %v1900 = vpop.f32.mrb[0].mxu0
  %v1901 = vadd.f32 0.0, %v1900
  %v1902 = vpop.f32.mrb[0].mxu0
  %1903 = vmatprep.mubr.bf16.mxu0 0
  %1904 = vmatmul.mubr.bf16.gmra.mrb[0].mxu0 %v1075
  %v1905 = vpop.f32.mrb[0].mxu0
  %v1906 = vadd.f32 0.0, %v1905
  %v1907 = vpop.f32.mrb[0].mxu0
  %v1908 = vpop.f32.mrb[0].mxu0
  %v1909 = vadd.f32 0.0, %v1908
  %v1910 = vpop.f32.mrb[0].mxu0
  %1911 = vmatprep.mubr.bf16.mxu0 0
  %1912 = vmatmul.mubr.bf16.gmra.mrb[0].mxu0 %v1076
  %v1913 = vpop.f32.mrb[0].mxu0
  %v1914 = vadd.f32 0.0, %v1913
  %v1915 = vpop.f32.mrb[0].mxu0
  %v1916 = vpop.f32.mrb[0].mxu0
  %v1917 = vadd.f32 0.0, %v1916
  %v1918 = vpop.f32.mrb[0].mxu0
  %1919 = vmatprep.mubr.bf16.mxu0 0
  %1920 = vmatmul.mubr.bf16.gmra.mrb[0].mxu0 %v1077
  %v1921 = vpop.f32.mrb[0].mxu0
  %v1922 = vadd.f32 0.0, %v1921
  %v1923 = vpop.f32.mrb[0].mxu0
  %v1924 = vpop.f32.mrb[0].mxu0
  %v1925 = vadd.f32 0.0, %v1924
  %v1926 = vpop.f32.mrb[0].mxu0
  %1927 = vmatprep.mubr.bf16.mxu0 0
  %1928 = vmatmul.mubr.bf16.gmra.mrb[0].mxu0 %v1078
  %v1929 = vpop.f32.mrb[0].mxu0
  %v1930 = vadd.f32 0.0, %v1929
  %v1931 = vpop.f32.mrb[0].mxu0
  %v1932 = vpop.f32.mrb[0].mxu0
  %v1933 = vadd.f32 0.0, %v1932
  %v1934 = vpop.f32.mrb[0].mxu0
  %1935 = vmatprep.mubr.bf16.mxu0 0
  %1936 = vmatmul.mubr.bf16.gmra.mrb[0].mxu0 %v1079
  %v1937 = vpop.f32.mrb[0].mxu0
  %v1938 = vadd.f32 0.0, %v1937
  %v1939 = vpop.f32.mrb[0].mxu0
  %v1940 = vpop.f32.mrb[0].mxu0
  %v1941 = vadd.f32 0.0, %v1940
  %v1942 = vpop.f32.mrb[0].mxu0
  %1943 = vmatprep.mubr.bf16.mxu0 0
  %1944 = vmatmul.mubr.bf16.gmra.mrb[0].mxu0 %v1080
  %v1945 = vpop.f32.mrb[0].mxu0
  %v1946 = vadd.f32 0.0, %v1945
  %v1947 = vpop.f32.mrb[0].mxu0
  %v1948 = vpop.f32.mrb[0].mxu0
  %v1949 = vadd.f32 0.0, %v1948
  %v1950 = vpop.f32.mrb[0].mxu0
  %1951 = vmatprep.mubr.bf16.mxu0 0
  %1952 = vmatmul.mubr.bf16.gmra.mrb[0].mxu0 %v1081
  %v1953 = vpop.f32.mrb[0].mxu0
  %v1954 = vadd.f32 0.0, %v1953
  %v1955 = vpop.f32.mrb[0].mxu0
  %v1956 = vpop.f32.mrb[0].mxu0
  %v1957 = vadd.f32 0.0, %v1956
  %v1958 = vpop.f32.mrb[0].mxu0
  %1959 = vmatprep.mubr.bf16.mxu0 0
  %1960 = vmatmul.mubr.bf16.gmra.mrb[0].mxu0 %v1082
  %v1961 = vpop.f32.mrb[0].mxu0
  %v1962 = vadd.f32 0.0, %v1961
  %v1963 = vpop.f32.mrb[0].mxu0
  %v1964 = vpop.f32.mrb[0].mxu0
  %v1965 = vadd.f32 0.0, %v1964
  %v1966 = vpop.f32.mrb[0].mxu0
  %1967 = vmatprep.mubr.bf16.mxu0 0
  %1968 = vmatmul.mubr.bf16.gmra.mrb[0].mxu0 %v1083
  %v1969 = vpop.f32.mrb[0].mxu0
  %v1970 = vadd.f32 0.0, %v1969
  %v1971 = vpop.f32.mrb[0].mxu0
  %v1972 = vpop.f32.mrb[0].mxu0
  %v1973 = vadd.f32 0.0, %v1972
  %v1974 = vpop.f32.mrb[0].mxu0
  %1975 = vmatprep.mubr.bf16.mxu0 0
  %1976 = vmatmul.mubr.bf16.gmra.mrb[0].mxu0 %v1084
  %v1977 = vpop.f32.mrb[0].mxu0
  %v1978 = vadd.f32 0.0, %v1977
  %v1979 = vpop.f32.mrb[0].mxu0
  %v1980 = vpop.f32.mrb[0].mxu0
  %v1981 = vadd.f32 0.0, %v1980
  %v1982 = vpop.f32.mrb[0].mxu0
  %1983 = vmatprep.mubr.bf16.mxu0 0
  %1984 = vmatmul.mubr.bf16.gmra.mrb[0].mxu0 %v1085
  %v1985 = vpop.f32.mrb[0].mxu0
  %v1986 = vadd.f32 0.0, %v1985
  %v1987 = vpop.f32.mrb[0].mxu0
  %v1988 = vpop.f32.mrb[0].mxu0
  %v1989 = vadd.f32 0.0, %v1988
  %v1990 = vpop.f32.mrb[0].mxu0
  %1991 = vmatprep.mubr.bf16.mxu0 0
  %1992 = vmatmul.mubr.bf16.gmra.mrb[0].mxu0 %v1086
  %v1993 = vpop.f32.mrb[0].mxu0
  %v1994 = vadd.f32 0.0, %v1993
  %v1995 = vpop.f32.mrb[0].mxu0
  %v1996 = vpop.f32.mrb[0].mxu0
  %v1997 = vadd.f32 0.0, %v1996
  %v1998 = vpop.f32.mrb[0].mxu0
  %1999 = vmatprep.mubr.bf16.mxu0 0
  %2000 = vmatmul.mubr.bf16.gmra.mrb[0].mxu0 %v1087
  %v2001 = vpop.f32.mrb[0].mxu0
  %v2002 = vadd.f32 0.0, %v2001
  %v2003 = vpop.f32.mrb[0].mxu0
  %v2004 = vpop.f32.mrb[0].mxu0
  %v2005 = vadd.f32 0.0, %v2004
  %v2006 = vpop.f32.mrb[0].mxu0
  %2007 = vmatprep.mubr.bf16.mxu0 0
  %2008 = vmatmul.mubr.bf16.gmra.mrb[0].mxu0 %v1088
  %v2009 = vpop.f32.mrb[0].mxu0
  %v2010 = vadd.f32 0.0, %v2009
  %v2011 = vpop.f32.mrb[0].mxu0
  %v2012 = vpop.f32.mrb[0].mxu0
  %v2013 = vadd.f32 0.0, %v2012
  %v2014 = vpop.f32.mrb[0].mxu0
  %2015 = vmatprep.mubr.bf16.mxu0 0
  %2016 = vmatmul.mubr.bf16.gmra.mrb[0].mxu0 %v1089
  %v2017 = vpop.f32.mrb[0].mxu0
  %v2018 = vadd.f32 0.0, %v2017
  %v2019 = vpop.f32.mrb[0].mxu0
  %v2020 = vpop.f32.mrb[0].mxu0
  %v2021 = vadd.f32 0.0, %v2020
  %v2022 = vpop.f32.mrb[0].mxu0
  %2023 = vmatprep.mubr.bf16.mxu0 0
  %2024 = vmatmul.mubr.bf16.gmra.mrb[0].mxu0 %v1090
  %v2025 = vpop.f32.mrb[0].mxu0
  %v2026 = vadd.f32 0.0, %v2025
  %v2027 = vpop.f32.mrb[0].mxu0
  %v2028 = vpop.f32.mrb[0].mxu0
  %v2029 = vadd.f32 0.0, %v2028
  %v2030 = vpop.f32.mrb[0].mxu0
  %2031 = vmatprep.mubr.bf16.mxu0 0
  %2032 = vmatmul.mubr.bf16.gmra.mrb[0].mxu0 %v1091
  %v2033 = vpop.f32.mrb[0].mxu0
  %v2034 = vadd.f32 0.0, %v2033
  %v2035 = vpop.f32.mrb[0].mxu0
  %v2036 = vpop.f32.mrb[0].mxu0
  %v2037 = vadd.f32 0.0, %v2036
  %v2038 = vpop.f32.mrb[0].mxu0
  %2039 = vmatprep.mubr.bf16.mxu0 0
  %2040 = vmatmul.mubr.bf16.gmra.mrb[0].mxu0 %v1092
  %v2041 = vpop.f32.mrb[0].mxu0
  %v2042 = vadd.f32 0.0, %v2041
  %v2043 = vpop.f32.mrb[0].mxu0
  %v2044 = vpop.f32.mrb[0].mxu0
  %v2045 = vadd.f32 0.0, %v2044
  %v2046 = vpop.f32.mrb[0].mxu0
  %2047 = vmatprep.mubr.bf16.mxu0 0
  %2048 = vmatmul.mubr.bf16.gmra.mrb[0].mxu0 %v1093
  %v2049 = vpop.f32.mrb[0].mxu0
  %v2050 = vadd.f32 0.0, %v2049
  %v2051 = vpop.f32.mrb[0].mxu0
  %v2052 = vpop.f32.mrb[0].mxu0
  %v2053 = vadd.f32 0.0, %v2052
  %v2054 = vpop.f32.mrb[0].mxu0
  %2055 = vmatprep.mubr.bf16.mxu0 0
  %2056 = vmatmul.mubr.bf16.gmra.mrb[0].mxu0 %v1094
  %v2057 = vpop.f32.mrb[0].mxu0
  %v2058 = vadd.f32 0.0, %v2057
  %v2059 = vpop.f32.mrb[0].mxu0
  %v2060 = vpop.f32.mrb[0].mxu0
  %v2061 = vadd.f32 0.0, %v2060
  %v2062 = vpop.f32.mrb[0].mxu0
  %2063 = vmatprep.mubr.bf16.mxu0 0
  %2064 = vmatmul.mubr.bf16.gmra.mrb[0].mxu0 %v1095
  %v2065 = vpop.f32.mrb[0].mxu0
  %v2066 = vadd.f32 0.0, %v2065
  %v2067 = vpop.f32.mrb[0].mxu0
  %v2068 = vpop.f32.mrb[0].mxu0
  %v2069 = vadd.f32 0.0, %v2068
  %v2070 = vpop.f32.mrb[0].mxu0
  %2071 = vmatprep.mubr.bf16.mxu0 0
  %2072 = vmatmul.mubr.bf16.gmra.mrb[0].mxu0 %v1096
  %v2073 = vpop.f32.mrb[0].mxu0
  %v2074 = vadd.f32 0.0, %v2073
  %v2075 = vpop.f32.mrb[0].mxu0
  %v2076 = vpop.f32.mrb[0].mxu0
  %v2077 = vadd.f32 0.0, %v2076
  %v2078 = vpop.f32.mrb[0].mxu0
  %2079 = vmatprep.mubr.bf16.mxu0 0
  %2080 = vmatmul.mubr.bf16.gmra.mrb[0].mxu0 %v1097
  %v2081 = vpop.f32.mrb[0].mxu0
  %v2082 = vadd.f32 0.0, %v2081
  %v2083 = vpop.f32.mrb[0].mxu0
  %v2084 = vpop.f32.mrb[0].mxu0
  %v2085 = vadd.f32 0.0, %v2084
  %v2086 = vpop.f32.mrb[0].mxu0
  %2087 = vmatprep.mubr.bf16.mxu0 0
  %2088 = vmatmul.mubr.bf16.gmra.mrb[0].mxu0 %v1098
  %v2089 = vpop.f32.mrb[0].mxu0
  %v2090 = vadd.f32 0.0, %v2089
  %v2091 = vpop.f32.mrb[0].mxu0
  %v2092 = vpop.f32.mrb[0].mxu0
  %v2093 = vadd.f32 0.0, %v2092
  %v2094 = vpop.f32.mrb[0].mxu0
  %2095 = vmatprep.mubr.bf16.mxu0 0
  %2096 = vmatmul.mubr.bf16.gmra.mrb[0].mxu0 %v1099
  %v2097 = vpop.f32.mrb[0].mxu0
  %v2098 = vadd.f32 0.0, %v2097
  %v2099 = vpop.f32.mrb[0].mxu0
  %v2100 = vpop.f32.mrb[0].mxu0
  %v2101 = vadd.f32 0.0, %v2100
  %v2102 = vpop.f32.mrb[0].mxu0
  %2103 = vmatprep.mubr.bf16.mxu0 0
  %2104 = vmatmul.mubr.bf16.gmra.mrb[0].mxu0 %v1100
  %v2105 = vpop.f32.mrb[0].mxu0
  %v2106 = vadd.f32 0.0, %v2105
  %v2107 = vpop.f32.mrb[0].mxu0
  %v2108 = vpop.f32.mrb[0].mxu0
  %v2109 = vadd.f32 0.0, %v2108
  %v2110 = vpop.f32.mrb[0].mxu0
  %2111 = vmatprep.mubr.bf16.mxu0 0
  %2112 = vmatmul.mubr.bf16.gmra.mrb[0].mxu0 %v1101
  %v2113 = vpop.f32.mrb[0].mxu0
  %v2114 = vadd.f32 0.0, %v2113
  %v2115 = vpop.f32.mrb[0].mxu0
  %v2116 = vpop.f32.mrb[0].mxu0
  %v2117 = vadd.f32 0.0, %v2116
  %v2118 = vpop.f32.mrb[0].mxu0
  %2119 = vmatprep.mubr.bf16.mxu0 0
  %2120 = vmatmul.mubr.bf16.gmra.mrb[0].mxu0 %v1102
  %v2121 = vpop.f32.mrb[0].mxu0
  %v2122 = vadd.f32 0.0, %v2121
  %v2123 = vpop.f32.mrb[0].mxu0
  %v2124 = vpop.f32.mrb[0].mxu0
  %v2125 = vadd.f32 0.0, %v2124
  %v2126 = vpop.f32.mrb[0].mxu0
  %2127 = vmatprep.mubr.bf16.mxu0 0
  %2128 = vmatmul.mubr.bf16.gmra.mrb[0].mxu0 %v1103
  %v2129 = vpop.f32.mrb[0].mxu0
  %v2130 = vadd.f32 0.0, %v2129
  %v2131 = vpop.f32.mrb[0].mxu0
  %v2132 = vpop.f32.mrb[0].mxu0
  %v2133 = vadd.f32 0.0, %v2132
  %v2134 = vpop.f32.mrb[0].mxu0
  %2135 = vmatprep.mubr.bf16.mxu0 0
  %2136 = vmatmul.mubr.bf16.gmra.mrb[0].mxu0 %v1104
  %v2137 = vpop.f32.mrb[0].mxu0
  %v2138 = vadd.f32 0.0, %v2137
  %v2139 = vpop.f32.mrb[0].mxu0
  %v2140 = vpop.f32.mrb[0].mxu0
  %v2141 = vadd.f32 0.0, %v2140
  %v2142 = vpop.f32.mrb[0].mxu0
  %2143 = vmatprep.mubr.bf16.mxu0 0
  %2144 = vmatmul.mubr.bf16.gmra.mrb[0].mxu0 %v1105
  %v2145 = vpop.f32.mrb[0].mxu0
  %v2146 = vadd.f32 0.0, %v2145
  %v2147 = vpop.f32.mrb[0].mxu0
  %v2148 = vpop.f32.mrb[0].mxu0
  %v2149 = vadd.f32 0.0, %v2148
  %v2150 = vpop.f32.mrb[0].mxu0
  %2151 = vmatprep.mubr.bf16.mxu0 0
  %2152 = vmatmul.mubr.bf16.gmra.mrb[0].mxu0 %v1106
  %v2153 = vpop.f32.mrb[0].mxu0
  %v2154 = vadd.f32 0.0, %v2153
  %v2155 = vpop.f32.mrb[0].mxu0
  %v2156 = vpop.f32.mrb[0].mxu0
  %v2157 = vadd.f32 0.0, %v2156
  %v2158 = vpop.f32.mrb[0].mxu0
  %2159 = vmatprep.mubr.bf16.mxu0 0
  %2160 = vmatmul.mubr.bf16.gmra.mrb[0].mxu0 %v1107
  %v2161 = vpop.f32.mrb[0].mxu0
  %v2162 = vadd.f32 0.0, %v2161
  %v2163 = vpop.f32.mrb[0].mxu0
  %v2164 = vpop.f32.mrb[0].mxu0
  %v2165 = vadd.f32 0.0, %v2164
  %v2166 = vpop.f32.mrb[0].mxu0
  %2167 = vmatprep.mubr.bf16.mxu0 0
  %2168 = vmatmul.mubr.bf16.gmra.mrb[0].mxu0 %v1108
  %v2169 = vpop.f32.mrb[0].mxu0
  %v2170 = vadd.f32 0.0, %v2169
  %v2171 = vpop.f32.mrb[0].mxu0
  %v2172 = vpop.f32.mrb[0].mxu0
  %v2173 = vadd.f32 0.0, %v2172
  %v2174 = vpop.f32.mrb[0].mxu0
  %2175 = vmatprep.mubr.bf16.mxu0 0
  %2176 = vmatmul.mubr.bf16.gmra.mrb[0].mxu0 %v1109
  %v2177 = vpop.f32.mrb[0].mxu0
  %v2178 = vadd.f32 0.0, %v2177
  %v2179 = vpop.f32.mrb[0].mxu0
  %v2180 = vpop.f32.mrb[0].mxu0
  %v2181 = vadd.f32 0.0, %v2180
  %v2182 = vpop.f32.mrb[0].mxu0
  %2183 = vmatprep.mubr.bf16.mxu0 0
  %2184 = vmatmul.mubr.bf16.gmra.mrb[0].mxu0 %v1110
  %v2185 = vpop.f32.mrb[0].mxu0
  %v2186 = vadd.f32 0.0, %v2185
  %v2187 = vpop.f32.mrb[0].mxu0
  %v2188 = vpop.f32.mrb[0].mxu0
  %v2189 = vadd.f32 0.0, %v2188
  %v2190 = vpop.f32.mrb[0].mxu0
  %2191 = vmatprep.mubr.bf16.mxu0 0
  %2192 = vmatmul.mubr.bf16.gmra.mrb[0].mxu0 %v1111
  %v2193 = vpop.f32.mrb[0].mxu0
  %v2194 = vadd.f32 0.0, %v2193
  %v2195 = vpop.f32.mrb[0].mxu0
  %v2196 = vpop.f32.mrb[0].mxu0
  %v2197 = vadd.f32 0.0, %v2196
  %v2198 = vpop.f32.mrb[0].mxu0
  %2199 = vmatprep.mubr.bf16.mxu0 0
  %2200 = vmatmul.mubr.bf16.gmra.mrb[0].mxu0 %v1112
  %v2201 = vpop.f32.mrb[0].mxu0
  %v2202 = vadd.f32 0.0, %v2201
  %v2203 = vpop.f32.mrb[0].mxu0
  %v2204 = vpop.f32.mrb[0].mxu0
  %v2205 = vadd.f32 0.0, %v2204
  %v2206 = vpop.f32.mrb[0].mxu0
  %2207 = vmatprep.mubr.bf16.mxu0 0
  %2208 = vmatmul.mubr.bf16.gmra.mrb[0].mxu0 %v1113
  %v2209 = vpop.f32.mrb[0].mxu0
  %v2210 = vadd.f32 0.0, %v2209
  %v2211 = vpop.f32.mrb[0].mxu0
  %v2212 = vpop.f32.mrb[0].mxu0
  %v2213 = vadd.f32 0.0, %v2212
  %v2214 = vpop.f32.mrb[0].mxu0
  %2215 = vmatprep.mubr.bf16.mxu0 0
  %2216 = vmatmul.mubr.bf16.gmra.mrb[0].mxu0 %v1114
  %v2217 = vpop.f32.mrb[0].mxu0
  %v2218 = vadd.f32 0.0, %v2217
  %v2219 = vpop.f32.mrb[0].mxu0
  %v2220 = vpop.f32.mrb[0].mxu0
  %v2221 = vadd.f32 0.0, %v2220
  %v2222 = vpop.f32.mrb[0].mxu0
  %2223 = vmatprep.mubr.bf16.mxu0 0
  %2224 = vmatmul.mubr.bf16.gmra.mrb[0].mxu0 %v1115
  %v2225 = vpop.f32.mrb[0].mxu0
  %v2226 = vadd.f32 0.0, %v2225
  %v2227 = vpop.f32.mrb[0].mxu0
  %v2228 = vpop.f32.mrb[0].mxu0
  %v2229 = vadd.f32 0.0, %v2228
  %v2230 = vpop.f32.mrb[0].mxu0
  %2231 = vmatprep.mubr.bf16.mxu0 0
  %2232 = vmatmul.mubr.bf16.gmra.mrb[0].mxu0 %v1116
  %v2233 = vpop.f32.mrb[0].mxu0
  %v2234 = vadd.f32 0.0, %v2233
  %v2235 = vpop.f32.mrb[0].mxu0
  %v2236 = vpop.f32.mrb[0].mxu0
  %v2237 = vadd.f32 0.0, %v2236
  %v2238 = vpop.f32.mrb[0].mxu0
  %2239 = vmatprep.mubr.bf16.mxu0 0
  %2240 = vmatmul.mubr.bf16.gmra.mrb[0].mxu0 %v1117
  %v2241 = vpop.f32.mrb[0].mxu0
  %v2242 = vadd.f32 0.0, %v2241
  %v2243 = vpop.f32.mrb[0].mxu0
  %v2244 = vpop.f32.mrb[0].mxu0
  %v2245 = vadd.f32 0.0, %v2244
  %v2246 = vpop.f32.mrb[0].mxu0
  %2247 = vmatprep.mubr.bf16.mxu0 0
  %2248 = vmatmul.mubr.bf16.gmra.mrb[0].mxu0 %v1118
  %v2249 = vpop.f32.mrb[0].mxu0
  %v2250 = vadd.f32 0.0, %v2249
  %v2251 = vpop.f32.mrb[0].mxu0
  %v2252 = vpop.f32.mrb[0].mxu0
  %v2253 = vadd.f32 0.0, %v2252
  %v2254 = vpop.f32.mrb[0].mxu0
  %2255 = vmatprep.mubr.bf16.mxu0 0
  %2256 = vmatmul.mubr.bf16.gmra.mrb[0].mxu0 %v1119
  %v2257 = vpop.f32.mrb[0].mxu0
  %v2258 = vadd.f32 0.0, %v2257
  %v2259 = vpop.f32.mrb[0].mxu0
  %v2260 = vpop.f32.mrb[0].mxu0
  %v2261 = vadd.f32 0.0, %v2260
  %v2262 = vpop.f32.mrb[0].mxu0
  %2263 = vmatprep.mubr.bf16.mxu0 0
  %2264 = vmatmul.mubr.bf16.gmra.mrb[0].mxu0 %v1120
  %v2265 = vpop.f32.mrb[0].mxu0
  %v2266 = vadd.f32 0.0, %v2265
  %v2267 = vpop.f32.mrb[0].mxu0
  %v2268 = vpop.f32.mrb[0].mxu0
  %v2269 = vadd.f32 0.0, %v2268
  %v2270 = vpop.f32.mrb[0].mxu0
  %2271 = vmatprep.mubr.bf16.mxu0 0
  %2272 = vmatmul.mubr.bf16.gmra.mrb[0].mxu0 %v1121
  %v2273 = vpop.f32.mrb[0].mxu0
  %v2274 = vadd.f32 0.0, %v2273
  %v2275 = vpop.f32.mrb[0].mxu0
  %v2276 = vpop.f32.mrb[0].mxu0
  %v2277 = vadd.f32 0.0, %v2276
  %v2278 = vpop.f32.mrb[0].mxu0
  %2279 = vmatprep.mubr.bf16.mxu0 0
  %2280 = vmatmul.mubr.bf16.gmra.mrb[0].mxu0 %v1122
  %v2281 = vpop.f32.mrb[0].mxu0
  %v2282 = vadd.f32 0.0, %v2281
  %v2283 = vpop.f32.mrb[0].mxu0
  %v2284 = vpop.f32.mrb[0].mxu0
  %v2285 = vadd.f32 0.0, %v2284
  %v2286 = vpop.f32.mrb[0].mxu0
  %2287 = vmatprep.mubr.bf16.mxu0 0
  %2288 = vmatmul.mubr.bf16.gmra.mrb[0].mxu0 %v1123
  %v2289 = vpop.f32.mrb[0].mxu0
  %v2290 = vadd.f32 0.0, %v2289
  %v2291 = vpop.f32.mrb[0].mxu0
  %v2292 = vpop.f32.mrb[0].mxu0
  %v2293 = vadd.f32 0.0, %v2292
  %v2294 = vpop.f32.mrb[0].mxu0
  %2295 = vmatprep.mubr.bf16.mxu0 0
  %2296 = vmatmul.mubr.bf16.gmra.mrb[0].mxu0 %v1124
  %v2297 = vpop.f32.mrb[0].mxu0
  %v2298 = vadd.f32 0.0, %v2297
  %v2299 = vpop.f32.mrb[0].mxu0
  %v2300 = vpop.f32.mrb[0].mxu0
  %v2301 = vadd.f32 0.0, %v2300
  %v2302 = vpop.f32.mrb[0].mxu0
  %2303 = vmatprep.mubr.bf16.mxu0 0
  %2304 = vmatmul.mubr.bf16.gmra.mrb[0].mxu0 %v1125
  %v2305 = vpop.f32.mrb[0].mxu0
  %v2306 = vadd.f32 0.0, %v2305
  %v2307 = vpop.f32.mrb[0].mxu0
  %v2308 = vpop.f32.mrb[0].mxu0
  %v2309 = vadd.f32 0.0, %v2308
  %v2310 = vpop.f32.mrb[0].mxu0
  %2311 = vmatprep.mubr.bf16.mxu0 0
  %2312 = vmatmul.mubr.bf16.gmra.mrb[0].mxu0 %v1126
  %v2313 = vpop.f32.mrb[0].mxu0
  %v2314 = vadd.f32 0.0, %v2313
  %v2315 = vpop.f32.mrb[0].mxu0
  %v2316 = vpop.f32.mrb[0].mxu0
  %v2317 = vadd.f32 0.0, %v2316
  %v2318 = vpop.f32.mrb[0].mxu0
  %2319 = vmatprep.mubr.bf16.mxu0 0
  %2320 = vmatmul.mubr.bf16.gmra.mrb[0].mxu0 %v1127
  %v2321 = vpop.f32.mrb[0].mxu0
  %v2322 = vadd.f32 0.0, %v2321
  %v2323 = vpop.f32.mrb[0].mxu0
  %v2324 = vpop.f32.mrb[0].mxu0
  %v2325 = vadd.f32 0.0, %v2324
  %v2326 = vpop.f32.mrb[0].mxu0
  %2327 = vmatprep.mubr.bf16.mxu0 0
  %2328 = vmatmul.mubr.bf16.gmra.mrb[0].mxu0 %v1128
  %v2329 = vpop.f32.mrb[0].mxu0
  %v2330 = vadd.f32 0.0, %v2329
  %v2331 = vpop.f32.mrb[0].mxu0
  %v2332 = vpop.f32.mrb[0].mxu0
  %v2333 = vadd.f32 0.0, %v2332
  %v2334 = vpop.f32.mrb[0].mxu0
  %2335 = vmatprep.mubr.bf16.mxu0 0
  %2336 = vmatmul.mubr.bf16.gmra.mrb[0].mxu0 %v1129
  %v2337 = vpop.f32.mrb[0].mxu0
  %v2338 = vadd.f32 0.0, %v2337
  %v2339 = vpop.f32.mrb[0].mxu0
  %v2340 = vpop.f32.mrb[0].mxu0
  %v2341 = vadd.f32 0.0, %v2340
  %v2342 = vpop.f32.mrb[0].mxu0
  %2343 = vmatprep.mubr.bf16.mxu0 0
  %2344 = vmatmul.mubr.bf16.gmra.mrb[0].mxu0 %v1130
  %v2345 = vpop.f32.mrb[0].mxu0
  %v2346 = vadd.f32 0.0, %v2345
  %v2347 = vpop.f32.mrb[0].mxu0
  %v2348 = vpop.f32.mrb[0].mxu0
  %v2349 = vadd.f32 0.0, %v2348
  %v2350 = vpop.f32.mrb[0].mxu0
  %2351 = vmatprep.mubr.bf16.mxu0 0
  %2352 = vmatmul.mubr.bf16.gmra.mrb[0].mxu0 %v1131
  %v2353 = vpop.f32.mrb[0].mxu0
  %v2354 = vadd.f32 0.0, %v2353
  %v2355 = vpop.f32.mrb[0].mxu0
  %v2356 = vpop.f32.mrb[0].mxu0
  %v2357 = vadd.f32 0.0, %v2356
  %v2358 = vpop.f32.mrb[0].mxu0
  %2359 = vmatprep.mubr.bf16.mxu0 0
  %2360 = vmatmul.mubr.bf16.gmra.mrb[0].mxu0 %v1132
  %v2361 = vpop.f32.mrb[0].mxu0
  %v2362 = vadd.f32 0.0, %v2361
  %v2363 = vpop.f32.mrb[0].mxu0
  %v2364 = vpop.f32.mrb[0].mxu0
  %v2365 = vadd.f32 0.0, %v2364
  %v2366 = vpop.f32.mrb[0].mxu0
  %2367 = vmatprep.mubr.bf16.mxu0 0
  %2368 = vmatmul.mubr.bf16.gmra.mrb[0].mxu0 %v1133
  %v2369 = vpop.f32.mrb[0].mxu0
  %v2370 = vadd.f32 0.0, %v2369
  %v2371 = vpop.f32.mrb[0].mxu0
  %v2372 = vpop.f32.mrb[0].mxu0
  %v2373 = vadd.f32 0.0, %v2372
  %v2374 = vpop.f32.mrb[0].mxu0
  %2375 = vmatprep.mubr.bf16.mxu0 0
  %2376 = vmatmul.mubr.bf16.gmra.mrb[0].mxu0 %v1134
  %v2377 = vpop.f32.mrb[0].mxu0
  %v2378 = vadd.f32 0.0, %v2377
  %v2379 = vpop.f32.mrb[0].mxu0
  %v2380 = vpop.f32.mrb[0].mxu0
  %v2381 = vadd.f32 0.0, %v2380
  %v2382 = vpop.f32.mrb[0].mxu0
  %2383 = vmatprep.mubr.bf16.mxu0 0
  %2384 = vmatmul.mubr.bf16.gmra.mrb[0].mxu0 %v1135
  %v2385 = vpop.f32.mrb[0].mxu0
  %v2386 = vadd.f32 0.0, %v2385
  %v2387 = vpop.f32.mrb[0].mxu0
  %v2388 = vpop.f32.mrb[0].mxu0
  %v2389 = vadd.f32 0.0, %v2388
  %v2390 = vpop.f32.mrb[0].mxu0
  %2391 = vmatprep.mubr.bf16.mxu0 0
  %2392 = vmatmul.mubr.bf16.gmra.mrb[0].mxu0 %v1136
  %v2393 = vpop.f32.mrb[0].mxu0
  %v2394 = vadd.f32 0.0, %v2393
  %v2395 = vpop.f32.mrb[0].mxu0
  %v2396 = vpop.f32.mrb[0].mxu0
  %v2397 = vadd.f32 0.0, %v2396
  %v2398 = vpop.f32.mrb[0].mxu0
  %2399 = vmatprep.mubr.bf16.mxu0 0
  %2400 = vmatmul.mubr.bf16.gmra.mrb[0].mxu0 %v1137
  %v2401 = vpop.f32.mrb[0].mxu0
  %v2402 = vadd.f32 0.0, %v2401
  %v2403 = vpop.f32.mrb[0].mxu0
  %v2404 = vpop.f32.mrb[0].mxu0
  %v2405 = vadd.f32 0.0, %v2404
  %v2406 = vpop.f32.mrb[0].mxu0
  %2407 = vmatprep.mubr.bf16.mxu0 0
  %2408 = vmatmul.mubr.bf16.gmra.mrb[0].mxu0 %v1138
  %v2409 = vpop.f32.mrb[0].mxu0
  %v2410 = vadd.f32 0.0, %v2409
  %v2411 = vpop.f32.mrb[0].mxu0
  %v2412 = vpop.f32.mrb[0].mxu0
  %v2413 = vadd.f32 0.0, %v2412
  %v2414 = vpop.f32.mrb[0].mxu0
  %2415 = vmatprep.mubr.bf16.mxu0 0
  %2416 = vmatmul.mubr.bf16.gmra.mrb[0].mxu0 %v1139
  %v2417 = vpop.f32.mrb[0].mxu0
  %v2418 = vadd.f32 0.0, %v2417
  %v2419 = vpop.f32.mrb[0].mxu0
  %v2420 = vpop.f32.mrb[0].mxu0
  %v2421 = vadd.f32 0.0, %v2420
  %v2422 = vpop.f32.mrb[0].mxu0
  %2423 = vmatprep.mubr.bf16.mxu0 0
  %2424 = vmatmul.mubr.bf16.gmra.mrb[0].mxu0 %v1140
  %v2425 = vpop.f32.mrb[0].mxu0
  %v2426 = vadd.f32 0.0, %v2425
  %v2427 = vpop.f32.mrb[0].mxu0
  %v2428 = vpop.f32.mrb[0].mxu0
  %v2429 = vadd.f32 0.0, %v2428
  %v2430 = vpop.f32.mrb[0].mxu0
  %2431 = vmatprep.mubr.bf16.mxu0 0
  %2432 = vmatmul.mubr.bf16.gmra.mrb[0].mxu0 %v1141
  %v2433 = vpop.f32.mrb[0].mxu0
  %v2434 = vadd.f32 0.0, %v2433
  %v2435 = vpop.f32.mrb[0].mxu0
  %v2436 = vpop.f32.mrb[0].mxu0
  %v2437 = vadd.f32 0.0, %v2436
  %v2438 = vpop.f32.mrb[0].mxu0
  %2439 = vmatprep.mubr.bf16.mxu0 0
  %2440 = vmatmul.mubr.bf16.gmra.mrb[0].mxu0 %v1142
  %v2441 = vpop.f32.mrb[0].mxu0
  %v2442 = vadd.f32 0.0, %v2441
  %v2443 = vpop.f32.mrb[0].mxu0
  %v2444 = vpop.f32.mrb[0].mxu0
  %v2445 = vadd.f32 0.0, %v2444
  %v2446 = vpop.f32.mrb[0].mxu0
  %2447 = vmatprep.mubr.bf16.mxu0 0
  %2448 = vmatmul.mubr.bf16.gmra.mrb[0].mxu0 %v1143
  %v2449 = vpop.f32.mrb[0].mxu0
  %v2450 = vadd.f32 0.0, %v2449
  %v2451 = vpop.f32.mrb[0].mxu0
  %v2452 = vpop.f32.mrb[0].mxu0
  %v2453 = vadd.f32 0.0, %v2452
  %v2454 = vpop.f32.mrb[0].mxu0
  %2455 = vmatprep.mubr.bf16.mxu0 0
  %2456 = vmatmul.mubr.bf16.gmra.mrb[0].mxu0 %v1144
  %v2457 = vpop.f32.mrb[0].mxu0
  %v2458 = vadd.f32 0.0, %v2457
  %v2459 = vpop.f32.mrb[0].mxu0
  %v2460 = vpop.f32.mrb[0].mxu0
  %v2461 = vadd.f32 0.0, %v2460
  %v2462 = vpop.f32.mrb[0].mxu0
  %2463 = vmatprep.mubr.bf16.mxu0 0
  %2464 = vmatmul.mubr.bf16.gmra.mrb[0].mxu0 %v1145
  %v2465 = vpop.f32.mrb[0].mxu0
  %v2466 = vadd.f32 0.0, %v2465
  %v2467 = vpop.f32.mrb[0].mxu0
  %v2468 = vpop.f32.mrb[0].mxu0
  %v2469 = vadd.f32 0.0, %v2468
  %v2470 = vpop.f32.mrb[0].mxu0
  %2471 = vmatprep.mubr.bf16.mxu0 0
  %2472 = vmatmul.mubr.bf16.gmra.mrb[0].mxu0 %v1146
  %v2473 = vpop.f32.mrb[0].mxu0
  %v2474 = vadd.f32 0.0, %v2473
  %v2475 = vpop.f32.mrb[0].mxu0
  %v2476 = vpop.f32.mrb[0].mxu0
  %v2477 = vadd.f32 0.0, %v2476
  %v2478 = vpop.f32.mrb[0].mxu0
  %2479 = vmatprep.mubr.bf16.mxu0 0
  %2480 = vmatmul.mubr.bf16.gmra.mrb[0].mxu0 %v1147
  %v2481 = vpop.f32.mrb[0].mxu0
  %v2482 = vadd.f32 0.0, %v2481
  %v2483 = vpop.f32.mrb[0].mxu0
  %v2484 = vpop.f32.mrb[0].mxu0
  %v2485 = vadd.f32 0.0, %v2484
  %v2486 = vpop.f32.mrb[0].mxu0
  %2487 = vmatprep.mubr.bf16.mxu0 0
  %2488 = vmatmul.mubr.bf16.gmra.mrb[0].mxu0 %v1148
  %v2489 = vpop.f32.mrb[0].mxu0
  %v2490 = vadd.f32 0.0, %v2489
  %v2491 = vpop.f32.mrb[0].mxu0
  %v2492 = vpop.f32.mrb[0].mxu0
  %v2493 = vadd.f32 0.0, %v2492
  %v2494 = vpop.f32.mrb[0].mxu0
  %2495 = vmatprep.mubr.bf16.mxu0 0
  %2496 = vmatmul.mubr.bf16.gmra.mrb[0].mxu0 %v1149
  %v2497 = vpop.f32.mrb[0].mxu0
  %v2498 = vadd.f32 0.0, %v2497
  %v2499 = vpop.f32.mrb[0].mxu0
  %v2500 = vpop.f32.mrb[0].mxu0
  %v2501 = vadd.f32 0.0, %v2500
  %v2502 = vpop.f32.mrb[0].mxu0
  %2503 = vmatprep.mubr.bf16.mxu0 0
  %2504 = vmatmul.mubr.bf16.gmra.mrb[0].mxu0 %v1150
  %v2505 = vpop.f32.mrb[0].mxu0
  %v2506 = vadd.f32 0.0, %v2505
  %v2507 = vpop.f32.mrb[0].mxu0
  %v2508 = vpop.f32.mrb[0].mxu0
  %v2509 = vadd.f32 0.0, %v2508
  %v2510 = vpop.f32.mrb[0].mxu0
  %2511 = vmatprep.mubr.bf16.mxu0 0
  %2512 = vmatmul.mubr.bf16.gmra.mrb[0].mxu0 %v1151
  %v2513 = vpop.f32.mrb[0].mxu0
  %v2514 = vadd.f32 0.0, %v2513
  %v2515 = vpop.f32.mrb[0].mxu0
  %v2516 = vpop.f32.mrb[0].mxu0
  %v2517 = vadd.f32 0.0, %v2516
  %v2518 = vpop.f32.mrb[0].mxu0
  %2519 = vmatprep.mubr.bf16.mxu0 0
  %2520 = vmatmul.mubr.bf16.gmra.mrb[0].mxu0 %v1152
  %v2521 = vpop.f32.mrb[0].mxu0
  %v2522 = vadd.f32 0.0, %v2521
  %v2523 = vpop.f32.mrb[0].mxu0
  %v2524 = vpop.f32.mrb[0].mxu0
  %v2525 = vadd.f32 0.0, %v2524
  %v2526 = vpop.f32.mrb[0].mxu0
  %2527 = vmatprep.mubr.bf16.mxu0 0
  %2528 = vmatmul.mubr.bf16.gmra.mrb[0].mxu0 %v1153
  %v2529 = vpop.f32.mrb[0].mxu0
  %v2530 = vadd.f32 0.0, %v2529
  %v2531 = vpop.f32.mrb[0].mxu0
  %v2532 = vpop.f32.mrb[0].mxu0
  %v2533 = vadd.f32 0.0, %v2532
  %v2534 = vpop.f32.mrb[0].mxu0
  %2535 = vmatprep.mubr.bf16.mxu0 0
  %2536 = vmatmul.mubr.bf16.gmra.mrb[0].mxu0 %v1154
  %v2537 = vpop.f32.mrb[0].mxu0
  %v2538 = vadd.f32 0.0, %v2537
  %v2539 = vpop.f32.mrb[0].mxu0
  %v2540 = vpop.f32.mrb[0].mxu0
  %v2541 = vadd.f32 0.0, %v2540
  %v2542 = vpop.f32.mrb[0].mxu0
  %2543 = vmatprep.mubr.bf16.mxu0 0
  %2544 = vmatmul.mubr.bf16.gmra.mrb[0].mxu0 %v1155
  %v2545 = vpop.f32.mrb[0].mxu0
  %v2546 = vadd.f32 0.0, %v2545
  %v2547 = vpop.f32.mrb[0].mxu0
  %v2548 = vpop.f32.mrb[0].mxu0
  %v2549 = vadd.f32 0.0, %v2548
  %v2550 = vpop.f32.mrb[0].mxu0
  %2551 = vmatprep.mubr.bf16.mxu0 0
  %2552 = vmatmul.mubr.bf16.gmra.mrb[0].mxu0 %v1156
  %v2553 = vpop.f32.mrb[0].mxu0
  %v2554 = vadd.f32 0.0, %v2553
  %v2555 = vpop.f32.mrb[0].mxu0
  %v2556 = vpop.f32.mrb[0].mxu0
  %v2557 = vadd.f32 0.0, %v2556
  %v2558 = vpop.f32.mrb[0].mxu0
  %2559 = vmatprep.mubr.bf16.mxu0 0
  %2560 = vmatmul.mubr.bf16.gmra.mrb[0].mxu0 %v1157
  %v2561 = vpop.f32.mrb[0].mxu0
  %v2562 = vadd.f32 0.0, %v2561
  %v2563 = vpop.f32.mrb[0].mxu0
  %v2564 = vpop.f32.mrb[0].mxu0
  %v2565 = vadd.f32 0.0, %v2564
  %v2566 = vpop.f32.mrb[0].mxu0
  %2567 = vmatprep.mubr.bf16.mxu0 0
  %2568 = vmatmul.mubr.bf16.gmra.mrb[0].mxu0 %v1158
  %v2569 = vpop.f32.mrb[0].mxu0
  %v2570 = vadd.f32 0.0, %v2569
  %v2571 = vpop.f32.mrb[0].mxu0
  %v2572 = vpop.f32.mrb[0].mxu0
  %v2573 = vadd.f32 0.0, %v2572
  %v2574 = vpop.f32.mrb[0].mxu0
  %2575 = vmatprep.mubr.bf16.mxu0 0
  %2576 = vmatmul.mubr.bf16.gmra.mrb[0].mxu0 %v1159
  %v2577 = vpop.f32.mrb[0].mxu0
  %v2578 = vadd.f32 0.0, %v2577
  %v2579 = vpop.f32.mrb[0].mxu0
  %v2580 = vpop.f32.mrb[0].mxu0
  %v2581 = vadd.f32 0.0, %v2580
  %v2582 = vpop.f32.mrb[0].mxu0
  %2583 = vmatprep.mubr.bf16.mxu0 0
  %2584 = vmatmul.mubr.bf16.gmra.mrb[0].mxu0 %v1160
  %v2585 = vpop.f32.mrb[0].mxu0
  %v2586 = vadd.f32 0.0, %v2585
  %v2587 = vpop.f32.mrb[0].mxu0
  %v2588 = vpop.f32.mrb[0].mxu0
  %v2589 = vadd.f32 0.0, %v2588
  %v2590 = vpop.f32.mrb[0].mxu0
  %2591 = vmatprep.mubr.bf16.mxu0 0
  %2592 = vmatmul.mubr.bf16.gmra.mrb[0].mxu0 %v1161
  %v2593 = vpop.f32.mrb[0].mxu0
  %v2594 = vadd.f32 0.0, %v2593
  %v2595 = vpop.f32.mrb[0].mxu0
  %v2596 = vpop.f32.mrb[0].mxu0
  %v2597 = vadd.f32 0.0, %v2596
  %v2598 = vpop.f32.mrb[0].mxu0
  %2599 = vmatprep.mubr.bf16.mxu0 0
  %2600 = vmatmul.mubr.bf16.gmra.mrb[0].mxu0 %v1162
  %v2601 = vpop.f32.mrb[0].mxu0
  %v2602 = vadd.f32 0.0, %v2601
  %v2603 = vpop.f32.mrb[0].mxu0
  %v2604 = vpop.f32.mrb[0].mxu0
  %v2605 = vadd.f32 0.0, %v2604
  %v2606 = vpop.f32.mrb[0].mxu0
  %2607 = vmatprep.mubr.bf16.mxu0 0
  %2608 = vmatmul.mubr.bf16.gmra.mrb[0].mxu0 %v1163
  %v2609 = vpop.f32.mrb[0].mxu0
  %v2610 = vadd.f32 0.0, %v2609
  %v2611 = vpop.f32.mrb[0].mxu0
  %v2612 = vpop.f32.mrb[0].mxu0
  %v2613 = vadd.f32 0.0, %v2612
  %v2614 = vpop.f32.mrb[0].mxu0
  %2615 = vmatprep.mubr.bf16.mxu0 0
  %2616 = vmatmul.mubr.bf16.gmra.mrb[0].mxu0 %v1164
  %v2617 = vpop.f32.mrb[0].mxu0
  %v2618 = vadd.f32 0.0, %v2617
  %v2619 = vpop.f32.mrb[0].mxu0
  %v2620 = vpop.f32.mrb[0].mxu0
  %v2621 = vadd.f32 0.0, %v2620
  %v2622 = vpop.f32.mrb[0].mxu0
  %2623 = vmatprep.mubr.bf16.mxu0 0
  %2624 = vmatmul.mubr.bf16.gmra.mrb[0].mxu0 %v1165
  %v2625 = vpop.f32.mrb[0].mxu0
  %v2626 = vadd.f32 0.0, %v2625
  %v2627 = vpop.f32.mrb[0].mxu0
  %v2628 = vpop.f32.mrb[0].mxu0
  %v2629 = vadd.f32 0.0, %v2628
  %v2630 = vpop.f32.mrb[0].mxu0
  %2631 = vmatprep.mubr.bf16.mxu0 0
  %2632 = vmatmul.mubr.bf16.gmra.mrb[0].mxu0 %v1166
  %v2633 = vpop.f32.mrb[0].mxu0
  %v2634 = vadd.f32 0.0, %v2633
  %v2635 = vpop.f32.mrb[0].mxu0
  %v2636 = vpop.f32.mrb[0].mxu0
  %v2637 = vadd.f32 0.0, %v2636
  %v2638 = vpop.f32.mrb[0].mxu0
  %2639 = vmatprep.mubr.bf16.mxu0 0
  %2640 = vmatmul.mubr.bf16.gmra.mrb[0].mxu0 %v1167
  %v2641 = vpop.f32.mrb[0].mxu0
  %v2642 = vadd.f32 0.0, %v2641
  %v2643 = vpop.f32.mrb[0].mxu0
  %v2644 = vpop.f32.mrb[0].mxu0
  %v2645 = vadd.f32 0.0, %v2644
  %v2646 = vpop.f32.mrb[0].mxu0
  %2647 = vmatprep.mubr.bf16.mxu0 0
  %2648 = vmatmul.mubr.bf16.gmra.mrb[0].mxu0 %v1168
  %v2649 = vpop.f32.mrb[0].mxu0
  %v2650 = vadd.f32 0.0, %v2649
  %v2651 = vpop.f32.mrb[0].mxu0
  %v2652 = vpop.f32.mrb[0].mxu0
  %v2653 = vadd.f32 0.0, %v2652
  %v2654 = vpop.f32.mrb[0].mxu0
  %2655 = vmatprep.mubr.bf16.mxu0 0
  %2656 = vmatmul.mubr.bf16.gmra.mrb[0].mxu0 %v1169
  %v2657 = vpop.f32.mrb[0].mxu0
  %v2658 = vadd.f32 0.0, %v2657
  %v2659 = vpop.f32.mrb[0].mxu0
  %v2660 = vpop.f32.mrb[0].mxu0
  %v2661 = vadd.f32 0.0, %v2660
  %v2662 = vpop.f32.mrb[0].mxu0
  %2663 = vmatprep.mubr.bf16.mxu0 0
  %2664 = vmatmul.mubr.bf16.gmra.mrb[0].mxu0 %v1170
  %v2665 = vpop.f32.mrb[0].mxu0
  %v2666 = vadd.f32 0.0, %v2665
  %v2667 = vpop.f32.mrb[0].mxu0
  %v2668 = vpop.f32.mrb[0].mxu0
  %v2669 = vadd.f32 0.0, %v2668
  %v2670 = vpop.f32.mrb[0].mxu0
  %2671 = vmatprep.mubr.bf16.mxu0 0
  %2672 = vmatmul.mubr.bf16.gmra.mrb[0].mxu0 %v1171
  %v2673 = vpop.f32.mrb[0].mxu0
  %v2674 = vadd.f32 0.0, %v2673
  %v2675 = vpop.f32.mrb[0].mxu0
  %v2676 = vpop.f32.mrb[0].mxu0
  %v2677 = vadd.f32 0.0, %v2676
  %v2678 = vpop.f32.mrb[0].mxu0
  %2679 = vmatprep.mubr.bf16.mxu0 0
  %2680 = vmatmul.mubr.bf16.gmra.mrb[0].mxu0 %v1172
  %v2681 = vpop.f32.mrb[0].mxu0
  %v2682 = vadd.f32 0.0, %v2681
  %v2683 = vpop.f32.mrb[0].mxu0
  %v2684 = vpop.f32.mrb[0].mxu0
  %v2685 = vadd.f32 0.0, %v2684
  %v2686 = vpop.f32.mrb[0].mxu0
  %2687 = vmatprep.mubr.bf16.mxu0 0
  %2688 = vmatmul.mubr.bf16.gmra.mrb[0].mxu0 %v1173
  %v2689 = vpop.f32.mrb[0].mxu0
  %v2690 = vadd.f32 0.0, %v2689
  %v2691 = vpop.f32.mrb[0].mxu0
  %v2692 = vpop.f32.mrb[0].mxu0
  %v2693 = vadd.f32 0.0, %v2692
  %v2694 = vpop.f32.mrb[0].mxu0
  %2695 = vmatprep.mubr.bf16.mxu0 0
  %2696 = vmatmul.mubr.bf16.gmra.mrb[0].mxu0 %v1174
  %v2697 = vpop.f32.mrb[0].mxu0
  %v2698 = vadd.f32 0.0, %v2697
  %v2699 = vpop.f32.mrb[0].mxu0
  %v2700 = vpop.f32.mrb[0].mxu0
  %v2701 = vadd.f32 0.0, %v2700
  %v2702 = vpop.f32.mrb[0].mxu0
  %2703 = vmatprep.mubr.bf16.mxu0 0
  %2704 = vmatmul.mubr.bf16.gmra.mrb[0].mxu0 %v1175
  %v2705 = vpop.f32.mrb[0].mxu0
  %v2706 = vadd.f32 0.0, %v2705
  %v2707 = vpop.f32.mrb[0].mxu0
  %v2708 = vpop.f32.mrb[0].mxu0
  %v2709 = vadd.f32 0.0, %v2708
  %v2710 = vpop.f32.mrb[0].mxu0
  %2711 = vmatprep.mubr.bf16.mxu0 0
  %2712 = vmatmul.mubr.bf16.gmra.mrb[0].mxu0 %v1176
  %v2713 = vpop.f32.mrb[0].mxu0
  %v2714 = vadd.f32 0.0, %v2713
  %v2715 = vpop.f32.mrb[0].mxu0
  %v2716 = vpop.f32.mrb[0].mxu0
  %v2717 = vadd.f32 0.0, %v2716
  %v2718 = vpop.f32.mrb[0].mxu0
  %2719 = vmatprep.mubr.bf16.mxu0 0
  %2720 = vmatmul.mubr.bf16.gmra.mrb[0].mxu0 %v1177
  %v2721 = vpop.f32.mrb[0].mxu0
  %v2722 = vadd.f32 0.0, %v2721
  %v2723 = vpop.f32.mrb[0].mxu0
  %v2724 = vpop.f32.mrb[0].mxu0
  %v2725 = vadd.f32 0.0, %v2724
  %v2726 = vpop.f32.mrb[0].mxu0
  %2727 = vmatprep.mubr.bf16.mxu0 0
  %2728 = vmatmul.mubr.bf16.gmra.mrb[0].mxu0 %v1178
  %v2729 = vpop.f32.mrb[0].mxu0
  %v2730 = vadd.f32 0.0, %v2729
  %v2731 = vpop.f32.mrb[0].mxu0
  %v2732 = vpop.f32.mrb[0].mxu0
  %v2733 = vadd.f32 0.0, %v2732
  %v2734 = vpop.f32.mrb[0].mxu0
  %2735 = vdwg.mxu0
  %v2736 = vmax.f32 %v1426, %v1754
  %v2737 = vmax.f32 %v1429, %v1757
  %v2738 = vmax.f32 %v1434, %v1762
  %v2739 = vmax.f32 %v1437, %v1765
  %v2740 = vmax.f32 %v1442, %v1770
  %v2741 = vmax.f32 %v1445, %v1773
  %v2742 = vmax.f32 %v1450, %v1778
  %v2743 = vmax.f32 %v1453, %v1781
  %v2744 = vmax.f32 %v1458, %v1786
  %v2745 = vmax.f32 %v1461, %v1789
  %v2746 = vmax.f32 %v1466, %v1794
  %v2747 = vmax.f32 %v1469, %v1797
  %v2748 = vmax.f32 %v1474, %v1802
  %v2749 = vmax.f32 %v1477, %v1805
  %v2750 = vmax.f32 %v1482, %v1810
  %v2751 = vmax.f32 %v1485, %v1813
  %v2752 = vmax.f32 %v1490, %v1818
  %v2753 = vmax.f32 %v1493, %v1821
  %v2754 = vmax.f32 %v1498, %v1826
  %v2755 = vmax.f32 %v1501, %v1829
  %v2756 = vmax.f32 %v1506, %v1834
  %v2757 = vmax.f32 %v1509, %v1837
  %v2758 = vmax.f32 %v1514, %v1842
  %v2759 = vmax.f32 %v1517, %v1845
  %v2760 = vmax.f32 %v1522, %v1850
  %v2761 = vmax.f32 %v1525, %v1853
  %v2762 = vmax.f32 %v1530, %v1858
  %v2763 = vmax.f32 %v1533, %v1861
  %v2764 = vmax.f32 %v1538, %v1866
  %v2765 = vmax.f32 %v1541, %v1869
  %v2766 = vmax.f32 %v1546, %v1874
  %v2767 = vmax.f32 %v1549, %v1877
  %v2768 = vmax.f32 %v1554, %v1882
  %v2769 = vmax.f32 %v1557, %v1885
  %v2770 = vmax.f32 %v1562, %v1890
  %v2771 = vmax.f32 %v1565, %v1893
  %v2772 = vmax.f32 %v1570, %v1898
  %v2773 = vmax.f32 %v1573, %v1901
  %v2774 = vmax.f32 %v1578, %v1906
  %v2775 = vmax.f32 %v1581, %v1909
  %v2776 = vmax.f32 %v1586, %v1914
  %v2777 = vmax.f32 %v1589, %v1917
  %v2778 = vmax.f32 %v1594, %v1922
  %v2779 = vmax.f32 %v1597, %v1925
  %v2780 = vmax.f32 %v1602, %v1930
  %v2781 = vmax.f32 %v1605, %v1933
  %v2782 = vmax.f32 %v1610, %v1938
  %v2783 = vmax.f32 %v1613, %v1941
  %v2784 = vmax.f32 %v1618, %v1946
  %v2785 = vmax.f32 %v1621, %v1949
  %v2786 = vmax.f32 %v1626, %v1954
  %v2787 = vmax.f32 %v1629, %v1957
  %v2788 = vmax.f32 %v1634, %v1962
  %v2789 = vmax.f32 %v1637, %v1965
  %v2790 = vmax.f32 %v1642, %v1970
  %v2791 = vmax.f32 %v1645, %v1973
  %v2792 = vmax.f32 %v1650, %v1978
  %v2793 = vmax.f32 %v1653, %v1981
  %v2794 = vmax.f32 %v1658, %v1986
  %v2795 = vmax.f32 %v1661, %v1989
  %v2796 = vmax.f32 %v1666, %v1994
  %v2797 = vmax.f32 %v1669, %v1997
  %v2798 = vmax.f32 %v1674, %v2002
  %v2799 = vmax.f32 %v1677, %v2005
  %v2800 = vmax.f32 %v1682, %v2010
  %v2801 = vmax.f32 %v1685, %v2013
  %v2802 = vmax.f32 %v1690, %v2018
  %v2803 = vmax.f32 %v1693, %v2021
  %v2804 = vmax.f32 %v1698, %v2026
  %v2805 = vmax.f32 %v1701, %v2029
  %v2806 = vmax.f32 %v1706, %v2034
  %v2807 = vmax.f32 %v1709, %v2037
  %v2808 = vmax.f32 %v1714, %v2042
  %v2809 = vmax.f32 %v1717, %v2045
  %v2810 = vmax.f32 %v1722, %v2050
  %v2811 = vmax.f32 %v1725, %v2053
  %v2812 = vmax.f32 %v1730, %v2058
  %v2813 = vmax.f32 %v1733, %v2061
  %v2814 = vmax.f32 %v1738, %v2066
  %v2815 = vmax.f32 %v1741, %v2069
  %v2816 = vmax.f32 %v1746, %v2074
  %v2817 = vmax.f32 %v1749, %v2077
  %v2818 = vmax.f32 %v2082, %v2410
  %v2819 = vmax.f32 %v2085, %v2413
  %v2820 = vmax.f32 %v2090, %v2418
  %v2821 = vmax.f32 %v2093, %v2421
  %v2822 = vmax.f32 %v2098, %v2426
  %v2823 = vmax.f32 %v2101, %v2429
  %v2824 = vmax.f32 %v2106, %v2434
  %v2825 = vmax.f32 %v2109, %v2437
  %v2826 = vmax.f32 %v2114, %v2442
  %v2827 = vmax.f32 %v2117, %v2445
  %v2828 = vmax.f32 %v2122, %v2450
  %v2829 = vmax.f32 %v2125, %v2453
  %v2830 = vmax.f32 %v2130, %v2458
  %v2831 = vmax.f32 %v2133, %v2461
  %v2832 = vmax.f32 %v2138, %v2466
  %v2833 = vmax.f32 %v2141, %v2469
  %v2834 = vmax.f32 %v2146, %v2474
  %v2835 = vmax.f32 %v2149, %v2477
  %v2836 = vmax.f32 %v2154, %v2482
  %v2837 = vmax.f32 %v2157, %v2485
  %v2838 = vmax.f32 %v2162, %v2490
  %v2839 = vmax.f32 %v2165, %v2493
  %v2840 = vmax.f32 %v2170, %v2498
  %v2841 = vmax.f32 %v2173, %v2501
  %v2842 = vmax.f32 %v2178, %v2506
  %v2843 = vmax.f32 %v2181, %v2509
  %v2844 = vmax.f32 %v2186, %v2514
  %v2845 = vmax.f32 %v2189, %v2517
  %v2846 = vmax.f32 %v2194, %v2522
  %v2847 = vmax.f32 %v2197, %v2525
  %v2848 = vmax.f32 %v2202, %v2530
  %v2849 = vmax.f32 %v2205, %v2533
  %v2850 = vmax.f32 %v2210, %v2538
  %v2851 = vmax.f32 %v2213, %v2541
  %v2852 = vmax.f32 %v2218, %v2546
  %v2853 = vmax.f32 %v2221, %v2549
  %v2854 = vmax.f32 %v2226, %v2554
  %v2855 = vmax.f32 %v2229, %v2557
  %v2856 = vmax.f32 %v2234, %v2562
  %v2857 = vmax.f32 %v2237, %v2565
  %v2858 = vmax.f32 %v2242, %v2570
  %v2859 = vmax.f32 %v2245, %v2573
  %v2860 = vmax.f32 %v2250, %v2578
  %v2861 = vmax.f32 %v2253, %v2581
  %v2862 = vmax.f32 %v2258, %v2586
  %v2863 = vmax.f32 %v2261, %v2589
  %v2864 = vmax.f32 %v2266, %v2594
  %v2865 = vmax.f32 %v2269, %v2597
  %v2866 = vmax.f32 %v2274, %v2602
  %v2867 = vmax.f32 %v2277, %v2605
  %v2868 = vmax.f32 %v2282, %v2610
  %v2869 = vmax.f32 %v2285, %v2613
  %v2870 = vmax.f32 %v2290, %v2618
  %v2871 = vmax.f32 %v2293, %v2621
  %v2872 = vmax.f32 %v2298, %v2626
  %v2873 = vmax.f32 %v2301, %v2629
  %v2874 = vmax.f32 %v2306, %v2634
  %v2875 = vmax.f32 %v2309, %v2637
  %v2876 = vmax.f32 %v2314, %v2642
  %v2877 = vmax.f32 %v2317, %v2645
  %v2878 = vmax.f32 %v2322, %v2650
  %v2879 = vmax.f32 %v2325, %v2653
  %v2880 = vmax.f32 %v2330, %v2658
  %v2881 = vmax.f32 %v2333, %v2661
  %v2882 = vmax.f32 %v2338, %v2666
  %v2883 = vmax.f32 %v2341, %v2669
  %v2884 = vmax.f32 %v2346, %v2674
  %v2885 = vmax.f32 %v2349, %v2677
  %v2886 = vmax.f32 %v2354, %v2682
  %v2887 = vmax.f32 %v2357, %v2685
  %v2888 = vmax.f32 %v2362, %v2690
  %v2889 = vmax.f32 %v2365, %v2693
  %v2890 = vmax.f32 %v2370, %v2698
  %v2891 = vmax.f32 %v2373, %v2701
  %v2892 = vmax.f32 %v2378, %v2706
  %v2893 = vmax.f32 %v2381, %v2709
  %v2894 = vmax.f32 %v2386, %v2714
  %v2895 = vmax.f32 %v2389, %v2717
  %v2896 = vmax.f32 %v2394, %v2722
  %v2897 = vmax.f32 %v2397, %v2725
  %v2898 = vmax.f32 %v2402, %v2730
  %v2899 = vmax.f32 %v2405, %v2733
  %v2900 = vmax.f32 %v2736, %v2818
  %v2901 = vmax.f32 %v2737, %v2819
  %v2902 = vmax.f32 %v2738, %v2820
  %v2903 = vmax.f32 %v2739, %v2821
  %v2904 = vmax.f32 %v2740, %v2822
  %v2905 = vmax.f32 %v2741, %v2823
  %v2906 = vmax.f32 %v2742, %v2824
  %v2907 = vmax.f32 %v2743, %v2825
  %v2908 = vmax.f32 %v2744, %v2826
  %v2909 = vmax.f32 %v2745, %v2827
  %v2910 = vmax.f32 %v2746, %v2828
  %v2911 = vmax.f32 %v2747, %v2829
  %v2912 = vmax.f32 %v2748, %v2830
  %v2913 = vmax.f32 %v2749, %v2831
  %v2914 = vmax.f32 %v2750, %v2832
  %v2915 = vmax.f32 %v2751, %v2833
  %v2916 = vmax.f32 %v2752, %v2834
  %v2917 = vmax.f32 %v2753, %v2835
  %v2918 = vmax.f32 %v2754, %v2836
  %v2919 = vmax.f32 %v2755, %v2837
  %v2920 = vmax.f32 %v2756, %v2838
  %v2921 = vmax.f32 %v2757, %v2839
  %v2922 = vmax.f32 %v2758, %v2840
  %v2923 = vmax.f32 %v2759, %v2841
  %v2924 = vmax.f32 %v2760, %v2842
  %v2925 = vmax.f32 %v2761, %v2843
  %v2926 = vmax.f32 %v2762, %v2844
  %v2927 = vmax.f32 %v2763, %v2845
  %v2928 = vmax.f32 %v2764, %v2846
  %v2929 = vmax.f32 %v2765, %v2847
  %v2930 = vmax.f32 %v2766, %v2848
  %v2931 = vmax.f32 %v2767, %v2849
  %v2932 = vmax.f32 %v2768, %v2850
  %v2933 = vmax.f32 %v2769, %v2851
  %v2934 = vmax.f32 %v2770, %v2852
  %v2935 = vmax.f32 %v2771, %v2853
  %v2936 = vmax.f32 %v2772, %v2854
  %v2937 = vmax.f32 %v2773, %v2855
  %v2938 = vmax.f32 %v2774, %v2856
  %v2939 = vmax.f32 %v2775, %v2857
  %v2940 = vmax.f32 %v2776, %v2858
  %v2941 = vmax.f32 %v2777, %v2859
  %v2942 = vmax.f32 %v2778, %v2860
  %v2943 = vmax.f32 %v2779, %v2861
  %v2944 = vmax.f32 %v2780, %v2862
  %v2945 = vmax.f32 %v2781, %v2863
  %v2946 = vmax.f32 %v2782, %v2864
  %v2947 = vmax.f32 %v2783, %v2865
  %v2948 = vmax.f32 %v2784, %v2866
  %v2949 = vmax.f32 %v2785, %v2867
  %v2950 = vmax.f32 %v2786, %v2868
  %v2951 = vmax.f32 %v2787, %v2869
  %v2952 = vmax.f32 %v2788, %v2870
  %v2953 = vmax.f32 %v2789, %v2871
  %v2954 = vmax.f32 %v2790, %v2872
  %v2955 = vmax.f32 %v2791, %v2873
  %v2956 = vmax.f32 %v2792, %v2874
  %v2957 = vmax.f32 %v2793, %v2875
  %v2958 = vmax.f32 %v2794, %v2876
  %v2959 = vmax.f32 %v2795, %v2877
  %v2960 = vmax.f32 %v2796, %v2878
  %v2961 = vmax.f32 %v2797, %v2879
  %v2962 = vmax.f32 %v2798, %v2880
  %v2963 = vmax.f32 %v2799, %v2881
  %v2964 = vmax.f32 %v2800, %v2882
  %v2965 = vmax.f32 %v2801, %v2883
  %v2966 = vmax.f32 %v2802, %v2884
  %v2967 = vmax.f32 %v2803, %v2885
  %v2968 = vmax.f32 %v2804, %v2886
  %v2969 = vmax.f32 %v2805, %v2887
  %v2970 = vmax.f32 %v2806, %v2888
  %v2971 = vmax.f32 %v2807, %v2889
  %v2972 = vmax.f32 %v2808, %v2890
  %v2973 = vmax.f32 %v2809, %v2891
  %v2974 = vmax.f32 %v2810, %v2892
  %v2975 = vmax.f32 %v2811, %v2893
  %v2976 = vmax.f32 %v2812, %v2894
  %v2977 = vmax.f32 %v2813, %v2895
  %v2978 = vmax.f32 %v2814, %v2896
  %v2979 = vmax.f32 %v2815, %v2897
  %v2980 = vmax.f32 %v2816, %v2898
  %v2981 = vmax.f32 %v2817, %v2899
  %v2982 = vld [vmem:[%s2] sm:$0x1]
  %v2984 = vlaneseq
  %v2985 = vshrl.u32 %v2984, 7
  %v2986 = vsub.s32 0, %v2985
  %v2987 = vrot.slane %v2982, %v2986
  %v2989 = vadd.f32 %v2900, %v2987
  %v2990 = vadd.f32 %v2901, %v2987
  %v2991 = vadd.f32 %v2902, %v2987
  %v2992 = vadd.f32 %v2903, %v2987
  %v2993 = vadd.f32 %v2904, %v2987
  %v2994 = vadd.f32 %v2905, %v2987
  %v2995 = vadd.f32 %v2906, %v2987
  %v2996 = vadd.f32 %v2907, %v2987
  %v2997 = vadd.f32 %v2908, %v2987
  %v2998 = vadd.f32 %v2909, %v2987
  %v2999 = vadd.f32 %v2910, %v2987
  %v3000 = vadd.f32 %v2911, %v2987
  %v3001 = vadd.f32 %v2912, %v2987
  %v3002 = vadd.f32 %v2913, %v2987
  %v3003 = vadd.f32 %v2914, %v2987
  %v3004 = vadd.f32 %v2915, %v2987
  %v3005 = vadd.f32 %v2916, %v2987
  %v3006 = vadd.f32 %v2917, %v2987
  %v3007 = vadd.f32 %v2918, %v2987
  %v3008 = vadd.f32 %v2919, %v2987
  %v3009 = vadd.f32 %v2920, %v2987
  %v3010 = vadd.f32 %v2921, %v2987
  %v3011 = vadd.f32 %v2922, %v2987
  %v3012 = vadd.f32 %v2923, %v2987
  %v3013 = vadd.f32 %v2924, %v2987
  %v3014 = vadd.f32 %v2925, %v2987
  %v3015 = vadd.f32 %v2926, %v2987
  %v3016 = vadd.f32 %v2927, %v2987
  %v3017 = vadd.f32 %v2928, %v2987
  %v3018 = vadd.f32 %v2929, %v2987
  %v3019 = vadd.f32 %v2930, %v2987
  %v3020 = vadd.f32 %v2931, %v2987
  %v3021 = vadd.f32 %v2932, %v2987
  %v3022 = vadd.f32 %v2933, %v2987
  %v3023 = vadd.f32 %v2934, %v2987
  %v3024 = vadd.f32 %v2935, %v2987
  %v3025 = vadd.f32 %v2936, %v2987
  %v3026 = vadd.f32 %v2937, %v2987
  %v3027 = vadd.f32 %v2938, %v2987
  %v3028 = vadd.f32 %v2939, %v2987
  %v3029 = vadd.f32 %v2940, %v2987
  %v3030 = vadd.f32 %v2941, %v2987
  %v3031 = vadd.f32 %v2942, %v2987
  %v3032 = vadd.f32 %v2943, %v2987
  %v3033 = vadd.f32 %v2944, %v2987
  %v3034 = vadd.f32 %v2945, %v2987
  %v3035 = vadd.f32 %v2946, %v2987
  %v3036 = vadd.f32 %v2947, %v2987
  %v3037 = vadd.f32 %v2948, %v2987
  %v3038 = vadd.f32 %v2949, %v2987
  %v3039 = vadd.f32 %v2950, %v2987
  %v3040 = vadd.f32 %v2951, %v2987
  %v3041 = vadd.f32 %v2952, %v2987
  %v3042 = vadd.f32 %v2953, %v2987
  %v3043 = vadd.f32 %v2954, %v2987
  %v3044 = vadd.f32 %v2955, %v2987
  %v3045 = vadd.f32 %v2956, %v2987
  %v3046 = vadd.f32 %v2957, %v2987
  %v3047 = vadd.f32 %v2958, %v2987
  %v3048 = vadd.f32 %v2959, %v2987
  %v3049 = vadd.f32 %v2960, %v2987
  %v3050 = vadd.f32 %v2961, %v2987
  %v3051 = vadd.f32 %v2962, %v2987
  %v3052 = vadd.f32 %v2963, %v2987
  %v3053 = vadd.f32 %v2964, %v2987
  %v3054 = vadd.f32 %v2965, %v2987
  %v3055 = vadd.f32 %v2966, %v2987
  %v3056 = vadd.f32 %v2967, %v2987
  %v3057 = vadd.f32 %v2968, %v2987
  %v3058 = vadd.f32 %v2969, %v2987
  %v3059 = vadd.f32 %v2970, %v2987
  %v3060 = vadd.f32 %v2971, %v2987
  %v3061 = vadd.f32 %v2972, %v2987
  %v3062 = vadd.f32 %v2973, %v2987
  %v3063 = vadd.f32 %v2974, %v2987
  %v3064 = vadd.f32 %v2975, %v2987
  %v3065 = vadd.f32 %v2976, %v2987
  %v3066 = vadd.f32 %v2977, %v2987
  %v3067 = vadd.f32 %v2978, %v2987
  %v3068 = vadd.f32 %v2979, %v2987
  %v3069 = vadd.f32 %v2980, %v2987
  %v3070 = vadd.f32 %v2981, %v2987
  %v3071 = vmax.f32 %v2989, 0.0
  %v3072 = vmax.f32 %v2990, 0.0
  %v3073 = vmax.f32 %v2991, 0.0
  %v3074 = vmax.f32 %v2992, 0.0
  %v3075 = vmax.f32 %v2993, 0.0
  %v3076 = vmax.f32 %v2994, 0.0
  %v3077 = vmax.f32 %v2995, 0.0
  %v3078 = vmax.f32 %v2996, 0.0
  %v3079 = vmax.f32 %v2997, 0.0
  %v3080 = vmax.f32 %v2998, 0.0
  %v3081 = vmax.f32 %v2999, 0.0
  %v3082 = vmax.f32 %v3000, 0.0
  %v3083 = vmax.f32 %v3001, 0.0
  %v3084 = vmax.f32 %v3002, 0.0
  %v3085 = vmax.f32 %v3003, 0.0
  %v3086 = vmax.f32 %v3004, 0.0
  %v3087 = vmax.f32 %v3005, 0.0
  %v3088 = vmax.f32 %v3006, 0.0
  %v3089 = vmax.f32 %v3007, 0.0
  %v3090 = vmax.f32 %v3008, 0.0
  %v3091 = vmax.f32 %v3009, 0.0
  %v3092 = vmax.f32 %v3010, 0.0
  %v3093 = vmax.f32 %v3011, 0.0
  %v3094 = vmax.f32 %v3012, 0.0
  %v3095 = vmax.f32 %v3013, 0.0
  %v3096 = vmax.f32 %v3014, 0.0
  %v3097 = vmax.f32 %v3015, 0.0
  %v3098 = vmax.f32 %v3016, 0.0
  %v3099 = vmax.f32 %v3017, 0.0
  %v3100 = vmax.f32 %v3018, 0.0
  %v3101 = vmax.f32 %v3019, 0.0
  %v3102 = vmax.f32 %v3020, 0.0
  %v3103 = vmax.f32 %v3021, 0.0
  %v3104 = vmax.f32 %v3022, 0.0
  %v3105 = vmax.f32 %v3023, 0.0
  %v3106 = vmax.f32 %v3024, 0.0
  %v3107 = vmax.f32 %v3025, 0.0
  %v3108 = vmax.f32 %v3026, 0.0
  %v3109 = vmax.f32 %v3027, 0.0
  %v3110 = vmax.f32 %v3028, 0.0
  %v3111 = vmax.f32 %v3029, 0.0
  %v3112 = vmax.f32 %v3030, 0.0
  %v3113 = vmax.f32 %v3031, 0.0
  %v3114 = vmax.f32 %v3032, 0.0
  %v3115 = vmax.f32 %v3033, 0.0
  %v3116 = vmax.f32 %v3034, 0.0
  %v3117 = vmax.f32 %v3035, 0.0
  %v3118 = vmax.f32 %v3036, 0.0
  %v3119 = vmax.f32 %v3037, 0.0
  %v3120 = vmax.f32 %v3038, 0.0
  %v3121 = vmax.f32 %v3039, 0.0
  %v3122 = vmax.f32 %v3040, 0.0
  %v3123 = vmax.f32 %v3041, 0.0
  %v3124 = vmax.f32 %v3042, 0.0
  %v3125 = vmax.f32 %v3043, 0.0
  %v3126 = vmax.f32 %v3044, 0.0
  %v3127 = vmax.f32 %v3045, 0.0
  %v3128 = vmax.f32 %v3046, 0.0
  %v3129 = vmax.f32 %v3047, 0.0
  %v3130 = vmax.f32 %v3048, 0.0
  %v3131 = vmax.f32 %v3049, 0.0
  %v3132 = vmax.f32 %v3050, 0.0
  %v3133 = vmax.f32 %v3051, 0.0
  %v3134 = vmax.f32 %v3052, 0.0
  %v3135 = vmax.f32 %v3053, 0.0
  %v3136 = vmax.f32 %v3054, 0.0
  %v3137 = vmax.f32 %v3055, 0.0
  %v3138 = vmax.f32 %v3056, 0.0
  %v3139 = vmax.f32 %v3057, 0.0
  %v3140 = vmax.f32 %v3058, 0.0
  %v3141 = vmax.f32 %v3059, 0.0
  %v3142 = vmax.f32 %v3060, 0.0
  %v3143 = vmax.f32 %v3061, 0.0
  %v3144 = vmax.f32 %v3062, 0.0
  %v3145 = vmax.f32 %v3063, 0.0
  %v3146 = vmax.f32 %v3064, 0.0
  %v3147 = vmax.f32 %v3065, 0.0
  %v3148 = vmax.f32 %v3066, 0.0
  %v3149 = vmax.f32 %v3067, 0.0
  %v3150 = vmax.f32 %v3068, 0.0
  %v3151 = vmax.f32 %v3069, 0.0
  %v3152 = vmax.f32 %v3070, 0.0
  %v3153 = vpack.c.bf16 %v3072, %v3071
  %v3154 = vpack.c.bf16 %v3074, %v3073
  %v3155 = vpack.c.bf16 %v3076, %v3075
  %v3156 = vpack.c.bf16 %v3078, %v3077
  %v3157 = vpack.c.bf16 %v3080, %v3079
  %v3158 = vpack.c.bf16 %v3082, %v3081
  %v3159 = vpack.c.bf16 %v3084, %v3083
  %v3160 = vpack.c.bf16 %v3086, %v3085
  %v3161 = vpack.c.bf16 %v3088, %v3087
  %v3162 = vpack.c.bf16 %v3090, %v3089
  %v3163 = vpack.c.bf16 %v3092, %v3091
  %v3164 = vpack.c.bf16 %v3094, %v3093
  %v3165 = vpack.c.bf16 %v3096, %v3095
  %v3166 = vpack.c.bf16 %v3098, %v3097
  %v3167 = vpack.c.bf16 %v3100, %v3099
  %v3168 = vpack.c.bf16 %v3102, %v3101
  %v3169 = vpack.c.bf16 %v3104, %v3103
  %v3170 = vpack.c.bf16 %v3106, %v3105
  %v3171 = vpack.c.bf16 %v3108, %v3107
  %v3172 = vpack.c.bf16 %v3110, %v3109
  %v3173 = vpack.c.bf16 %v3112, %v3111
  %v3174 = vpack.c.bf16 %v3114, %v3113
  %v3175 = vpack.c.bf16 %v3116, %v3115
  %v3176 = vpack.c.bf16 %v3118, %v3117
  %v3177 = vpack.c.bf16 %v3120, %v3119
  %v3178 = vpack.c.bf16 %v3122, %v3121
  %v3179 = vpack.c.bf16 %v3124, %v3123
  %v3180 = vpack.c.bf16 %v3126, %v3125
  %v3181 = vpack.c.bf16 %v3128, %v3127
  %v3182 = vpack.c.bf16 %v3130, %v3129
  %v3183 = vpack.c.bf16 %v3132, %v3131
  %v3184 = vpack.c.bf16 %v3134, %v3133
  %v3185 = vpack.c.bf16 %v3136, %v3135
  %v3186 = vpack.c.bf16 %v3138, %v3137
  %v3187 = vpack.c.bf16 %v3140, %v3139
  %v3188 = vpack.c.bf16 %v3142, %v3141
  %v3189 = vpack.c.bf16 %v3144, %v3143
  %v3190 = vpack.c.bf16 %v3146, %v3145
  %v3191 = vpack.c.bf16 %v3148, %v3147
  %v3192 = vpack.c.bf16 %v3150, %v3149
  %v3193 = vpack.c.bf16 %v3152, %v3151
  %v3235 = vunpack.c.l.b16 %v3153
  %v3236 = vunpack.c.h.b16 %v3153
  %v3237 = vunpack.c.l.b16 %v3154
  %v3238 = vunpack.c.h.b16 %v3154
  %v3239 = vunpack.c.l.b16 %v3155
  %v3240 = vunpack.c.h.b16 %v3155
  %v3241 = vunpack.c.l.b16 %v3156
  %v3242 = vunpack.c.h.b16 %v3156
  %v3243 = vunpack.c.l.b16 %v3157
  %v3244 = vunpack.c.h.b16 %v3157
  %v3245 = vunpack.c.l.b16 %v3158
  %v3246 = vunpack.c.h.b16 %v3158
  %v3247 = vunpack.c.l.b16 %v3159
  %v3248 = vunpack.c.h.b16 %v3159
  %v3249 = vunpack.c.l.b16 %v3160
  %v3250 = vunpack.c.h.b16 %v3160
  %v3251 = vunpack.c.l.b16 %v3161
  %v3252 = vunpack.c.h.b16 %v3161
  %v3253 = vunpack.c.l.b16 %v3162
  %v3254 = vunpack.c.h.b16 %v3162
  %v3255 = vunpack.c.l.b16 %v3163
  %v3256 = vunpack.c.h.b16 %v3163
  %v3257 = vunpack.c.l.b16 %v3164
  %v3258 = vunpack.c.h.b16 %v3164
  %v3259 = vunpack.c.l.b16 %v3165
  %v3260 = vunpack.c.h.b16 %v3165
  %v3261 = vunpack.c.l.b16 %v3166
  %v3262 = vunpack.c.h.b16 %v3166
  %v3263 = vunpack.c.l.b16 %v3167
  %v3264 = vunpack.c.h.b16 %v3167
  %v3265 = vunpack.c.l.b16 %v3168
  %v3266 = vunpack.c.h.b16 %v3168
  %v3267 = vunpack.c.l.b16 %v3169
  %v3268 = vunpack.c.h.b16 %v3169
  %v3269 = vunpack.c.l.b16 %v3170
  %v3270 = vunpack.c.h.b16 %v3170
  %v3271 = vunpack.c.l.b16 %v3171
  %v3272 = vunpack.c.h.b16 %v3171
  %v3273 = vunpack.c.l.b16 %v3172
  %v3274 = vunpack.c.h.b16 %v3172
  %v3275 = vunpack.c.l.b16 %v3173
  %v3276 = vunpack.c.h.b16 %v3173
  %v3277 = vunpack.c.l.b16 %v3174
  %v3278 = vunpack.c.h.b16 %v3174
  %v3279 = vunpack.c.l.b16 %v3175
  %v3280 = vunpack.c.h.b16 %v3175
  %v3281 = vunpack.c.l.b16 %v3176
  %v3282 = vunpack.c.h.b16 %v3176
  %v3283 = vunpack.c.l.b16 %v3177
  %v3284 = vunpack.c.h.b16 %v3177
  %v3285 = vunpack.c.l.b16 %v3178
  %v3286 = vunpack.c.h.b16 %v3178
  %v3287 = vunpack.c.l.b16 %v3179
  %v3288 = vunpack.c.h.b16 %v3179
  %v3289 = vunpack.c.l.b16 %v3180
  %v3290 = vunpack.c.h.b16 %v3180
  %v3291 = vunpack.c.l.b16 %v3181
  %v3292 = vunpack.c.h.b16 %v3181
  %v3293 = vunpack.c.l.b16 %v3182
  %v3294 = vunpack.c.h.b16 %v3182
  %v3295 = vunpack.c.l.b16 %v3183
  %v3296 = vunpack.c.h.b16 %v3183
  %v3297 = vunpack.c.l.b16 %v3184
  %v3298 = vunpack.c.h.b16 %v3184
  %v3299 = vunpack.c.l.b16 %v3185
  %v3300 = vunpack.c.h.b16 %v3185
  %v3301 = vunpack.c.l.b16 %v3186
  %v3302 = vunpack.c.h.b16 %v3186
  %v3303 = vunpack.c.l.b16 %v3187
  %v3304 = vunpack.c.h.b16 %v3187
  %v3305 = vunpack.c.l.b16 %v3188
  %v3306 = vunpack.c.h.b16 %v3188
  %v3307 = vunpack.c.l.b16 %v3189
  %v3308 = vunpack.c.h.b16 %v3189
  %v3309 = vunpack.c.l.b16 %v3190
  %v3310 = vunpack.c.h.b16 %v3190
  %v3311 = vunpack.c.l.b16 %v3191
  %v3312 = vunpack.c.h.b16 %v3191
  %v3313 = vunpack.c.l.b16 %v3192
  %v3314 = vunpack.c.h.b16 %v3192
  %v3315 = vunpack.c.l.b16 %v3193
  %v3316 = vunpack.c.h.b16 %v3193
  %v3317 = vpack.c.b16 %v3235, %v3235
  %v3318 = vpack.c.b16 %v3236, %v3236
  %v3319 = vpack.c.b16 %v3237, %v3237
  %v3320 = vpack.c.b16 %v3238, %v3238
  %v3321 = vpack.c.b16 %v3239, %v3239
  %v3322 = vpack.c.b16 %v3240, %v3240
  %v3323 = vpack.c.b16 %v3241, %v3241
  %v3324 = vpack.c.b16 %v3242, %v3242
  %v3325 = vpack.c.b16 %v3243, %v3243
  %v3326 = vpack.c.b16 %v3244, %v3244
  %v3327 = vpack.c.b16 %v3245, %v3245
  %v3328 = vpack.c.b16 %v3246, %v3246
  %v3329 = vpack.c.b16 %v3247, %v3247
  %v3330 = vpack.c.b16 %v3248, %v3248
  %v3331 = vpack.c.b16 %v3249, %v3249
  %v3332 = vpack.c.b16 %v3250, %v3250
  %v3333 = vpack.c.b16 %v3251, %v3251
  %v3334 = vpack.c.b16 %v3252, %v3252
  %v3335 = vpack.c.b16 %v3253, %v3253
  %v3336 = vpack.c.b16 %v3254, %v3254
  %v3337 = vpack.c.b16 %v3255, %v3255
  %v3338 = vpack.c.b16 %v3256, %v3256
  %v3339 = vpack.c.b16 %v3257, %v3257
  %v3340 = vpack.c.b16 %v3258, %v3258
  %v3341 = vpack.c.b16 %v3259, %v3259
  %v3342 = vpack.c.b16 %v3260, %v3260
  %v3343 = vpack.c.b16 %v3261, %v3261
  %v3344 = vpack.c.b16 %v3262, %v3262
  %v3345 = vpack.c.b16 %v3263, %v3263
  %v3346 = vpack.c.b16 %v3264, %v3264
  %v3347 = vpack.c.b16 %v3265, %v3265
  %v3348 = vpack.c.b16 %v3266, %v3266
  %v3349 = vpack.c.b16 %v3267, %v3267
  %v3350 = vpack.c.b16 %v3268, %v3268
  %v3351 = vpack.c.b16 %v3269, %v3269
  %v3352 = vpack.c.b16 %v3270, %v3270
  %v3353 = vpack.c.b16 %v3271, %v3271
  %v3354 = vpack.c.b16 %v3272, %v3272
  %v3355 = vpack.c.b16 %v3273, %v3273
  %v3356 = vpack.c.b16 %v3274, %v3274
  %v3357 = vpack.c.b16 %v3275, %v3275
  %v3358 = vpack.c.b16 %v3276, %v3276
  %v3359 = vpack.c.b16 %v3277, %v3277
  %v3360 = vpack.c.b16 %v3278, %v3278
  %v3361 = vpack.c.b16 %v3279, %v3279
  %v3362 = vpack.c.b16 %v3280, %v3280
  %v3363 = vpack.c.b16 %v3281, %v3281
  %v3364 = vpack.c.b16 %v3282, %v3282
  %v3365 = vpack.c.b16 %v3283, %v3283
  %v3366 = vpack.c.b16 %v3284, %v3284
  %v3367 = vpack.c.b16 %v3285, %v3285
  %v3368 = vpack.c.b16 %v3286, %v3286
  %v3369 = vpack.c.b16 %v3287, %v3287
  %v3370 = vpack.c.b16 %v3288, %v3288
  %v3371 = vpack.c.b16 %v3289, %v3289
  %v3372 = vpack.c.b16 %v3290, %v3290
  %v3373 = vpack.c.b16 %v3291, %v3291
  %v3374 = vpack.c.b16 %v3292, %v3292
  %v3375 = vpack.c.b16 %v3293, %v3293
  %v3376 = vpack.c.b16 %v3294, %v3294
  %v3377 = vpack.c.b16 %v3295, %v3295
  %v3378 = vpack.c.b16 %v3296, %v3296
  %v3379 = vpack.c.b16 %v3297, %v3297
  %v3380 = vpack.c.b16 %v3298, %v3298
  %v3381 = vpack.c.b16 %v3299, %v3299
  %v3382 = vpack.c.b16 %v3300, %v3300
  %v3383 = vpack.c.b16 %v3301, %v3301
  %v3384 = vpack.c.b16 %v3302, %v3302
  %v3385 = vpack.c.b16 %v3303, %v3303
  %v3386 = vpack.c.b16 %v3304, %v3304
  %v3387 = vpack.c.b16 %v3305, %v3305
  %v3388 = vpack.c.b16 %v3306, %v3306
  %v3389 = vpack.c.b16 %v3307, %v3307
  %v3390 = vpack.c.b16 %v3308, %v3308
  %v3391 = vpack.c.b16 %v3309, %v3309
  %v3392 = vpack.c.b16 %v3310, %v3310
  %v3393 = vpack.c.b16 %v3311, %v3311
  %v3394 = vpack.c.b16 %v3312, %v3312
  %v3395 = vpack.c.b16 %v3313, %v3313
  %v3396 = vpack.c.b16 %v3314, %v3314
  %v3397 = vpack.c.b16 %v3315, %v3315
  %v3398 = vpack.c.b16 %v3316, %v3316
  %3481 = vst [vmem:[%s3] sm:$0xf] %v3317
  %3482 = vst [vmem:[%s3 + $0x4] sm:$0xf] %v3318
  %3483 = vst [vmem:[%s3 + $0x8] sm:$0xf] %v3319
  %3484 = vst [vmem:[%s3 + $0xc] sm:$0xf] %v3320
  %3485 = vst [vmem:[%s3 + $0x10] sm:$0xf] %v3321
  %3486 = vst [vmem:[%s3 + $0x14] sm:$0xf] %v3322
  %3487 = vst [vmem:[%s3 + $0x18] sm:$0xf] %v3323
  %3488 = vst [vmem:[%s3 + $0x1c] sm:$0xf] %v3324
  %3489 = vst [vmem:[%s3 + $0x20] sm:$0xf] %v3325
  %3490 = vst [vmem:[%s3 + $0x24] sm:$0xf] %v3326
  %3491 = vst [vmem:[%s3 + $0x28] sm:$0xf] %v3327
  %3492 = vst [vmem:[%s3 + $0x2c] sm:$0xf] %v3328
  %3493 = vst [vmem:[%s3 + $0x30] sm:$0xf] %v3329
  %3494 = vst [vmem:[%s3 + $0x34] sm:$0xf] %v3330
  %3495 = vst [vmem:[%s3 + $0x38] sm:$0xf] %v3331
  %3496 = vst [vmem:[%s3 + $0x3c] sm:$0xf] %v3332
  %3497 = vst [vmem:[%s3 + $0x40] sm:$0xf] %v3333
  %3498 = vst [vmem:[%s3 + $0x44] sm:$0xf] %v3334
  %3499 = vst [vmem:[%s3 + $0x48] sm:$0xf] %v3335
  %3500 = vst [vmem:[%s3 + $0x4c] sm:$0xf] %v3336
  %3501 = vst [vmem:[%s3 + $0x50] sm:$0xf] %v3337
  %3502 = vst [vmem:[%s3 + $0x54] sm:$0xf] %v3338
  %3503 = vst [vmem:[%s3 + $0x58] sm:$0xf] %v3339
  %3504 = vst [vmem:[%s3 + $0x5c] sm:$0xf] %v3340
  %3505 = vst [vmem:[%s3 + $0x60] sm:$0xf] %v3341
  %3506 = vst [vmem:[%s3 + $0x64] sm:$0xf] %v3342
  %3507 = vst [vmem:[%s3 + $0x68] sm:$0xf] %v3343
  %3508 = vst [vmem:[%s3 + $0x6c] sm:$0xf] %v3344
  %3509 = vst [vmem:[%s3 + $0x70] sm:$0xf] %v3345
  %3510 = vst [vmem:[%s3 + $0x74] sm:$0xf] %v3346
  %3511 = vst [vmem:[%s3 + $0x78] sm:$0xf] %v3347
  %3512 = vst [vmem:[%s3 + $0x7c] sm:$0xf] %v3348
  %3513 = vst [vmem:[%s3 + $0x80] sm:$0xf] %v3349
  %3514 = vst [vmem:[%s3 + $0x84] sm:$0xf] %v3350
  %3515 = vst [vmem:[%s3 + $0x88] sm:$0xf] %v3351
  %3516 = vst [vmem:[%s3 + $0x8c] sm:$0xf] %v3352
  %3517 = vst [vmem:[%s3 + $0x90] sm:$0xf] %v3353
  %3518 = vst [vmem:[%s3 + $0x94] sm:$0xf] %v3354
  %3519 = vst [vmem:[%s3 + $0x98] sm:$0xf] %v3355
  %3520 = vst [vmem:[%s3 + $0x9c] sm:$0xf] %v3356
  %3521 = vst [vmem:[%s3 + $0xa0] sm:$0xf] %v3357
  %3522 = vst [vmem:[%s3 + $0xa4] sm:$0xf] %v3358
  %3523 = vst [vmem:[%s3 + $0xa8] sm:$0xf] %v3359
  %3524 = vst [vmem:[%s3 + $0xac] sm:$0xf] %v3360
  %3525 = vst [vmem:[%s3 + $0xb0] sm:$0xf] %v3361
  %3526 = vst [vmem:[%s3 + $0xb4] sm:$0xf] %v3362
  %3527 = vst [vmem:[%s3 + $0xb8] sm:$0xf] %v3363
  %3528 = vst [vmem:[%s3 + $0xbc] sm:$0xf] %v3364
  %3529 = vst [vmem:[%s3 + $0xc0] sm:$0xf] %v3365
  %3530 = vst [vmem:[%s3 + $0xc4] sm:$0xf] %v3366
  %3531 = vst [vmem:[%s3 + $0xc8] sm:$0xf] %v3367
  %3532 = vst [vmem:[%s3 + $0xcc] sm:$0xf] %v3368
  %3533 = vst [vmem:[%s3 + $0xd0] sm:$0xf] %v3369
  %3534 = vst [vmem:[%s3 + $0xd4] sm:$0xf] %v3370
  %3535 = vst [vmem:[%s3 + $0xd8] sm:$0xf] %v3371
  %3536 = vst [vmem:[%s3 + $0xdc] sm:$0xf] %v3372
  %3537 = vst [vmem:[%s3 + $0xe0] sm:$0xf] %v3373
  %3538 = vst [vmem:[%s3 + $0xe4] sm:$0xf] %v3374
  %3539 = vst [vmem:[%s3 + $0xe8] sm:$0xf] %v3375
  %3540 = vst [vmem:[%s3 + $0xec] sm:$0xf] %v3376
  %3541 = vst [vmem:[%s3 + $0xf0] sm:$0xf] %v3377
  %3542 = vst [vmem:[%s3 + $0xf4] sm:$0xf] %v3378
  %3543 = vst [vmem:[%s3 + $0xf8] sm:$0xf] %v3379
  %3544 = vst [vmem:[%s3 + $0xfc] sm:$0xf] %v3380
  %3545 = vst [vmem:[%s3 + $0x100] sm:$0xf] %v3381
  %3546 = vst [vmem:[%s3 + $0x104] sm:$0xf] %v3382
  %3547 = vst [vmem:[%s3 + $0x108] sm:$0xf] %v3383
  %3548 = vst [vmem:[%s3 + $0x10c] sm:$0xf] %v3384
  %3549 = vst [vmem:[%s3 + $0x110] sm:$0xf] %v3385
  %3550 = vst [vmem:[%s3 + $0x114] sm:$0xf] %v3386
  %3551 = vst [vmem:[%s3 + $0x118] sm:$0xf] %v3387
  %3552 = vst [vmem:[%s3 + $0x11c] sm:$0xf] %v3388
  %3553 = vst [vmem:[%s3 + $0x120] sm:$0xf] %v3389
  %3554 = vst [vmem:[%s3 + $0x124] sm:$0xf] %v3390
  %3555 = vst [vmem:[%s3 + $0x128] sm:$0xf] %v3391
  %3556 = vst [vmem:[%s3 + $0x12c] sm:$0xf] %v3392
  %3557 = vst [vmem:[%s3 + $0x130] sm:$0xf] %v3393
  %3558 = vst [vmem:[%s3 + $0x134] sm:$0xf] %v3394
  %3559 = vst [vmem:[%s3 + $0x138] sm:$0xf] %v3395
  %3560 = vst [vmem:[%s3 + $0x13c] sm:$0xf] %v3396
  %3561 = vst [vmem:[%s3 + $0x140] sm:$0xf] %v3397
  %3562 = vst [vmem:[%s3 + $0x144] sm:$0xf] %v3398
  // Predicated region
  $region14: #{alexnet_forward.4} parent=0 // pred_check
    _
  $region15: #{alexnet_forward.4} parent=0 // pred_check_branch
    %3564 = sbr.rel (0) target = $region17
  $region16: #{alexnet_forward.4} parent=0 // pred_region
    _
  $region17: #{alexnet_forward.4} parent=0 // pred_fallthru
    _
  // Predicated region
  $region18: #{alexnet_forward.4} parent=0 // pred_check
    _
  $region19: #{alexnet_forward.4} parent=0 // pred_check_branch
    %3566 = sbr.rel (0) target = $region21
  $region20: #{alexnet_forward.4} parent=0 // pred_region
    _
  $region21: #{alexnet_forward.4} parent=0 // pred_fallthru
    _

// kernel: alexnet_forward.5
$region0: #{alexnet_forward.5}
  #allocation0 [shape = 'u32[]', space=smem, size = 0x4, offset = 0x4, fixed_abs, tag = 'smem constant byte address 0x4 - core index']
  #allocation1 [shape = 'u32[144,128]{1,0:T(1,128)}', space=vmem, size = 0x12000, scoped, tag = 'internal scratch']
  %s0 = inlined_call_operand.vmem [shape: bf16[4,128,1152], index: 0, kind: input, shape index: {}]
  %s1 = inlined_call_operand.vmem [shape: bf16[1152,128], index: 1, kind: input, shape index: {}]
  %s2 = inlined_call_operand.vmem [shape: f32[1,128], index: 2, kind: input, shape index: {}]
  %s3 = inlined_call_operand.vmem [shape: bf16[128,128], index: 3, kind: output, shape index: {}]
  %s4 = sld [smem:[#allocation0]]
  $region22: #{alexnet_forward.5} parent=0
    _
  %s6 = ssub.s32 1, %s4
  %s7 = scalar_select 0, %s6, %s4
  // Predicated region
  $region2: #{alexnet_forward.5} parent=0 // pred_check
    _
  $region3: #{alexnet_forward.5} parent=0 // pred_check_branch
    %9 = sbr.rel (0) target = $region5
  $region4: #{alexnet_forward.5} parent=0 // pred_region
    _
  $region5: #{alexnet_forward.5} parent=0 // pred_fallthru
    _
  // Predicated region
  $region6: #{alexnet_forward.5} parent=0 // pred_check
    _
  $region7: #{alexnet_forward.5} parent=0 // pred_check_branch
    %11 = sbr.rel (0) target = $region9
  $region8: #{alexnet_forward.5} parent=0 // pred_region
    _
  $region9: #{alexnet_forward.5} parent=0 // pred_fallthru
    _
  // Predicated region
  $region10: #{alexnet_forward.5} parent=0 // pred_check
    _
  $region11: #{alexnet_forward.5} parent=0 // pred_check_branch
    %13 = sbr.rel (0) target = $region13
  $region12: #{alexnet_forward.5} parent=0 // pred_region
    _
  $region13: #{alexnet_forward.5} parent=0 // pred_fallthru
    _
  %v15 = vld [vmem:[%s0] sm:$0xff]
  %v16 = vld [vmem:[%s0 + $0x8] sm:$0xff]
  %v17 = vld [vmem:[%s0 + $0x10] sm:$0xff]
  %v18 = vld [vmem:[%s0 + $0x18] sm:$0xff]
  %v19 = vld [vmem:[%s0 + $0x20] sm:$0xf]
  %v20 = vld [vmem:[%s0 + $0x24] sm:$0xff]
  %v21 = vld [vmem:[%s0 + $0x2c] sm:$0xff]
  %v22 = vld [vmem:[%s0 + $0x34] sm:$0xff]
  %v23 = vld [vmem:[%s0 + $0x3c] sm:$0xff]
  %v24 = vld [vmem:[%s0 + $0x44] sm:$0xf]
  %v25 = vld [vmem:[%s0 + $0x48] sm:$0xff]
  %v26 = vld [vmem:[%s0 + $0x50] sm:$0xff]
  %v27 = vld [vmem:[%s0 + $0x58] sm:$0xff]
  %v28 = vld [vmem:[%s0 + $0x60] sm:$0xff]
  %v29 = vld [vmem:[%s0 + $0x68] sm:$0xf]
  %v30 = vld [vmem:[%s0 + $0x6c] sm:$0xff]
  %v31 = vld [vmem:[%s0 + $0x74] sm:$0xff]
  %v32 = vld [vmem:[%s0 + $0x7c] sm:$0xff]
  %v33 = vld [vmem:[%s0 + $0x84] sm:$0xff]
  %v34 = vld [vmem:[%s0 + $0x8c] sm:$0xf]
  %v35 = vld [vmem:[%s0 + $0x90] sm:$0xff]
  %v36 = vld [vmem:[%s0 + $0x98] sm:$0xff]
  %v37 = vld [vmem:[%s0 + $0xa0] sm:$0xff]
  %v38 = vld [vmem:[%s0 + $0xa8] sm:$0xff]
  %v39 = vld [vmem:[%s0 + $0xb0] sm:$0xf]
  %v40 = vld [vmem:[%s0 + $0xb4] sm:$0xff]
  %v41 = vld [vmem:[%s0 + $0xbc] sm:$0xff]
  %v42 = vld [vmem:[%s0 + $0xc4] sm:$0xff]
  %v43 = vld [vmem:[%s0 + $0xcc] sm:$0xff]
  %v44 = vld [vmem:[%s0 + $0xd4] sm:$0xf]
  %v45 = vld [vmem:[%s0 + $0xd8] sm:$0xff]
  %v46 = vld [vmem:[%s0 + $0xe0] sm:$0xff]
  %v47 = vld [vmem:[%s0 + $0xe8] sm:$0xff]
  %v48 = vld [vmem:[%s0 + $0xf0] sm:$0xff]
  %v49 = vld [vmem:[%s0 + $0xf8] sm:$0xf]
  %v50 = vld [vmem:[%s0 + $0xfc] sm:$0xff]
  %v51 = vld [vmem:[%s0 + $0x104] sm:$0xff]
  %v52 = vld [vmem:[%s0 + $0x10c] sm:$0xff]
  %v53 = vld [vmem:[%s0 + $0x114] sm:$0xff]
  %v54 = vld [vmem:[%s0 + $0x11c] sm:$0xf]
  %v55 = vld [vmem:[%s0 + $0x120] sm:$0xff]
  %v56 = vld [vmem:[%s0 + $0x128] sm:$0xff]
  %v57 = vld [vmem:[%s0 + $0x130] sm:$0xff]
  %v58 = vld [vmem:[%s0 + $0x138] sm:$0xff]
  %v59 = vld [vmem:[%s0 + $0x140] sm:$0xf]
  %v60 = vld [vmem:[%s0 + $0x144] sm:$0xff]
  %v61 = vld [vmem:[%s0 + $0x14c] sm:$0xff]
  %v62 = vld [vmem:[%s0 + $0x154] sm:$0xff]
  %v63 = vld [vmem:[%s0 + $0x15c] sm:$0xff]
  %v64 = vld [vmem:[%s0 + $0x164] sm:$0xf]
  %v65 = vld [vmem:[%s0 + $0x168] sm:$0xff]
  %v66 = vld [vmem:[%s0 + $0x170] sm:$0xff]
  %v67 = vld [vmem:[%s0 + $0x178] sm:$0xff]
  %v68 = vld [vmem:[%s0 + $0x180] sm:$0xff]
  %v69 = vld [vmem:[%s0 + $0x188] sm:$0xf]
  %v70 = vld [vmem:[%s0 + $0x18c] sm:$0xff]
  %v71 = vld [vmem:[%s0 + $0x194] sm:$0xff]
  %v72 = vld [vmem:[%s0 + $0x19c] sm:$0xff]
  %v73 = vld [vmem:[%s0 + $0x1a4] sm:$0xff]
  %v74 = vld [vmem:[%s0 + $0x1ac] sm:$0xf]
  %v75 = vld [vmem:[%s0 + $0x1b0] sm:$0xff]
  %v76 = vld [vmem:[%s0 + $0x1b8] sm:$0xff]
  %v77 = vld [vmem:[%s0 + $0x1c0] sm:$0xff]
  %v78 = vld [vmem:[%s0 + $0x1c8] sm:$0xff]
  %v79 = vld [vmem:[%s0 + $0x1d0] sm:$0xf]
  %v80 = vld [vmem:[%s0 + $0x1d4] sm:$0xff]
  %v81 = vld [vmem:[%s0 + $0x1dc] sm:$0xff]
  %v82 = vld [vmem:[%s0 + $0x1e4] sm:$0xff]
  %v83 = vld [vmem:[%s0 + $0x1ec] sm:$0xff]
  %v84 = vld [vmem:[%s0 + $0x1f4] sm:$0xf]
  %v85 = vld [vmem:[%s0 + $0x1f8] sm:$0xff]
  %v86 = vld [vmem:[%s0 + $0x200] sm:$0xff]
  %v87 = vld [vmem:[%s0 + $0x208] sm:$0xff]
  %v88 = vld [vmem:[%s0 + $0x210] sm:$0xff]
  %v89 = vld [vmem:[%s0 + $0x218] sm:$0xf]
  %v90 = vld [vmem:[%s0 + $0x21c] sm:$0xff]
  %v91 = vld [vmem:[%s0 + $0x224] sm:$0xff]
  %v92 = vld [vmem:[%s0 + $0x22c] sm:$0xff]
  %v93 = vld [vmem:[%s0 + $0x234] sm:$0xff]
  %v94 = vld [vmem:[%s0 + $0x23c] sm:$0xf]
  %v95 = vld [vmem:[%s0 + $0x240] sm:$0xff]
  %v96 = vld [vmem:[%s0 + $0x248] sm:$0xff]
  %v97 = vld [vmem:[%s0 + $0x250] sm:$0xff]
  %v98 = vld [vmem:[%s0 + $0x258] sm:$0xff]
  %v99 = vld [vmem:[%s0 + $0x260] sm:$0xf]
  %v100 = vld [vmem:[%s0 + $0x264] sm:$0xff]
  %v101 = vld [vmem:[%s0 + $0x26c] sm:$0xff]
  %v102 = vld [vmem:[%s0 + $0x274] sm:$0xff]
  %v103 = vld [vmem:[%s0 + $0x27c] sm:$0xff]
  %v104 = vld [vmem:[%s0 + $0x284] sm:$0xf]
  %v105 = vld [vmem:[%s0 + $0x288] sm:$0xff]
  %v106 = vld [vmem:[%s0 + $0x290] sm:$0xff]
  %v107 = vld [vmem:[%s0 + $0x298] sm:$0xff]
  %v108 = vld [vmem:[%s0 + $0x2a0] sm:$0xff]
  %v109 = vld [vmem:[%s0 + $0x2a8] sm:$0xf]
  %v110 = vld [vmem:[%s0 + $0x2ac] sm:$0xff]
  %v111 = vld [vmem:[%s0 + $0x2b4] sm:$0xff]
  %v112 = vld [vmem:[%s0 + $0x2bc] sm:$0xff]
  %v113 = vld [vmem:[%s0 + $0x2c4] sm:$0xff]
  %v114 = vld [vmem:[%s0 + $0x2cc] sm:$0xf]
  %v115 = vld [vmem:[%s0 + $0x2d0] sm:$0xff]
  %v116 = vld [vmem:[%s0 + $0x2d8] sm:$0xff]
  %v117 = vld [vmem:[%s0 + $0x2e0] sm:$0xff]
  %v118 = vld [vmem:[%s0 + $0x2e8] sm:$0xff]
  %v119 = vld [vmem:[%s0 + $0x2f0] sm:$0xf]
  %v120 = vld [vmem:[%s0 + $0x2f4] sm:$0xff]
  %v121 = vld [vmem:[%s0 + $0x2fc] sm:$0xff]
  %v122 = vld [vmem:[%s0 + $0x304] sm:$0xff]
  %v123 = vld [vmem:[%s0 + $0x30c] sm:$0xff]
  %v124 = vld [vmem:[%s0 + $0x314] sm:$0xf]
  %v125 = vld [vmem:[%s0 + $0x318] sm:$0xff]
  %v126 = vld [vmem:[%s0 + $0x320] sm:$0xff]
  %v127 = vld [vmem:[%s0 + $0x328] sm:$0xff]
  %v128 = vld [vmem:[%s0 + $0x330] sm:$0xff]
  %v129 = vld [vmem:[%s0 + $0x338] sm:$0xf]
  %v130 = vld [vmem:[%s0 + $0x33c] sm:$0xff]
  %v131 = vld [vmem:[%s0 + $0x344] sm:$0xff]
  %v132 = vld [vmem:[%s0 + $0x34c] sm:$0xff]
  %v133 = vld [vmem:[%s0 + $0x354] sm:$0xff]
  %v134 = vld [vmem:[%s0 + $0x35c] sm:$0xf]
  %v135 = vld [vmem:[%s0 + $0x360] sm:$0xff]
  %v136 = vld [vmem:[%s0 + $0x368] sm:$0xff]
  %v137 = vld [vmem:[%s0 + $0x370] sm:$0xff]
  %v138 = vld [vmem:[%s0 + $0x378] sm:$0xff]
  %v139 = vld [vmem:[%s0 + $0x380] sm:$0xf]
  %v140 = vld [vmem:[%s0 + $0x384] sm:$0xff]
  %v141 = vld [vmem:[%s0 + $0x38c] sm:$0xff]
  %v142 = vld [vmem:[%s0 + $0x394] sm:$0xff]
  %v143 = vld [vmem:[%s0 + $0x39c] sm:$0xff]
  %v144 = vld [vmem:[%s0 + $0x3a4] sm:$0xf]
  %v145 = vld [vmem:[%s0 + $0x3a8] sm:$0xff]
  %v146 = vld [vmem:[%s0 + $0x3b0] sm:$0xff]
  %v147 = vld [vmem:[%s0 + $0x3b8] sm:$0xff]
  %v148 = vld [vmem:[%s0 + $0x3c0] sm:$0xff]
  %v149 = vld [vmem:[%s0 + $0x3c8] sm:$0xf]
  %v150 = vld [vmem:[%s0 + $0x3cc] sm:$0xff]
  %v151 = vld [vmem:[%s0 + $0x3d4] sm:$0xff]
  %v152 = vld [vmem:[%s0 + $0x3dc] sm:$0xff]
  %v153 = vld [vmem:[%s0 + $0x3e4] sm:$0xff]
  %v154 = vld [vmem:[%s0 + $0x3ec] sm:$0xf]
  %v155 = vld [vmem:[%s0 + $0x3f0] sm:$0xff]
  %v156 = vld [vmem:[%s0 + $0x3f8] sm:$0xff]
  %v157 = vld [vmem:[%s0 + $0x400] sm:$0xff]
  %v158 = vld [vmem:[%s0 + $0x408] sm:$0xff]
  %v159 = vld [vmem:[%s0 + $0x410] sm:$0xf]
  %v160 = vld [vmem:[%s0 + $0x414] sm:$0xff]
  %v161 = vld [vmem:[%s0 + $0x41c] sm:$0xff]
  %v162 = vld [vmem:[%s0 + $0x424] sm:$0xff]
  %v163 = vld [vmem:[%s0 + $0x42c] sm:$0xff]
  %v164 = vld [vmem:[%s0 + $0x434] sm:$0xf]
  %v165 = vld [vmem:[%s0 + $0x438] sm:$0xff]
  %v166 = vld [vmem:[%s0 + $0x440] sm:$0xff]
  %v167 = vld [vmem:[%s0 + $0x448] sm:$0xff]
  %v168 = vld [vmem:[%s0 + $0x450] sm:$0xff]
  %v169 = vld [vmem:[%s0 + $0x458] sm:$0xf]
  %v170 = vld [vmem:[%s0 + $0x45c] sm:$0xff]
  %v171 = vld [vmem:[%s0 + $0x464] sm:$0xff]
  %v172 = vld [vmem:[%s0 + $0x46c] sm:$0xff]
  %v173 = vld [vmem:[%s0 + $0x474] sm:$0xff]
  %v174 = vld [vmem:[%s0 + $0x47c] sm:$0xf]
  %v175 = vld [vmem:[%s0 + $0x480] sm:$0xff]
  %v176 = vld [vmem:[%s0 + $0x488] sm:$0xff]
  %v177 = vld [vmem:[%s0 + $0x490] sm:$0xff]
  %v178 = vld [vmem:[%s0 + $0x498] sm:$0xff]
  %v179 = vld [vmem:[%s0 + $0x4a0] sm:$0xf]
  %v180 = vld [vmem:[%s0 + $0x4a4] sm:$0xff]
  %v181 = vld [vmem:[%s0 + $0x4ac] sm:$0xff]
  %v182 = vld [vmem:[%s0 + $0x4b4] sm:$0xff]
  %v183 = vld [vmem:[%s0 + $0x4bc] sm:$0xff]
  %v184 = vld [vmem:[%s0 + $0x4c4] sm:$0xf]
  %v185 = vld [vmem:[%s0 + $0x4c8] sm:$0xff]
  %v186 = vld [vmem:[%s0 + $0x4d0] sm:$0xff]
  %v187 = vld [vmem:[%s0 + $0x4d8] sm:$0xff]
  %v188 = vld [vmem:[%s0 + $0x4e0] sm:$0xff]
  %v189 = vld [vmem:[%s0 + $0x4e8] sm:$0xf]
  %v190 = vld [vmem:[%s0 + $0x4ec] sm:$0xff]
  %v191 = vld [vmem:[%s0 + $0x4f4] sm:$0xff]
  %v192 = vld [vmem:[%s0 + $0x4fc] sm:$0xff]
  %v193 = vld [vmem:[%s0 + $0x504] sm:$0xff]
  %v194 = vld [vmem:[%s0 + $0x50c] sm:$0xf]
  %v195 = vld [vmem:[%s0 + $0x510] sm:$0xff]
  %v196 = vld [vmem:[%s0 + $0x518] sm:$0xff]
  %v197 = vld [vmem:[%s0 + $0x520] sm:$0xff]
  %v198 = vld [vmem:[%s0 + $0x528] sm:$0xff]
  %v199 = vld [vmem:[%s0 + $0x530] sm:$0xf]
  %v200 = vld [vmem:[%s0 + $0x534] sm:$0xff]
  %v201 = vld [vmem:[%s0 + $0x53c] sm:$0xff]
  %v202 = vld [vmem:[%s0 + $0x544] sm:$0xff]
  %v203 = vld [vmem:[%s0 + $0x54c] sm:$0xff]
  %v204 = vld [vmem:[%s0 + $0x554] sm:$0xf]
  %v205 = vld [vmem:[%s0 + $0x558] sm:$0xff]
  %v206 = vld [vmem:[%s0 + $0x560] sm:$0xff]
  %v207 = vld [vmem:[%s0 + $0x568] sm:$0xff]
  %v208 = vld [vmem:[%s0 + $0x570] sm:$0xff]
  %v209 = vld [vmem:[%s0 + $0x578] sm:$0xf]
  %v210 = vld [vmem:[%s0 + $0x57c] sm:$0xff]
  %v211 = vld [vmem:[%s0 + $0x584] sm:$0xff]
  %v212 = vld [vmem:[%s0 + $0x58c] sm:$0xff]
  %v213 = vld [vmem:[%s0 + $0x594] sm:$0xff]
  %v214 = vld [vmem:[%s0 + $0x59c] sm:$0xf]
  %v215 = vld [vmem:[%s0 + $0x5a0] sm:$0xff]
  %v216 = vld [vmem:[%s0 + $0x5a8] sm:$0xff]
  %v217 = vld [vmem:[%s0 + $0x5b0] sm:$0xff]
  %v218 = vld [vmem:[%s0 + $0x5b8] sm:$0xff]
  %v219 = vld [vmem:[%s0 + $0x5c0] sm:$0xf]
  %v220 = vld [vmem:[%s0 + $0x5c4] sm:$0xff]
  %v221 = vld [vmem:[%s0 + $0x5cc] sm:$0xff]
  %v222 = vld [vmem:[%s0 + $0x5d4] sm:$0xff]
  %v223 = vld [vmem:[%s0 + $0x5dc] sm:$0xff]
  %v224 = vld [vmem:[%s0 + $0x5e4] sm:$0xf]
  %v225 = vld [vmem:[%s0 + $0x5e8] sm:$0xff]
  %v226 = vld [vmem:[%s0 + $0x5f0] sm:$0xff]
  %v227 = vld [vmem:[%s0 + $0x5f8] sm:$0xff]
  %v228 = vld [vmem:[%s0 + $0x600] sm:$0xff]
  %v229 = vld [vmem:[%s0 + $0x608] sm:$0xf]
  %v230 = vld [vmem:[%s0 + $0x60c] sm:$0xff]
  %v231 = vld [vmem:[%s0 + $0x614] sm:$0xff]
  %v232 = vld [vmem:[%s0 + $0x61c] sm:$0xff]
  %v233 = vld [vmem:[%s0 + $0x624] sm:$0xff]
  %v234 = vld [vmem:[%s0 + $0x62c] sm:$0xf]
  %v235 = vld [vmem:[%s0 + $0x630] sm:$0xff]
  %v236 = vld [vmem:[%s0 + $0x638] sm:$0xff]
  %v237 = vld [vmem:[%s0 + $0x640] sm:$0xff]
  %v238 = vld [vmem:[%s0 + $0x648] sm:$0xff]
  %v239 = vld [vmem:[%s0 + $0x650] sm:$0xf]
  %v240 = vld [vmem:[%s0 + $0x654] sm:$0xff]
  %v241 = vld [vmem:[%s0 + $0x65c] sm:$0xff]
  %v242 = vld [vmem:[%s0 + $0x664] sm:$0xff]
  %v243 = vld [vmem:[%s0 + $0x66c] sm:$0xff]
  %v244 = vld [vmem:[%s0 + $0x674] sm:$0xf]
  %v245 = vld [vmem:[%s0 + $0x678] sm:$0xff]
  %v246 = vld [vmem:[%s0 + $0x680] sm:$0xff]
  %v247 = vld [vmem:[%s0 + $0x688] sm:$0xff]
  %v248 = vld [vmem:[%s0 + $0x690] sm:$0xff]
  %v249 = vld [vmem:[%s0 + $0x698] sm:$0xf]
  %v250 = vld [vmem:[%s0 + $0x69c] sm:$0xff]
  %v251 = vld [vmem:[%s0 + $0x6a4] sm:$0xff]
  %v252 = vld [vmem:[%s0 + $0x6ac] sm:$0xff]
  %v253 = vld [vmem:[%s0 + $0x6b4] sm:$0xff]
  %v254 = vld [vmem:[%s0 + $0x6bc] sm:$0xf]
  %v255 = vld [vmem:[%s0 + $0x6c0] sm:$0xff]
  %v256 = vld [vmem:[%s0 + $0x6c8] sm:$0xff]
  %v257 = vld [vmem:[%s0 + $0x6d0] sm:$0xff]
  %v258 = vld [vmem:[%s0 + $0x6d8] sm:$0xff]
  %v259 = vld [vmem:[%s0 + $0x6e0] sm:$0xf]
  %v260 = vld [vmem:[%s0 + $0x6e4] sm:$0xff]
  %v261 = vld [vmem:[%s0 + $0x6ec] sm:$0xff]
  %v262 = vld [vmem:[%s0 + $0x6f4] sm:$0xff]
  %v263 = vld [vmem:[%s0 + $0x6fc] sm:$0xff]
  %v264 = vld [vmem:[%s0 + $0x704] sm:$0xf]
  %v265 = vld [vmem:[%s0 + $0x708] sm:$0xff]
  %v266 = vld [vmem:[%s0 + $0x710] sm:$0xff]
  %v267 = vld [vmem:[%s0 + $0x718] sm:$0xff]
  %v268 = vld [vmem:[%s0 + $0x720] sm:$0xff]
  %v269 = vld [vmem:[%s0 + $0x728] sm:$0xf]
  %v270 = vld [vmem:[%s0 + $0x72c] sm:$0xff]
  %v271 = vld [vmem:[%s0 + $0x734] sm:$0xff]
  %v272 = vld [vmem:[%s0 + $0x73c] sm:$0xff]
  %v273 = vld [vmem:[%s0 + $0x744] sm:$0xff]
  %v274 = vld [vmem:[%s0 + $0x74c] sm:$0xf]
  %v275 = vld [vmem:[%s0 + $0x750] sm:$0xff]
  %v276 = vld [vmem:[%s0 + $0x758] sm:$0xff]
  %v277 = vld [vmem:[%s0 + $0x760] sm:$0xff]
  %v278 = vld [vmem:[%s0 + $0x768] sm:$0xff]
  %v279 = vld [vmem:[%s0 + $0x770] sm:$0xf]
  %v280 = vld [vmem:[%s0 + $0x774] sm:$0xff]
  %v281 = vld [vmem:[%s0 + $0x77c] sm:$0xff]
  %v282 = vld [vmem:[%s0 + $0x784] sm:$0xff]
  %v283 = vld [vmem:[%s0 + $0x78c] sm:$0xff]
  %v284 = vld [vmem:[%s0 + $0x794] sm:$0xf]
  %v285 = vld [vmem:[%s0 + $0x798] sm:$0xff]
  %v286 = vld [vmem:[%s0 + $0x7a0] sm:$0xff]
  %v287 = vld [vmem:[%s0 + $0x7a8] sm:$0xff]
  %v288 = vld [vmem:[%s0 + $0x7b0] sm:$0xff]
  %v289 = vld [vmem:[%s0 + $0x7b8] sm:$0xf]
  %v290 = vld [vmem:[%s0 + $0x7bc] sm:$0xff]
  %v291 = vld [vmem:[%s0 + $0x7c4] sm:$0xff]
  %v292 = vld [vmem:[%s0 + $0x7cc] sm:$0xff]
  %v293 = vld [vmem:[%s0 + $0x7d4] sm:$0xff]
  %v294 = vld [vmem:[%s0 + $0x7dc] sm:$0xf]
  %v295 = vld [vmem:[%s0 + $0x7e0] sm:$0xff]
  %v296 = vld [vmem:[%s0 + $0x7e8] sm:$0xff]
  %v297 = vld [vmem:[%s0 + $0x7f0] sm:$0xff]
  %v298 = vld [vmem:[%s0 + $0x7f8] sm:$0xff]
  %v299 = vld [vmem:[%s0 + $0x800] sm:$0xf]
  %v300 = vld [vmem:[%s0 + $0x804] sm:$0xff]
  %v301 = vld [vmem:[%s0 + $0x80c] sm:$0xff]
  %v302 = vld [vmem:[%s0 + $0x814] sm:$0xff]
  %v303 = vld [vmem:[%s0 + $0x81c] sm:$0xff]
  %v304 = vld [vmem:[%s0 + $0x824] sm:$0xf]
  %v305 = vld [vmem:[%s0 + $0x828] sm:$0xff]
  %v306 = vld [vmem:[%s0 + $0x830] sm:$0xff]
  %v307 = vld [vmem:[%s0 + $0x838] sm:$0xff]
  %v308 = vld [vmem:[%s0 + $0x840] sm:$0xff]
  %v309 = vld [vmem:[%s0 + $0x848] sm:$0xf]
  %v310 = vld [vmem:[%s0 + $0x84c] sm:$0xff]
  %v311 = vld [vmem:[%s0 + $0x854] sm:$0xff]
  %v312 = vld [vmem:[%s0 + $0x85c] sm:$0xff]
  %v313 = vld [vmem:[%s0 + $0x864] sm:$0xff]
  %v314 = vld [vmem:[%s0 + $0x86c] sm:$0xf]
  %v315 = vld [vmem:[%s0 + $0x870] sm:$0xff]
  %v316 = vld [vmem:[%s0 + $0x878] sm:$0xff]
  %v317 = vld [vmem:[%s0 + $0x880] sm:$0xff]
  %v318 = vld [vmem:[%s0 + $0x888] sm:$0xff]
  %v319 = vld [vmem:[%s0 + $0x890] sm:$0xf]
  %v320 = vld [vmem:[%s0 + $0x894] sm:$0xff]
  %v321 = vld [vmem:[%s0 + $0x89c] sm:$0xff]
  %v322 = vld [vmem:[%s0 + $0x8a4] sm:$0xff]
  %v323 = vld [vmem:[%s0 + $0x8ac] sm:$0xff]
  %v324 = vld [vmem:[%s0 + $0x8b4] sm:$0xf]
  %v325 = vld [vmem:[%s0 + $0x8b8] sm:$0xff]
  %v326 = vld [vmem:[%s0 + $0x8c0] sm:$0xff]
  %v327 = vld [vmem:[%s0 + $0x8c8] sm:$0xff]
  %v328 = vld [vmem:[%s0 + $0x8d0] sm:$0xff]
  %v329 = vld [vmem:[%s0 + $0x8d8] sm:$0xf]
  %v330 = vld [vmem:[%s0 + $0x8dc] sm:$0xff]
  %v331 = vld [vmem:[%s0 + $0x8e4] sm:$0xff]
  %v332 = vld [vmem:[%s0 + $0x8ec] sm:$0xff]
  %v333 = vld [vmem:[%s0 + $0x8f4] sm:$0xff]
  %v334 = vld [vmem:[%s0 + $0x8fc] sm:$0xf]
  %v335 = vld [vmem:[%s1] sm:$0xf]
  %v336 = vld [vmem:[%s1 + $0x4] sm:$0xf]
  %v337 = vld [vmem:[%s1 + $0x8] sm:$0xf]
  %v338 = vld [vmem:[%s1 + $0xc] sm:$0xf]
  %v339 = vld [vmem:[%s1 + $0x10] sm:$0xf]
  %v340 = vld [vmem:[%s1 + $0x14] sm:$0xf]
  %v341 = vld [vmem:[%s1 + $0x18] sm:$0xf]
  %v342 = vld [vmem:[%s1 + $0x1c] sm:$0xf]
  %v343 = vld [vmem:[%s1 + $0x20] sm:$0xf]
  %v344 = vld [vmem:[%s1 + $0x24] sm:$0xf]
  %v345 = vld [vmem:[%s1 + $0x28] sm:$0xf]
  %v346 = vld [vmem:[%s1 + $0x2c] sm:$0xf]
  %v347 = vld [vmem:[%s1 + $0x30] sm:$0xf]
  %v348 = vld [vmem:[%s1 + $0x34] sm:$0xf]
  %v349 = vld [vmem:[%s1 + $0x38] sm:$0xf]
  %v350 = vld [vmem:[%s1 + $0x3c] sm:$0xf]
  %v351 = vld [vmem:[%s1 + $0x40] sm:$0xf]
  %v352 = vld [vmem:[%s1 + $0x44] sm:$0xf]
  %v353 = vld [vmem:[%s1 + $0x48] sm:$0xf]
  %v354 = vld [vmem:[%s1 + $0x4c] sm:$0xf]
  %v355 = vld [vmem:[%s1 + $0x50] sm:$0xf]
  %v356 = vld [vmem:[%s1 + $0x54] sm:$0xf]
  %v357 = vld [vmem:[%s1 + $0x58] sm:$0xf]
  %v358 = vld [vmem:[%s1 + $0x5c] sm:$0xf]
  %v359 = vld [vmem:[%s1 + $0x60] sm:$0xf]
  %v360 = vld [vmem:[%s1 + $0x64] sm:$0xf]
  %v361 = vld [vmem:[%s1 + $0x68] sm:$0xf]
  %v362 = vld [vmem:[%s1 + $0x6c] sm:$0xf]
  %v363 = vld [vmem:[%s1 + $0x70] sm:$0xf]
  %v364 = vld [vmem:[%s1 + $0x74] sm:$0xf]
  %v365 = vld [vmem:[%s1 + $0x78] sm:$0xf]
  %v366 = vld [vmem:[%s1 + $0x7c] sm:$0xf]
  %v367 = vld [vmem:[%s1 + $0x80] sm:$0xf]
  %v368 = vld [vmem:[%s1 + $0x84] sm:$0xf]
  %v369 = vld [vmem:[%s1 + $0x88] sm:$0xf]
  %v370 = vld [vmem:[%s1 + $0x8c] sm:$0xf]
  %v371 = vld [vmem:[%s1 + $0x90] sm:$0xf]
  %v372 = vld [vmem:[%s1 + $0x94] sm:$0xf]
  %v373 = vld [vmem:[%s1 + $0x98] sm:$0xf]
  %v374 = vld [vmem:[%s1 + $0x9c] sm:$0xf]
  %v375 = vld [vmem:[%s1 + $0xa0] sm:$0xf]
  %v376 = vld [vmem:[%s1 + $0xa4] sm:$0xf]
  %v377 = vld [vmem:[%s1 + $0xa8] sm:$0xf]
  %v378 = vld [vmem:[%s1 + $0xac] sm:$0xf]
  %v379 = vld [vmem:[%s1 + $0xb0] sm:$0xf]
  %v380 = vld [vmem:[%s1 + $0xb4] sm:$0xf]
  %v381 = vld [vmem:[%s1 + $0xb8] sm:$0xf]
  %v382 = vld [vmem:[%s1 + $0xbc] sm:$0xf]
  %v383 = vld [vmem:[%s1 + $0xc0] sm:$0xf]
  %v384 = vld [vmem:[%s1 + $0xc4] sm:$0xf]
  %v385 = vld [vmem:[%s1 + $0xc8] sm:$0xf]
  %v386 = vld [vmem:[%s1 + $0xcc] sm:$0xf]
  %v387 = vld [vmem:[%s1 + $0xd0] sm:$0xf]
  %v388 = vld [vmem:[%s1 + $0xd4] sm:$0xf]
  %v389 = vld [vmem:[%s1 + $0xd8] sm:$0xf]
  %v390 = vld [vmem:[%s1 + $0xdc] sm:$0xf]
  %v391 = vld [vmem:[%s1 + $0xe0] sm:$0xf]
  %v392 = vld [vmem:[%s1 + $0xe4] sm:$0xf]
  %v393 = vld [vmem:[%s1 + $0xe8] sm:$0xf]
  %v394 = vld [vmem:[%s1 + $0xec] sm:$0xf]
  %v395 = vld [vmem:[%s1 + $0xf0] sm:$0xf]
  %v396 = vld [vmem:[%s1 + $0xf4] sm:$0xf]
  %v397 = vld [vmem:[%s1 + $0xf8] sm:$0xf]
  %v398 = vld [vmem:[%s1 + $0xfc] sm:$0xf]
  %v399 = vld [vmem:[%s1 + $0x100] sm:$0xf]
  %v400 = vld [vmem:[%s1 + $0x104] sm:$0xf]
  %v401 = vld [vmem:[%s1 + $0x108] sm:$0xf]
  %v402 = vld [vmem:[%s1 + $0x10c] sm:$0xf]
  %v403 = vld [vmem:[%s1 + $0x110] sm:$0xf]
  %v404 = vld [vmem:[%s1 + $0x114] sm:$0xf]
  %v405 = vld [vmem:[%s1 + $0x118] sm:$0xf]
  %v406 = vld [vmem:[%s1 + $0x11c] sm:$0xf]
  %v407 = vld [vmem:[%s1 + $0x120] sm:$0xf]
  %v408 = vld [vmem:[%s1 + $0x124] sm:$0xf]
  %v409 = vld [vmem:[%s1 + $0x128] sm:$0xf]
  %v410 = vld [vmem:[%s1 + $0x12c] sm:$0xf]
  %v411 = vld [vmem:[%s1 + $0x130] sm:$0xf]
  %v412 = vld [vmem:[%s1 + $0x134] sm:$0xf]
  %v413 = vld [vmem:[%s1 + $0x138] sm:$0xf]
  %v414 = vld [vmem:[%s1 + $0x13c] sm:$0xf]
  %v415 = vld [vmem:[%s1 + $0x140] sm:$0xf]
  %v416 = vld [vmem:[%s1 + $0x144] sm:$0xf]
  %v417 = vld [vmem:[%s1 + $0x148] sm:$0xf]
  %v418 = vld [vmem:[%s1 + $0x14c] sm:$0xf]
  %v419 = vld [vmem:[%s1 + $0x150] sm:$0xf]
  %v420 = vld [vmem:[%s1 + $0x154] sm:$0xf]
  %v421 = vld [vmem:[%s1 + $0x158] sm:$0xf]
  %v422 = vld [vmem:[%s1 + $0x15c] sm:$0xf]
  %v423 = vld [vmem:[%s1 + $0x160] sm:$0xf]
  %v424 = vld [vmem:[%s1 + $0x164] sm:$0xf]
  %v425 = vld [vmem:[%s1 + $0x168] sm:$0xf]
  %v426 = vld [vmem:[%s1 + $0x16c] sm:$0xf]
  %v427 = vld [vmem:[%s1 + $0x170] sm:$0xf]
  %v428 = vld [vmem:[%s1 + $0x174] sm:$0xf]
  %v429 = vld [vmem:[%s1 + $0x178] sm:$0xf]
  %v430 = vld [vmem:[%s1 + $0x17c] sm:$0xf]
  %v431 = vld [vmem:[%s1 + $0x180] sm:$0xf]
  %v432 = vld [vmem:[%s1 + $0x184] sm:$0xf]
  %v433 = vld [vmem:[%s1 + $0x188] sm:$0xf]
  %v434 = vld [vmem:[%s1 + $0x18c] sm:$0xf]
  %v435 = vld [vmem:[%s1 + $0x190] sm:$0xf]
  %v436 = vld [vmem:[%s1 + $0x194] sm:$0xf]
  %v437 = vld [vmem:[%s1 + $0x198] sm:$0xf]
  %v438 = vld [vmem:[%s1 + $0x19c] sm:$0xf]
  %v439 = vld [vmem:[%s1 + $0x1a0] sm:$0xf]
  %v440 = vld [vmem:[%s1 + $0x1a4] sm:$0xf]
  %v441 = vld [vmem:[%s1 + $0x1a8] sm:$0xf]
  %v442 = vld [vmem:[%s1 + $0x1ac] sm:$0xf]
  %v443 = vld [vmem:[%s1 + $0x1b0] sm:$0xf]
  %v444 = vld [vmem:[%s1 + $0x1b4] sm:$0xf]
  %v445 = vld [vmem:[%s1 + $0x1b8] sm:$0xf]
  %v446 = vld [vmem:[%s1 + $0x1bc] sm:$0xf]
  %v447 = vld [vmem:[%s1 + $0x1c0] sm:$0xf]
  %v448 = vld [vmem:[%s1 + $0x1c4] sm:$0xf]
  %v449 = vld [vmem:[%s1 + $0x1c8] sm:$0xf]
  %v450 = vld [vmem:[%s1 + $0x1cc] sm:$0xf]
  %v451 = vld [vmem:[%s1 + $0x1d0] sm:$0xf]
  %v452 = vld [vmem:[%s1 + $0x1d4] sm:$0xf]
  %v453 = vld [vmem:[%s1 + $0x1d8] sm:$0xf]
  %v454 = vld [vmem:[%s1 + $0x1dc] sm:$0xf]
  %v455 = vld [vmem:[%s1 + $0x1e0] sm:$0xf]
  %v456 = vld [vmem:[%s1 + $0x1e4] sm:$0xf]
  %v457 = vld [vmem:[%s1 + $0x1e8] sm:$0xf]
  %v458 = vld [vmem:[%s1 + $0x1ec] sm:$0xf]
  %v459 = vld [vmem:[%s1 + $0x1f0] sm:$0xf]
  %v460 = vld [vmem:[%s1 + $0x1f4] sm:$0xf]
  %v461 = vld [vmem:[%s1 + $0x1f8] sm:$0xf]
  %v462 = vld [vmem:[%s1 + $0x1fc] sm:$0xf]
  %v463 = vld [vmem:[%s1 + $0x200] sm:$0xf]
  %v464 = vld [vmem:[%s1 + $0x204] sm:$0xf]
  %v465 = vld [vmem:[%s1 + $0x208] sm:$0xf]
  %v466 = vld [vmem:[%s1 + $0x20c] sm:$0xf]
  %v467 = vld [vmem:[%s1 + $0x210] sm:$0xf]
  %v468 = vld [vmem:[%s1 + $0x214] sm:$0xf]
  %v469 = vld [vmem:[%s1 + $0x218] sm:$0xf]
  %v470 = vld [vmem:[%s1 + $0x21c] sm:$0xf]
  %v471 = vld [vmem:[%s1 + $0x220] sm:$0xf]
  %v472 = vld [vmem:[%s1 + $0x224] sm:$0xf]
  %v473 = vld [vmem:[%s1 + $0x228] sm:$0xf]
  %v474 = vld [vmem:[%s1 + $0x22c] sm:$0xf]
  %v475 = vld [vmem:[%s1 + $0x230] sm:$0xf]
  %v476 = vld [vmem:[%s1 + $0x234] sm:$0xf]
  %v477 = vld [vmem:[%s1 + $0x238] sm:$0xf]
  %v478 = vld [vmem:[%s1 + $0x23c] sm:$0xf]
  %v799 = vunpack.c.l.b16 %v15
  %v800 = vunpack.c.h.b16 %v15
  %v801 = vunpack.c.l.b16 %v16
  %v802 = vunpack.c.h.b16 %v16
  %v803 = vunpack.c.l.b16 %v17
  %v804 = vunpack.c.h.b16 %v17
  %v805 = vunpack.c.l.b16 %v18
  %v806 = vunpack.c.h.b16 %v18
  %v807 = vunpack.c.l.b16 %v19
  %v808 = vunpack.c.l.b16 %v20
  %v809 = vunpack.c.h.b16 %v20
  %v810 = vunpack.c.l.b16 %v21
  %v811 = vunpack.c.h.b16 %v21
  %v812 = vunpack.c.l.b16 %v22
  %v813 = vunpack.c.h.b16 %v22
  %v814 = vunpack.c.l.b16 %v23
  %v815 = vunpack.c.h.b16 %v23
  %v816 = vunpack.c.l.b16 %v24
  %v817 = vunpack.c.l.b16 %v25
  %v818 = vunpack.c.h.b16 %v25
  %v819 = vunpack.c.l.b16 %v26
  %v820 = vunpack.c.h.b16 %v26
  %v821 = vunpack.c.l.b16 %v27
  %v822 = vunpack.c.h.b16 %v27
  %v823 = vunpack.c.l.b16 %v28
  %v824 = vunpack.c.h.b16 %v28
  %v825 = vunpack.c.l.b16 %v29
  %v826 = vunpack.c.l.b16 %v30
  %v827 = vunpack.c.h.b16 %v30
  %v828 = vunpack.c.l.b16 %v31
  %v829 = vunpack.c.h.b16 %v31
  %v830 = vunpack.c.l.b16 %v32
  %v831 = vunpack.c.h.b16 %v32
  %v832 = vunpack.c.l.b16 %v33
  %v833 = vunpack.c.h.b16 %v33
  %v834 = vunpack.c.l.b16 %v34
  %v835 = vunpack.c.l.b16 %v35
  %v836 = vunpack.c.h.b16 %v35
  %v837 = vunpack.c.l.b16 %v36
  %v838 = vunpack.c.h.b16 %v36
  %v839 = vunpack.c.l.b16 %v37
  %v840 = vunpack.c.h.b16 %v37
  %v841 = vunpack.c.l.b16 %v38
  %v842 = vunpack.c.h.b16 %v38
  %v843 = vunpack.c.l.b16 %v39
  %v844 = vunpack.c.l.b16 %v40
  %v845 = vunpack.c.h.b16 %v40
  %v846 = vunpack.c.l.b16 %v41
  %v847 = vunpack.c.h.b16 %v41
  %v848 = vunpack.c.l.b16 %v42
  %v849 = vunpack.c.h.b16 %v42
  %v850 = vunpack.c.l.b16 %v43
  %v851 = vunpack.c.h.b16 %v43
  %v852 = vunpack.c.l.b16 %v44
  %v853 = vunpack.c.l.b16 %v45
  %v854 = vunpack.c.h.b16 %v45
  %v855 = vunpack.c.l.b16 %v46
  %v856 = vunpack.c.h.b16 %v46
  %v857 = vunpack.c.l.b16 %v47
  %v858 = vunpack.c.h.b16 %v47
  %v859 = vunpack.c.l.b16 %v48
  %v860 = vunpack.c.h.b16 %v48
  %v861 = vunpack.c.l.b16 %v49
  %v862 = vunpack.c.l.b16 %v50
  %v863 = vunpack.c.h.b16 %v50
  %v864 = vunpack.c.l.b16 %v51
  %v865 = vunpack.c.h.b16 %v51
  %v866 = vunpack.c.l.b16 %v52
  %v867 = vunpack.c.h.b16 %v52
  %v868 = vunpack.c.l.b16 %v53
  %v869 = vunpack.c.h.b16 %v53
  %v870 = vunpack.c.l.b16 %v54
  %v871 = vunpack.c.l.b16 %v55
  %v872 = vunpack.c.h.b16 %v55
  %v873 = vunpack.c.l.b16 %v56
  %v874 = vunpack.c.h.b16 %v56
  %v875 = vunpack.c.l.b16 %v57
  %v876 = vunpack.c.h.b16 %v57
  %v877 = vunpack.c.l.b16 %v58
  %v878 = vunpack.c.h.b16 %v58
  %v879 = vunpack.c.l.b16 %v59
  %v880 = vunpack.c.l.b16 %v60
  %v881 = vunpack.c.h.b16 %v60
  %v882 = vunpack.c.l.b16 %v61
  %v883 = vunpack.c.h.b16 %v61
  %v884 = vunpack.c.l.b16 %v62
  %v885 = vunpack.c.h.b16 %v62
  %v886 = vunpack.c.l.b16 %v63
  %v887 = vunpack.c.h.b16 %v63
  %v888 = vunpack.c.l.b16 %v64
  %v889 = vunpack.c.l.b16 %v65
  %v890 = vunpack.c.h.b16 %v65
  %v891 = vunpack.c.l.b16 %v66
  %v892 = vunpack.c.h.b16 %v66
  %v893 = vunpack.c.l.b16 %v67
  %v894 = vunpack.c.h.b16 %v67
  %v895 = vunpack.c.l.b16 %v68
  %v896 = vunpack.c.h.b16 %v68
  %v897 = vunpack.c.l.b16 %v69
  %v898 = vunpack.c.l.b16 %v70
  %v899 = vunpack.c.h.b16 %v70
  %v900 = vunpack.c.l.b16 %v71
  %v901 = vunpack.c.h.b16 %v71
  %v902 = vunpack.c.l.b16 %v72
  %v903 = vunpack.c.h.b16 %v72
  %v904 = vunpack.c.l.b16 %v73
  %v905 = vunpack.c.h.b16 %v73
  %v906 = vunpack.c.l.b16 %v74
  %v907 = vunpack.c.l.b16 %v75
  %v908 = vunpack.c.h.b16 %v75
  %v909 = vunpack.c.l.b16 %v76
  %v910 = vunpack.c.h.b16 %v76
  %v911 = vunpack.c.l.b16 %v77
  %v912 = vunpack.c.h.b16 %v77
  %v913 = vunpack.c.l.b16 %v78
  %v914 = vunpack.c.h.b16 %v78
  %v915 = vunpack.c.l.b16 %v79
  %v916 = vunpack.c.l.b16 %v80
  %v917 = vunpack.c.h.b16 %v80
  %v918 = vunpack.c.l.b16 %v81
  %v919 = vunpack.c.h.b16 %v81
  %v920 = vunpack.c.l.b16 %v82
  %v921 = vunpack.c.h.b16 %v82
  %v922 = vunpack.c.l.b16 %v83
  %v923 = vunpack.c.h.b16 %v83
  %v924 = vunpack.c.l.b16 %v84
  %v925 = vunpack.c.l.b16 %v85
  %v926 = vunpack.c.h.b16 %v85
  %v927 = vunpack.c.l.b16 %v86
  %v928 = vunpack.c.h.b16 %v86
  %v929 = vunpack.c.l.b16 %v87
  %v930 = vunpack.c.h.b16 %v87
  %v931 = vunpack.c.l.b16 %v88
  %v932 = vunpack.c.h.b16 %v88
  %v933 = vunpack.c.l.b16 %v89
  %v934 = vunpack.c.l.b16 %v90
  %v935 = vunpack.c.h.b16 %v90
  %v936 = vunpack.c.l.b16 %v91
  %v937 = vunpack.c.h.b16 %v91
  %v938 = vunpack.c.l.b16 %v92
  %v939 = vunpack.c.h.b16 %v92
  %v940 = vunpack.c.l.b16 %v93
  %v941 = vunpack.c.h.b16 %v93
  %v942 = vunpack.c.l.b16 %v94
  %v943 = vunpack.c.l.b16 %v95
  %v944 = vunpack.c.h.b16 %v95
  %v945 = vunpack.c.l.b16 %v96
  %v946 = vunpack.c.h.b16 %v96
  %v947 = vunpack.c.l.b16 %v97
  %v948 = vunpack.c.h.b16 %v97
  %v949 = vunpack.c.l.b16 %v98
  %v950 = vunpack.c.h.b16 %v98
  %v951 = vunpack.c.l.b16 %v99
  %v952 = vunpack.c.l.b16 %v100
  %v953 = vunpack.c.h.b16 %v100
  %v954 = vunpack.c.l.b16 %v101
  %v955 = vunpack.c.h.b16 %v101
  %v956 = vunpack.c.l.b16 %v102
  %v957 = vunpack.c.h.b16 %v102
  %v958 = vunpack.c.l.b16 %v103
  %v959 = vunpack.c.h.b16 %v103
  %v960 = vunpack.c.l.b16 %v104
  %v961 = vunpack.c.l.b16 %v105
  %v962 = vunpack.c.h.b16 %v105
  %v963 = vunpack.c.l.b16 %v106
  %v964 = vunpack.c.h.b16 %v106
  %v965 = vunpack.c.l.b16 %v107
  %v966 = vunpack.c.h.b16 %v107
  %v967 = vunpack.c.l.b16 %v108
  %v968 = vunpack.c.h.b16 %v108
  %v969 = vunpack.c.l.b16 %v109
  %v970 = vunpack.c.l.b16 %v110
  %v971 = vunpack.c.h.b16 %v110
  %v972 = vunpack.c.l.b16 %v111
  %v973 = vunpack.c.h.b16 %v111
  %v974 = vunpack.c.l.b16 %v112
  %v975 = vunpack.c.h.b16 %v112
  %v976 = vunpack.c.l.b16 %v113
  %v977 = vunpack.c.h.b16 %v113
  %v978 = vunpack.c.l.b16 %v114
  %v979 = vunpack.c.l.b16 %v115
  %v980 = vunpack.c.h.b16 %v115
  %v981 = vunpack.c.l.b16 %v116
  %v982 = vunpack.c.h.b16 %v116
  %v983 = vunpack.c.l.b16 %v117
  %v984 = vunpack.c.h.b16 %v117
  %v985 = vunpack.c.l.b16 %v118
  %v986 = vunpack.c.h.b16 %v118
  %v987 = vunpack.c.l.b16 %v119
  %v988 = vunpack.c.l.b16 %v120
  %v989 = vunpack.c.h.b16 %v120
  %v990 = vunpack.c.l.b16 %v121
  %v991 = vunpack.c.h.b16 %v121
  %v992 = vunpack.c.l.b16 %v122
  %v993 = vunpack.c.h.b16 %v122
  %v994 = vunpack.c.l.b16 %v123
  %v995 = vunpack.c.h.b16 %v123
  %v996 = vunpack.c.l.b16 %v124
  %v997 = vunpack.c.l.b16 %v125
  %v998 = vunpack.c.h.b16 %v125
  %v999 = vunpack.c.l.b16 %v126
  %v1000 = vunpack.c.h.b16 %v126
  %v1001 = vunpack.c.l.b16 %v127
  %v1002 = vunpack.c.h.b16 %v127
  %v1003 = vunpack.c.l.b16 %v128
  %v1004 = vunpack.c.h.b16 %v128
  %v1005 = vunpack.c.l.b16 %v129
  %v1006 = vunpack.c.l.b16 %v130
  %v1007 = vunpack.c.h.b16 %v130
  %v1008 = vunpack.c.l.b16 %v131
  %v1009 = vunpack.c.h.b16 %v131
  %v1010 = vunpack.c.l.b16 %v132
  %v1011 = vunpack.c.h.b16 %v132
  %v1012 = vunpack.c.l.b16 %v133
  %v1013 = vunpack.c.h.b16 %v133
  %v1014 = vunpack.c.l.b16 %v134
  %v1015 = vunpack.c.l.b16 %v135
  %v1016 = vunpack.c.h.b16 %v135
  %v1017 = vunpack.c.l.b16 %v136
  %v1018 = vunpack.c.h.b16 %v136
  %v1019 = vunpack.c.l.b16 %v137
  %v1020 = vunpack.c.h.b16 %v137
  %v1021 = vunpack.c.l.b16 %v138
  %v1022 = vunpack.c.h.b16 %v138
  %v1023 = vunpack.c.l.b16 %v139
  %v1024 = vunpack.c.l.b16 %v140
  %v1025 = vunpack.c.h.b16 %v140
  %v1026 = vunpack.c.l.b16 %v141
  %v1027 = vunpack.c.h.b16 %v141
  %v1028 = vunpack.c.l.b16 %v142
  %v1029 = vunpack.c.h.b16 %v142
  %v1030 = vunpack.c.l.b16 %v143
  %v1031 = vunpack.c.h.b16 %v143
  %v1032 = vunpack.c.l.b16 %v144
  %v1033 = vunpack.c.l.b16 %v145
  %v1034 = vunpack.c.h.b16 %v145
  %v1035 = vunpack.c.l.b16 %v146
  %v1036 = vunpack.c.h.b16 %v146
  %v1037 = vunpack.c.l.b16 %v147
  %v1038 = vunpack.c.h.b16 %v147
  %v1039 = vunpack.c.l.b16 %v148
  %v1040 = vunpack.c.h.b16 %v148
  %v1041 = vunpack.c.l.b16 %v149
  %v1042 = vunpack.c.l.b16 %v150
  %v1043 = vunpack.c.h.b16 %v150
  %v1044 = vunpack.c.l.b16 %v151
  %v1045 = vunpack.c.h.b16 %v151
  %v1046 = vunpack.c.l.b16 %v152
  %v1047 = vunpack.c.h.b16 %v152
  %v1048 = vunpack.c.l.b16 %v153
  %v1049 = vunpack.c.h.b16 %v153
  %v1050 = vunpack.c.l.b16 %v154
  %v1051 = vunpack.c.l.b16 %v155
  %v1052 = vunpack.c.h.b16 %v155
  %v1053 = vunpack.c.l.b16 %v156
  %v1054 = vunpack.c.h.b16 %v156
  %v1055 = vunpack.c.l.b16 %v157
  %v1056 = vunpack.c.h.b16 %v157
  %v1057 = vunpack.c.l.b16 %v158
  %v1058 = vunpack.c.h.b16 %v158
  %v1059 = vunpack.c.l.b16 %v159
  %v1060 = vunpack.c.l.b16 %v160
  %v1061 = vunpack.c.h.b16 %v160
  %v1062 = vunpack.c.l.b16 %v161
  %v1063 = vunpack.c.h.b16 %v161
  %v1064 = vunpack.c.l.b16 %v162
  %v1065 = vunpack.c.h.b16 %v162
  %v1066 = vunpack.c.l.b16 %v163
  %v1067 = vunpack.c.h.b16 %v163
  %v1068 = vunpack.c.l.b16 %v164
  %v1069 = vunpack.c.l.b16 %v165
  %v1070 = vunpack.c.h.b16 %v165
  %v1071 = vunpack.c.l.b16 %v166
  %v1072 = vunpack.c.h.b16 %v166
  %v1073 = vunpack.c.l.b16 %v167
  %v1074 = vunpack.c.h.b16 %v167
  %v1075 = vunpack.c.l.b16 %v168
  %v1076 = vunpack.c.h.b16 %v168
  %v1077 = vunpack.c.l.b16 %v169
  %v1078 = vunpack.c.l.b16 %v170
  %v1079 = vunpack.c.h.b16 %v170
  %v1080 = vunpack.c.l.b16 %v171
  %v1081 = vunpack.c.h.b16 %v171
  %v1082 = vunpack.c.l.b16 %v172
  %v1083 = vunpack.c.h.b16 %v172
  %v1084 = vunpack.c.l.b16 %v173
  %v1085 = vunpack.c.h.b16 %v173
  %v1086 = vunpack.c.l.b16 %v174
  %v1087 = vunpack.c.l.b16 %v175
  %v1088 = vunpack.c.h.b16 %v175
  %v1089 = vunpack.c.l.b16 %v176
  %v1090 = vunpack.c.h.b16 %v176
  %v1091 = vunpack.c.l.b16 %v177
  %v1092 = vunpack.c.h.b16 %v177
  %v1093 = vunpack.c.l.b16 %v178
  %v1094 = vunpack.c.h.b16 %v178
  %v1095 = vunpack.c.l.b16 %v179
  %v1096 = vunpack.c.l.b16 %v180
  %v1097 = vunpack.c.h.b16 %v180
  %v1098 = vunpack.c.l.b16 %v181
  %v1099 = vunpack.c.h.b16 %v181
  %v1100 = vunpack.c.l.b16 %v182
  %v1101 = vunpack.c.h.b16 %v182
  %v1102 = vunpack.c.l.b16 %v183
  %v1103 = vunpack.c.h.b16 %v183
  %v1104 = vunpack.c.l.b16 %v184
  %v1105 = vunpack.c.l.b16 %v185
  %v1106 = vunpack.c.h.b16 %v185
  %v1107 = vunpack.c.l.b16 %v186
  %v1108 = vunpack.c.h.b16 %v186
  %v1109 = vunpack.c.l.b16 %v187
  %v1110 = vunpack.c.h.b16 %v187
  %v1111 = vunpack.c.l.b16 %v188
  %v1112 = vunpack.c.h.b16 %v188
  %v1113 = vunpack.c.l.b16 %v189
  %v1114 = vunpack.c.l.b16 %v190
  %v1115 = vunpack.c.h.b16 %v190
  %v1116 = vunpack.c.l.b16 %v191
  %v1117 = vunpack.c.h.b16 %v191
  %v1118 = vunpack.c.l.b16 %v192
  %v1119 = vunpack.c.h.b16 %v192
  %v1120 = vunpack.c.l.b16 %v193
  %v1121 = vunpack.c.h.b16 %v193
  %v1122 = vunpack.c.l.b16 %v194
  %v1123 = vunpack.c.l.b16 %v195
  %v1124 = vunpack.c.h.b16 %v195
  %v1125 = vunpack.c.l.b16 %v196
  %v1126 = vunpack.c.h.b16 %v196
  %v1127 = vunpack.c.l.b16 %v197
  %v1128 = vunpack.c.h.b16 %v197
  %v1129 = vunpack.c.l.b16 %v198
  %v1130 = vunpack.c.h.b16 %v198
  %v1131 = vunpack.c.l.b16 %v199
  %v1132 = vunpack.c.l.b16 %v200
  %v1133 = vunpack.c.h.b16 %v200
  %v1134 = vunpack.c.l.b16 %v201
  %v1135 = vunpack.c.h.b16 %v201
  %v1136 = vunpack.c.l.b16 %v202
  %v1137 = vunpack.c.h.b16 %v202
  %v1138 = vunpack.c.l.b16 %v203
  %v1139 = vunpack.c.h.b16 %v203
  %v1140 = vunpack.c.l.b16 %v204
  %v1141 = vunpack.c.l.b16 %v205
  %v1142 = vunpack.c.h.b16 %v205
  %v1143 = vunpack.c.l.b16 %v206
  %v1144 = vunpack.c.h.b16 %v206
  %v1145 = vunpack.c.l.b16 %v207
  %v1146 = vunpack.c.h.b16 %v207
  %v1147 = vunpack.c.l.b16 %v208
  %v1148 = vunpack.c.h.b16 %v208
  %v1149 = vunpack.c.l.b16 %v209
  %v1150 = vunpack.c.l.b16 %v210
  %v1151 = vunpack.c.h.b16 %v210
  %v1152 = vunpack.c.l.b16 %v211
  %v1153 = vunpack.c.h.b16 %v211
  %v1154 = vunpack.c.l.b16 %v212
  %v1155 = vunpack.c.h.b16 %v212
  %v1156 = vunpack.c.l.b16 %v213
  %v1157 = vunpack.c.h.b16 %v213
  %v1158 = vunpack.c.l.b16 %v214
  %v1159 = vunpack.c.l.b16 %v215
  %v1160 = vunpack.c.h.b16 %v215
  %v1161 = vunpack.c.l.b16 %v216
  %v1162 = vunpack.c.h.b16 %v216
  %v1163 = vunpack.c.l.b16 %v217
  %v1164 = vunpack.c.h.b16 %v217
  %v1165 = vunpack.c.l.b16 %v218
  %v1166 = vunpack.c.h.b16 %v218
  %v1167 = vunpack.c.l.b16 %v219
  %v1168 = vunpack.c.l.b16 %v220
  %v1169 = vunpack.c.h.b16 %v220
  %v1170 = vunpack.c.l.b16 %v221
  %v1171 = vunpack.c.h.b16 %v221
  %v1172 = vunpack.c.l.b16 %v222
  %v1173 = vunpack.c.h.b16 %v222
  %v1174 = vunpack.c.l.b16 %v223
  %v1175 = vunpack.c.h.b16 %v223
  %v1176 = vunpack.c.l.b16 %v224
  %v1177 = vunpack.c.l.b16 %v225
  %v1178 = vunpack.c.h.b16 %v225
  %v1179 = vunpack.c.l.b16 %v226
  %v1180 = vunpack.c.h.b16 %v226
  %v1181 = vunpack.c.l.b16 %v227
  %v1182 = vunpack.c.h.b16 %v227
  %v1183 = vunpack.c.l.b16 %v228
  %v1184 = vunpack.c.h.b16 %v228
  %v1185 = vunpack.c.l.b16 %v229
  %v1186 = vunpack.c.l.b16 %v230
  %v1187 = vunpack.c.h.b16 %v230
  %v1188 = vunpack.c.l.b16 %v231
  %v1189 = vunpack.c.h.b16 %v231
  %v1190 = vunpack.c.l.b16 %v232
  %v1191 = vunpack.c.h.b16 %v232
  %v1192 = vunpack.c.l.b16 %v233
  %v1193 = vunpack.c.h.b16 %v233
  %v1194 = vunpack.c.l.b16 %v234
  %v1195 = vunpack.c.l.b16 %v235
  %v1196 = vunpack.c.h.b16 %v235
  %v1197 = vunpack.c.l.b16 %v236
  %v1198 = vunpack.c.h.b16 %v236
  %v1199 = vunpack.c.l.b16 %v237
  %v1200 = vunpack.c.h.b16 %v237
  %v1201 = vunpack.c.l.b16 %v238
  %v1202 = vunpack.c.h.b16 %v238
  %v1203 = vunpack.c.l.b16 %v239
  %v1204 = vunpack.c.l.b16 %v240
  %v1205 = vunpack.c.h.b16 %v240
  %v1206 = vunpack.c.l.b16 %v241
  %v1207 = vunpack.c.h.b16 %v241
  %v1208 = vunpack.c.l.b16 %v242
  %v1209 = vunpack.c.h.b16 %v242
  %v1210 = vunpack.c.l.b16 %v243
  %v1211 = vunpack.c.h.b16 %v243
  %v1212 = vunpack.c.l.b16 %v244
  %v1213 = vunpack.c.l.b16 %v245
  %v1214 = vunpack.c.h.b16 %v245
  %v1215 = vunpack.c.l.b16 %v246
  %v1216 = vunpack.c.h.b16 %v246
  %v1217 = vunpack.c.l.b16 %v247
  %v1218 = vunpack.c.h.b16 %v247
  %v1219 = vunpack.c.l.b16 %v248
  %v1220 = vunpack.c.h.b16 %v248
  %v1221 = vunpack.c.l.b16 %v249
  %v1222 = vunpack.c.l.b16 %v250
  %v1223 = vunpack.c.h.b16 %v250
  %v1224 = vunpack.c.l.b16 %v251
  %v1225 = vunpack.c.h.b16 %v251
  %v1226 = vunpack.c.l.b16 %v252
  %v1227 = vunpack.c.h.b16 %v252
  %v1228 = vunpack.c.l.b16 %v253
  %v1229 = vunpack.c.h.b16 %v253
  %v1230 = vunpack.c.l.b16 %v254
  %v1231 = vunpack.c.l.b16 %v255
  %v1232 = vunpack.c.h.b16 %v255
  %v1233 = vunpack.c.l.b16 %v256
  %v1234 = vunpack.c.h.b16 %v256
  %v1235 = vunpack.c.l.b16 %v257
  %v1236 = vunpack.c.h.b16 %v257
  %v1237 = vunpack.c.l.b16 %v258
  %v1238 = vunpack.c.h.b16 %v258
  %v1239 = vunpack.c.l.b16 %v259
  %v1240 = vunpack.c.l.b16 %v260
  %v1241 = vunpack.c.h.b16 %v260
  %v1242 = vunpack.c.l.b16 %v261
  %v1243 = vunpack.c.h.b16 %v261
  %v1244 = vunpack.c.l.b16 %v262
  %v1245 = vunpack.c.h.b16 %v262
  %v1246 = vunpack.c.l.b16 %v263
  %v1247 = vunpack.c.h.b16 %v263
  %v1248 = vunpack.c.l.b16 %v264
  %v1249 = vunpack.c.l.b16 %v265
  %v1250 = vunpack.c.h.b16 %v265
  %v1251 = vunpack.c.l.b16 %v266
  %v1252 = vunpack.c.h.b16 %v266
  %v1253 = vunpack.c.l.b16 %v267
  %v1254 = vunpack.c.h.b16 %v267
  %v1255 = vunpack.c.l.b16 %v268
  %v1256 = vunpack.c.h.b16 %v268
  %v1257 = vunpack.c.l.b16 %v269
  %v1258 = vunpack.c.l.b16 %v270
  %v1259 = vunpack.c.h.b16 %v270
  %v1260 = vunpack.c.l.b16 %v271
  %v1261 = vunpack.c.h.b16 %v271
  %v1262 = vunpack.c.l.b16 %v272
  %v1263 = vunpack.c.h.b16 %v272
  %v1264 = vunpack.c.l.b16 %v273
  %v1265 = vunpack.c.h.b16 %v273
  %v1266 = vunpack.c.l.b16 %v274
  %v1267 = vunpack.c.l.b16 %v275
  %v1268 = vunpack.c.h.b16 %v275
  %v1269 = vunpack.c.l.b16 %v276
  %v1270 = vunpack.c.h.b16 %v276
  %v1271 = vunpack.c.l.b16 %v277
  %v1272 = vunpack.c.h.b16 %v277
  %v1273 = vunpack.c.l.b16 %v278
  %v1274 = vunpack.c.h.b16 %v278
  %v1275 = vunpack.c.l.b16 %v279
  %v1276 = vunpack.c.l.b16 %v280
  %v1277 = vunpack.c.h.b16 %v280
  %v1278 = vunpack.c.l.b16 %v281
  %v1279 = vunpack.c.h.b16 %v281
  %v1280 = vunpack.c.l.b16 %v282
  %v1281 = vunpack.c.h.b16 %v282
  %v1282 = vunpack.c.l.b16 %v283
  %v1283 = vunpack.c.h.b16 %v283
  %v1284 = vunpack.c.l.b16 %v284
  %v1285 = vunpack.c.l.b16 %v285
  %v1286 = vunpack.c.h.b16 %v285
  %v1287 = vunpack.c.l.b16 %v286
  %v1288 = vunpack.c.h.b16 %v286
  %v1289 = vunpack.c.l.b16 %v287
  %v1290 = vunpack.c.h.b16 %v287
  %v1291 = vunpack.c.l.b16 %v288
  %v1292 = vunpack.c.h.b16 %v288
  %v1293 = vunpack.c.l.b16 %v289
  %v1294 = vunpack.c.l.b16 %v290
  %v1295 = vunpack.c.h.b16 %v290
  %v1296 = vunpack.c.l.b16 %v291
  %v1297 = vunpack.c.h.b16 %v291
  %v1298 = vunpack.c.l.b16 %v292
  %v1299 = vunpack.c.h.b16 %v292
  %v1300 = vunpack.c.l.b16 %v293
  %v1301 = vunpack.c.h.b16 %v293
  %v1302 = vunpack.c.l.b16 %v294
  %v1303 = vunpack.c.l.b16 %v295
  %v1304 = vunpack.c.h.b16 %v295
  %v1305 = vunpack.c.l.b16 %v296
  %v1306 = vunpack.c.h.b16 %v296
  %v1307 = vunpack.c.l.b16 %v297
  %v1308 = vunpack.c.h.b16 %v297
  %v1309 = vunpack.c.l.b16 %v298
  %v1310 = vunpack.c.h.b16 %v298
  %v1311 = vunpack.c.l.b16 %v299
  %v1312 = vunpack.c.l.b16 %v300
  %v1313 = vunpack.c.h.b16 %v300
  %v1314 = vunpack.c.l.b16 %v301
  %v1315 = vunpack.c.h.b16 %v301
  %v1316 = vunpack.c.l.b16 %v302
  %v1317 = vunpack.c.h.b16 %v302
  %v1318 = vunpack.c.l.b16 %v303
  %v1319 = vunpack.c.h.b16 %v303
  %v1320 = vunpack.c.l.b16 %v304
  %v1321 = vunpack.c.l.b16 %v305
  %v1322 = vunpack.c.h.b16 %v305
  %v1323 = vunpack.c.l.b16 %v306
  %v1324 = vunpack.c.h.b16 %v306
  %v1325 = vunpack.c.l.b16 %v307
  %v1326 = vunpack.c.h.b16 %v307
  %v1327 = vunpack.c.l.b16 %v308
  %v1328 = vunpack.c.h.b16 %v308
  %v1329 = vunpack.c.l.b16 %v309
  %v1330 = vunpack.c.l.b16 %v310
  %v1331 = vunpack.c.h.b16 %v310
  %v1332 = vunpack.c.l.b16 %v311
  %v1333 = vunpack.c.h.b16 %v311
  %v1334 = vunpack.c.l.b16 %v312
  %v1335 = vunpack.c.h.b16 %v312
  %v1336 = vunpack.c.l.b16 %v313
  %v1337 = vunpack.c.h.b16 %v313
  %v1338 = vunpack.c.l.b16 %v314
  %v1339 = vunpack.c.l.b16 %v315
  %v1340 = vunpack.c.h.b16 %v315
  %v1341 = vunpack.c.l.b16 %v316
  %v1342 = vunpack.c.h.b16 %v316
  %v1343 = vunpack.c.l.b16 %v317
  %v1344 = vunpack.c.h.b16 %v317
  %v1345 = vunpack.c.l.b16 %v318
  %v1346 = vunpack.c.h.b16 %v318
  %v1347 = vunpack.c.l.b16 %v319
  %v1348 = vunpack.c.l.b16 %v320
  %v1349 = vunpack.c.h.b16 %v320
  %v1350 = vunpack.c.l.b16 %v321
  %v1351 = vunpack.c.h.b16 %v321
  %v1352 = vunpack.c.l.b16 %v322
  %v1353 = vunpack.c.h.b16 %v322
  %v1354 = vunpack.c.l.b16 %v323
  %v1355 = vunpack.c.h.b16 %v323
  %v1356 = vunpack.c.l.b16 %v324
  %v1357 = vunpack.c.l.b16 %v325
  %v1358 = vunpack.c.h.b16 %v325
  %v1359 = vunpack.c.l.b16 %v326
  %v1360 = vunpack.c.h.b16 %v326
  %v1361 = vunpack.c.l.b16 %v327
  %v1362 = vunpack.c.h.b16 %v327
  %v1363 = vunpack.c.l.b16 %v328
  %v1364 = vunpack.c.h.b16 %v328
  %v1365 = vunpack.c.l.b16 %v329
  %v1366 = vunpack.c.l.b16 %v330
  %v1367 = vunpack.c.h.b16 %v330
  %v1368 = vunpack.c.l.b16 %v331
  %v1369 = vunpack.c.h.b16 %v331
  %v1370 = vunpack.c.l.b16 %v332
  %v1371 = vunpack.c.h.b16 %v332
  %v1372 = vunpack.c.l.b16 %v333
  %v1373 = vunpack.c.h.b16 %v333
  %v1374 = vunpack.c.l.b16 %v334
  %v1375 = vpack.c.b16 %v808, %v799
  %v1376 = vpack.c.b16 %v809, %v800
  %v1377 = vpack.c.b16 %v810, %v801
  %v1378 = vpack.c.b16 %v811, %v802
  %v1379 = vpack.c.b16 %v812, %v803
  %v1380 = vpack.c.b16 %v813, %v804
  %v1381 = vpack.c.b16 %v814, %v805
  %v1382 = vpack.c.b16 %v815, %v806
  %v1383 = vpack.c.b16 %v816, %v807
  %v1384 = vpack.c.b16 %v826, %v817
  %v1385 = vpack.c.b16 %v827, %v818
  %v1386 = vpack.c.b16 %v828, %v819
  %v1387 = vpack.c.b16 %v829, %v820
  %v1388 = vpack.c.b16 %v830, %v821
  %v1389 = vpack.c.b16 %v831, %v822
  %v1390 = vpack.c.b16 %v832, %v823
  %v1391 = vpack.c.b16 %v833, %v824
  %v1392 = vpack.c.b16 %v834, %v825
  %v1393 = vpack.c.b16 %v844, %v835
  %v1394 = vpack.c.b16 %v845, %v836
  %v1395 = vpack.c.b16 %v846, %v837
  %v1396 = vpack.c.b16 %v847, %v838
  %v1397 = vpack.c.b16 %v848, %v839
  %v1398 = vpack.c.b16 %v849, %v840
  %v1399 = vpack.c.b16 %v850, %v841
  %v1400 = vpack.c.b16 %v851, %v842
  %v1401 = vpack.c.b16 %v852, %v843
  %v1402 = vpack.c.b16 %v862, %v853
  %v1403 = vpack.c.b16 %v863, %v854
  %v1404 = vpack.c.b16 %v864, %v855
  %v1405 = vpack.c.b16 %v865, %v856
  %v1406 = vpack.c.b16 %v866, %v857
  %v1407 = vpack.c.b16 %v867, %v858
  %v1408 = vpack.c.b16 %v868, %v859
  %v1409 = vpack.c.b16 %v869, %v860
  %v1410 = vpack.c.b16 %v870, %v861
  %v1411 = vpack.c.b16 %v880, %v871
  %v1412 = vpack.c.b16 %v881, %v872
  %v1413 = vpack.c.b16 %v882, %v873
  %v1414 = vpack.c.b16 %v883, %v874
  %v1415 = vpack.c.b16 %v884, %v875
  %v1416 = vpack.c.b16 %v885, %v876
  %v1417 = vpack.c.b16 %v886, %v877
  %v1418 = vpack.c.b16 %v887, %v878
  %v1419 = vpack.c.b16 %v888, %v879
  %v1420 = vpack.c.b16 %v898, %v889
  %v1421 = vpack.c.b16 %v899, %v890
  %v1422 = vpack.c.b16 %v900, %v891
  %v1423 = vpack.c.b16 %v901, %v892
  %v1424 = vpack.c.b16 %v902, %v893
  %v1425 = vpack.c.b16 %v903, %v894
  %v1426 = vpack.c.b16 %v904, %v895
  %v1427 = vpack.c.b16 %v905, %v896
  %v1428 = vpack.c.b16 %v906, %v897
  %v1429 = vpack.c.b16 %v916, %v907
  %v1430 = vpack.c.b16 %v917, %v908
  %v1431 = vpack.c.b16 %v918, %v909
  %v1432 = vpack.c.b16 %v919, %v910
  %v1433 = vpack.c.b16 %v920, %v911
  %v1434 = vpack.c.b16 %v921, %v912
  %v1435 = vpack.c.b16 %v922, %v913
  %v1436 = vpack.c.b16 %v923, %v914
  %v1437 = vpack.c.b16 %v924, %v915
  %v1438 = vpack.c.b16 %v934, %v925
  %v1439 = vpack.c.b16 %v935, %v926
  %v1440 = vpack.c.b16 %v936, %v927
  %v1441 = vpack.c.b16 %v937, %v928
  %v1442 = vpack.c.b16 %v938, %v929
  %v1443 = vpack.c.b16 %v939, %v930
  %v1444 = vpack.c.b16 %v940, %v931
  %v1445 = vpack.c.b16 %v941, %v932
  %v1446 = vpack.c.b16 %v942, %v933
  %v1447 = vpack.c.b16 %v952, %v943
  %v1448 = vpack.c.b16 %v953, %v944
  %v1449 = vpack.c.b16 %v954, %v945
  %v1450 = vpack.c.b16 %v955, %v946
  %v1451 = vpack.c.b16 %v956, %v947
  %v1452 = vpack.c.b16 %v957, %v948
  %v1453 = vpack.c.b16 %v958, %v949
  %v1454 = vpack.c.b16 %v959, %v950
  %v1455 = vpack.c.b16 %v960, %v951
  %v1456 = vpack.c.b16 %v970, %v961
  %v1457 = vpack.c.b16 %v971, %v962
  %v1458 = vpack.c.b16 %v972, %v963
  %v1459 = vpack.c.b16 %v973, %v964
  %v1460 = vpack.c.b16 %v974, %v965
  %v1461 = vpack.c.b16 %v975, %v966
  %v1462 = vpack.c.b16 %v976, %v967
  %v1463 = vpack.c.b16 %v977, %v968
  %v1464 = vpack.c.b16 %v978, %v969
  %v1465 = vpack.c.b16 %v988, %v979
  %v1466 = vpack.c.b16 %v989, %v980
  %v1467 = vpack.c.b16 %v990, %v981
  %v1468 = vpack.c.b16 %v991, %v982
  %v1469 = vpack.c.b16 %v992, %v983
  %v1470 = vpack.c.b16 %v993, %v984
  %v1471 = vpack.c.b16 %v994, %v985
  %v1472 = vpack.c.b16 %v995, %v986
  %v1473 = vpack.c.b16 %v996, %v987
  %v1474 = vpack.c.b16 %v1006, %v997
  %v1475 = vpack.c.b16 %v1007, %v998
  %v1476 = vpack.c.b16 %v1008, %v999
  %v1477 = vpack.c.b16 %v1009, %v1000
  %v1478 = vpack.c.b16 %v1010, %v1001
  %v1479 = vpack.c.b16 %v1011, %v1002
  %v1480 = vpack.c.b16 %v1012, %v1003
  %v1481 = vpack.c.b16 %v1013, %v1004
  %v1482 = vpack.c.b16 %v1014, %v1005
  %v1483 = vpack.c.b16 %v1024, %v1015
  %v1484 = vpack.c.b16 %v1025, %v1016
  %v1485 = vpack.c.b16 %v1026, %v1017
  %v1486 = vpack.c.b16 %v1027, %v1018
  %v1487 = vpack.c.b16 %v1028, %v1019
  %v1488 = vpack.c.b16 %v1029, %v1020
  %v1489 = vpack.c.b16 %v1030, %v1021
  %v1490 = vpack.c.b16 %v1031, %v1022
  %v1491 = vpack.c.b16 %v1032, %v1023
  %v1492 = vpack.c.b16 %v1042, %v1033
  %v1493 = vpack.c.b16 %v1043, %v1034
  %v1494 = vpack.c.b16 %v1044, %v1035
  %v1495 = vpack.c.b16 %v1045, %v1036
  %v1496 = vpack.c.b16 %v1046, %v1037
  %v1497 = vpack.c.b16 %v1047, %v1038
  %v1498 = vpack.c.b16 %v1048, %v1039
  %v1499 = vpack.c.b16 %v1049, %v1040
  %v1500 = vpack.c.b16 %v1050, %v1041
  %v1501 = vpack.c.b16 %v1060, %v1051
  %v1502 = vpack.c.b16 %v1061, %v1052
  %v1503 = vpack.c.b16 %v1062, %v1053
  %v1504 = vpack.c.b16 %v1063, %v1054
  %v1505 = vpack.c.b16 %v1064, %v1055
  %v1506 = vpack.c.b16 %v1065, %v1056
  %v1507 = vpack.c.b16 %v1066, %v1057
  %v1508 = vpack.c.b16 %v1067, %v1058
  %v1509 = vpack.c.b16 %v1068, %v1059
  %v1510 = vpack.c.b16 %v1078, %v1069
  %v1511 = vpack.c.b16 %v1079, %v1070
  %v1512 = vpack.c.b16 %v1080, %v1071
  %v1513 = vpack.c.b16 %v1081, %v1072
  %v1514 = vpack.c.b16 %v1082, %v1073
  %v1515 = vpack.c.b16 %v1083, %v1074
  %v1516 = vpack.c.b16 %v1084, %v1075
  %v1517 = vpack.c.b16 %v1085, %v1076
  %v1518 = vpack.c.b16 %v1086, %v1077
  %v1519 = vpack.c.b16 %v1096, %v1087
  %v1520 = vpack.c.b16 %v1097, %v1088
  %v1521 = vpack.c.b16 %v1098, %v1089
  %v1522 = vpack.c.b16 %v1099, %v1090
  %v1523 = vpack.c.b16 %v1100, %v1091
  %v1524 = vpack.c.b16 %v1101, %v1092
  %v1525 = vpack.c.b16 %v1102, %v1093
  %v1526 = vpack.c.b16 %v1103, %v1094
  %v1527 = vpack.c.b16 %v1104, %v1095
  %v1528 = vpack.c.b16 %v1114, %v1105
  %v1529 = vpack.c.b16 %v1115, %v1106
  %v1530 = vpack.c.b16 %v1116, %v1107
  %v1531 = vpack.c.b16 %v1117, %v1108
  %v1532 = vpack.c.b16 %v1118, %v1109
  %v1533 = vpack.c.b16 %v1119, %v1110
  %v1534 = vpack.c.b16 %v1120, %v1111
  %v1535 = vpack.c.b16 %v1121, %v1112
  %v1536 = vpack.c.b16 %v1122, %v1113
  %v1537 = vpack.c.b16 %v1132, %v1123
  %v1538 = vpack.c.b16 %v1133, %v1124
  %v1539 = vpack.c.b16 %v1134, %v1125
  %v1540 = vpack.c.b16 %v1135, %v1126
  %v1541 = vpack.c.b16 %v1136, %v1127
  %v1542 = vpack.c.b16 %v1137, %v1128
  %v1543 = vpack.c.b16 %v1138, %v1129
  %v1544 = vpack.c.b16 %v1139, %v1130
  %v1545 = vpack.c.b16 %v1140, %v1131
  %v1546 = vpack.c.b16 %v1150, %v1141
  %v1547 = vpack.c.b16 %v1151, %v1142
  %v1548 = vpack.c.b16 %v1152, %v1143
  %v1549 = vpack.c.b16 %v1153, %v1144
  %v1550 = vpack.c.b16 %v1154, %v1145
  %v1551 = vpack.c.b16 %v1155, %v1146
  %v1552 = vpack.c.b16 %v1156, %v1147
  %v1553 = vpack.c.b16 %v1157, %v1148
  %v1554 = vpack.c.b16 %v1158, %v1149
  %v1555 = vpack.c.b16 %v1168, %v1159
  %v1556 = vpack.c.b16 %v1169, %v1160
  %v1557 = vpack.c.b16 %v1170, %v1161
  %v1558 = vpack.c.b16 %v1171, %v1162
  %v1559 = vpack.c.b16 %v1172, %v1163
  %v1560 = vpack.c.b16 %v1173, %v1164
  %v1561 = vpack.c.b16 %v1174, %v1165
  %v1562 = vpack.c.b16 %v1175, %v1166
  %v1563 = vpack.c.b16 %v1176, %v1167
  %v1564 = vpack.c.b16 %v1186, %v1177
  %v1565 = vpack.c.b16 %v1187, %v1178
  %v1566 = vpack.c.b16 %v1188, %v1179
  %v1567 = vpack.c.b16 %v1189, %v1180
  %v1568 = vpack.c.b16 %v1190, %v1181
  %v1569 = vpack.c.b16 %v1191, %v1182
  %v1570 = vpack.c.b16 %v1192, %v1183
  %v1571 = vpack.c.b16 %v1193, %v1184
  %v1572 = vpack.c.b16 %v1194, %v1185
  %v1573 = vpack.c.b16 %v1204, %v1195
  %v1574 = vpack.c.b16 %v1205, %v1196
  %v1575 = vpack.c.b16 %v1206, %v1197
  %v1576 = vpack.c.b16 %v1207, %v1198
  %v1577 = vpack.c.b16 %v1208, %v1199
  %v1578 = vpack.c.b16 %v1209, %v1200
  %v1579 = vpack.c.b16 %v1210, %v1201
  %v1580 = vpack.c.b16 %v1211, %v1202
  %v1581 = vpack.c.b16 %v1212, %v1203
  %v1582 = vpack.c.b16 %v1222, %v1213
  %v1583 = vpack.c.b16 %v1223, %v1214
  %v1584 = vpack.c.b16 %v1224, %v1215
  %v1585 = vpack.c.b16 %v1225, %v1216
  %v1586 = vpack.c.b16 %v1226, %v1217
  %v1587 = vpack.c.b16 %v1227, %v1218
  %v1588 = vpack.c.b16 %v1228, %v1219
  %v1589 = vpack.c.b16 %v1229, %v1220
  %v1590 = vpack.c.b16 %v1230, %v1221
  %v1591 = vpack.c.b16 %v1240, %v1231
  %v1592 = vpack.c.b16 %v1241, %v1232
  %v1593 = vpack.c.b16 %v1242, %v1233
  %v1594 = vpack.c.b16 %v1243, %v1234
  %v1595 = vpack.c.b16 %v1244, %v1235
  %v1596 = vpack.c.b16 %v1245, %v1236
  %v1597 = vpack.c.b16 %v1246, %v1237
  %v1598 = vpack.c.b16 %v1247, %v1238
  %v1599 = vpack.c.b16 %v1248, %v1239
  %v1600 = vpack.c.b16 %v1258, %v1249
  %v1601 = vpack.c.b16 %v1259, %v1250
  %v1602 = vpack.c.b16 %v1260, %v1251
  %v1603 = vpack.c.b16 %v1261, %v1252
  %v1604 = vpack.c.b16 %v1262, %v1253
  %v1605 = vpack.c.b16 %v1263, %v1254
  %v1606 = vpack.c.b16 %v1264, %v1255
  %v1607 = vpack.c.b16 %v1265, %v1256
  %v1608 = vpack.c.b16 %v1266, %v1257
  %v1609 = vpack.c.b16 %v1276, %v1267
  %v1610 = vpack.c.b16 %v1277, %v1268
  %v1611 = vpack.c.b16 %v1278, %v1269
  %v1612 = vpack.c.b16 %v1279, %v1270
  %v1613 = vpack.c.b16 %v1280, %v1271
  %v1614 = vpack.c.b16 %v1281, %v1272
  %v1615 = vpack.c.b16 %v1282, %v1273
  %v1616 = vpack.c.b16 %v1283, %v1274
  %v1617 = vpack.c.b16 %v1284, %v1275
  %v1618 = vpack.c.b16 %v1294, %v1285
  %v1619 = vpack.c.b16 %v1295, %v1286
  %v1620 = vpack.c.b16 %v1296, %v1287
  %v1621 = vpack.c.b16 %v1297, %v1288
  %v1622 = vpack.c.b16 %v1298, %v1289
  %v1623 = vpack.c.b16 %v1299, %v1290
  %v1624 = vpack.c.b16 %v1300, %v1291
  %v1625 = vpack.c.b16 %v1301, %v1292
  %v1626 = vpack.c.b16 %v1302, %v1293
  %v1627 = vpack.c.b16 %v1312, %v1303
  %v1628 = vpack.c.b16 %v1313, %v1304
  %v1629 = vpack.c.b16 %v1314, %v1305
  %v1630 = vpack.c.b16 %v1315, %v1306
  %v1631 = vpack.c.b16 %v1316, %v1307
  %v1632 = vpack.c.b16 %v1317, %v1308
  %v1633 = vpack.c.b16 %v1318, %v1309
  %v1634 = vpack.c.b16 %v1319, %v1310
  %v1635 = vpack.c.b16 %v1320, %v1311
  %v1636 = vpack.c.b16 %v1330, %v1321
  %v1637 = vpack.c.b16 %v1331, %v1322
  %v1638 = vpack.c.b16 %v1332, %v1323
  %v1639 = vpack.c.b16 %v1333, %v1324
  %v1640 = vpack.c.b16 %v1334, %v1325
  %v1641 = vpack.c.b16 %v1335, %v1326
  %v1642 = vpack.c.b16 %v1336, %v1327
  %v1643 = vpack.c.b16 %v1337, %v1328
  %v1644 = vpack.c.b16 %v1338, %v1329
  %v1645 = vpack.c.b16 %v1348, %v1339
  %v1646 = vpack.c.b16 %v1349, %v1340
  %v1647 = vpack.c.b16 %v1350, %v1341
  %v1648 = vpack.c.b16 %v1351, %v1342
  %v1649 = vpack.c.b16 %v1352, %v1343
  %v1650 = vpack.c.b16 %v1353, %v1344
  %v1651 = vpack.c.b16 %v1354, %v1345
  %v1652 = vpack.c.b16 %v1355, %v1346
  %v1653 = vpack.c.b16 %v1356, %v1347
  %v1654 = vpack.c.b16 %v1366, %v1357
  %v1655 = vpack.c.b16 %v1367, %v1358
  %v1656 = vpack.c.b16 %v1368, %v1359
  %v1657 = vpack.c.b16 %v1369, %v1360
  %v1658 = vpack.c.b16 %v1370, %v1361
  %v1659 = vpack.c.b16 %v1371, %v1362
  %v1660 = vpack.c.b16 %v1372, %v1363
  %v1661 = vpack.c.b16 %v1373, %v1364
  %v1662 = vpack.c.b16 %v1374, %v1365
  %v2095 = vunpack.c.l.b16 %v335
  %v2096 = vunpack.c.l.b16 %v336
  %v2097 = vunpack.c.l.b16 %v337
  %v2098 = vunpack.c.l.b16 %v338
  %v2099 = vunpack.c.l.b16 %v339
  %v2100 = vunpack.c.l.b16 %v340
  %v2101 = vunpack.c.l.b16 %v341
  %v2102 = vunpack.c.l.b16 %v342
  %v2103 = vunpack.c.l.b16 %v343
  %v2104 = vunpack.c.l.b16 %v344
  %v2105 = vunpack.c.l.b16 %v345
  %v2106 = vunpack.c.l.b16 %v346
  %v2107 = vunpack.c.l.b16 %v347
  %v2108 = vunpack.c.l.b16 %v348
  %v2109 = vunpack.c.l.b16 %v349
  %v2110 = vunpack.c.l.b16 %v350
  %v2111 = vunpack.c.l.b16 %v351
  %v2112 = vunpack.c.l.b16 %v352
  %v2113 = vunpack.c.l.b16 %v353
  %v2114 = vunpack.c.l.b16 %v354
  %v2115 = vunpack.c.l.b16 %v355
  %v2116 = vunpack.c.l.b16 %v356
  %v2117 = vunpack.c.l.b16 %v357
  %v2118 = vunpack.c.l.b16 %v358
  %v2119 = vunpack.c.l.b16 %v359
  %v2120 = vunpack.c.l.b16 %v360
  %v2121 = vunpack.c.l.b16 %v361
  %v2122 = vunpack.c.l.b16 %v362
  %v2123 = vunpack.c.l.b16 %v363
  %v2124 = vunpack.c.l.b16 %v364
  %v2125 = vunpack.c.l.b16 %v365
  %v2126 = vunpack.c.l.b16 %v366
  %v2127 = vunpack.c.l.b16 %v367
  %v2128 = vunpack.c.l.b16 %v368
  %v2129 = vunpack.c.l.b16 %v369
  %v2130 = vunpack.c.l.b16 %v370
  %v2131 = vunpack.c.l.b16 %v371
  %v2132 = vunpack.c.l.b16 %v372
  %v2133 = vunpack.c.l.b16 %v373
  %v2134 = vunpack.c.l.b16 %v374
  %v2135 = vunpack.c.l.b16 %v375
  %v2136 = vunpack.c.l.b16 %v376
  %v2137 = vunpack.c.l.b16 %v377
  %v2138 = vunpack.c.l.b16 %v378
  %v2139 = vunpack.c.l.b16 %v379
  %v2140 = vunpack.c.l.b16 %v380
  %v2141 = vunpack.c.l.b16 %v381
  %v2142 = vunpack.c.l.b16 %v382
  %v2143 = vunpack.c.l.b16 %v383
  %v2144 = vunpack.c.l.b16 %v384
  %v2145 = vunpack.c.l.b16 %v385
  %v2146 = vunpack.c.l.b16 %v386
  %v2147 = vunpack.c.l.b16 %v387
  %v2148 = vunpack.c.l.b16 %v388
  %v2149 = vunpack.c.l.b16 %v389
  %v2150 = vunpack.c.l.b16 %v390
  %v2151 = vunpack.c.l.b16 %v391
  %v2152 = vunpack.c.l.b16 %v392
  %v2153 = vunpack.c.l.b16 %v393
  %v2154 = vunpack.c.l.b16 %v394
  %v2155 = vunpack.c.l.b16 %v395
  %v2156 = vunpack.c.l.b16 %v396
  %v2157 = vunpack.c.l.b16 %v397
  %v2158 = vunpack.c.l.b16 %v398
  %v2159 = vunpack.c.l.b16 %v399
  %v2160 = vunpack.c.l.b16 %v400
  %v2161 = vunpack.c.l.b16 %v401
  %v2162 = vunpack.c.l.b16 %v402
  %v2163 = vunpack.c.l.b16 %v403
  %v2164 = vunpack.c.l.b16 %v404
  %v2165 = vunpack.c.l.b16 %v405
  %v2166 = vunpack.c.l.b16 %v406
  %v2167 = vunpack.c.l.b16 %v407
  %v2168 = vunpack.c.l.b16 %v408
  %v2169 = vunpack.c.l.b16 %v409
  %v2170 = vunpack.c.l.b16 %v410
  %v2171 = vunpack.c.l.b16 %v411
  %v2172 = vunpack.c.l.b16 %v412
  %v2173 = vunpack.c.l.b16 %v413
  %v2174 = vunpack.c.l.b16 %v414
  %v2175 = vunpack.c.l.b16 %v415
  %v2176 = vunpack.c.l.b16 %v416
  %v2177 = vunpack.c.l.b16 %v417
  %v2178 = vunpack.c.l.b16 %v418
  %v2179 = vunpack.c.l.b16 %v419
  %v2180 = vunpack.c.l.b16 %v420
  %v2181 = vunpack.c.l.b16 %v421
  %v2182 = vunpack.c.l.b16 %v422
  %v2183 = vunpack.c.l.b16 %v423
  %v2184 = vunpack.c.l.b16 %v424
  %v2185 = vunpack.c.l.b16 %v425
  %v2186 = vunpack.c.l.b16 %v426
  %v2187 = vunpack.c.l.b16 %v427
  %v2188 = vunpack.c.l.b16 %v428
  %v2189 = vunpack.c.l.b16 %v429
  %v2190 = vunpack.c.l.b16 %v430
  %v2191 = vunpack.c.l.b16 %v431
  %v2192 = vunpack.c.l.b16 %v432
  %v2193 = vunpack.c.l.b16 %v433
  %v2194 = vunpack.c.l.b16 %v434
  %v2195 = vunpack.c.l.b16 %v435
  %v2196 = vunpack.c.l.b16 %v436
  %v2197 = vunpack.c.l.b16 %v437
  %v2198 = vunpack.c.l.b16 %v438
  %v2199 = vunpack.c.l.b16 %v439
  %v2200 = vunpack.c.l.b16 %v440
  %v2201 = vunpack.c.l.b16 %v441
  %v2202 = vunpack.c.l.b16 %v442
  %v2203 = vunpack.c.l.b16 %v443
  %v2204 = vunpack.c.l.b16 %v444
  %v2205 = vunpack.c.l.b16 %v445
  %v2206 = vunpack.c.l.b16 %v446
  %v2207 = vunpack.c.l.b16 %v447
  %v2208 = vunpack.c.l.b16 %v448
  %v2209 = vunpack.c.l.b16 %v449
  %v2210 = vunpack.c.l.b16 %v450
  %v2211 = vunpack.c.l.b16 %v451
  %v2212 = vunpack.c.l.b16 %v452
  %v2213 = vunpack.c.l.b16 %v453
  %v2214 = vunpack.c.l.b16 %v454
  %v2215 = vunpack.c.l.b16 %v455
  %v2216 = vunpack.c.l.b16 %v456
  %v2217 = vunpack.c.l.b16 %v457
  %v2218 = vunpack.c.l.b16 %v458
  %v2219 = vunpack.c.l.b16 %v459
  %v2220 = vunpack.c.l.b16 %v460
  %v2221 = vunpack.c.l.b16 %v461
  %v2222 = vunpack.c.l.b16 %v462
  %v2223 = vunpack.c.l.b16 %v463
  %v2224 = vunpack.c.l.b16 %v464
  %v2225 = vunpack.c.l.b16 %v465
  %v2226 = vunpack.c.l.b16 %v466
  %v2227 = vunpack.c.l.b16 %v467
  %v2228 = vunpack.c.l.b16 %v468
  %v2229 = vunpack.c.l.b16 %v469
  %v2230 = vunpack.c.l.b16 %v470
  %v2231 = vunpack.c.l.b16 %v471
  %v2232 = vunpack.c.l.b16 %v472
  %v2233 = vunpack.c.l.b16 %v473
  %v2234 = vunpack.c.l.b16 %v474
  %v2235 = vunpack.c.l.b16 %v475
  %v2236 = vunpack.c.l.b16 %v476
  %v2237 = vunpack.c.l.b16 %v477
  %v2238 = vunpack.c.l.b16 %v478
  %v2239 = vpack.c.b16 %v2096, %v2095
  %v2240 = vpack.c.b16 %v2098, %v2097
  %v2241 = vpack.c.b16 %v2100, %v2099
  %v2242 = vpack.c.b16 %v2102, %v2101
  %v2243 = vpack.c.b16 %v2104, %v2103
  %v2244 = vpack.c.b16 %v2106, %v2105
  %v2245 = vpack.c.b16 %v2108, %v2107
  %v2246 = vpack.c.b16 %v2110, %v2109
  %v2247 = vpack.c.b16 %v2112, %v2111
  %v2248 = vpack.c.b16 %v2114, %v2113
  %v2249 = vpack.c.b16 %v2116, %v2115
  %v2250 = vpack.c.b16 %v2118, %v2117
  %v2251 = vpack.c.b16 %v2120, %v2119
  %v2252 = vpack.c.b16 %v2122, %v2121
  %v2253 = vpack.c.b16 %v2124, %v2123
  %v2254 = vpack.c.b16 %v2126, %v2125
  %v2255 = vpack.c.b16 %v2128, %v2127
  %v2256 = vpack.c.b16 %v2130, %v2129
  %v2257 = vpack.c.b16 %v2132, %v2131
  %v2258 = vpack.c.b16 %v2134, %v2133
  %v2259 = vpack.c.b16 %v2136, %v2135
  %v2260 = vpack.c.b16 %v2138, %v2137
  %v2261 = vpack.c.b16 %v2140, %v2139
  %v2262 = vpack.c.b16 %v2142, %v2141
  %v2263 = vpack.c.b16 %v2144, %v2143
  %v2264 = vpack.c.b16 %v2146, %v2145
  %v2265 = vpack.c.b16 %v2148, %v2147
  %v2266 = vpack.c.b16 %v2150, %v2149
  %v2267 = vpack.c.b16 %v2152, %v2151
  %v2268 = vpack.c.b16 %v2154, %v2153
  %v2269 = vpack.c.b16 %v2156, %v2155
  %v2270 = vpack.c.b16 %v2158, %v2157
  %v2271 = vpack.c.b16 %v2160, %v2159
  %v2272 = vpack.c.b16 %v2162, %v2161
  %v2273 = vpack.c.b16 %v2164, %v2163
  %v2274 = vpack.c.b16 %v2166, %v2165
  %v2275 = vpack.c.b16 %v2168, %v2167
  %v2276 = vpack.c.b16 %v2170, %v2169
  %v2277 = vpack.c.b16 %v2172, %v2171
  %v2278 = vpack.c.b16 %v2174, %v2173
  %v2279 = vpack.c.b16 %v2176, %v2175
  %v2280 = vpack.c.b16 %v2178, %v2177
  %v2281 = vpack.c.b16 %v2180, %v2179
  %v2282 = vpack.c.b16 %v2182, %v2181
  %v2283 = vpack.c.b16 %v2184, %v2183
  %v2284 = vpack.c.b16 %v2186, %v2185
  %v2285 = vpack.c.b16 %v2188, %v2187
  %v2286 = vpack.c.b16 %v2190, %v2189
  %v2287 = vpack.c.b16 %v2192, %v2191
  %v2288 = vpack.c.b16 %v2194, %v2193
  %v2289 = vpack.c.b16 %v2196, %v2195
  %v2290 = vpack.c.b16 %v2198, %v2197
  %v2291 = vpack.c.b16 %v2200, %v2199
  %v2292 = vpack.c.b16 %v2202, %v2201
  %v2293 = vpack.c.b16 %v2204, %v2203
  %v2294 = vpack.c.b16 %v2206, %v2205
  %v2295 = vpack.c.b16 %v2208, %v2207
  %v2296 = vpack.c.b16 %v2210, %v2209
  %v2297 = vpack.c.b16 %v2212, %v2211
  %v2298 = vpack.c.b16 %v2214, %v2213
  %v2299 = vpack.c.b16 %v2216, %v2215
  %v2300 = vpack.c.b16 %v2218, %v2217
  %v2301 = vpack.c.b16 %v2220, %v2219
  %v2302 = vpack.c.b16 %v2222, %v2221
  %v2303 = vpack.c.b16 %v2224, %v2223
  %v2304 = vpack.c.b16 %v2226, %v2225
  %v2305 = vpack.c.b16 %v2228, %v2227
  %v2306 = vpack.c.b16 %v2230, %v2229
  %v2307 = vpack.c.b16 %v2232, %v2231
  %v2308 = vpack.c.b16 %v2234, %v2233
  %v2309 = vpack.c.b16 %v2236, %v2235
  %v2310 = vpack.c.b16 %v2238, %v2237
  %2383 = vmatprep.subr.bf16.mxu0 0
  %2384 = vmatpush1.bf16.msra.mxu0 %v2239
  %2385 = vmatprep.subr.bf16.mxu0 0
  %2386 = vmatpush1.bf16.msra.mxu0 %v2240
  %2387 = vmatprep.subr.bf16.mxu0 0
  %2388 = vmatpush1.bf16.msra.mxu0 %v2241
  %2389 = vmatprep.subr.bf16.mxu0 0
  %2390 = vmatpush1.bf16.msra.mxu0 %v2242
  %2391 = vmatprep.subr.bf16.mxu0 0
  %2392 = vmatpush1.bf16.msra.mxu0 %v2243
  %2393 = vmatprep.subr.bf16.mxu0 0
  %2394 = vmatpush1.bf16.msra.mxu0 %v2244
  %2395 = vmatprep.subr.bf16.mxu0 0
  %2396 = vmatpush1.bf16.msra.mxu0 %v2245
  %2397 = vmatprep.subr.bf16.mxu0 0
  %2398 = vmatpush1.bf16.msra.mxu0 %v2246
  %2399 = vmatprep.subr.bf16.mxu0 0
  %2400 = vmatpush1.bf16.msra.mxu0 %v2247
  %2401 = vmatprep.subr.bf16.mxu0 0
  %2402 = vmatpush1.bf16.msra.mxu0 %v2248
  %2403 = vmatprep.subr.bf16.mxu0 0
  %2404 = vmatpush1.bf16.msra.mxu0 %v2249
  %2405 = vmatprep.subr.bf16.mxu0 0
  %2406 = vmatpush1.bf16.msra.mxu0 %v2250
  %2407 = vmatprep.subr.bf16.mxu0 0
  %2408 = vmatpush1.bf16.msra.mxu0 %v2251
  %2409 = vmatprep.subr.bf16.mxu0 0
  %2410 = vmatpush1.bf16.msra.mxu0 %v2252
  %2411 = vmatprep.subr.bf16.mxu0 0
  %2412 = vmatpush1.bf16.msra.mxu0 %v2253
  %2413 = vmatprep.subr.bf16.mxu0 0
  %2414 = vmatpush1.bf16.msra.mxu0 %v2254
  %2415 = vmatprep.mubr.bf16.mxu0 %v1376
  %2416 = vmatmul.mubr.bf16.gmra.mrb[0].mxu0 %v1375
  %v2417 = vpop.f32.mrb[0].mxu0
  %v2418 = vadd.f32 0.0, %v2417
  %v2419 = vpop.f32.mrb[0].mxu0
  %v2420 = vpop.f32.mrb[0].mxu0
  %v2421 = vadd.f32 0.0, %v2420
  %v2422 = vpop.f32.mrb[0].mxu0
  %2423 = vmatprep.mubr.bf16.mxu0 %v1385
  %2424 = vmatmul.mubr.bf16.gmra.mrb[0].mxu0 %v1384
  %v2425 = vpop.f32.mrb[0].mxu0
  %v2426 = vadd.f32 0.0, %v2425
  %v2427 = vpop.f32.mrb[0].mxu0
  %v2428 = vpop.f32.mrb[0].mxu0
  %v2429 = vadd.f32 0.0, %v2428
  %v2430 = vpop.f32.mrb[0].mxu0
  %2431 = vmatprep.mubr.bf16.mxu0 %v1394
  %2432 = vmatmul.mubr.bf16.gmra.mrb[0].mxu0 %v1393
  %v2433 = vpop.f32.mrb[0].mxu0
  %v2434 = vadd.f32 0.0, %v2433
  %v2435 = vpop.f32.mrb[0].mxu0
  %v2436 = vpop.f32.mrb[0].mxu0
  %v2437 = vadd.f32 0.0, %v2436
  %v2438 = vpop.f32.mrb[0].mxu0
  %2439 = vmatprep.mubr.bf16.mxu0 %v1403
  %2440 = vmatmul.mubr.bf16.gmra.mrb[0].mxu0 %v1402
  %v2441 = vpop.f32.mrb[0].mxu0
  %v2442 = vadd.f32 0.0, %v2441
  %v2443 = vpop.f32.mrb[0].mxu0
  %v2444 = vpop.f32.mrb[0].mxu0
  %v2445 = vadd.f32 0.0, %v2444
  %v2446 = vpop.f32.mrb[0].mxu0
  %2447 = vmatprep.mubr.bf16.mxu0 %v1412
  %2448 = vmatmul.mubr.bf16.gmra.mrb[0].mxu0 %v1411
  %v2449 = vpop.f32.mrb[0].mxu0
  %v2450 = vadd.f32 0.0, %v2449
  %v2451 = vpop.f32.mrb[0].mxu0
  %v2452 = vpop.f32.mrb[0].mxu0
  %v2453 = vadd.f32 0.0, %v2452
  %v2454 = vpop.f32.mrb[0].mxu0
  %2455 = vmatprep.mubr.bf16.mxu0 %v1421
  %2456 = vmatmul.mubr.bf16.gmra.mrb[0].mxu0 %v1420
  %v2457 = vpop.f32.mrb[0].mxu0
  %v2458 = vadd.f32 0.0, %v2457
  %v2459 = vpop.f32.mrb[0].mxu0
  %v2460 = vpop.f32.mrb[0].mxu0
  %v2461 = vadd.f32 0.0, %v2460
  %v2462 = vpop.f32.mrb[0].mxu0
  %2463 = vmatprep.mubr.bf16.mxu0 %v1430
  %2464 = vmatmul.mubr.bf16.gmra.mrb[0].mxu0 %v1429
  %v2465 = vpop.f32.mrb[0].mxu0
  %v2466 = vadd.f32 0.0, %v2465
  %v2467 = vpop.f32.mrb[0].mxu0
  %v2468 = vpop.f32.mrb[0].mxu0
  %v2469 = vadd.f32 0.0, %v2468
  %v2470 = vpop.f32.mrb[0].mxu0
  %2471 = vmatprep.mubr.bf16.mxu0 %v1439
  %2472 = vmatmul.mubr.bf16.gmra.mrb[0].mxu0 %v1438
  %v2473 = vpop.f32.mrb[0].mxu0
  %v2474 = vadd.f32 0.0, %v2473
  %v2475 = vpop.f32.mrb[0].mxu0
  %v2476 = vpop.f32.mrb[0].mxu0
  %v2477 = vadd.f32 0.0, %v2476
  %v2478 = vpop.f32.mrb[0].mxu0
  %2479 = vmatprep.mubr.bf16.mxu0 %v1448
  %2480 = vmatmul.mubr.bf16.gmra.mrb[0].mxu0 %v1447
  %v2481 = vpop.f32.mrb[0].mxu0
  %v2482 = vadd.f32 0.0, %v2481
  %v2483 = vpop.f32.mrb[0].mxu0
  %v2484 = vpop.f32.mrb[0].mxu0
  %v2485 = vadd.f32 0.0, %v2484
  %v2486 = vpop.f32.mrb[0].mxu0
  %2487 = vmatprep.mubr.bf16.mxu0 %v1457
  %2488 = vmatmul.mubr.bf16.gmra.mrb[0].mxu0 %v1456
  %v2489 = vpop.f32.mrb[0].mxu0
  %v2490 = vadd.f32 0.0, %v2489
  %v2491 = vpop.f32.mrb[0].mxu0
  %v2492 = vpop.f32.mrb[0].mxu0
  %v2493 = vadd.f32 0.0, %v2492
  %v2494 = vpop.f32.mrb[0].mxu0
  %2495 = vmatprep.mubr.bf16.mxu0 %v1466
  %2496 = vmatmul.mubr.bf16.gmra.mrb[0].mxu0 %v1465
  %v2497 = vpop.f32.mrb[0].mxu0
  %v2498 = vadd.f32 0.0, %v2497
  %v2499 = vpop.f32.mrb[0].mxu0
  %v2500 = vpop.f32.mrb[0].mxu0
  %v2501 = vadd.f32 0.0, %v2500
  %v2502 = vpop.f32.mrb[0].mxu0
  %2503 = vmatprep.mubr.bf16.mxu0 %v1475
  %2504 = vmatmul.mubr.bf16.gmra.mrb[0].mxu0 %v1474
  %v2505 = vpop.f32.mrb[0].mxu0
  %v2506 = vadd.f32 0.0, %v2505
  %v2507 = vpop.f32.mrb[0].mxu0
  %v2508 = vpop.f32.mrb[0].mxu0
  %v2509 = vadd.f32 0.0, %v2508
  %v2510 = vpop.f32.mrb[0].mxu0
  %2511 = vmatprep.mubr.bf16.mxu0 %v1484
  %2512 = vmatmul.mubr.bf16.gmra.mrb[0].mxu0 %v1483
  %v2513 = vpop.f32.mrb[0].mxu0
  %v2514 = vadd.f32 0.0, %v2513
  %v2515 = vpop.f32.mrb[0].mxu0
  %v2516 = vpop.f32.mrb[0].mxu0
  %v2517 = vadd.f32 0.0, %v2516
  %v2518 = vpop.f32.mrb[0].mxu0
  %2519 = vmatprep.mubr.bf16.mxu0 %v1493
  %2520 = vmatmul.mubr.bf16.gmra.mrb[0].mxu0 %v1492
  %v2521 = vpop.f32.mrb[0].mxu0
  %v2522 = vadd.f32 0.0, %v2521
  %v2523 = vpop.f32.mrb[0].mxu0
  %v2524 = vpop.f32.mrb[0].mxu0
  %v2525 = vadd.f32 0.0, %v2524
  %v2526 = vpop.f32.mrb[0].mxu0
  %2527 = vmatprep.mubr.bf16.mxu0 %v1502
  %2528 = vmatmul.mubr.bf16.gmra.mrb[0].mxu0 %v1501
  %v2529 = vpop.f32.mrb[0].mxu0
  %v2530 = vadd.f32 0.0, %v2529
  %v2531 = vpop.f32.mrb[0].mxu0
  %v2532 = vpop.f32.mrb[0].mxu0
  %v2533 = vadd.f32 0.0, %v2532
  %v2534 = vpop.f32.mrb[0].mxu0
  %2535 = vmatprep.mubr.bf16.mxu0 %v1511
  %2536 = vmatmul.mubr.bf16.gmra.mrb[0].mxu0 %v1510
  %v2537 = vpop.f32.mrb[0].mxu0
  %v2538 = vadd.f32 0.0, %v2537
  %v2539 = vpop.f32.mrb[0].mxu0
  %v2540 = vpop.f32.mrb[0].mxu0
  %v2541 = vadd.f32 0.0, %v2540
  %v2542 = vpop.f32.mrb[0].mxu0
  %2543 = vmatprep.mubr.bf16.mxu0 %v1520
  %2544 = vmatmul.mubr.bf16.gmra.mrb[0].mxu0 %v1519
  %v2545 = vpop.f32.mrb[0].mxu0
  %v2546 = vadd.f32 0.0, %v2545
  %v2547 = vpop.f32.mrb[0].mxu0
  %v2548 = vpop.f32.mrb[0].mxu0
  %v2549 = vadd.f32 0.0, %v2548
  %v2550 = vpop.f32.mrb[0].mxu0
  %2551 = vmatprep.mubr.bf16.mxu0 %v1529
  %2552 = vmatmul.mubr.bf16.gmra.mrb[0].mxu0 %v1528
  %v2553 = vpop.f32.mrb[0].mxu0
  %v2554 = vadd.f32 0.0, %v2553
  %v2555 = vpop.f32.mrb[0].mxu0
  %v2556 = vpop.f32.mrb[0].mxu0
  %v2557 = vadd.f32 0.0, %v2556
  %v2558 = vpop.f32.mrb[0].mxu0
  %2559 = vmatprep.mubr.bf16.mxu0 %v1538
  %2560 = vmatmul.mubr.bf16.gmra.mrb[0].mxu0 %v1537
  %v2561 = vpop.f32.mrb[0].mxu0
  %v2562 = vadd.f32 0.0, %v2561
  %v2563 = vpop.f32.mrb[0].mxu0
  %v2564 = vpop.f32.mrb[0].mxu0
  %v2565 = vadd.f32 0.0, %v2564
  %v2566 = vpop.f32.mrb[0].mxu0
  %2567 = vmatprep.mubr.bf16.mxu0 %v1547
  %2568 = vmatmul.mubr.bf16.gmra.mrb[0].mxu0 %v1546
  %v2569 = vpop.f32.mrb[0].mxu0
  %v2570 = vadd.f32 0.0, %v2569
  %v2571 = vpop.f32.mrb[0].mxu0
  %v2572 = vpop.f32.mrb[0].mxu0
  %v2573 = vadd.f32 0.0, %v2572
  %v2574 = vpop.f32.mrb[0].mxu0
  %2575 = vmatprep.mubr.bf16.mxu0 %v1556
  %2576 = vmatmul.mubr.bf16.gmra.mrb[0].mxu0 %v1555
  %v2577 = vpop.f32.mrb[0].mxu0
  %v2578 = vadd.f32 0.0, %v2577
  %v2579 = vpop.f32.mrb[0].mxu0
  %v2580 = vpop.f32.mrb[0].mxu0
  %v2581 = vadd.f32 0.0, %v2580
  %v2582 = vpop.f32.mrb[0].mxu0
  %2583 = vmatprep.mubr.bf16.mxu0 %v1565
  %2584 = vmatmul.mubr.bf16.gmra.mrb[0].mxu0 %v1564
  %v2585 = vpop.f32.mrb[0].mxu0
  %v2586 = vadd.f32 0.0, %v2585
  %v2587 = vpop.f32.mrb[0].mxu0
  %v2588 = vpop.f32.mrb[0].mxu0
  %v2589 = vadd.f32 0.0, %v2588
  %v2590 = vpop.f32.mrb[0].mxu0
  %2591 = vmatprep.mubr.bf16.mxu0 %v1574
  %2592 = vmatmul.mubr.bf16.gmra.mrb[0].mxu0 %v1573
  %v2593 = vpop.f32.mrb[0].mxu0
  %v2594 = vadd.f32 0.0, %v2593
  %v2595 = vpop.f32.mrb[0].mxu0
  %v2596 = vpop.f32.mrb[0].mxu0
  %v2597 = vadd.f32 0.0, %v2596
  %v2598 = vpop.f32.mrb[0].mxu0
  %2599 = vmatprep.mubr.bf16.mxu0 %v1583
  %2600 = vmatmul.mubr.bf16.gmra.mrb[0].mxu0 %v1582
  %v2601 = vpop.f32.mrb[0].mxu0
  %v2602 = vadd.f32 0.0, %v2601
  %v2603 = vpop.f32.mrb[0].mxu0
  %v2604 = vpop.f32.mrb[0].mxu0
  %v2605 = vadd.f32 0.0, %v2604
  %v2606 = vpop.f32.mrb[0].mxu0
  %2607 = vmatprep.mubr.bf16.mxu0 %v1592
  %2608 = vmatmul.mubr.bf16.gmra.mrb[0].mxu0 %v1591
  %v2609 = vpop.f32.mrb[0].mxu0
  %v2610 = vadd.f32 0.0, %v2609
  %v2611 = vpop.f32.mrb[0].mxu0
  %v2612 = vpop.f32.mrb[0].mxu0
  %v2613 = vadd.f32 0.0, %v2612
  %v2614 = vpop.f32.mrb[0].mxu0
  %2615 = vmatprep.mubr.bf16.mxu0 %v1601
  %2616 = vmatmul.mubr.bf16.gmra.mrb[0].mxu0 %v1600
  %v2617 = vpop.f32.mrb[0].mxu0
  %v2618 = vadd.f32 0.0, %v2617
  %v2619 = vpop.f32.mrb[0].mxu0
  %v2620 = vpop.f32.mrb[0].mxu0
  %v2621 = vadd.f32 0.0, %v2620
  %v2622 = vpop.f32.mrb[0].mxu0
  %2623 = vmatprep.mubr.bf16.mxu0 %v1610
  %2624 = vmatmul.mubr.bf16.gmra.mrb[0].mxu0 %v1609
  %v2625 = vpop.f32.mrb[0].mxu0
  %v2626 = vadd.f32 0.0, %v2625
  %v2627 = vpop.f32.mrb[0].mxu0
  %v2628 = vpop.f32.mrb[0].mxu0
  %v2629 = vadd.f32 0.0, %v2628
  %v2630 = vpop.f32.mrb[0].mxu0
  %2631 = vmatprep.mubr.bf16.mxu0 %v1619
  %2632 = vmatmul.mubr.bf16.gmra.mrb[0].mxu0 %v1618
  %v2633 = vpop.f32.mrb[0].mxu0
  %v2634 = vadd.f32 0.0, %v2633
  %v2635 = vpop.f32.mrb[0].mxu0
  %v2636 = vpop.f32.mrb[0].mxu0
  %v2637 = vadd.f32 0.0, %v2636
  %v2638 = vpop.f32.mrb[0].mxu0
  %2639 = vmatprep.mubr.bf16.mxu0 %v1628
  %2640 = vmatmul.mubr.bf16.gmra.mrb[0].mxu0 %v1627
  %v2641 = vpop.f32.mrb[0].mxu0
  %v2642 = vadd.f32 0.0, %v2641
  %v2643 = vpop.f32.mrb[0].mxu0
  %v2644 = vpop.f32.mrb[0].mxu0
  %v2645 = vadd.f32 0.0, %v2644
  %v2646 = vpop.f32.mrb[0].mxu0
  %2647 = vmatprep.mubr.bf16.mxu0 %v1637
  %2648 = vmatmul.mubr.bf16.gmra.mrb[0].mxu0 %v1636
  %v2649 = vpop.f32.mrb[0].mxu0
  %v2650 = vadd.f32 0.0, %v2649
  %v2651 = vpop.f32.mrb[0].mxu0
  %v2652 = vpop.f32.mrb[0].mxu0
  %v2653 = vadd.f32 0.0, %v2652
  %v2654 = vpop.f32.mrb[0].mxu0
  %2655 = vmatprep.mubr.bf16.mxu0 %v1646
  %2656 = vmatmul.mubr.bf16.gmra.mrb[0].mxu0 %v1645
  %v2657 = vpop.f32.mrb[0].mxu0
  %v2658 = vadd.f32 0.0, %v2657
  %v2659 = vpop.f32.mrb[0].mxu0
  %v2660 = vpop.f32.mrb[0].mxu0
  %v2661 = vadd.f32 0.0, %v2660
  %v2662 = vpop.f32.mrb[0].mxu0
  %2663 = vmatprep.mubr.bf16.mxu0 %v1655
  %2664 = vmatmul.mubr.bf16.gmra.mrb[0].mxu0 %v1654
  %v2665 = vpop.f32.mrb[0].mxu0
  %v2666 = vadd.f32 0.0, %v2665
  %v2667 = vpop.f32.mrb[0].mxu0
  %v2668 = vpop.f32.mrb[0].mxu0
  %v2669 = vadd.f32 0.0, %v2668
  %v2670 = vpop.f32.mrb[0].mxu0
  %2671 = vdwg.mxu0
  %2672 = vmatprep.subr.bf16.mxu0 0
  %2673 = vmatpush1.bf16.msra.mxu0 %v2255
  %2674 = vmatprep.subr.bf16.mxu0 0
  %2675 = vmatpush1.bf16.msra.mxu0 %v2256
  %2676 = vmatprep.subr.bf16.mxu0 0
  %2677 = vmatpush1.bf16.msra.mxu0 %v2257
  %2678 = vmatprep.subr.bf16.mxu0 0
  %2679 = vmatpush1.bf16.msra.mxu0 %v2258
  %2680 = vmatprep.subr.bf16.mxu0 0
  %2681 = vmatpush1.bf16.msra.mxu0 %v2259
  %2682 = vmatprep.subr.bf16.mxu0 0
  %2683 = vmatpush1.bf16.msra.mxu0 %v2260
  %2684 = vmatprep.subr.bf16.mxu0 0
  %2685 = vmatpush1.bf16.msra.mxu0 %v2261
  %2686 = vmatprep.subr.bf16.mxu0 0
  %2687 = vmatpush1.bf16.msra.mxu0 %v2262
  %2688 = vmatprep.subr.bf16.mxu0 0
  %2689 = vmatpush1.bf16.msra.mxu0 %v2263
  %2690 = vmatprep.subr.bf16.mxu0 0
  %2691 = vmatpush1.bf16.msra.mxu0 %v2264
  %2692 = vmatprep.subr.bf16.mxu0 0
  %2693 = vmatpush1.bf16.msra.mxu0 %v2265
  %2694 = vmatprep.subr.bf16.mxu0 0
  %2695 = vmatpush1.bf16.msra.mxu0 %v2266
  %2696 = vmatprep.subr.bf16.mxu0 0
  %2697 = vmatpush1.bf16.msra.mxu0 %v2267
  %2698 = vmatprep.subr.bf16.mxu0 0
  %2699 = vmatpush1.bf16.msra.mxu0 %v2268
  %2700 = vmatprep.subr.bf16.mxu0 0
  %2701 = vmatpush1.bf16.msra.mxu0 %v2269
  %2702 = vmatprep.subr.bf16.mxu0 0
  %2703 = vmatpush1.bf16.msra.mxu0 %v2270
  %2704 = vmatprep.mubr.bf16.mxu0 %v1378
  %2705 = vmatmul.mubr.bf16.gmra.mrb[0].mxu0 %v1377
  %v2706 = vpop.f32.mrb[0].mxu0
  %v2707 = vadd.f32 %v2418, %v2706
  %v2708 = vpop.f32.mrb[0].mxu0
  %v2709 = vpop.f32.mrb[0].mxu0
  %v2710 = vadd.f32 %v2421, %v2709
  %v2711 = vpop.f32.mrb[0].mxu0
  %2712 = vmatprep.mubr.bf16.mxu0 %v1387
  %2713 = vmatmul.mubr.bf16.gmra.mrb[0].mxu0 %v1386
  %v2714 = vpop.f32.mrb[0].mxu0
  %v2715 = vadd.f32 %v2426, %v2714
  %v2716 = vpop.f32.mrb[0].mxu0
  %v2717 = vpop.f32.mrb[0].mxu0
  %v2718 = vadd.f32 %v2429, %v2717
  %v2719 = vpop.f32.mrb[0].mxu0
  %2720 = vmatprep.mubr.bf16.mxu0 %v1396
  %2721 = vmatmul.mubr.bf16.gmra.mrb[0].mxu0 %v1395
  %v2722 = vpop.f32.mrb[0].mxu0
  %v2723 = vadd.f32 %v2434, %v2722
  %v2724 = vpop.f32.mrb[0].mxu0
  %v2725 = vpop.f32.mrb[0].mxu0
  %v2726 = vadd.f32 %v2437, %v2725
  %v2727 = vpop.f32.mrb[0].mxu0
  %2728 = vmatprep.mubr.bf16.mxu0 %v1405
  %2729 = vmatmul.mubr.bf16.gmra.mrb[0].mxu0 %v1404
  %v2730 = vpop.f32.mrb[0].mxu0
  %v2731 = vadd.f32 %v2442, %v2730
  %v2732 = vpop.f32.mrb[0].mxu0
  %v2733 = vpop.f32.mrb[0].mxu0
  %v2734 = vadd.f32 %v2445, %v2733
  %v2735 = vpop.f32.mrb[0].mxu0
  %2736 = vmatprep.mubr.bf16.mxu0 %v1414
  %2737 = vmatmul.mubr.bf16.gmra.mrb[0].mxu0 %v1413
  %v2738 = vpop.f32.mrb[0].mxu0
  %v2739 = vadd.f32 %v2450, %v2738
  %v2740 = vpop.f32.mrb[0].mxu0
  %v2741 = vpop.f32.mrb[0].mxu0
  %v2742 = vadd.f32 %v2453, %v2741
  %v2743 = vpop.f32.mrb[0].mxu0
  %2744 = vmatprep.mubr.bf16.mxu0 %v1423
  %2745 = vmatmul.mubr.bf16.gmra.mrb[0].mxu0 %v1422
  %v2746 = vpop.f32.mrb[0].mxu0
  %v2747 = vadd.f32 %v2458, %v2746
  %v2748 = vpop.f32.mrb[0].mxu0
  %v2749 = vpop.f32.mrb[0].mxu0
  %v2750 = vadd.f32 %v2461, %v2749
  %v2751 = vpop.f32.mrb[0].mxu0
  %2752 = vmatprep.mubr.bf16.mxu0 %v1432
  %2753 = vmatmul.mubr.bf16.gmra.mrb[0].mxu0 %v1431
  %v2754 = vpop.f32.mrb[0].mxu0
  %v2755 = vadd.f32 %v2466, %v2754
  %v2756 = vpop.f32.mrb[0].mxu0
  %v2757 = vpop.f32.mrb[0].mxu0
  %v2758 = vadd.f32 %v2469, %v2757
  %v2759 = vpop.f32.mrb[0].mxu0
  %2760 = vmatprep.mubr.bf16.mxu0 %v1441
  %2761 = vmatmul.mubr.bf16.gmra.mrb[0].mxu0 %v1440
  %v2762 = vpop.f32.mrb[0].mxu0
  %v2763 = vadd.f32 %v2474, %v2762
  %v2764 = vpop.f32.mrb[0].mxu0
  %v2765 = vpop.f32.mrb[0].mxu0
  %v2766 = vadd.f32 %v2477, %v2765
  %v2767 = vpop.f32.mrb[0].mxu0
  %2768 = vmatprep.mubr.bf16.mxu0 %v1450
  %2769 = vmatmul.mubr.bf16.gmra.mrb[0].mxu0 %v1449
  %v2770 = vpop.f32.mrb[0].mxu0
  %v2771 = vadd.f32 %v2482, %v2770
  %v2772 = vpop.f32.mrb[0].mxu0
  %v2773 = vpop.f32.mrb[0].mxu0
  %v2774 = vadd.f32 %v2485, %v2773
  %v2775 = vpop.f32.mrb[0].mxu0
  %2776 = vmatprep.mubr.bf16.mxu0 %v1459
  %2777 = vmatmul.mubr.bf16.gmra.mrb[0].mxu0 %v1458
  %v2778 = vpop.f32.mrb[0].mxu0
  %v2779 = vadd.f32 %v2490, %v2778
  %v2780 = vpop.f32.mrb[0].mxu0
  %v2781 = vpop.f32.mrb[0].mxu0
  %v2782 = vadd.f32 %v2493, %v2781
  %v2783 = vpop.f32.mrb[0].mxu0
  %2784 = vmatprep.mubr.bf16.mxu0 %v1468
  %2785 = vmatmul.mubr.bf16.gmra.mrb[0].mxu0 %v1467
  %v2786 = vpop.f32.mrb[0].mxu0
  %v2787 = vadd.f32 %v2498, %v2786
  %v2788 = vpop.f32.mrb[0].mxu0
  %v2789 = vpop.f32.mrb[0].mxu0
  %v2790 = vadd.f32 %v2501, %v2789
  %v2791 = vpop.f32.mrb[0].mxu0
  %2792 = vmatprep.mubr.bf16.mxu0 %v1477
  %2793 = vmatmul.mubr.bf16.gmra.mrb[0].mxu0 %v1476
  %v2794 = vpop.f32.mrb[0].mxu0
  %v2795 = vadd.f32 %v2506, %v2794
  %v2796 = vpop.f32.mrb[0].mxu0
  %v2797 = vpop.f32.mrb[0].mxu0
  %v2798 = vadd.f32 %v2509, %v2797
  %v2799 = vpop.f32.mrb[0].mxu0
  %2800 = vmatprep.mubr.bf16.mxu0 %v1486
  %2801 = vmatmul.mubr.bf16.gmra.mrb[0].mxu0 %v1485
  %v2802 = vpop.f32.mrb[0].mxu0
  %v2803 = vadd.f32 %v2514, %v2802
  %v2804 = vpop.f32.mrb[0].mxu0
  %v2805 = vpop.f32.mrb[0].mxu0
  %v2806 = vadd.f32 %v2517, %v2805
  %v2807 = vpop.f32.mrb[0].mxu0
  %2808 = vmatprep.mubr.bf16.mxu0 %v1495
  %2809 = vmatmul.mubr.bf16.gmra.mrb[0].mxu0 %v1494
  %v2810 = vpop.f32.mrb[0].mxu0
  %v2811 = vadd.f32 %v2522, %v2810
  %v2812 = vpop.f32.mrb[0].mxu0
  %v2813 = vpop.f32.mrb[0].mxu0
  %v2814 = vadd.f32 %v2525, %v2813
  %v2815 = vpop.f32.mrb[0].mxu0
  %2816 = vmatprep.mubr.bf16.mxu0 %v1504
  %2817 = vmatmul.mubr.bf16.gmra.mrb[0].mxu0 %v1503
  %v2818 = vpop.f32.mrb[0].mxu0
  %v2819 = vadd.f32 %v2530, %v2818
  %v2820 = vpop.f32.mrb[0].mxu0
  %v2821 = vpop.f32.mrb[0].mxu0
  %v2822 = vadd.f32 %v2533, %v2821
  %v2823 = vpop.f32.mrb[0].mxu0
  %2824 = vmatprep.mubr.bf16.mxu0 %v1513
  %2825 = vmatmul.mubr.bf16.gmra.mrb[0].mxu0 %v1512
  %v2826 = vpop.f32.mrb[0].mxu0
  %v2827 = vadd.f32 %v2538, %v2826
  %v2828 = vpop.f32.mrb[0].mxu0
  %v2829 = vpop.f32.mrb[0].mxu0
  %v2830 = vadd.f32 %v2541, %v2829
  %v2831 = vpop.f32.mrb[0].mxu0
  %2832 = vmatprep.mubr.bf16.mxu0 %v1522
  %2833 = vmatmul.mubr.bf16.gmra.mrb[0].mxu0 %v1521
  %v2834 = vpop.f32.mrb[0].mxu0
  %v2835 = vadd.f32 %v2546, %v2834
  %v2836 = vpop.f32.mrb[0].mxu0
  %v2837 = vpop.f32.mrb[0].mxu0
  %v2838 = vadd.f32 %v2549, %v2837
  %v2839 = vpop.f32.mrb[0].mxu0
  %2840 = vmatprep.mubr.bf16.mxu0 %v1531
  %2841 = vmatmul.mubr.bf16.gmra.mrb[0].mxu0 %v1530
  %v2842 = vpop.f32.mrb[0].mxu0
  %v2843 = vadd.f32 %v2554, %v2842
  %v2844 = vpop.f32.mrb[0].mxu0
  %v2845 = vpop.f32.mrb[0].mxu0
  %v2846 = vadd.f32 %v2557, %v2845
  %v2847 = vpop.f32.mrb[0].mxu0
  %2848 = vmatprep.mubr.bf16.mxu0 %v1540
  %2849 = vmatmul.mubr.bf16.gmra.mrb[0].mxu0 %v1539
  %v2850 = vpop.f32.mrb[0].mxu0
  %v2851 = vadd.f32 %v2562, %v2850
  %v2852 = vpop.f32.mrb[0].mxu0
  %v2853 = vpop.f32.mrb[0].mxu0
  %v2854 = vadd.f32 %v2565, %v2853
  %v2855 = vpop.f32.mrb[0].mxu0
  %2856 = vmatprep.mubr.bf16.mxu0 %v1549
  %2857 = vmatmul.mubr.bf16.gmra.mrb[0].mxu0 %v1548
  %v2858 = vpop.f32.mrb[0].mxu0
  %v2859 = vadd.f32 %v2570, %v2858
  %v2860 = vpop.f32.mrb[0].mxu0
  %v2861 = vpop.f32.mrb[0].mxu0
  %v2862 = vadd.f32 %v2573, %v2861
  %v2863 = vpop.f32.mrb[0].mxu0
  %2864 = vmatprep.mubr.bf16.mxu0 %v1558
  %2865 = vmatmul.mubr.bf16.gmra.mrb[0].mxu0 %v1557
  %v2866 = vpop.f32.mrb[0].mxu0
  %v2867 = vadd.f32 %v2578, %v2866
  %v2868 = vpop.f32.mrb[0].mxu0
  %v2869 = vpop.f32.mrb[0].mxu0
  %v2870 = vadd.f32 %v2581, %v2869
  %v2871 = vpop.f32.mrb[0].mxu0
  %2872 = vmatprep.mubr.bf16.mxu0 %v1567
  %2873 = vmatmul.mubr.bf16.gmra.mrb[0].mxu0 %v1566
  %v2874 = vpop.f32.mrb[0].mxu0
  %v2875 = vadd.f32 %v2586, %v2874
  %v2876 = vpop.f32.mrb[0].mxu0
  %v2877 = vpop.f32.mrb[0].mxu0
  %v2878 = vadd.f32 %v2589, %v2877
  %v2879 = vpop.f32.mrb[0].mxu0
  %2880 = vmatprep.mubr.bf16.mxu0 %v1576
  %2881 = vmatmul.mubr.bf16.gmra.mrb[0].mxu0 %v1575
  %v2882 = vpop.f32.mrb[0].mxu0
  %v2883 = vadd.f32 %v2594, %v2882
  %v2884 = vpop.f32.mrb[0].mxu0
  %v2885 = vpop.f32.mrb[0].mxu0
  %v2886 = vadd.f32 %v2597, %v2885
  %v2887 = vpop.f32.mrb[0].mxu0
  %2888 = vmatprep.mubr.bf16.mxu0 %v1585
  %2889 = vmatmul.mubr.bf16.gmra.mrb[0].mxu0 %v1584
  %v2890 = vpop.f32.mrb[0].mxu0
  %v2891 = vadd.f32 %v2602, %v2890
  %v2892 = vpop.f32.mrb[0].mxu0
  %v2893 = vpop.f32.mrb[0].mxu0
  %v2894 = vadd.f32 %v2605, %v2893
  %v2895 = vpop.f32.mrb[0].mxu0
  %2896 = vmatprep.mubr.bf16.mxu0 %v1594
  %2897 = vmatmul.mubr.bf16.gmra.mrb[0].mxu0 %v1593
  %v2898 = vpop.f32.mrb[0].mxu0
  %v2899 = vadd.f32 %v2610, %v2898
  %v2900 = vpop.f32.mrb[0].mxu0
  %v2901 = vpop.f32.mrb[0].mxu0
  %v2902 = vadd.f32 %v2613, %v2901
  %v2903 = vpop.f32.mrb[0].mxu0
  %2904 = vmatprep.mubr.bf16.mxu0 %v1603
  %2905 = vmatmul.mubr.bf16.gmra.mrb[0].mxu0 %v1602
  %v2906 = vpop.f32.mrb[0].mxu0
  %v2907 = vadd.f32 %v2618, %v2906
  %v2908 = vpop.f32.mrb[0].mxu0
  %v2909 = vpop.f32.mrb[0].mxu0
  %v2910 = vadd.f32 %v2621, %v2909
  %v2911 = vpop.f32.mrb[0].mxu0
  %2912 = vmatprep.mubr.bf16.mxu0 %v1612
  %2913 = vmatmul.mubr.bf16.gmra.mrb[0].mxu0 %v1611
  %v2914 = vpop.f32.mrb[0].mxu0
  %v2915 = vadd.f32 %v2626, %v2914
  %v2916 = vpop.f32.mrb[0].mxu0
  %v2917 = vpop.f32.mrb[0].mxu0
  %v2918 = vadd.f32 %v2629, %v2917
  %v2919 = vpop.f32.mrb[0].mxu0
  %2920 = vmatprep.mubr.bf16.mxu0 %v1621
  %2921 = vmatmul.mubr.bf16.gmra.mrb[0].mxu0 %v1620
  %v2922 = vpop.f32.mrb[0].mxu0
  %v2923 = vadd.f32 %v2634, %v2922
  %v2924 = vpop.f32.mrb[0].mxu0
  %v2925 = vpop.f32.mrb[0].mxu0
  %v2926 = vadd.f32 %v2637, %v2925
  %v2927 = vpop.f32.mrb[0].mxu0
  %2928 = vmatprep.mubr.bf16.mxu0 %v1630
  %2929 = vmatmul.mubr.bf16.gmra.mrb[0].mxu0 %v1629
  %v2930 = vpop.f32.mrb[0].mxu0
  %v2931 = vadd.f32 %v2642, %v2930
  %v2932 = vpop.f32.mrb[0].mxu0
  %v2933 = vpop.f32.mrb[0].mxu0
  %v2934 = vadd.f32 %v2645, %v2933
  %v2935 = vpop.f32.mrb[0].mxu0
  %2936 = vmatprep.mubr.bf16.mxu0 %v1639
  %2937 = vmatmul.mubr.bf16.gmra.mrb[0].mxu0 %v1638
  %v2938 = vpop.f32.mrb[0].mxu0
  %v2939 = vadd.f32 %v2650, %v2938
  %v2940 = vpop.f32.mrb[0].mxu0
  %v2941 = vpop.f32.mrb[0].mxu0
  %v2942 = vadd.f32 %v2653, %v2941
  %v2943 = vpop.f32.mrb[0].mxu0
  %2944 = vmatprep.mubr.bf16.mxu0 %v1648
  %2945 = vmatmul.mubr.bf16.gmra.mrb[0].mxu0 %v1647
  %v2946 = vpop.f32.mrb[0].mxu0
  %v2947 = vadd.f32 %v2658, %v2946
  %v2948 = vpop.f32.mrb[0].mxu0
  %v2949 = vpop.f32.mrb[0].mxu0
  %v2950 = vadd.f32 %v2661, %v2949
  %v2951 = vpop.f32.mrb[0].mxu0
  %2952 = vmatprep.mubr.bf16.mxu0 %v1657
  %2953 = vmatmul.mubr.bf16.gmra.mrb[0].mxu0 %v1656
  %v2954 = vpop.f32.mrb[0].mxu0
  %v2955 = vadd.f32 %v2666, %v2954
  %v2956 = vpop.f32.mrb[0].mxu0
  %v2957 = vpop.f32.mrb[0].mxu0
  %v2958 = vadd.f32 %v2669, %v2957
  %v2959 = vpop.f32.mrb[0].mxu0
  %2960 = vdwg.mxu0
  %2961 = vmatprep.subr.bf16.mxu0 0
  %2962 = vmatpush1.bf16.msra.mxu0 %v2271
  %2963 = vmatprep.subr.bf16.mxu0 0
  %2964 = vmatpush1.bf16.msra.mxu0 %v2272
  %2965 = vmatprep.subr.bf16.mxu0 0
  %2966 = vmatpush1.bf16.msra.mxu0 %v2273
  %2967 = vmatprep.subr.bf16.mxu0 0
  %2968 = vmatpush1.bf16.msra.mxu0 %v2274
  %2969 = vmatprep.subr.bf16.mxu0 0
  %2970 = vmatpush1.bf16.msra.mxu0 %v2275
  %2971 = vmatprep.subr.bf16.mxu0 0
  %2972 = vmatpush1.bf16.msra.mxu0 %v2276
  %2973 = vmatprep.subr.bf16.mxu0 0
  %2974 = vmatpush1.bf16.msra.mxu0 %v2277
  %2975 = vmatprep.subr.bf16.mxu0 0
  %2976 = vmatpush1.bf16.msra.mxu0 %v2278
  %2977 = vmatprep.subr.bf16.mxu0 0
  %2978 = vmatpush1.bf16.msra.mxu0 %v2279
  %2979 = vmatprep.subr.bf16.mxu0 0
  %2980 = vmatpush1.bf16.msra.mxu0 %v2280
  %2981 = vmatprep.subr.bf16.mxu0 0
  %2982 = vmatpush1.bf16.msra.mxu0 %v2281
  %2983 = vmatprep.subr.bf16.mxu0 0
  %2984 = vmatpush1.bf16.msra.mxu0 %v2282
  %2985 = vmatprep.subr.bf16.mxu0 0
  %2986 = vmatpush1.bf16.msra.mxu0 %v2283
  %2987 = vmatprep.subr.bf16.mxu0 0
  %2988 = vmatpush1.bf16.msra.mxu0 %v2284
  %2989 = vmatprep.subr.bf16.mxu0 0
  %2990 = vmatpush1.bf16.msra.mxu0 %v2285
  %2991 = vmatprep.subr.bf16.mxu0 0
  %2992 = vmatpush1.bf16.msra.mxu0 %v2286
  %2993 = vmatprep.mubr.bf16.mxu0 %v1380
  %2994 = vmatmul.mubr.bf16.gmra.mrb[0].mxu0 %v1379
  %v2995 = vpop.f32.mrb[0].mxu0
  %v2996 = vadd.f32 %v2707, %v2995
  %v2997 = vpop.f32.mrb[0].mxu0
  %v2998 = vpop.f32.mrb[0].mxu0
  %v2999 = vadd.f32 %v2710, %v2998
  %v3000 = vpop.f32.mrb[0].mxu0
  %3001 = vmatprep.mubr.bf16.mxu0 %v1389
  %3002 = vmatmul.mubr.bf16.gmra.mrb[0].mxu0 %v1388
  %v3003 = vpop.f32.mrb[0].mxu0
  %v3004 = vadd.f32 %v2715, %v3003
  %v3005 = vpop.f32.mrb[0].mxu0
  %v3006 = vpop.f32.mrb[0].mxu0
  %v3007 = vadd.f32 %v2718, %v3006
  %v3008 = vpop.f32.mrb[0].mxu0
  %3009 = vmatprep.mubr.bf16.mxu0 %v1398
  %3010 = vmatmul.mubr.bf16.gmra.mrb[0].mxu0 %v1397
  %v3011 = vpop.f32.mrb[0].mxu0
  %v3012 = vadd.f32 %v2723, %v3011
  %v3013 = vpop.f32.mrb[0].mxu0
  %v3014 = vpop.f32.mrb[0].mxu0
  %v3015 = vadd.f32 %v2726, %v3014
  %v3016 = vpop.f32.mrb[0].mxu0
  %3017 = vmatprep.mubr.bf16.mxu0 %v1407
  %3018 = vmatmul.mubr.bf16.gmra.mrb[0].mxu0 %v1406
  %v3019 = vpop.f32.mrb[0].mxu0
  %v3020 = vadd.f32 %v2731, %v3019
  %v3021 = vpop.f32.mrb[0].mxu0
  %v3022 = vpop.f32.mrb[0].mxu0
  %v3023 = vadd.f32 %v2734, %v3022
  %v3024 = vpop.f32.mrb[0].mxu0
  %3025 = vmatprep.mubr.bf16.mxu0 %v1416
  %3026 = vmatmul.mubr.bf16.gmra.mrb[0].mxu0 %v1415
  %v3027 = vpop.f32.mrb[0].mxu0
  %v3028 = vadd.f32 %v2739, %v3027
  %v3029 = vpop.f32.mrb[0].mxu0
  %v3030 = vpop.f32.mrb[0].mxu0
  %v3031 = vadd.f32 %v2742, %v3030
  %v3032 = vpop.f32.mrb[0].mxu0
  %3033 = vmatprep.mubr.bf16.mxu0 %v1425
  %3034 = vmatmul.mubr.bf16.gmra.mrb[0].mxu0 %v1424
  %v3035 = vpop.f32.mrb[0].mxu0
  %v3036 = vadd.f32 %v2747, %v3035
  %v3037 = vpop.f32.mrb[0].mxu0
  %v3038 = vpop.f32.mrb[0].mxu0
  %v3039 = vadd.f32 %v2750, %v3038
  %v3040 = vpop.f32.mrb[0].mxu0
  %3041 = vmatprep.mubr.bf16.mxu0 %v1434
  %3042 = vmatmul.mubr.bf16.gmra.mrb[0].mxu0 %v1433
  %v3043 = vpop.f32.mrb[0].mxu0
  %v3044 = vadd.f32 %v2755, %v3043
  %v3045 = vpop.f32.mrb[0].mxu0
  %v3046 = vpop.f32.mrb[0].mxu0
  %v3047 = vadd.f32 %v2758, %v3046
  %v3048 = vpop.f32.mrb[0].mxu0
  %3049 = vmatprep.mubr.bf16.mxu0 %v1443
  %3050 = vmatmul.mubr.bf16.gmra.mrb[0].mxu0 %v1442
  %v3051 = vpop.f32.mrb[0].mxu0
  %v3052 = vadd.f32 %v2763, %v3051
  %v3053 = vpop.f32.mrb[0].mxu0
  %v3054 = vpop.f32.mrb[0].mxu0
  %v3055 = vadd.f32 %v2766, %v3054
  %v3056 = vpop.f32.mrb[0].mxu0
  %3057 = vmatprep.mubr.bf16.mxu0 %v1452
  %3058 = vmatmul.mubr.bf16.gmra.mrb[0].mxu0 %v1451
  %v3059 = vpop.f32.mrb[0].mxu0
  %v3060 = vadd.f32 %v2771, %v3059
  %v3061 = vpop.f32.mrb[0].mxu0
  %v3062 = vpop.f32.mrb[0].mxu0
  %v3063 = vadd.f32 %v2774, %v3062
  %v3064 = vpop.f32.mrb[0].mxu0
  %3065 = vmatprep.mubr.bf16.mxu0 %v1461
  %3066 = vmatmul.mubr.bf16.gmra.mrb[0].mxu0 %v1460
  %v3067 = vpop.f32.mrb[0].mxu0
  %v3068 = vadd.f32 %v2779, %v3067
  %v3069 = vpop.f32.mrb[0].mxu0
  %v3070 = vpop.f32.mrb[0].mxu0
  %v3071 = vadd.f32 %v2782, %v3070
  %v3072 = vpop.f32.mrb[0].mxu0
  %3073 = vmatprep.mubr.bf16.mxu0 %v1470
  %3074 = vmatmul.mubr.bf16.gmra.mrb[0].mxu0 %v1469
  %v3075 = vpop.f32.mrb[0].mxu0
  %v3076 = vadd.f32 %v2787, %v3075
  %v3077 = vpop.f32.mrb[0].mxu0
  %v3078 = vpop.f32.mrb[0].mxu0
  %v3079 = vadd.f32 %v2790, %v3078
  %v3080 = vpop.f32.mrb[0].mxu0
  %3081 = vmatprep.mubr.bf16.mxu0 %v1479
  %3082 = vmatmul.mubr.bf16.gmra.mrb[0].mxu0 %v1478
  %v3083 = vpop.f32.mrb[0].mxu0
  %v3084 = vadd.f32 %v2795, %v3083
  %v3085 = vpop.f32.mrb[0].mxu0
  %v3086 = vpop.f32.mrb[0].mxu0
  %v3087 = vadd.f32 %v2798, %v3086
  %v3088 = vpop.f32.mrb[0].mxu0
  %3089 = vmatprep.mubr.bf16.mxu0 %v1488
  %3090 = vmatmul.mubr.bf16.gmra.mrb[0].mxu0 %v1487
  %v3091 = vpop.f32.mrb[0].mxu0
  %v3092 = vadd.f32 %v2803, %v3091
  %v3093 = vpop.f32.mrb[0].mxu0
  %v3094 = vpop.f32.mrb[0].mxu0
  %v3095 = vadd.f32 %v2806, %v3094
  %v3096 = vpop.f32.mrb[0].mxu0
  %3097 = vmatprep.mubr.bf16.mxu0 %v1497
  %3098 = vmatmul.mubr.bf16.gmra.mrb[0].mxu0 %v1496
  %v3099 = vpop.f32.mrb[0].mxu0
  %v3100 = vadd.f32 %v2811, %v3099
  %v3101 = vpop.f32.mrb[0].mxu0
  %v3102 = vpop.f32.mrb[0].mxu0
  %v3103 = vadd.f32 %v2814, %v3102
  %v3104 = vpop.f32.mrb[0].mxu0
  %3105 = vmatprep.mubr.bf16.mxu0 %v1506
  %3106 = vmatmul.mubr.bf16.gmra.mrb[0].mxu0 %v1505
  %v3107 = vpop.f32.mrb[0].mxu0
  %v3108 = vadd.f32 %v2819, %v3107
  %v3109 = vpop.f32.mrb[0].mxu0
  %v3110 = vpop.f32.mrb[0].mxu0
  %v3111 = vadd.f32 %v2822, %v3110
  %v3112 = vpop.f32.mrb[0].mxu0
  %3113 = vmatprep.mubr.bf16.mxu0 %v1515
  %3114 = vmatmul.mubr.bf16.gmra.mrb[0].mxu0 %v1514
  %v3115 = vpop.f32.mrb[0].mxu0
  %v3116 = vadd.f32 %v2827, %v3115
  %v3117 = vpop.f32.mrb[0].mxu0
  %v3118 = vpop.f32.mrb[0].mxu0
  %v3119 = vadd.f32 %v2830, %v3118
  %v3120 = vpop.f32.mrb[0].mxu0
  %3121 = vmatprep.mubr.bf16.mxu0 %v1524
  %3122 = vmatmul.mubr.bf16.gmra.mrb[0].mxu0 %v1523
  %v3123 = vpop.f32.mrb[0].mxu0
  %v3124 = vadd.f32 %v2835, %v3123
  %v3125 = vpop.f32.mrb[0].mxu0
  %v3126 = vpop.f32.mrb[0].mxu0
  %v3127 = vadd.f32 %v2838, %v3126
  %v3128 = vpop.f32.mrb[0].mxu0
  %3129 = vmatprep.mubr.bf16.mxu0 %v1533
  %3130 = vmatmul.mubr.bf16.gmra.mrb[0].mxu0 %v1532
  %v3131 = vpop.f32.mrb[0].mxu0
  %v3132 = vadd.f32 %v2843, %v3131
  %v3133 = vpop.f32.mrb[0].mxu0
  %v3134 = vpop.f32.mrb[0].mxu0
  %v3135 = vadd.f32 %v2846, %v3134
  %v3136 = vpop.f32.mrb[0].mxu0
  %3137 = vmatprep.mubr.bf16.mxu0 %v1542
  %3138 = vmatmul.mubr.bf16.gmra.mrb[0].mxu0 %v1541
  %v3139 = vpop.f32.mrb[0].mxu0
  %v3140 = vadd.f32 %v2851, %v3139
  %v3141 = vpop.f32.mrb[0].mxu0
  %v3142 = vpop.f32.mrb[0].mxu0
  %v3143 = vadd.f32 %v2854, %v3142
  %v3144 = vpop.f32.mrb[0].mxu0
  %3145 = vmatprep.mubr.bf16.mxu0 %v1551
  %3146 = vmatmul.mubr.bf16.gmra.mrb[0].mxu0 %v1550
  %v3147 = vpop.f32.mrb[0].mxu0
  %v3148 = vadd.f32 %v2859, %v3147
  %v3149 = vpop.f32.mrb[0].mxu0
  %v3150 = vpop.f32.mrb[0].mxu0
  %v3151 = vadd.f32 %v2862, %v3150
  %v3152 = vpop.f32.mrb[0].mxu0
  %3153 = vmatprep.mubr.bf16.mxu0 %v1560
  %3154 = vmatmul.mubr.bf16.gmra.mrb[0].mxu0 %v1559
  %v3155 = vpop.f32.mrb[0].mxu0
  %v3156 = vadd.f32 %v2867, %v3155
  %v3157 = vpop.f32.mrb[0].mxu0
  %v3158 = vpop.f32.mrb[0].mxu0
  %v3159 = vadd.f32 %v2870, %v3158
  %v3160 = vpop.f32.mrb[0].mxu0
  %3161 = vmatprep.mubr.bf16.mxu0 %v1569
  %3162 = vmatmul.mubr.bf16.gmra.mrb[0].mxu0 %v1568
  %v3163 = vpop.f32.mrb[0].mxu0
  %v3164 = vadd.f32 %v2875, %v3163
  %v3165 = vpop.f32.mrb[0].mxu0
  %v3166 = vpop.f32.mrb[0].mxu0
  %v3167 = vadd.f32 %v2878, %v3166
  %v3168 = vpop.f32.mrb[0].mxu0
  %3169 = vmatprep.mubr.bf16.mxu0 %v1578
  %3170 = vmatmul.mubr.bf16.gmra.mrb[0].mxu0 %v1577
  %v3171 = vpop.f32.mrb[0].mxu0
  %v3172 = vadd.f32 %v2883, %v3171
  %v3173 = vpop.f32.mrb[0].mxu0
  %v3174 = vpop.f32.mrb[0].mxu0
  %v3175 = vadd.f32 %v2886, %v3174
  %v3176 = vpop.f32.mrb[0].mxu0
  %3177 = vmatprep.mubr.bf16.mxu0 %v1587
  %3178 = vmatmul.mubr.bf16.gmra.mrb[0].mxu0 %v1586
  %v3179 = vpop.f32.mrb[0].mxu0
  %v3180 = vadd.f32 %v2891, %v3179
  %v3181 = vpop.f32.mrb[0].mxu0
  %v3182 = vpop.f32.mrb[0].mxu0
  %v3183 = vadd.f32 %v2894, %v3182
  %v3184 = vpop.f32.mrb[0].mxu0
  %3185 = vmatprep.mubr.bf16.mxu0 %v1596
  %3186 = vmatmul.mubr.bf16.gmra.mrb[0].mxu0 %v1595
  %v3187 = vpop.f32.mrb[0].mxu0
  %v3188 = vadd.f32 %v2899, %v3187
  %v3189 = vpop.f32.mrb[0].mxu0
  %v3190 = vpop.f32.mrb[0].mxu0
  %v3191 = vadd.f32 %v2902, %v3190
  %v3192 = vpop.f32.mrb[0].mxu0
  %3193 = vmatprep.mubr.bf16.mxu0 %v1605
  %3194 = vmatmul.mubr.bf16.gmra.mrb[0].mxu0 %v1604
  %v3195 = vpop.f32.mrb[0].mxu0
  %v3196 = vadd.f32 %v2907, %v3195
  %v3197 = vpop.f32.mrb[0].mxu0
  %v3198 = vpop.f32.mrb[0].mxu0
  %v3199 = vadd.f32 %v2910, %v3198
  %v3200 = vpop.f32.mrb[0].mxu0
  %3201 = vmatprep.mubr.bf16.mxu0 %v1614
  %3202 = vmatmul.mubr.bf16.gmra.mrb[0].mxu0 %v1613
  %v3203 = vpop.f32.mrb[0].mxu0
  %v3204 = vadd.f32 %v2915, %v3203
  %v3205 = vpop.f32.mrb[0].mxu0
  %v3206 = vpop.f32.mrb[0].mxu0
  %v3207 = vadd.f32 %v2918, %v3206
  %v3208 = vpop.f32.mrb[0].mxu0
  %3209 = vmatprep.mubr.bf16.mxu0 %v1623
  %3210 = vmatmul.mubr.bf16.gmra.mrb[0].mxu0 %v1622
  %v3211 = vpop.f32.mrb[0].mxu0
  %v3212 = vadd.f32 %v2923, %v3211
  %v3213 = vpop.f32.mrb[0].mxu0
  %v3214 = vpop.f32.mrb[0].mxu0
  %v3215 = vadd.f32 %v2926, %v3214
  %v3216 = vpop.f32.mrb[0].mxu0
  %3217 = vmatprep.mubr.bf16.mxu0 %v1632
  %3218 = vmatmul.mubr.bf16.gmra.mrb[0].mxu0 %v1631
  %v3219 = vpop.f32.mrb[0].mxu0
  %v3220 = vadd.f32 %v2931, %v3219
  %v3221 = vpop.f32.mrb[0].mxu0
  %v3222 = vpop.f32.mrb[0].mxu0
  %v3223 = vadd.f32 %v2934, %v3222
  %v3224 = vpop.f32.mrb[0].mxu0
  %3225 = vmatprep.mubr.bf16.mxu0 %v1641
  %3226 = vmatmul.mubr.bf16.gmra.mrb[0].mxu0 %v1640
  %v3227 = vpop.f32.mrb[0].mxu0
  %v3228 = vadd.f32 %v2939, %v3227
  %v3229 = vpop.f32.mrb[0].mxu0
  %v3230 = vpop.f32.mrb[0].mxu0
  %v3231 = vadd.f32 %v2942, %v3230
  %v3232 = vpop.f32.mrb[0].mxu0
  %3233 = vmatprep.mubr.bf16.mxu0 %v1650
  %3234 = vmatmul.mubr.bf16.gmra.mrb[0].mxu0 %v1649
  %v3235 = vpop.f32.mrb[0].mxu0
  %v3236 = vadd.f32 %v2947, %v3235
  %v3237 = vpop.f32.mrb[0].mxu0
  %v3238 = vpop.f32.mrb[0].mxu0
  %v3239 = vadd.f32 %v2950, %v3238
  %v3240 = vpop.f32.mrb[0].mxu0
  %3241 = vmatprep.mubr.bf16.mxu0 %v1659
  %3242 = vmatmul.mubr.bf16.gmra.mrb[0].mxu0 %v1658
  %v3243 = vpop.f32.mrb[0].mxu0
  %v3244 = vadd.f32 %v2955, %v3243
  %v3245 = vpop.f32.mrb[0].mxu0
  %v3246 = vpop.f32.mrb[0].mxu0
  %v3247 = vadd.f32 %v2958, %v3246
  %v3248 = vpop.f32.mrb[0].mxu0
  %3249 = vdwg.mxu0
  %3250 = vmatprep.subr.bf16.mxu0 0
  %3251 = vmatpush1.bf16.msra.mxu0 %v2287
  %3252 = vmatprep.subr.bf16.mxu0 0
  %3253 = vmatpush1.bf16.msra.mxu0 %v2288
  %3254 = vmatprep.subr.bf16.mxu0 0
  %3255 = vmatpush1.bf16.msra.mxu0 %v2289
  %3256 = vmatprep.subr.bf16.mxu0 0
  %3257 = vmatpush1.bf16.msra.mxu0 %v2290
  %3258 = vmatprep.subr.bf16.mxu0 0
  %3259 = vmatpush1.bf16.msra.mxu0 %v2291
  %3260 = vmatprep.subr.bf16.mxu0 0
  %3261 = vmatpush1.bf16.msra.mxu0 %v2292
  %3262 = vmatprep.subr.bf16.mxu0 0
  %3263 = vmatpush1.bf16.msra.mxu0 %v2293
  %3264 = vmatprep.subr.bf16.mxu0 0
  %3265 = vmatpush1.bf16.msra.mxu0 %v2294
  %3266 = vmatprep.subr.bf16.mxu0 0
  %3267 = vmatpush1.bf16.msra.mxu0 %v2295
  %3268 = vmatprep.subr.bf16.mxu0 0
  %3269 = vmatpush1.bf16.msra.mxu0 %v2296
  %3270 = vmatprep.subr.bf16.mxu0 0
  %3271 = vmatpush1.bf16.msra.mxu0 %v2297
  %3272 = vmatprep.subr.bf16.mxu0 0
  %3273 = vmatpush1.bf16.msra.mxu0 %v2298
  %3274 = vmatprep.subr.bf16.mxu0 0
  %3275 = vmatpush1.bf16.msra.mxu0 %v2299
  %3276 = vmatprep.subr.bf16.mxu0 0
  %3277 = vmatpush1.bf16.msra.mxu0 %v2300
  %3278 = vmatprep.subr.bf16.mxu0 0
  %3279 = vmatpush1.bf16.msra.mxu0 %v2301
  %3280 = vmatprep.subr.bf16.mxu0 0
  %3281 = vmatpush1.bf16.msra.mxu0 %v2302
  %3282 = vmatprep.mubr.bf16.mxu0 %v1382
  %3283 = vmatmul.mubr.bf16.gmra.mrb[0].mxu0 %v1381
  %v3284 = vpop.f32.mrb[0].mxu0
  %v3285 = vadd.f32 %v2996, %v3284
  %v3286 = vpop.f32.mrb[0].mxu0
  %v3287 = vpop.f32.mrb[0].mxu0
  %v3288 = vadd.f32 %v2999, %v3287
  %v3289 = vpop.f32.mrb[0].mxu0
  %3290 = vmatprep.mubr.bf16.mxu0 %v1391
  %3291 = vmatmul.mubr.bf16.gmra.mrb[0].mxu0 %v1390
  %v3292 = vpop.f32.mrb[0].mxu0
  %v3293 = vadd.f32 %v3004, %v3292
  %v3294 = vpop.f32.mrb[0].mxu0
  %v3295 = vpop.f32.mrb[0].mxu0
  %v3296 = vadd.f32 %v3007, %v3295
  %v3297 = vpop.f32.mrb[0].mxu0
  %3298 = vmatprep.mubr.bf16.mxu0 %v1400
  %3299 = vmatmul.mubr.bf16.gmra.mrb[0].mxu0 %v1399
  %v3300 = vpop.f32.mrb[0].mxu0
  %v3301 = vadd.f32 %v3012, %v3300
  %v3302 = vpop.f32.mrb[0].mxu0
  %v3303 = vpop.f32.mrb[0].mxu0
  %v3304 = vadd.f32 %v3015, %v3303
  %v3305 = vpop.f32.mrb[0].mxu0
  %3306 = vmatprep.mubr.bf16.mxu0 %v1409
  %3307 = vmatmul.mubr.bf16.gmra.mrb[0].mxu0 %v1408
  %v3308 = vpop.f32.mrb[0].mxu0
  %v3309 = vadd.f32 %v3020, %v3308
  %v3310 = vpop.f32.mrb[0].mxu0
  %v3311 = vpop.f32.mrb[0].mxu0
  %v3312 = vadd.f32 %v3023, %v3311
  %v3313 = vpop.f32.mrb[0].mxu0
  %3314 = vmatprep.mubr.bf16.mxu0 %v1418
  %3315 = vmatmul.mubr.bf16.gmra.mrb[0].mxu0 %v1417
  %v3316 = vpop.f32.mrb[0].mxu0
  %v3317 = vadd.f32 %v3028, %v3316
  %v3318 = vpop.f32.mrb[0].mxu0
  %v3319 = vpop.f32.mrb[0].mxu0
  %v3320 = vadd.f32 %v3031, %v3319
  %v3321 = vpop.f32.mrb[0].mxu0
  %3322 = vmatprep.mubr.bf16.mxu0 %v1427
  %3323 = vmatmul.mubr.bf16.gmra.mrb[0].mxu0 %v1426
  %v3324 = vpop.f32.mrb[0].mxu0
  %v3325 = vadd.f32 %v3036, %v3324
  %v3326 = vpop.f32.mrb[0].mxu0
  %v3327 = vpop.f32.mrb[0].mxu0
  %v3328 = vadd.f32 %v3039, %v3327
  %v3329 = vpop.f32.mrb[0].mxu0
  %3330 = vmatprep.mubr.bf16.mxu0 %v1436
  %3331 = vmatmul.mubr.bf16.gmra.mrb[0].mxu0 %v1435
  %v3332 = vpop.f32.mrb[0].mxu0
  %v3333 = vadd.f32 %v3044, %v3332
  %v3334 = vpop.f32.mrb[0].mxu0
  %v3335 = vpop.f32.mrb[0].mxu0
  %v3336 = vadd.f32 %v3047, %v3335
  %v3337 = vpop.f32.mrb[0].mxu0
  %3338 = vmatprep.mubr.bf16.mxu0 %v1445
  %3339 = vmatmul.mubr.bf16.gmra.mrb[0].mxu0 %v1444
  %v3340 = vpop.f32.mrb[0].mxu0
  %v3341 = vadd.f32 %v3052, %v3340
  %v3342 = vpop.f32.mrb[0].mxu0
  %v3343 = vpop.f32.mrb[0].mxu0
  %v3344 = vadd.f32 %v3055, %v3343
  %v3345 = vpop.f32.mrb[0].mxu0
  %3346 = vmatprep.mubr.bf16.mxu0 %v1454
  %3347 = vmatmul.mubr.bf16.gmra.mrb[0].mxu0 %v1453
  %v3348 = vpop.f32.mrb[0].mxu0
  %v3349 = vadd.f32 %v3060, %v3348
  %v3350 = vpop.f32.mrb[0].mxu0
  %v3351 = vpop.f32.mrb[0].mxu0
  %v3352 = vadd.f32 %v3063, %v3351
  %v3353 = vpop.f32.mrb[0].mxu0
  %3354 = vmatprep.mubr.bf16.mxu0 %v1463
  %3355 = vmatmul.mubr.bf16.gmra.mrb[0].mxu0 %v1462
  %v3356 = vpop.f32.mrb[0].mxu0
  %v3357 = vadd.f32 %v3068, %v3356
  %v3358 = vpop.f32.mrb[0].mxu0
  %v3359 = vpop.f32.mrb[0].mxu0
  %v3360 = vadd.f32 %v3071, %v3359
  %v3361 = vpop.f32.mrb[0].mxu0
  %3362 = vmatprep.mubr.bf16.mxu0 %v1472
  %3363 = vmatmul.mubr.bf16.gmra.mrb[0].mxu0 %v1471
  %v3364 = vpop.f32.mrb[0].mxu0
  %v3365 = vadd.f32 %v3076, %v3364
  %v3366 = vpop.f32.mrb[0].mxu0
  %v3367 = vpop.f32.mrb[0].mxu0
  %v3368 = vadd.f32 %v3079, %v3367
  %v3369 = vpop.f32.mrb[0].mxu0
  %3370 = vmatprep.mubr.bf16.mxu0 %v1481
  %3371 = vmatmul.mubr.bf16.gmra.mrb[0].mxu0 %v1480
  %v3372 = vpop.f32.mrb[0].mxu0
  %v3373 = vadd.f32 %v3084, %v3372
  %v3374 = vpop.f32.mrb[0].mxu0
  %v3375 = vpop.f32.mrb[0].mxu0
  %v3376 = vadd.f32 %v3087, %v3375
  %v3377 = vpop.f32.mrb[0].mxu0
  %3378 = vmatprep.mubr.bf16.mxu0 %v1490
  %3379 = vmatmul.mubr.bf16.gmra.mrb[0].mxu0 %v1489
  %v3380 = vpop.f32.mrb[0].mxu0
  %v3381 = vadd.f32 %v3092, %v3380
  %v3382 = vpop.f32.mrb[0].mxu0
  %v3383 = vpop.f32.mrb[0].mxu0
  %v3384 = vadd.f32 %v3095, %v3383
  %v3385 = vpop.f32.mrb[0].mxu0
  %3386 = vmatprep.mubr.bf16.mxu0 %v1499
  %3387 = vmatmul.mubr.bf16.gmra.mrb[0].mxu0 %v1498
  %v3388 = vpop.f32.mrb[0].mxu0
  %v3389 = vadd.f32 %v3100, %v3388
  %v3390 = vpop.f32.mrb[0].mxu0
  %v3391 = vpop.f32.mrb[0].mxu0
  %v3392 = vadd.f32 %v3103, %v3391
  %v3393 = vpop.f32.mrb[0].mxu0
  %3394 = vmatprep.mubr.bf16.mxu0 %v1508
  %3395 = vmatmul.mubr.bf16.gmra.mrb[0].mxu0 %v1507
  %v3396 = vpop.f32.mrb[0].mxu0
  %v3397 = vadd.f32 %v3108, %v3396
  %v3398 = vpop.f32.mrb[0].mxu0
  %v3399 = vpop.f32.mrb[0].mxu0
  %v3400 = vadd.f32 %v3111, %v3399
  %v3401 = vpop.f32.mrb[0].mxu0
  %3402 = vmatprep.mubr.bf16.mxu0 %v1517
  %3403 = vmatmul.mubr.bf16.gmra.mrb[0].mxu0 %v1516
  %v3404 = vpop.f32.mrb[0].mxu0
  %v3405 = vadd.f32 %v3116, %v3404
  %v3406 = vpop.f32.mrb[0].mxu0
  %v3407 = vpop.f32.mrb[0].mxu0
  %v3408 = vadd.f32 %v3119, %v3407
  %v3409 = vpop.f32.mrb[0].mxu0
  %3410 = vmatprep.mubr.bf16.mxu0 %v1526
  %3411 = vmatmul.mubr.bf16.gmra.mrb[0].mxu0 %v1525
  %v3412 = vpop.f32.mrb[0].mxu0
  %v3413 = vadd.f32 %v3124, %v3412
  %v3414 = vpop.f32.mrb[0].mxu0
  %v3415 = vpop.f32.mrb[0].mxu0
  %v3416 = vadd.f32 %v3127, %v3415
  %v3417 = vpop.f32.mrb[0].mxu0
  %3418 = vmatprep.mubr.bf16.mxu0 %v1535
  %3419 = vmatmul.mubr.bf16.gmra.mrb[0].mxu0 %v1534
  %v3420 = vpop.f32.mrb[0].mxu0
  %v3421 = vadd.f32 %v3132, %v3420
  %v3422 = vpop.f32.mrb[0].mxu0
  %v3423 = vpop.f32.mrb[0].mxu0
  %v3424 = vadd.f32 %v3135, %v3423
  %v3425 = vpop.f32.mrb[0].mxu0
  %3426 = vmatprep.mubr.bf16.mxu0 %v1544
  %3427 = vmatmul.mubr.bf16.gmra.mrb[0].mxu0 %v1543
  %v3428 = vpop.f32.mrb[0].mxu0
  %v3429 = vadd.f32 %v3140, %v3428
  %v3430 = vpop.f32.mrb[0].mxu0
  %v3431 = vpop.f32.mrb[0].mxu0
  %v3432 = vadd.f32 %v3143, %v3431
  %v3433 = vpop.f32.mrb[0].mxu0
  %3434 = vmatprep.mubr.bf16.mxu0 %v1553
  %3435 = vmatmul.mubr.bf16.gmra.mrb[0].mxu0 %v1552
  %v3436 = vpop.f32.mrb[0].mxu0
  %v3437 = vadd.f32 %v3148, %v3436
  %v3438 = vpop.f32.mrb[0].mxu0
  %v3439 = vpop.f32.mrb[0].mxu0
  %v3440 = vadd.f32 %v3151, %v3439
  %v3441 = vpop.f32.mrb[0].mxu0
  %3442 = vmatprep.mubr.bf16.mxu0 %v1562
  %3443 = vmatmul.mubr.bf16.gmra.mrb[0].mxu0 %v1561
  %v3444 = vpop.f32.mrb[0].mxu0
  %v3445 = vadd.f32 %v3156, %v3444
  %v3446 = vpop.f32.mrb[0].mxu0
  %v3447 = vpop.f32.mrb[0].mxu0
  %v3448 = vadd.f32 %v3159, %v3447
  %v3449 = vpop.f32.mrb[0].mxu0
  %3450 = vmatprep.mubr.bf16.mxu0 %v1571
  %3451 = vmatmul.mubr.bf16.gmra.mrb[0].mxu0 %v1570
  %v3452 = vpop.f32.mrb[0].mxu0
  %v3453 = vadd.f32 %v3164, %v3452
  %v3454 = vpop.f32.mrb[0].mxu0
  %v3455 = vpop.f32.mrb[0].mxu0
  %v3456 = vadd.f32 %v3167, %v3455
  %v3457 = vpop.f32.mrb[0].mxu0
  %3458 = vmatprep.mubr.bf16.mxu0 %v1580
  %3459 = vmatmul.mubr.bf16.gmra.mrb[0].mxu0 %v1579
  %v3460 = vpop.f32.mrb[0].mxu0
  %v3461 = vadd.f32 %v3172, %v3460
  %v3462 = vpop.f32.mrb[0].mxu0
  %v3463 = vpop.f32.mrb[0].mxu0
  %v3464 = vadd.f32 %v3175, %v3463
  %v3465 = vpop.f32.mrb[0].mxu0
  %3466 = vmatprep.mubr.bf16.mxu0 %v1589
  %3467 = vmatmul.mubr.bf16.gmra.mrb[0].mxu0 %v1588
  %v3468 = vpop.f32.mrb[0].mxu0
  %v3469 = vadd.f32 %v3180, %v3468
  %v3470 = vpop.f32.mrb[0].mxu0
  %v3471 = vpop.f32.mrb[0].mxu0
  %v3472 = vadd.f32 %v3183, %v3471
  %v3473 = vpop.f32.mrb[0].mxu0
  %3474 = vmatprep.mubr.bf16.mxu0 %v1598
  %3475 = vmatmul.mubr.bf16.gmra.mrb[0].mxu0 %v1597
  %v3476 = vpop.f32.mrb[0].mxu0
  %v3477 = vadd.f32 %v3188, %v3476
  %v3478 = vpop.f32.mrb[0].mxu0
  %v3479 = vpop.f32.mrb[0].mxu0
  %v3480 = vadd.f32 %v3191, %v3479
  %v3481 = vpop.f32.mrb[0].mxu0
  %3482 = vmatprep.mubr.bf16.mxu0 %v1607
  %3483 = vmatmul.mubr.bf16.gmra.mrb[0].mxu0 %v1606
  %v3484 = vpop.f32.mrb[0].mxu0
  %v3485 = vadd.f32 %v3196, %v3484
  %v3486 = vpop.f32.mrb[0].mxu0
  %v3487 = vpop.f32.mrb[0].mxu0
  %v3488 = vadd.f32 %v3199, %v3487
  %v3489 = vpop.f32.mrb[0].mxu0
  %3490 = vmatprep.mubr.bf16.mxu0 %v1616
  %3491 = vmatmul.mubr.bf16.gmra.mrb[0].mxu0 %v1615
  %v3492 = vpop.f32.mrb[0].mxu0
  %v3493 = vadd.f32 %v3204, %v3492
  %v3494 = vpop.f32.mrb[0].mxu0
  %v3495 = vpop.f32.mrb[0].mxu0
  %v3496 = vadd.f32 %v3207, %v3495
  %v3497 = vpop.f32.mrb[0].mxu0
  %3498 = vmatprep.mubr.bf16.mxu0 %v1625
  %3499 = vmatmul.mubr.bf16.gmra.mrb[0].mxu0 %v1624
  %v3500 = vpop.f32.mrb[0].mxu0
  %v3501 = vadd.f32 %v3212, %v3500
  %v3502 = vpop.f32.mrb[0].mxu0
  %v3503 = vpop.f32.mrb[0].mxu0
  %v3504 = vadd.f32 %v3215, %v3503
  %v3505 = vpop.f32.mrb[0].mxu0
  %3506 = vmatprep.mubr.bf16.mxu0 %v1634
  %3507 = vmatmul.mubr.bf16.gmra.mrb[0].mxu0 %v1633
  %v3508 = vpop.f32.mrb[0].mxu0
  %v3509 = vadd.f32 %v3220, %v3508
  %v3510 = vpop.f32.mrb[0].mxu0
  %v3511 = vpop.f32.mrb[0].mxu0
  %v3512 = vadd.f32 %v3223, %v3511
  %v3513 = vpop.f32.mrb[0].mxu0
  %3514 = vmatprep.mubr.bf16.mxu0 %v1643
  %3515 = vmatmul.mubr.bf16.gmra.mrb[0].mxu0 %v1642
  %v3516 = vpop.f32.mrb[0].mxu0
  %v3517 = vadd.f32 %v3228, %v3516
  %v3518 = vpop.f32.mrb[0].mxu0
  %v3519 = vpop.f32.mrb[0].mxu0
  %v3520 = vadd.f32 %v3231, %v3519
  %v3521 = vpop.f32.mrb[0].mxu0
  %3522 = vmatprep.mubr.bf16.mxu0 %v1652
  %3523 = vmatmul.mubr.bf16.gmra.mrb[0].mxu0 %v1651
  %v3524 = vpop.f32.mrb[0].mxu0
  %v3525 = vadd.f32 %v3236, %v3524
  %v3526 = vpop.f32.mrb[0].mxu0
  %v3527 = vpop.f32.mrb[0].mxu0
  %v3528 = vadd.f32 %v3239, %v3527
  %v3529 = vpop.f32.mrb[0].mxu0
  %3530 = vmatprep.mubr.bf16.mxu0 %v1661
  %3531 = vmatmul.mubr.bf16.gmra.mrb[0].mxu0 %v1660
  %v3532 = vpop.f32.mrb[0].mxu0
  %v3533 = vadd.f32 %v3244, %v3532
  %v3534 = vpop.f32.mrb[0].mxu0
  %v3535 = vpop.f32.mrb[0].mxu0
  %v3536 = vadd.f32 %v3247, %v3535
  %v3537 = vpop.f32.mrb[0].mxu0
  %3538 = vdwg.mxu0
  %3539 = vmatprep.subr.bf16.mxu0 0
  %3540 = vmatpush1.bf16.msra.mxu0 %v2303
  %3541 = vmatprep.subr.bf16.mxu0 0
  %3542 = vmatpush1.bf16.msra.mxu0 %v2304
  %3543 = vmatprep.subr.bf16.mxu0 0
  %3544 = vmatpush1.bf16.msra.mxu0 %v2305
  %3545 = vmatprep.subr.bf16.mxu0 0
  %3546 = vmatpush1.bf16.msra.mxu0 %v2306
  %3547 = vmatprep.subr.bf16.mxu0 0
  %3548 = vmatpush1.bf16.msra.mxu0 %v2307
  %3549 = vmatprep.subr.bf16.mxu0 0
  %3550 = vmatpush1.bf16.msra.mxu0 %v2308
  %3551 = vmatprep.subr.bf16.mxu0 0
  %3552 = vmatpush1.bf16.msra.mxu0 %v2309
  %3553 = vmatprep.subr.bf16.mxu0 0
  %3554 = vmatpush1.bf16.msra.mxu0 %v2310
  %3555 = vmatprep.subr.bf16.mxu0 0
  %3556 = vmatpush1.bf16.msra.mxu0 0
  %3557 = vmatprep.subr.bf16.mxu0 0
  %3558 = vmatpush1.bf16.msra.mxu0 0
  %3559 = vmatprep.subr.bf16.mxu0 0
  %3560 = vmatpush1.bf16.msra.mxu0 0
  %3561 = vmatprep.subr.bf16.mxu0 0
  %3562 = vmatpush1.bf16.msra.mxu0 0
  %3563 = vmatprep.subr.bf16.mxu0 0
  %3564 = vmatpush1.bf16.msra.mxu0 0
  %3565 = vmatprep.subr.bf16.mxu0 0
  %3566 = vmatpush1.bf16.msra.mxu0 0
  %3567 = vmatprep.subr.bf16.mxu0 0
  %3568 = vmatpush1.bf16.msra.mxu0 0
  %3569 = vmatprep.subr.bf16.mxu0 0
  %3570 = vmatpush1.bf16.msra.mxu0 0
  %3571 = vmatprep.mubr.bf16.mxu0 0
  %3572 = vmatmul.mubr.bf16.gmra.mrb[0].mxu0 %v1383
  %v3573 = vpop.f32.mrb[0].mxu0
  %v3574 = vadd.f32 %v3285, %v3573
  %v3575 = vpop.f32.mrb[0].mxu0
  %v3576 = vpop.f32.mrb[0].mxu0
  %v3577 = vadd.f32 %v3288, %v3576
  %v3578 = vpop.f32.mrb[0].mxu0
  %3579 = vmatprep.mubr.bf16.mxu0 0
  %3580 = vmatmul.mubr.bf16.gmra.mrb[0].mxu0 %v1392
  %v3581 = vpop.f32.mrb[0].mxu0
  %v3582 = vadd.f32 %v3293, %v3581
  %v3583 = vpop.f32.mrb[0].mxu0
  %v3584 = vpop.f32.mrb[0].mxu0
  %v3585 = vadd.f32 %v3296, %v3584
  %v3586 = vpop.f32.mrb[0].mxu0
  %3587 = vmatprep.mubr.bf16.mxu0 0
  %3588 = vmatmul.mubr.bf16.gmra.mrb[0].mxu0 %v1401
  %v3589 = vpop.f32.mrb[0].mxu0
  %v3590 = vadd.f32 %v3301, %v3589
  %v3591 = vpop.f32.mrb[0].mxu0
  %v3592 = vpop.f32.mrb[0].mxu0
  %v3593 = vadd.f32 %v3304, %v3592
  %v3594 = vpop.f32.mrb[0].mxu0
  %3595 = vmatprep.mubr.bf16.mxu0 0
  %3596 = vmatmul.mubr.bf16.gmra.mrb[0].mxu0 %v1410
  %v3597 = vpop.f32.mrb[0].mxu0
  %v3598 = vadd.f32 %v3309, %v3597
  %v3599 = vpop.f32.mrb[0].mxu0
  %v3600 = vpop.f32.mrb[0].mxu0
  %v3601 = vadd.f32 %v3312, %v3600
  %v3602 = vpop.f32.mrb[0].mxu0
  %3603 = vmatprep.mubr.bf16.mxu0 0
  %3604 = vmatmul.mubr.bf16.gmra.mrb[0].mxu0 %v1419
  %v3605 = vpop.f32.mrb[0].mxu0
  %v3606 = vadd.f32 %v3317, %v3605
  %v3607 = vpop.f32.mrb[0].mxu0
  %v3608 = vpop.f32.mrb[0].mxu0
  %v3609 = vadd.f32 %v3320, %v3608
  %v3610 = vpop.f32.mrb[0].mxu0
  %3611 = vmatprep.mubr.bf16.mxu0 0
  %3612 = vmatmul.mubr.bf16.gmra.mrb[0].mxu0 %v1428
  %v3613 = vpop.f32.mrb[0].mxu0
  %v3614 = vadd.f32 %v3325, %v3613
  %v3615 = vpop.f32.mrb[0].mxu0
  %v3616 = vpop.f32.mrb[0].mxu0
  %v3617 = vadd.f32 %v3328, %v3616
  %v3618 = vpop.f32.mrb[0].mxu0
  %3619 = vmatprep.mubr.bf16.mxu0 0
  %3620 = vmatmul.mubr.bf16.gmra.mrb[0].mxu0 %v1437
  %v3621 = vpop.f32.mrb[0].mxu0
  %v3622 = vadd.f32 %v3333, %v3621
  %v3623 = vpop.f32.mrb[0].mxu0
  %v3624 = vpop.f32.mrb[0].mxu0
  %v3625 = vadd.f32 %v3336, %v3624
  %v3626 = vpop.f32.mrb[0].mxu0
  %3627 = vmatprep.mubr.bf16.mxu0 0
  %3628 = vmatmul.mubr.bf16.gmra.mrb[0].mxu0 %v1446
  %v3629 = vpop.f32.mrb[0].mxu0
  %v3630 = vadd.f32 %v3341, %v3629
  %v3631 = vpop.f32.mrb[0].mxu0
  %v3632 = vpop.f32.mrb[0].mxu0
  %v3633 = vadd.f32 %v3344, %v3632
  %v3634 = vpop.f32.mrb[0].mxu0
  %3635 = vmatprep.mubr.bf16.mxu0 0
  %3636 = vmatmul.mubr.bf16.gmra.mrb[0].mxu0 %v1455
  %v3637 = vpop.f32.mrb[0].mxu0
  %v3638 = vadd.f32 %v3349, %v3637
  %v3639 = vpop.f32.mrb[0].mxu0
  %v3640 = vpop.f32.mrb[0].mxu0
  %v3641 = vadd.f32 %v3352, %v3640
  %v3642 = vpop.f32.mrb[0].mxu0
  %3643 = vmatprep.mubr.bf16.mxu0 0
  %3644 = vmatmul.mubr.bf16.gmra.mrb[0].mxu0 %v1464
  %v3645 = vpop.f32.mrb[0].mxu0
  %v3646 = vadd.f32 %v3357, %v3645
  %v3647 = vpop.f32.mrb[0].mxu0
  %v3648 = vpop.f32.mrb[0].mxu0
  %v3649 = vadd.f32 %v3360, %v3648
  %v3650 = vpop.f32.mrb[0].mxu0
  %3651 = vmatprep.mubr.bf16.mxu0 0
  %3652 = vmatmul.mubr.bf16.gmra.mrb[0].mxu0 %v1473
  %v3653 = vpop.f32.mrb[0].mxu0
  %v3654 = vadd.f32 %v3365, %v3653
  %v3655 = vpop.f32.mrb[0].mxu0
  %v3656 = vpop.f32.mrb[0].mxu0
  %v3657 = vadd.f32 %v3368, %v3656
  %v3658 = vpop.f32.mrb[0].mxu0
  %3659 = vmatprep.mubr.bf16.mxu0 0
  %3660 = vmatmul.mubr.bf16.gmra.mrb[0].mxu0 %v1482
  %v3661 = vpop.f32.mrb[0].mxu0
  %v3662 = vadd.f32 %v3373, %v3661
  %v3663 = vpop.f32.mrb[0].mxu0
  %v3664 = vpop.f32.mrb[0].mxu0
  %v3665 = vadd.f32 %v3376, %v3664
  %v3666 = vpop.f32.mrb[0].mxu0
  %3667 = vmatprep.mubr.bf16.mxu0 0
  %3668 = vmatmul.mubr.bf16.gmra.mrb[0].mxu0 %v1491
  %v3669 = vpop.f32.mrb[0].mxu0
  %v3670 = vadd.f32 %v3381, %v3669
  %v3671 = vpop.f32.mrb[0].mxu0
  %v3672 = vpop.f32.mrb[0].mxu0
  %v3673 = vadd.f32 %v3384, %v3672
  %v3674 = vpop.f32.mrb[0].mxu0
  %3675 = vmatprep.mubr.bf16.mxu0 0
  %3676 = vmatmul.mubr.bf16.gmra.mrb[0].mxu0 %v1500
  %v3677 = vpop.f32.mrb[0].mxu0
  %v3678 = vadd.f32 %v3389, %v3677
  %v3679 = vpop.f32.mrb[0].mxu0
  %v3680 = vpop.f32.mrb[0].mxu0
  %v3681 = vadd.f32 %v3392, %v3680
  %v3682 = vpop.f32.mrb[0].mxu0
  %3683 = vmatprep.mubr.bf16.mxu0 0
  %3684 = vmatmul.mubr.bf16.gmra.mrb[0].mxu0 %v1509
  %v3685 = vpop.f32.mrb[0].mxu0
  %v3686 = vadd.f32 %v3397, %v3685
  %v3687 = vpop.f32.mrb[0].mxu0
  %v3688 = vpop.f32.mrb[0].mxu0
  %v3689 = vadd.f32 %v3400, %v3688
  %v3690 = vpop.f32.mrb[0].mxu0
  %3691 = vmatprep.mubr.bf16.mxu0 0
  %3692 = vmatmul.mubr.bf16.gmra.mrb[0].mxu0 %v1518
  %v3693 = vpop.f32.mrb[0].mxu0
  %v3694 = vadd.f32 %v3405, %v3693
  %v3695 = vpop.f32.mrb[0].mxu0
  %v3696 = vpop.f32.mrb[0].mxu0
  %v3697 = vadd.f32 %v3408, %v3696
  %v3698 = vpop.f32.mrb[0].mxu0
  %3699 = vmatprep.mubr.bf16.mxu0 0
  %3700 = vmatmul.mubr.bf16.gmra.mrb[0].mxu0 %v1527
  %v3701 = vpop.f32.mrb[0].mxu0
  %v3702 = vadd.f32 %v3413, %v3701
  %v3703 = vpop.f32.mrb[0].mxu0
  %v3704 = vpop.f32.mrb[0].mxu0
  %v3705 = vadd.f32 %v3416, %v3704
  %v3706 = vpop.f32.mrb[0].mxu0
  %3707 = vmatprep.mubr.bf16.mxu0 0
  %3708 = vmatmul.mubr.bf16.gmra.mrb[0].mxu0 %v1536
  %v3709 = vpop.f32.mrb[0].mxu0
  %v3710 = vadd.f32 %v3421, %v3709
  %v3711 = vpop.f32.mrb[0].mxu0
  %v3712 = vpop.f32.mrb[0].mxu0
  %v3713 = vadd.f32 %v3424, %v3712
  %v3714 = vpop.f32.mrb[0].mxu0
  %3715 = vmatprep.mubr.bf16.mxu0 0
  %3716 = vmatmul.mubr.bf16.gmra.mrb[0].mxu0 %v1545
  %v3717 = vpop.f32.mrb[0].mxu0
  %v3718 = vadd.f32 %v3429, %v3717
  %v3719 = vpop.f32.mrb[0].mxu0
  %v3720 = vpop.f32.mrb[0].mxu0
  %v3721 = vadd.f32 %v3432, %v3720
  %v3722 = vpop.f32.mrb[0].mxu0
  %3723 = vmatprep.mubr.bf16.mxu0 0
  %3724 = vmatmul.mubr.bf16.gmra.mrb[0].mxu0 %v1554
  %v3725 = vpop.f32.mrb[0].mxu0
  %v3726 = vadd.f32 %v3437, %v3725
  %v3727 = vpop.f32.mrb[0].mxu0
  %v3728 = vpop.f32.mrb[0].mxu0
  %v3729 = vadd.f32 %v3440, %v3728
  %v3730 = vpop.f32.mrb[0].mxu0
  %3731 = vmatprep.mubr.bf16.mxu0 0
  %3732 = vmatmul.mubr.bf16.gmra.mrb[0].mxu0 %v1563
  %v3733 = vpop.f32.mrb[0].mxu0
  %v3734 = vadd.f32 %v3445, %v3733
  %v3735 = vpop.f32.mrb[0].mxu0
  %v3736 = vpop.f32.mrb[0].mxu0
  %v3737 = vadd.f32 %v3448, %v3736
  %v3738 = vpop.f32.mrb[0].mxu0
  %3739 = vmatprep.mubr.bf16.mxu0 0
  %3740 = vmatmul.mubr.bf16.gmra.mrb[0].mxu0 %v1572
  %v3741 = vpop.f32.mrb[0].mxu0
  %v3742 = vadd.f32 %v3453, %v3741
  %v3743 = vpop.f32.mrb[0].mxu0
  %v3744 = vpop.f32.mrb[0].mxu0
  %v3745 = vadd.f32 %v3456, %v3744
  %v3746 = vpop.f32.mrb[0].mxu0
  %3747 = vmatprep.mubr.bf16.mxu0 0
  %3748 = vmatmul.mubr.bf16.gmra.mrb[0].mxu0 %v1581
  %v3749 = vpop.f32.mrb[0].mxu0
  %v3750 = vadd.f32 %v3461, %v3749
  %v3751 = vpop.f32.mrb[0].mxu0
  %v3752 = vpop.f32.mrb[0].mxu0
  %v3753 = vadd.f32 %v3464, %v3752
  %v3754 = vpop.f32.mrb[0].mxu0
  %3755 = vmatprep.mubr.bf16.mxu0 0
  %3756 = vmatmul.mubr.bf16.gmra.mrb[0].mxu0 %v1590
  %v3757 = vpop.f32.mrb[0].mxu0
  %v3758 = vadd.f32 %v3469, %v3757
  %v3759 = vpop.f32.mrb[0].mxu0
  %v3760 = vpop.f32.mrb[0].mxu0
  %v3761 = vadd.f32 %v3472, %v3760
  %v3762 = vpop.f32.mrb[0].mxu0
  %3763 = vmatprep.mubr.bf16.mxu0 0
  %3764 = vmatmul.mubr.bf16.gmra.mrb[0].mxu0 %v1599
  %v3765 = vpop.f32.mrb[0].mxu0
  %v3766 = vadd.f32 %v3477, %v3765
  %v3767 = vpop.f32.mrb[0].mxu0
  %v3768 = vpop.f32.mrb[0].mxu0
  %v3769 = vadd.f32 %v3480, %v3768
  %v3770 = vpop.f32.mrb[0].mxu0
  %3771 = vmatprep.mubr.bf16.mxu0 0
  %3772 = vmatmul.mubr.bf16.gmra.mrb[0].mxu0 %v1608
  %v3773 = vpop.f32.mrb[0].mxu0
  %v3774 = vadd.f32 %v3485, %v3773
  %v3775 = vpop.f32.mrb[0].mxu0
  %v3776 = vpop.f32.mrb[0].mxu0
  %v3777 = vadd.f32 %v3488, %v3776
  %v3778 = vpop.f32.mrb[0].mxu0
  %3779 = vmatprep.mubr.bf16.mxu0 0
  %3780 = vmatmul.mubr.bf16.gmra.mrb[0].mxu0 %v1617
  %v3781 = vpop.f32.mrb[0].mxu0
  %v3782 = vadd.f32 %v3493, %v3781
  %v3783 = vpop.f32.mrb[0].mxu0
  %v3784 = vpop.f32.mrb[0].mxu0
  %v3785 = vadd.f32 %v3496, %v3784
  %v3786 = vpop.f32.mrb[0].mxu0
  %3787 = vmatprep.mubr.bf16.mxu0 0
  %3788 = vmatmul.mubr.bf16.gmra.mrb[0].mxu0 %v1626
  %v3789 = vpop.f32.mrb[0].mxu0
  %v3790 = vadd.f32 %v3501, %v3789
  %v3791 = vpop.f32.mrb[0].mxu0
  %v3792 = vpop.f32.mrb[0].mxu0
  %v3793 = vadd.f32 %v3504, %v3792
  %v3794 = vpop.f32.mrb[0].mxu0
  %3795 = vmatprep.mubr.bf16.mxu0 0
  %3796 = vmatmul.mubr.bf16.gmra.mrb[0].mxu0 %v1635
  %v3797 = vpop.f32.mrb[0].mxu0
  %v3798 = vadd.f32 %v3509, %v3797
  %v3799 = vpop.f32.mrb[0].mxu0
  %v3800 = vpop.f32.mrb[0].mxu0
  %v3801 = vadd.f32 %v3512, %v3800
  %v3802 = vpop.f32.mrb[0].mxu0
  %3803 = vmatprep.mubr.bf16.mxu0 0
  %3804 = vmatmul.mubr.bf16.gmra.mrb[0].mxu0 %v1644
  %v3805 = vpop.f32.mrb[0].mxu0
  %v3806 = vadd.f32 %v3517, %v3805
  %v3807 = vpop.f32.mrb[0].mxu0
  %v3808 = vpop.f32.mrb[0].mxu0
  %v3809 = vadd.f32 %v3520, %v3808
  %v3810 = vpop.f32.mrb[0].mxu0
  %3811 = vmatprep.mubr.bf16.mxu0 0
  %3812 = vmatmul.mubr.bf16.gmra.mrb[0].mxu0 %v1653
  %v3813 = vpop.f32.mrb[0].mxu0
  %v3814 = vadd.f32 %v3525, %v3813
  %v3815 = vpop.f32.mrb[0].mxu0
  %v3816 = vpop.f32.mrb[0].mxu0
  %v3817 = vadd.f32 %v3528, %v3816
  %v3818 = vpop.f32.mrb[0].mxu0
  %3819 = vmatprep.mubr.bf16.mxu0 0
  %3820 = vmatmul.mubr.bf16.gmra.mrb[0].mxu0 %v1662
  %v3821 = vpop.f32.mrb[0].mxu0
  %v3822 = vadd.f32 %v3533, %v3821
  %v3823 = vpop.f32.mrb[0].mxu0
  %v3824 = vpop.f32.mrb[0].mxu0
  %v3825 = vadd.f32 %v3536, %v3824
  %v3826 = vpop.f32.mrb[0].mxu0
  %3827 = vdwg.mxu0
  %v3828 = vmax.f32 %v3574, %v3638
  %v3829 = vmax.f32 %v3577, %v3641
  %v3830 = vmax.f32 %v3582, %v3646
  %v3831 = vmax.f32 %v3585, %v3649
  %v3832 = vmax.f32 %v3590, %v3654
  %v3833 = vmax.f32 %v3593, %v3657
  %v3834 = vmax.f32 %v3598, %v3662
  %v3835 = vmax.f32 %v3601, %v3665
  %v3836 = vmax.f32 %v3606, %v3670
  %v3837 = vmax.f32 %v3609, %v3673
  %v3838 = vmax.f32 %v3614, %v3678
  %v3839 = vmax.f32 %v3617, %v3681
  %v3840 = vmax.f32 %v3622, %v3686
  %v3841 = vmax.f32 %v3625, %v3689
  %v3842 = vmax.f32 %v3630, %v3694
  %v3843 = vmax.f32 %v3633, %v3697
  %v3844 = vmax.f32 %v3702, %v3766
  %v3845 = vmax.f32 %v3705, %v3769
  %v3846 = vmax.f32 %v3710, %v3774
  %v3847 = vmax.f32 %v3713, %v3777
  %v3848 = vmax.f32 %v3718, %v3782
  %v3849 = vmax.f32 %v3721, %v3785
  %v3850 = vmax.f32 %v3726, %v3790
  %v3851 = vmax.f32 %v3729, %v3793
  %v3852 = vmax.f32 %v3734, %v3798
  %v3853 = vmax.f32 %v3737, %v3801
  %v3854 = vmax.f32 %v3742, %v3806
  %v3855 = vmax.f32 %v3745, %v3809
  %v3856 = vmax.f32 %v3750, %v3814
  %v3857 = vmax.f32 %v3753, %v3817
  %v3858 = vmax.f32 %v3758, %v3822
  %v3859 = vmax.f32 %v3761, %v3825
  %v3860 = vmax.f32 %v3828, %v3844
  %v3861 = vmax.f32 %v3829, %v3845
  %v3862 = vmax.f32 %v3830, %v3846
  %v3863 = vmax.f32 %v3831, %v3847
  %v3864 = vmax.f32 %v3832, %v3848
  %v3865 = vmax.f32 %v3833, %v3849
  %v3866 = vmax.f32 %v3834, %v3850
  %v3867 = vmax.f32 %v3835, %v3851
  %v3868 = vmax.f32 %v3836, %v3852
  %v3869 = vmax.f32 %v3837, %v3853
  %v3870 = vmax.f32 %v3838, %v3854
  %v3871 = vmax.f32 %v3839, %v3855
  %v3872 = vmax.f32 %v3840, %v3856
  %v3873 = vmax.f32 %v3841, %v3857
  %v3874 = vmax.f32 %v3842, %v3858
  %v3875 = vmax.f32 %v3843, %v3859
  %v3876 = vld [vmem:[%s2] sm:$0x1]
  %v3878 = vlaneseq
  %v3879 = vshrl.u32 %v3878, 7
  %v3880 = vsub.s32 0, %v3879
  %v3881 = vrot.slane %v3876, %v3880
  %v3883 = vadd.f32 %v3860, %v3881
  %v3884 = vadd.f32 %v3861, %v3881
  %v3885 = vadd.f32 %v3862, %v3881
  %v3886 = vadd.f32 %v3863, %v3881
  %v3887 = vadd.f32 %v3864, %v3881
  %v3888 = vadd.f32 %v3865, %v3881
  %v3889 = vadd.f32 %v3866, %v3881
  %v3890 = vadd.f32 %v3867, %v3881
  %v3891 = vadd.f32 %v3868, %v3881
  %v3892 = vadd.f32 %v3869, %v3881
  %v3893 = vadd.f32 %v3870, %v3881
  %v3894 = vadd.f32 %v3871, %v3881
  %v3895 = vadd.f32 %v3872, %v3881
  %v3896 = vadd.f32 %v3873, %v3881
  %v3897 = vadd.f32 %v3874, %v3881
  %v3898 = vadd.f32 %v3875, %v3881
  %v3899 = vmax.f32 %v3883, 0.0
  %v3900 = vmax.f32 %v3884, 0.0
  %v3901 = vmax.f32 %v3885, 0.0
  %v3902 = vmax.f32 %v3886, 0.0
  %v3903 = vmax.f32 %v3887, 0.0
  %v3904 = vmax.f32 %v3888, 0.0
  %v3905 = vmax.f32 %v3889, 0.0
  %v3906 = vmax.f32 %v3890, 0.0
  %v3907 = vmax.f32 %v3891, 0.0
  %v3908 = vmax.f32 %v3892, 0.0
  %v3909 = vmax.f32 %v3893, 0.0
  %v3910 = vmax.f32 %v3894, 0.0
  %v3911 = vmax.f32 %v3895, 0.0
  %v3912 = vmax.f32 %v3896, 0.0
  %v3913 = vmax.f32 %v3897, 0.0
  %v3914 = vmax.f32 %v3898, 0.0
  %v3915 = vpack.c.bf16 %v3900, %v3899
  %v3916 = vpack.c.bf16 %v3902, %v3901
  %v3917 = vpack.c.bf16 %v3904, %v3903
  %v3918 = vpack.c.bf16 %v3906, %v3905
  %v3919 = vpack.c.bf16 %v3908, %v3907
  %v3920 = vpack.c.bf16 %v3910, %v3909
  %v3921 = vpack.c.bf16 %v3912, %v3911
  %v3922 = vpack.c.bf16 %v3914, %v3913
  %v3931 = vunpack.c.l.b16 %v3915
  %v3932 = vunpack.c.h.b16 %v3915
  %v3933 = vunpack.c.l.b16 %v3916
  %v3934 = vunpack.c.h.b16 %v3916
  %v3935 = vunpack.c.l.b16 %v3917
  %v3936 = vunpack.c.h.b16 %v3917
  %v3937 = vunpack.c.l.b16 %v3918
  %v3938 = vunpack.c.h.b16 %v3918
  %v3939 = vunpack.c.l.b16 %v3919
  %v3940 = vunpack.c.h.b16 %v3919
  %v3941 = vunpack.c.l.b16 %v3920
  %v3942 = vunpack.c.h.b16 %v3920
  %v3943 = vunpack.c.l.b16 %v3921
  %v3944 = vunpack.c.h.b16 %v3921
  %v3945 = vunpack.c.l.b16 %v3922
  %v3946 = vunpack.c.h.b16 %v3922
  %v3947 = vpack.c.b16 %v3931, %v3931
  %v3948 = vpack.c.b16 %v3932, %v3932
  %v3949 = vpack.c.b16 %v3933, %v3933
  %v3950 = vpack.c.b16 %v3934, %v3934
  %v3951 = vpack.c.b16 %v3935, %v3935
  %v3952 = vpack.c.b16 %v3936, %v3936
  %v3953 = vpack.c.b16 %v3937, %v3937
  %v3954 = vpack.c.b16 %v3938, %v3938
  %v3955 = vpack.c.b16 %v3939, %v3939
  %v3956 = vpack.c.b16 %v3940, %v3940
  %v3957 = vpack.c.b16 %v3941, %v3941
  %v3958 = vpack.c.b16 %v3942, %v3942
  %v3959 = vpack.c.b16 %v3943, %v3943
  %v3960 = vpack.c.b16 %v3944, %v3944
  %v3961 = vpack.c.b16 %v3945, %v3945
  %v3962 = vpack.c.b16 %v3946, %v3946
  %3979 = vst [vmem:[%s3] sm:$0xf] %v3947
  %3980 = vst [vmem:[%s3 + $0x4] sm:$0xf] %v3948
  %3981 = vst [vmem:[%s3 + $0x8] sm:$0xf] %v3949
  %3982 = vst [vmem:[%s3 + $0xc] sm:$0xf] %v3950
  %3983 = vst [vmem:[%s3 + $0x10] sm:$0xf] %v3951
  %3984 = vst [vmem:[%s3 + $0x14] sm:$0xf] %v3952
  %3985 = vst [vmem:[%s3 + $0x18] sm:$0xf] %v3953
  %3986 = vst [vmem:[%s3 + $0x1c] sm:$0xf] %v3954
  %3987 = vst [vmem:[%s3 + $0x20] sm:$0xf] %v3955
  %3988 = vst [vmem:[%s3 + $0x24] sm:$0xf] %v3956
  %3989 = vst [vmem:[%s3 + $0x28] sm:$0xf] %v3957
  %3990 = vst [vmem:[%s3 + $0x2c] sm:$0xf] %v3958
  %3991 = vst [vmem:[%s3 + $0x30] sm:$0xf] %v3959
  %3992 = vst [vmem:[%s3 + $0x34] sm:$0xf] %v3960
  %3993 = vst [vmem:[%s3 + $0x38] sm:$0xf] %v3961
  %3994 = vst [vmem:[%s3 + $0x3c] sm:$0xf] %v3962
  // Predicated region
  $region14: #{alexnet_forward.5} parent=0 // pred_check
    _
  $region15: #{alexnet_forward.5} parent=0 // pred_check_branch
    %3996 = sbr.rel (0) target = $region17
  $region16: #{alexnet_forward.5} parent=0 // pred_region
    _
  $region17: #{alexnet_forward.5} parent=0 // pred_fallthru
    _
  // Predicated region
  $region18: #{alexnet_forward.5} parent=0 // pred_check
    _
  $region19: #{alexnet_forward.5} parent=0 // pred_check_branch
    %3998 = sbr.rel (0) target = $region21
  $region20: #{alexnet_forward.5} parent=0 // pred_region
    _
  $region21: #{alexnet_forward.5} parent=0 // pred_fallthru
    _

// kernel: alexnet_forward.6
$region0: #{alexnet_forward.6}
  #allocation0 [shape = 'u32[]', space=smem, size = 0x4, offset = 0x4, fixed_abs, tag = 'smem constant byte address 0x4 - core index']
  #allocation1 [shape = 'u32[144,128]{1,0:T(1,128)}', space=vmem, size = 0x12000, scoped, tag = 'internal scratch']
  %s0 = inlined_call_operand.vmem [shape: bf16[4,32,1152], index: 0, kind: input, shape index: {}]
  %s1 = inlined_call_operand.vmem [shape: bf16[1152,128], index: 1, kind: input, shape index: {}]
  %s2 = inlined_call_operand.vmem [shape: f32[1,128], index: 2, kind: input, shape index: {}]
  %s3 = inlined_call_operand.vmem [shape: bf16[32,128], index: 3, kind: output, shape index: {}]
  %s4 = sld [smem:[#allocation0]]
  $region22: #{alexnet_forward.6} parent=0
    _
  %s6 = ssub.s32 1, %s4
  %s7 = scalar_select 0, %s6, %s4
  // Predicated region
  $region2: #{alexnet_forward.6} parent=0 // pred_check
    _
  $region3: #{alexnet_forward.6} parent=0 // pred_check_branch
    %9 = sbr.rel (0) target = $region5
  $region4: #{alexnet_forward.6} parent=0 // pred_region
    _
  $region5: #{alexnet_forward.6} parent=0 // pred_fallthru
    _
  // Predicated region
  $region6: #{alexnet_forward.6} parent=0 // pred_check
    _
  $region7: #{alexnet_forward.6} parent=0 // pred_check_branch
    %11 = sbr.rel (0) target = $region9
  $region8: #{alexnet_forward.6} parent=0 // pred_region
    _
  $region9: #{alexnet_forward.6} parent=0 // pred_fallthru
    _
  // Predicated region
  $region10: #{alexnet_forward.6} parent=0 // pred_check
    _
  $region11: #{alexnet_forward.6} parent=0 // pred_check_branch
    %13 = sbr.rel (0) target = $region13
  $region12: #{alexnet_forward.6} parent=0 // pred_region
    _
  $region13: #{alexnet_forward.6} parent=0 // pred_fallthru
    _
  %v15 = vld [vmem:[%s0] sm:$0xff]
  %v16 = vld [vmem:[%s0 + $0x8] sm:$0xff]
  %v17 = vld [vmem:[%s0 + $0x10] sm:$0xff]
  %v18 = vld [vmem:[%s0 + $0x18] sm:$0xff]
  %v19 = vld [vmem:[%s0 + $0x20] sm:$0xf]
  %v20 = vld [vmem:[%s0 + $0x24] sm:$0xff]
  %v21 = vld [vmem:[%s0 + $0x2c] sm:$0xff]
  %v22 = vld [vmem:[%s0 + $0x34] sm:$0xff]
  %v23 = vld [vmem:[%s0 + $0x3c] sm:$0xff]
  %v24 = vld [vmem:[%s0 + $0x44] sm:$0xf]
  %v25 = vld [vmem:[%s0 + $0x48] sm:$0xff]
  %v26 = vld [vmem:[%s0 + $0x50] sm:$0xff]
  %v27 = vld [vmem:[%s0 + $0x58] sm:$0xff]
  %v28 = vld [vmem:[%s0 + $0x60] sm:$0xff]
  %v29 = vld [vmem:[%s0 + $0x68] sm:$0xf]
  %v30 = vld [vmem:[%s0 + $0x6c] sm:$0xff]
  %v31 = vld [vmem:[%s0 + $0x74] sm:$0xff]
  %v32 = vld [vmem:[%s0 + $0x7c] sm:$0xff]
  %v33 = vld [vmem:[%s0 + $0x84] sm:$0xff]
  %v34 = vld [vmem:[%s0 + $0x8c] sm:$0xf]
  %v35 = vld [vmem:[%s0 + $0x90] sm:$0xff]
  %v36 = vld [vmem:[%s0 + $0x98] sm:$0xff]
  %v37 = vld [vmem:[%s0 + $0xa0] sm:$0xff]
  %v38 = vld [vmem:[%s0 + $0xa8] sm:$0xff]
  %v39 = vld [vmem:[%s0 + $0xb0] sm:$0xf]
  %v40 = vld [vmem:[%s0 + $0xb4] sm:$0xff]
  %v41 = vld [vmem:[%s0 + $0xbc] sm:$0xff]
  %v42 = vld [vmem:[%s0 + $0xc4] sm:$0xff]
  %v43 = vld [vmem:[%s0 + $0xcc] sm:$0xff]
  %v44 = vld [vmem:[%s0 + $0xd4] sm:$0xf]
  %v45 = vld [vmem:[%s0 + $0xd8] sm:$0xff]
  %v46 = vld [vmem:[%s0 + $0xe0] sm:$0xff]
  %v47 = vld [vmem:[%s0 + $0xe8] sm:$0xff]
  %v48 = vld [vmem:[%s0 + $0xf0] sm:$0xff]
  %v49 = vld [vmem:[%s0 + $0xf8] sm:$0xf]
  %v50 = vld [vmem:[%s0 + $0xfc] sm:$0xff]
  %v51 = vld [vmem:[%s0 + $0x104] sm:$0xff]
  %v52 = vld [vmem:[%s0 + $0x10c] sm:$0xff]
  %v53 = vld [vmem:[%s0 + $0x114] sm:$0xff]
  %v54 = vld [vmem:[%s0 + $0x11c] sm:$0xf]
  %v55 = vld [vmem:[%s0 + $0x120] sm:$0xff]
  %v56 = vld [vmem:[%s0 + $0x128] sm:$0xff]
  %v57 = vld [vmem:[%s0 + $0x130] sm:$0xff]
  %v58 = vld [vmem:[%s0 + $0x138] sm:$0xff]
  %v59 = vld [vmem:[%s0 + $0x140] sm:$0xf]
  %v60 = vld [vmem:[%s0 + $0x144] sm:$0xff]
  %v61 = vld [vmem:[%s0 + $0x14c] sm:$0xff]
  %v62 = vld [vmem:[%s0 + $0x154] sm:$0xff]
  %v63 = vld [vmem:[%s0 + $0x15c] sm:$0xff]
  %v64 = vld [vmem:[%s0 + $0x164] sm:$0xf]
  %v65 = vld [vmem:[%s0 + $0x168] sm:$0xff]
  %v66 = vld [vmem:[%s0 + $0x170] sm:$0xff]
  %v67 = vld [vmem:[%s0 + $0x178] sm:$0xff]
  %v68 = vld [vmem:[%s0 + $0x180] sm:$0xff]
  %v69 = vld [vmem:[%s0 + $0x188] sm:$0xf]
  %v70 = vld [vmem:[%s0 + $0x18c] sm:$0xff]
  %v71 = vld [vmem:[%s0 + $0x194] sm:$0xff]
  %v72 = vld [vmem:[%s0 + $0x19c] sm:$0xff]
  %v73 = vld [vmem:[%s0 + $0x1a4] sm:$0xff]
  %v74 = vld [vmem:[%s0 + $0x1ac] sm:$0xf]
  %v75 = vld [vmem:[%s0 + $0x1b0] sm:$0xff]
  %v76 = vld [vmem:[%s0 + $0x1b8] sm:$0xff]
  %v77 = vld [vmem:[%s0 + $0x1c0] sm:$0xff]
  %v78 = vld [vmem:[%s0 + $0x1c8] sm:$0xff]
  %v79 = vld [vmem:[%s0 + $0x1d0] sm:$0xf]
  %v80 = vld [vmem:[%s0 + $0x1d4] sm:$0xff]
  %v81 = vld [vmem:[%s0 + $0x1dc] sm:$0xff]
  %v82 = vld [vmem:[%s0 + $0x1e4] sm:$0xff]
  %v83 = vld [vmem:[%s0 + $0x1ec] sm:$0xff]
  %v84 = vld [vmem:[%s0 + $0x1f4] sm:$0xf]
  %v85 = vld [vmem:[%s0 + $0x1f8] sm:$0xff]
  %v86 = vld [vmem:[%s0 + $0x200] sm:$0xff]
  %v87 = vld [vmem:[%s0 + $0x208] sm:$0xff]
  %v88 = vld [vmem:[%s0 + $0x210] sm:$0xff]
  %v89 = vld [vmem:[%s0 + $0x218] sm:$0xf]
  %v90 = vld [vmem:[%s0 + $0x21c] sm:$0xff]
  %v91 = vld [vmem:[%s0 + $0x224] sm:$0xff]
  %v92 = vld [vmem:[%s0 + $0x22c] sm:$0xff]
  %v93 = vld [vmem:[%s0 + $0x234] sm:$0xff]
  %v94 = vld [vmem:[%s0 + $0x23c] sm:$0xf]
  %v95 = vld [vmem:[%s1] sm:$0xf]
  %v96 = vld [vmem:[%s1 + $0x4] sm:$0xf]
  %v97 = vld [vmem:[%s1 + $0x8] sm:$0xf]
  %v98 = vld [vmem:[%s1 + $0xc] sm:$0xf]
  %v99 = vld [vmem:[%s1 + $0x10] sm:$0xf]
  %v100 = vld [vmem:[%s1 + $0x14] sm:$0xf]
  %v101 = vld [vmem:[%s1 + $0x18] sm:$0xf]
  %v102 = vld [vmem:[%s1 + $0x1c] sm:$0xf]
  %v103 = vld [vmem:[%s1 + $0x20] sm:$0xf]
  %v104 = vld [vmem:[%s1 + $0x24] sm:$0xf]
  %v105 = vld [vmem:[%s1 + $0x28] sm:$0xf]
  %v106 = vld [vmem:[%s1 + $0x2c] sm:$0xf]
  %v107 = vld [vmem:[%s1 + $0x30] sm:$0xf]
  %v108 = vld [vmem:[%s1 + $0x34] sm:$0xf]
  %v109 = vld [vmem:[%s1 + $0x38] sm:$0xf]
  %v110 = vld [vmem:[%s1 + $0x3c] sm:$0xf]
  %v111 = vld [vmem:[%s1 + $0x40] sm:$0xf]
  %v112 = vld [vmem:[%s1 + $0x44] sm:$0xf]
  %v113 = vld [vmem:[%s1 + $0x48] sm:$0xf]
  %v114 = vld [vmem:[%s1 + $0x4c] sm:$0xf]
  %v115 = vld [vmem:[%s1 + $0x50] sm:$0xf]
  %v116 = vld [vmem:[%s1 + $0x54] sm:$0xf]
  %v117 = vld [vmem:[%s1 + $0x58] sm:$0xf]
  %v118 = vld [vmem:[%s1 + $0x5c] sm:$0xf]
  %v119 = vld [vmem:[%s1 + $0x60] sm:$0xf]
  %v120 = vld [vmem:[%s1 + $0x64] sm:$0xf]
  %v121 = vld [vmem:[%s1 + $0x68] sm:$0xf]
  %v122 = vld [vmem:[%s1 + $0x6c] sm:$0xf]
  %v123 = vld [vmem:[%s1 + $0x70] sm:$0xf]
  %v124 = vld [vmem:[%s1 + $0x74] sm:$0xf]
  %v125 = vld [vmem:[%s1 + $0x78] sm:$0xf]
  %v126 = vld [vmem:[%s1 + $0x7c] sm:$0xf]
  %v127 = vld [vmem:[%s1 + $0x80] sm:$0xf]
  %v128 = vld [vmem:[%s1 + $0x84] sm:$0xf]
  %v129 = vld [vmem:[%s1 + $0x88] sm:$0xf]
  %v130 = vld [vmem:[%s1 + $0x8c] sm:$0xf]
  %v131 = vld [vmem:[%s1 + $0x90] sm:$0xf]
  %v132 = vld [vmem:[%s1 + $0x94] sm:$0xf]
  %v133 = vld [vmem:[%s1 + $0x98] sm:$0xf]
  %v134 = vld [vmem:[%s1 + $0x9c] sm:$0xf]
  %v135 = vld [vmem:[%s1 + $0xa0] sm:$0xf]
  %v136 = vld [vmem:[%s1 + $0xa4] sm:$0xf]
  %v137 = vld [vmem:[%s1 + $0xa8] sm:$0xf]
  %v138 = vld [vmem:[%s1 + $0xac] sm:$0xf]
  %v139 = vld [vmem:[%s1 + $0xb0] sm:$0xf]
  %v140 = vld [vmem:[%s1 + $0xb4] sm:$0xf]
  %v141 = vld [vmem:[%s1 + $0xb8] sm:$0xf]
  %v142 = vld [vmem:[%s1 + $0xbc] sm:$0xf]
  %v143 = vld [vmem:[%s1 + $0xc0] sm:$0xf]
  %v144 = vld [vmem:[%s1 + $0xc4] sm:$0xf]
  %v145 = vld [vmem:[%s1 + $0xc8] sm:$0xf]
  %v146 = vld [vmem:[%s1 + $0xcc] sm:$0xf]
  %v147 = vld [vmem:[%s1 + $0xd0] sm:$0xf]
  %v148 = vld [vmem:[%s1 + $0xd4] sm:$0xf]
  %v149 = vld [vmem:[%s1 + $0xd8] sm:$0xf]
  %v150 = vld [vmem:[%s1 + $0xdc] sm:$0xf]
  %v151 = vld [vmem:[%s1 + $0xe0] sm:$0xf]
  %v152 = vld [vmem:[%s1 + $0xe4] sm:$0xf]
  %v153 = vld [vmem:[%s1 + $0xe8] sm:$0xf]
  %v154 = vld [vmem:[%s1 + $0xec] sm:$0xf]
  %v155 = vld [vmem:[%s1 + $0xf0] sm:$0xf]
  %v156 = vld [vmem:[%s1 + $0xf4] sm:$0xf]
  %v157 = vld [vmem:[%s1 + $0xf8] sm:$0xf]
  %v158 = vld [vmem:[%s1 + $0xfc] sm:$0xf]
  %v159 = vld [vmem:[%s1 + $0x100] sm:$0xf]
  %v160 = vld [vmem:[%s1 + $0x104] sm:$0xf]
  %v161 = vld [vmem:[%s1 + $0x108] sm:$0xf]
  %v162 = vld [vmem:[%s1 + $0x10c] sm:$0xf]
  %v163 = vld [vmem:[%s1 + $0x110] sm:$0xf]
  %v164 = vld [vmem:[%s1 + $0x114] sm:$0xf]
  %v165 = vld [vmem:[%s1 + $0x118] sm:$0xf]
  %v166 = vld [vmem:[%s1 + $0x11c] sm:$0xf]
  %v167 = vld [vmem:[%s1 + $0x120] sm:$0xf]
  %v168 = vld [vmem:[%s1 + $0x124] sm:$0xf]
  %v169 = vld [vmem:[%s1 + $0x128] sm:$0xf]
  %v170 = vld [vmem:[%s1 + $0x12c] sm:$0xf]
  %v171 = vld [vmem:[%s1 + $0x130] sm:$0xf]
  %v172 = vld [vmem:[%s1 + $0x134] sm:$0xf]
  %v173 = vld [vmem:[%s1 + $0x138] sm:$0xf]
  %v174 = vld [vmem:[%s1 + $0x13c] sm:$0xf]
  %v175 = vld [vmem:[%s1 + $0x140] sm:$0xf]
  %v176 = vld [vmem:[%s1 + $0x144] sm:$0xf]
  %v177 = vld [vmem:[%s1 + $0x148] sm:$0xf]
  %v178 = vld [vmem:[%s1 + $0x14c] sm:$0xf]
  %v179 = vld [vmem:[%s1 + $0x150] sm:$0xf]
  %v180 = vld [vmem:[%s1 + $0x154] sm:$0xf]
  %v181 = vld [vmem:[%s1 + $0x158] sm:$0xf]
  %v182 = vld [vmem:[%s1 + $0x15c] sm:$0xf]
  %v183 = vld [vmem:[%s1 + $0x160] sm:$0xf]
  %v184 = vld [vmem:[%s1 + $0x164] sm:$0xf]
  %v185 = vld [vmem:[%s1 + $0x168] sm:$0xf]
  %v186 = vld [vmem:[%s1 + $0x16c] sm:$0xf]
  %v187 = vld [vmem:[%s1 + $0x170] sm:$0xf]
  %v188 = vld [vmem:[%s1 + $0x174] sm:$0xf]
  %v189 = vld [vmem:[%s1 + $0x178] sm:$0xf]
  %v190 = vld [vmem:[%s1 + $0x17c] sm:$0xf]
  %v191 = vld [vmem:[%s1 + $0x180] sm:$0xf]
  %v192 = vld [vmem:[%s1 + $0x184] sm:$0xf]
  %v193 = vld [vmem:[%s1 + $0x188] sm:$0xf]
  %v194 = vld [vmem:[%s1 + $0x18c] sm:$0xf]
  %v195 = vld [vmem:[%s1 + $0x190] sm:$0xf]
  %v196 = vld [vmem:[%s1 + $0x194] sm:$0xf]
  %v197 = vld [vmem:[%s1 + $0x198] sm:$0xf]
  %v198 = vld [vmem:[%s1 + $0x19c] sm:$0xf]
  %v199 = vld [vmem:[%s1 + $0x1a0] sm:$0xf]
  %v200 = vld [vmem:[%s1 + $0x1a4] sm:$0xf]
  %v201 = vld [vmem:[%s1 + $0x1a8] sm:$0xf]
  %v202 = vld [vmem:[%s1 + $0x1ac] sm:$0xf]
  %v203 = vld [vmem:[%s1 + $0x1b0] sm:$0xf]
  %v204 = vld [vmem:[%s1 + $0x1b4] sm:$0xf]
  %v205 = vld [vmem:[%s1 + $0x1b8] sm:$0xf]
  %v206 = vld [vmem:[%s1 + $0x1bc] sm:$0xf]
  %v207 = vld [vmem:[%s1 + $0x1c0] sm:$0xf]
  %v208 = vld [vmem:[%s1 + $0x1c4] sm:$0xf]
  %v209 = vld [vmem:[%s1 + $0x1c8] sm:$0xf]
  %v210 = vld [vmem:[%s1 + $0x1cc] sm:$0xf]
  %v211 = vld [vmem:[%s1 + $0x1d0] sm:$0xf]
  %v212 = vld [vmem:[%s1 + $0x1d4] sm:$0xf]
  %v213 = vld [vmem:[%s1 + $0x1d8] sm:$0xf]
  %v214 = vld [vmem:[%s1 + $0x1dc] sm:$0xf]
  %v215 = vld [vmem:[%s1 + $0x1e0] sm:$0xf]
  %v216 = vld [vmem:[%s1 + $0x1e4] sm:$0xf]
  %v217 = vld [vmem:[%s1 + $0x1e8] sm:$0xf]
  %v218 = vld [vmem:[%s1 + $0x1ec] sm:$0xf]
  %v219 = vld [vmem:[%s1 + $0x1f0] sm:$0xf]
  %v220 = vld [vmem:[%s1 + $0x1f4] sm:$0xf]
  %v221 = vld [vmem:[%s1 + $0x1f8] sm:$0xf]
  %v222 = vld [vmem:[%s1 + $0x1fc] sm:$0xf]
  %v223 = vld [vmem:[%s1 + $0x200] sm:$0xf]
  %v224 = vld [vmem:[%s1 + $0x204] sm:$0xf]
  %v225 = vld [vmem:[%s1 + $0x208] sm:$0xf]
  %v226 = vld [vmem:[%s1 + $0x20c] sm:$0xf]
  %v227 = vld [vmem:[%s1 + $0x210] sm:$0xf]
  %v228 = vld [vmem:[%s1 + $0x214] sm:$0xf]
  %v229 = vld [vmem:[%s1 + $0x218] sm:$0xf]
  %v230 = vld [vmem:[%s1 + $0x21c] sm:$0xf]
  %v231 = vld [vmem:[%s1 + $0x220] sm:$0xf]
  %v232 = vld [vmem:[%s1 + $0x224] sm:$0xf]
  %v233 = vld [vmem:[%s1 + $0x228] sm:$0xf]
  %v234 = vld [vmem:[%s1 + $0x22c] sm:$0xf]
  %v235 = vld [vmem:[%s1 + $0x230] sm:$0xf]
  %v236 = vld [vmem:[%s1 + $0x234] sm:$0xf]
  %v237 = vld [vmem:[%s1 + $0x238] sm:$0xf]
  %v238 = vld [vmem:[%s1 + $0x23c] sm:$0xf]
  %v319 = vunpack.c.l.b16 %v15
  %v320 = vunpack.c.h.b16 %v15
  %v321 = vunpack.c.l.b16 %v16
  %v322 = vunpack.c.h.b16 %v16
  %v323 = vunpack.c.l.b16 %v17
  %v324 = vunpack.c.h.b16 %v17
  %v325 = vunpack.c.l.b16 %v18
  %v326 = vunpack.c.h.b16 %v18
  %v327 = vunpack.c.l.b16 %v19
  %v328 = vunpack.c.l.b16 %v20
  %v329 = vunpack.c.h.b16 %v20
  %v330 = vunpack.c.l.b16 %v21
  %v331 = vunpack.c.h.b16 %v21
  %v332 = vunpack.c.l.b16 %v22
  %v333 = vunpack.c.h.b16 %v22
  %v334 = vunpack.c.l.b16 %v23
  %v335 = vunpack.c.h.b16 %v23
  %v336 = vunpack.c.l.b16 %v24
  %v337 = vunpack.c.l.b16 %v25
  %v338 = vunpack.c.h.b16 %v25
  %v339 = vunpack.c.l.b16 %v26
  %v340 = vunpack.c.h.b16 %v26
  %v341 = vunpack.c.l.b16 %v27
  %v342 = vunpack.c.h.b16 %v27
  %v343 = vunpack.c.l.b16 %v28
  %v344 = vunpack.c.h.b16 %v28
  %v345 = vunpack.c.l.b16 %v29
  %v346 = vunpack.c.l.b16 %v30
  %v347 = vunpack.c.h.b16 %v30
  %v348 = vunpack.c.l.b16 %v31
  %v349 = vunpack.c.h.b16 %v31
  %v350 = vunpack.c.l.b16 %v32
  %v351 = vunpack.c.h.b16 %v32
  %v352 = vunpack.c.l.b16 %v33
  %v353 = vunpack.c.h.b16 %v33
  %v354 = vunpack.c.l.b16 %v34
  %v355 = vunpack.c.l.b16 %v35
  %v356 = vunpack.c.h.b16 %v35
  %v357 = vunpack.c.l.b16 %v36
  %v358 = vunpack.c.h.b16 %v36
  %v359 = vunpack.c.l.b16 %v37
  %v360 = vunpack.c.h.b16 %v37
  %v361 = vunpack.c.l.b16 %v38
  %v362 = vunpack.c.h.b16 %v38
  %v363 = vunpack.c.l.b16 %v39
  %v364 = vunpack.c.l.b16 %v40
  %v365 = vunpack.c.h.b16 %v40
  %v366 = vunpack.c.l.b16 %v41
  %v367 = vunpack.c.h.b16 %v41
  %v368 = vunpack.c.l.b16 %v42
  %v369 = vunpack.c.h.b16 %v42
  %v370 = vunpack.c.l.b16 %v43
  %v371 = vunpack.c.h.b16 %v43
  %v372 = vunpack.c.l.b16 %v44
  %v373 = vunpack.c.l.b16 %v45
  %v374 = vunpack.c.h.b16 %v45
  %v375 = vunpack.c.l.b16 %v46
  %v376 = vunpack.c.h.b16 %v46
  %v377 = vunpack.c.l.b16 %v47
  %v378 = vunpack.c.h.b16 %v47
  %v379 = vunpack.c.l.b16 %v48
  %v380 = vunpack.c.h.b16 %v48
  %v381 = vunpack.c.l.b16 %v49
  %v382 = vunpack.c.l.b16 %v50
  %v383 = vunpack.c.h.b16 %v50
  %v384 = vunpack.c.l.b16 %v51
  %v385 = vunpack.c.h.b16 %v51
  %v386 = vunpack.c.l.b16 %v52
  %v387 = vunpack.c.h.b16 %v52
  %v388 = vunpack.c.l.b16 %v53
  %v389 = vunpack.c.h.b16 %v53
  %v390 = vunpack.c.l.b16 %v54
  %v391 = vunpack.c.l.b16 %v55
  %v392 = vunpack.c.h.b16 %v55
  %v393 = vunpack.c.l.b16 %v56
  %v394 = vunpack.c.h.b16 %v56
  %v395 = vunpack.c.l.b16 %v57
  %v396 = vunpack.c.h.b16 %v57
  %v397 = vunpack.c.l.b16 %v58
  %v398 = vunpack.c.h.b16 %v58
  %v399 = vunpack.c.l.b16 %v59
  %v400 = vunpack.c.l.b16 %v60
  %v401 = vunpack.c.h.b16 %v60
  %v402 = vunpack.c.l.b16 %v61
  %v403 = vunpack.c.h.b16 %v61
  %v404 = vunpack.c.l.b16 %v62
  %v405 = vunpack.c.h.b16 %v62
  %v406 = vunpack.c.l.b16 %v63
  %v407 = vunpack.c.h.b16 %v63
  %v408 = vunpack.c.l.b16 %v64
  %v409 = vunpack.c.l.b16 %v65
  %v410 = vunpack.c.h.b16 %v65
  %v411 = vunpack.c.l.b16 %v66
  %v412 = vunpack.c.h.b16 %v66
  %v413 = vunpack.c.l.b16 %v67
  %v414 = vunpack.c.h.b16 %v67
  %v415 = vunpack.c.l.b16 %v68
  %v416 = vunpack.c.h.b16 %v68
  %v417 = vunpack.c.l.b16 %v69
  %v418 = vunpack.c.l.b16 %v70
  %v419 = vunpack.c.h.b16 %v70
  %v420 = vunpack.c.l.b16 %v71
  %v421 = vunpack.c.h.b16 %v71
  %v422 = vunpack.c.l.b16 %v72
  %v423 = vunpack.c.h.b16 %v72
  %v424 = vunpack.c.l.b16 %v73
  %v425 = vunpack.c.h.b16 %v73
  %v426 = vunpack.c.l.b16 %v74
  %v427 = vunpack.c.l.b16 %v75
  %v428 = vunpack.c.h.b16 %v75
  %v429 = vunpack.c.l.b16 %v76
  %v430 = vunpack.c.h.b16 %v76
  %v431 = vunpack.c.l.b16 %v77
  %v432 = vunpack.c.h.b16 %v77
  %v433 = vunpack.c.l.b16 %v78
  %v434 = vunpack.c.h.b16 %v78
  %v435 = vunpack.c.l.b16 %v79
  %v436 = vunpack.c.l.b16 %v80
  %v437 = vunpack.c.h.b16 %v80
  %v438 = vunpack.c.l.b16 %v81
  %v439 = vunpack.c.h.b16 %v81
  %v440 = vunpack.c.l.b16 %v82
  %v441 = vunpack.c.h.b16 %v82
  %v442 = vunpack.c.l.b16 %v83
  %v443 = vunpack.c.h.b16 %v83
  %v444 = vunpack.c.l.b16 %v84
  %v445 = vunpack.c.l.b16 %v85
  %v446 = vunpack.c.h.b16 %v85
  %v447 = vunpack.c.l.b16 %v86
  %v448 = vunpack.c.h.b16 %v86
  %v449 = vunpack.c.l.b16 %v87
  %v450 = vunpack.c.h.b16 %v87
  %v451 = vunpack.c.l.b16 %v88
  %v452 = vunpack.c.h.b16 %v88
  %v453 = vunpack.c.l.b16 %v89
  %v454 = vunpack.c.l.b16 %v90
  %v455 = vunpack.c.h.b16 %v90
  %v456 = vunpack.c.l.b16 %v91
  %v457 = vunpack.c.h.b16 %v91
  %v458 = vunpack.c.l.b16 %v92
  %v459 = vunpack.c.h.b16 %v92
  %v460 = vunpack.c.l.b16 %v93
  %v461 = vunpack.c.h.b16 %v93
  %v462 = vunpack.c.l.b16 %v94
  %v463 = vpack.c.b16 %v328, %v319
  %v464 = vpack.c.b16 %v329, %v320
  %v465 = vpack.c.b16 %v330, %v321
  %v466 = vpack.c.b16 %v331, %v322
  %v467 = vpack.c.b16 %v332, %v323
  %v468 = vpack.c.b16 %v333, %v324
  %v469 = vpack.c.b16 %v334, %v325
  %v470 = vpack.c.b16 %v335, %v326
  %v471 = vpack.c.b16 %v336, %v327
  %v472 = vpack.c.b16 %v346, %v337
  %v473 = vpack.c.b16 %v347, %v338
  %v474 = vpack.c.b16 %v348, %v339
  %v475 = vpack.c.b16 %v349, %v340
  %v476 = vpack.c.b16 %v350, %v341
  %v477 = vpack.c.b16 %v351, %v342
  %v478 = vpack.c.b16 %v352, %v343
  %v479 = vpack.c.b16 %v353, %v344
  %v480 = vpack.c.b16 %v354, %v345
  %v481 = vpack.c.b16 %v364, %v355
  %v482 = vpack.c.b16 %v365, %v356
  %v483 = vpack.c.b16 %v366, %v357
  %v484 = vpack.c.b16 %v367, %v358
  %v485 = vpack.c.b16 %v368, %v359
  %v486 = vpack.c.b16 %v369, %v360
  %v487 = vpack.c.b16 %v370, %v361
  %v488 = vpack.c.b16 %v371, %v362
  %v489 = vpack.c.b16 %v372, %v363
  %v490 = vpack.c.b16 %v382, %v373
  %v491 = vpack.c.b16 %v383, %v374
  %v492 = vpack.c.b16 %v384, %v375
  %v493 = vpack.c.b16 %v385, %v376
  %v494 = vpack.c.b16 %v386, %v377
  %v495 = vpack.c.b16 %v387, %v378
  %v496 = vpack.c.b16 %v388, %v379
  %v497 = vpack.c.b16 %v389, %v380
  %v498 = vpack.c.b16 %v390, %v381
  %v499 = vpack.c.b16 %v400, %v391
  %v500 = vpack.c.b16 %v401, %v392
  %v501 = vpack.c.b16 %v402, %v393
  %v502 = vpack.c.b16 %v403, %v394
  %v503 = vpack.c.b16 %v404, %v395
  %v504 = vpack.c.b16 %v405, %v396
  %v505 = vpack.c.b16 %v406, %v397
  %v506 = vpack.c.b16 %v407, %v398
  %v507 = vpack.c.b16 %v408, %v399
  %v508 = vpack.c.b16 %v418, %v409
  %v509 = vpack.c.b16 %v419, %v410
  %v510 = vpack.c.b16 %v420, %v411
  %v511 = vpack.c.b16 %v421, %v412
  %v512 = vpack.c.b16 %v422, %v413
  %v513 = vpack.c.b16 %v423, %v414
  %v514 = vpack.c.b16 %v424, %v415
  %v515 = vpack.c.b16 %v425, %v416
  %v516 = vpack.c.b16 %v426, %v417
  %v517 = vpack.c.b16 %v436, %v427
  %v518 = vpack.c.b16 %v437, %v428
  %v519 = vpack.c.b16 %v438, %v429
  %v520 = vpack.c.b16 %v439, %v430
  %v521 = vpack.c.b16 %v440, %v431
  %v522 = vpack.c.b16 %v441, %v432
  %v523 = vpack.c.b16 %v442, %v433
  %v524 = vpack.c.b16 %v443, %v434
  %v525 = vpack.c.b16 %v444, %v435
  %v526 = vpack.c.b16 %v454, %v445
  %v527 = vpack.c.b16 %v455, %v446
  %v528 = vpack.c.b16 %v456, %v447
  %v529 = vpack.c.b16 %v457, %v448
  %v530 = vpack.c.b16 %v458, %v449
  %v531 = vpack.c.b16 %v459, %v450
  %v532 = vpack.c.b16 %v460, %v451
  %v533 = vpack.c.b16 %v461, %v452
  %v534 = vpack.c.b16 %v462, %v453
  %v751 = vunpack.c.l.b16 %v95
  %v752 = vunpack.c.l.b16 %v96
  %v753 = vunpack.c.l.b16 %v97
  %v754 = vunpack.c.l.b16 %v98
  %v755 = vunpack.c.l.b16 %v99
  %v756 = vunpack.c.l.b16 %v100
  %v757 = vunpack.c.l.b16 %v101
  %v758 = vunpack.c.l.b16 %v102
  %v759 = vunpack.c.l.b16 %v103
  %v760 = vunpack.c.l.b16 %v104
  %v761 = vunpack.c.l.b16 %v105
  %v762 = vunpack.c.l.b16 %v106
  %v763 = vunpack.c.l.b16 %v107
  %v764 = vunpack.c.l.b16 %v108
  %v765 = vunpack.c.l.b16 %v109
  %v766 = vunpack.c.l.b16 %v110
  %v767 = vunpack.c.l.b16 %v111
  %v768 = vunpack.c.l.b16 %v112
  %v769 = vunpack.c.l.b16 %v113
  %v770 = vunpack.c.l.b16 %v114
  %v771 = vunpack.c.l.b16 %v115
  %v772 = vunpack.c.l.b16 %v116
  %v773 = vunpack.c.l.b16 %v117
  %v774 = vunpack.c.l.b16 %v118
  %v775 = vunpack.c.l.b16 %v119
  %v776 = vunpack.c.l.b16 %v120
  %v777 = vunpack.c.l.b16 %v121
  %v778 = vunpack.c.l.b16 %v122
  %v779 = vunpack.c.l.b16 %v123
  %v780 = vunpack.c.l.b16 %v124
  %v781 = vunpack.c.l.b16 %v125
  %v782 = vunpack.c.l.b16 %v126
  %v783 = vunpack.c.l.b16 %v127
  %v784 = vunpack.c.l.b16 %v128
  %v785 = vunpack.c.l.b16 %v129
  %v786 = vunpack.c.l.b16 %v130
  %v787 = vunpack.c.l.b16 %v131
  %v788 = vunpack.c.l.b16 %v132
  %v789 = vunpack.c.l.b16 %v133
  %v790 = vunpack.c.l.b16 %v134
  %v791 = vunpack.c.l.b16 %v135
  %v792 = vunpack.c.l.b16 %v136
  %v793 = vunpack.c.l.b16 %v137
  %v794 = vunpack.c.l.b16 %v138
  %v795 = vunpack.c.l.b16 %v139
  %v796 = vunpack.c.l.b16 %v140
  %v797 = vunpack.c.l.b16 %v141
  %v798 = vunpack.c.l.b16 %v142
  %v799 = vunpack.c.l.b16 %v143
  %v800 = vunpack.c.l.b16 %v144
  %v801 = vunpack.c.l.b16 %v145
  %v802 = vunpack.c.l.b16 %v146
  %v803 = vunpack.c.l.b16 %v147
  %v804 = vunpack.c.l.b16 %v148
  %v805 = vunpack.c.l.b16 %v149
  %v806 = vunpack.c.l.b16 %v150
  %v807 = vunpack.c.l.b16 %v151
  %v808 = vunpack.c.l.b16 %v152
  %v809 = vunpack.c.l.b16 %v153
  %v810 = vunpack.c.l.b16 %v154
  %v811 = vunpack.c.l.b16 %v155
  %v812 = vunpack.c.l.b16 %v156
  %v813 = vunpack.c.l.b16 %v157
  %v814 = vunpack.c.l.b16 %v158
  %v815 = vunpack.c.l.b16 %v159
  %v816 = vunpack.c.l.b16 %v160
  %v817 = vunpack.c.l.b16 %v161
  %v818 = vunpack.c.l.b16 %v162
  %v819 = vunpack.c.l.b16 %v163
  %v820 = vunpack.c.l.b16 %v164
  %v821 = vunpack.c.l.b16 %v165
  %v822 = vunpack.c.l.b16 %v166
  %v823 = vunpack.c.l.b16 %v167
  %v824 = vunpack.c.l.b16 %v168
  %v825 = vunpack.c.l.b16 %v169
  %v826 = vunpack.c.l.b16 %v170
  %v827 = vunpack.c.l.b16 %v171
  %v828 = vunpack.c.l.b16 %v172
  %v829 = vunpack.c.l.b16 %v173
  %v830 = vunpack.c.l.b16 %v174
  %v831 = vunpack.c.l.b16 %v175
  %v832 = vunpack.c.l.b16 %v176
  %v833 = vunpack.c.l.b16 %v177
  %v834 = vunpack.c.l.b16 %v178
  %v835 = vunpack.c.l.b16 %v179
  %v836 = vunpack.c.l.b16 %v180
  %v837 = vunpack.c.l.b16 %v181
  %v838 = vunpack.c.l.b16 %v182
  %v839 = vunpack.c.l.b16 %v183
  %v840 = vunpack.c.l.b16 %v184
  %v841 = vunpack.c.l.b16 %v185
  %v842 = vunpack.c.l.b16 %v186
  %v843 = vunpack.c.l.b16 %v187
  %v844 = vunpack.c.l.b16 %v188
  %v845 = vunpack.c.l.b16 %v189
  %v846 = vunpack.c.l.b16 %v190
  %v847 = vunpack.c.l.b16 %v191
  %v848 = vunpack.c.l.b16 %v192
  %v849 = vunpack.c.l.b16 %v193
  %v850 = vunpack.c.l.b16 %v194
  %v851 = vunpack.c.l.b16 %v195
  %v852 = vunpack.c.l.b16 %v196
  %v853 = vunpack.c.l.b16 %v197
  %v854 = vunpack.c.l.b16 %v198
  %v855 = vunpack.c.l.b16 %v199
  %v856 = vunpack.c.l.b16 %v200
  %v857 = vunpack.c.l.b16 %v201
  %v858 = vunpack.c.l.b16 %v202
  %v859 = vunpack.c.l.b16 %v203
  %v860 = vunpack.c.l.b16 %v204
  %v861 = vunpack.c.l.b16 %v205
  %v862 = vunpack.c.l.b16 %v206
  %v863 = vunpack.c.l.b16 %v207
  %v864 = vunpack.c.l.b16 %v208
  %v865 = vunpack.c.l.b16 %v209
  %v866 = vunpack.c.l.b16 %v210
  %v867 = vunpack.c.l.b16 %v211
  %v868 = vunpack.c.l.b16 %v212
  %v869 = vunpack.c.l.b16 %v213
  %v870 = vunpack.c.l.b16 %v214
  %v871 = vunpack.c.l.b16 %v215
  %v872 = vunpack.c.l.b16 %v216
  %v873 = vunpack.c.l.b16 %v217
  %v874 = vunpack.c.l.b16 %v218
  %v875 = vunpack.c.l.b16 %v219
  %v876 = vunpack.c.l.b16 %v220
  %v877 = vunpack.c.l.b16 %v221
  %v878 = vunpack.c.l.b16 %v222
  %v879 = vunpack.c.l.b16 %v223
  %v880 = vunpack.c.l.b16 %v224
  %v881 = vunpack.c.l.b16 %v225
  %v882 = vunpack.c.l.b16 %v226
  %v883 = vunpack.c.l.b16 %v227
  %v884 = vunpack.c.l.b16 %v228
  %v885 = vunpack.c.l.b16 %v229
  %v886 = vunpack.c.l.b16 %v230
  %v887 = vunpack.c.l.b16 %v231
  %v888 = vunpack.c.l.b16 %v232
  %v889 = vunpack.c.l.b16 %v233
  %v890 = vunpack.c.l.b16 %v234
  %v891 = vunpack.c.l.b16 %v235
  %v892 = vunpack.c.l.b16 %v236
  %v893 = vunpack.c.l.b16 %v237
  %v894 = vunpack.c.l.b16 %v238
  %v895 = vpack.c.b16 %v752, %v751
  %v896 = vpack.c.b16 %v754, %v753
  %v897 = vpack.c.b16 %v756, %v755
  %v898 = vpack.c.b16 %v758, %v757
  %v899 = vpack.c.b16 %v760, %v759
  %v900 = vpack.c.b16 %v762, %v761
  %v901 = vpack.c.b16 %v764, %v763
  %v902 = vpack.c.b16 %v766, %v765
  %v903 = vpack.c.b16 %v768, %v767
  %v904 = vpack.c.b16 %v770, %v769
  %v905 = vpack.c.b16 %v772, %v771
  %v906 = vpack.c.b16 %v774, %v773
  %v907 = vpack.c.b16 %v776, %v775
  %v908 = vpack.c.b16 %v778, %v777
  %v909 = vpack.c.b16 %v780, %v779
  %v910 = vpack.c.b16 %v782, %v781
  %v911 = vpack.c.b16 %v784, %v783
  %v912 = vpack.c.b16 %v786, %v785
  %v913 = vpack.c.b16 %v788, %v787
  %v914 = vpack.c.b16 %v790, %v789
  %v915 = vpack.c.b16 %v792, %v791
  %v916 = vpack.c.b16 %v794, %v793
  %v917 = vpack.c.b16 %v796, %v795
  %v918 = vpack.c.b16 %v798, %v797
  %v919 = vpack.c.b16 %v800, %v799
  %v920 = vpack.c.b16 %v802, %v801
  %v921 = vpack.c.b16 %v804, %v803
  %v922 = vpack.c.b16 %v806, %v805
  %v923 = vpack.c.b16 %v808, %v807
  %v924 = vpack.c.b16 %v810, %v809
  %v925 = vpack.c.b16 %v812, %v811
  %v926 = vpack.c.b16 %v814, %v813
  %v927 = vpack.c.b16 %v816, %v815
  %v928 = vpack.c.b16 %v818, %v817
  %v929 = vpack.c.b16 %v820, %v819
  %v930 = vpack.c.b16 %v822, %v821
  %v931 = vpack.c.b16 %v824, %v823
  %v932 = vpack.c.b16 %v826, %v825
  %v933 = vpack.c.b16 %v828, %v827
  %v934 = vpack.c.b16 %v830, %v829
  %v935 = vpack.c.b16 %v832, %v831
  %v936 = vpack.c.b16 %v834, %v833
  %v937 = vpack.c.b16 %v836, %v835
  %v938 = vpack.c.b16 %v838, %v837
  %v939 = vpack.c.b16 %v840, %v839
  %v940 = vpack.c.b16 %v842, %v841
  %v941 = vpack.c.b16 %v844, %v843
  %v942 = vpack.c.b16 %v846, %v845
  %v943 = vpack.c.b16 %v848, %v847
  %v944 = vpack.c.b16 %v850, %v849
  %v945 = vpack.c.b16 %v852, %v851
  %v946 = vpack.c.b16 %v854, %v853
  %v947 = vpack.c.b16 %v856, %v855
  %v948 = vpack.c.b16 %v858, %v857
  %v949 = vpack.c.b16 %v860, %v859
  %v950 = vpack.c.b16 %v862, %v861
  %v951 = vpack.c.b16 %v864, %v863
  %v952 = vpack.c.b16 %v866, %v865
  %v953 = vpack.c.b16 %v868, %v867
  %v954 = vpack.c.b16 %v870, %v869
  %v955 = vpack.c.b16 %v872, %v871
  %v956 = vpack.c.b16 %v874, %v873
  %v957 = vpack.c.b16 %v876, %v875
  %v958 = vpack.c.b16 %v878, %v877
  %v959 = vpack.c.b16 %v880, %v879
  %v960 = vpack.c.b16 %v882, %v881
  %v961 = vpack.c.b16 %v884, %v883
  %v962 = vpack.c.b16 %v886, %v885
  %v963 = vpack.c.b16 %v888, %v887
  %v964 = vpack.c.b16 %v890, %v889
  %v965 = vpack.c.b16 %v892, %v891
  %v966 = vpack.c.b16 %v894, %v893
  %1039 = vmatprep.subr.bf16.mxu0 0
  %1040 = vmatpush1.bf16.msra.mxu0 %v895
  %1041 = vmatprep.subr.bf16.mxu0 0
  %1042 = vmatpush1.bf16.msra.mxu0 %v896
  %1043 = vmatprep.subr.bf16.mxu0 0
  %1044 = vmatpush1.bf16.msra.mxu0 %v897
  %1045 = vmatprep.subr.bf16.mxu0 0
  %1046 = vmatpush1.bf16.msra.mxu0 %v898
  %1047 = vmatprep.subr.bf16.mxu0 0
  %1048 = vmatpush1.bf16.msra.mxu0 %v899
  %1049 = vmatprep.subr.bf16.mxu0 0
  %1050 = vmatpush1.bf16.msra.mxu0 %v900
  %1051 = vmatprep.subr.bf16.mxu0 0
  %1052 = vmatpush1.bf16.msra.mxu0 %v901
  %1053 = vmatprep.subr.bf16.mxu0 0
  %1054 = vmatpush1.bf16.msra.mxu0 %v902
  %1055 = vmatprep.subr.bf16.mxu0 0
  %1056 = vmatpush1.bf16.msra.mxu0 %v903
  %1057 = vmatprep.subr.bf16.mxu0 0
  %1058 = vmatpush1.bf16.msra.mxu0 %v904
  %1059 = vmatprep.subr.bf16.mxu0 0
  %1060 = vmatpush1.bf16.msra.mxu0 %v905
  %1061 = vmatprep.subr.bf16.mxu0 0
  %1062 = vmatpush1.bf16.msra.mxu0 %v906
  %1063 = vmatprep.subr.bf16.mxu0 0
  %1064 = vmatpush1.bf16.msra.mxu0 %v907
  %1065 = vmatprep.subr.bf16.mxu0 0
  %1066 = vmatpush1.bf16.msra.mxu0 %v908
  %1067 = vmatprep.subr.bf16.mxu0 0
  %1068 = vmatpush1.bf16.msra.mxu0 %v909
  %1069 = vmatprep.subr.bf16.mxu0 0
  %1070 = vmatpush1.bf16.msra.mxu0 %v910
  %1071 = vmatprep.mubr.bf16.mxu0 %v464
  %1072 = vmatmul.mubr.bf16.gmra.mrb[0].mxu0 %v463
  %v1073 = vpop.f32.mrb[0].mxu0
  %v1074 = vadd.f32 0.0, %v1073
  %v1075 = vpop.f32.mrb[0].mxu0
  %v1076 = vpop.f32.mrb[0].mxu0
  %v1077 = vadd.f32 0.0, %v1076
  %v1078 = vpop.f32.mrb[0].mxu0
  %1079 = vmatprep.mubr.bf16.mxu0 %v473
  %1080 = vmatmul.mubr.bf16.gmra.mrb[0].mxu0 %v472
  %v1081 = vpop.f32.mrb[0].mxu0
  %v1082 = vadd.f32 0.0, %v1081
  %v1083 = vpop.f32.mrb[0].mxu0
  %v1084 = vpop.f32.mrb[0].mxu0
  %v1085 = vadd.f32 0.0, %v1084
  %v1086 = vpop.f32.mrb[0].mxu0
  %1087 = vmatprep.mubr.bf16.mxu0 %v482
  %1088 = vmatmul.mubr.bf16.gmra.mrb[0].mxu0 %v481
  %v1089 = vpop.f32.mrb[0].mxu0
  %v1090 = vadd.f32 0.0, %v1089
  %v1091 = vpop.f32.mrb[0].mxu0
  %v1092 = vpop.f32.mrb[0].mxu0
  %v1093 = vadd.f32 0.0, %v1092
  %v1094 = vpop.f32.mrb[0].mxu0
  %1095 = vmatprep.mubr.bf16.mxu0 %v491
  %1096 = vmatmul.mubr.bf16.gmra.mrb[0].mxu0 %v490
  %v1097 = vpop.f32.mrb[0].mxu0
  %v1098 = vadd.f32 0.0, %v1097
  %v1099 = vpop.f32.mrb[0].mxu0
  %v1100 = vpop.f32.mrb[0].mxu0
  %v1101 = vadd.f32 0.0, %v1100
  %v1102 = vpop.f32.mrb[0].mxu0
  %1103 = vmatprep.mubr.bf16.mxu0 %v500
  %1104 = vmatmul.mubr.bf16.gmra.mrb[0].mxu0 %v499
  %v1105 = vpop.f32.mrb[0].mxu0
  %v1106 = vadd.f32 0.0, %v1105
  %v1107 = vpop.f32.mrb[0].mxu0
  %v1108 = vpop.f32.mrb[0].mxu0
  %v1109 = vadd.f32 0.0, %v1108
  %v1110 = vpop.f32.mrb[0].mxu0
  %1111 = vmatprep.mubr.bf16.mxu0 %v509
  %1112 = vmatmul.mubr.bf16.gmra.mrb[0].mxu0 %v508
  %v1113 = vpop.f32.mrb[0].mxu0
  %v1114 = vadd.f32 0.0, %v1113
  %v1115 = vpop.f32.mrb[0].mxu0
  %v1116 = vpop.f32.mrb[0].mxu0
  %v1117 = vadd.f32 0.0, %v1116
  %v1118 = vpop.f32.mrb[0].mxu0
  %1119 = vmatprep.mubr.bf16.mxu0 %v518
  %1120 = vmatmul.mubr.bf16.gmra.mrb[0].mxu0 %v517
  %v1121 = vpop.f32.mrb[0].mxu0
  %v1122 = vadd.f32 0.0, %v1121
  %v1123 = vpop.f32.mrb[0].mxu0
  %v1124 = vpop.f32.mrb[0].mxu0
  %v1125 = vadd.f32 0.0, %v1124
  %v1126 = vpop.f32.mrb[0].mxu0
  %1127 = vmatprep.mubr.bf16.mxu0 %v527
  %1128 = vmatmul.mubr.bf16.gmra.mrb[0].mxu0 %v526
  %v1129 = vpop.f32.mrb[0].mxu0
  %v1130 = vadd.f32 0.0, %v1129
  %v1131 = vpop.f32.mrb[0].mxu0
  %v1132 = vpop.f32.mrb[0].mxu0
  %v1133 = vadd.f32 0.0, %v1132
  %v1134 = vpop.f32.mrb[0].mxu0
  %1135 = vdwg.mxu0
  %1136 = vmatprep.subr.bf16.mxu0 0
  %1137 = vmatpush1.bf16.msra.mxu0 %v911
  %1138 = vmatprep.subr.bf16.mxu0 0
  %1139 = vmatpush1.bf16.msra.mxu0 %v912
  %1140 = vmatprep.subr.bf16.mxu0 0
  %1141 = vmatpush1.bf16.msra.mxu0 %v913
  %1142 = vmatprep.subr.bf16.mxu0 0
  %1143 = vmatpush1.bf16.msra.mxu0 %v914
  %1144 = vmatprep.subr.bf16.mxu0 0
  %1145 = vmatpush1.bf16.msra.mxu0 %v915
  %1146 = vmatprep.subr.bf16.mxu0 0
  %1147 = vmatpush1.bf16.msra.mxu0 %v916
  %1148 = vmatprep.subr.bf16.mxu0 0
  %1149 = vmatpush1.bf16.msra.mxu0 %v917
  %1150 = vmatprep.subr.bf16.mxu0 0
  %1151 = vmatpush1.bf16.msra.mxu0 %v918
  %1152 = vmatprep.subr.bf16.mxu0 0
  %1153 = vmatpush1.bf16.msra.mxu0 %v919
  %1154 = vmatprep.subr.bf16.mxu0 0
  %1155 = vmatpush1.bf16.msra.mxu0 %v920
  %1156 = vmatprep.subr.bf16.mxu0 0
  %1157 = vmatpush1.bf16.msra.mxu0 %v921
  %1158 = vmatprep.subr.bf16.mxu0 0
  %1159 = vmatpush1.bf16.msra.mxu0 %v922
  %1160 = vmatprep.subr.bf16.mxu0 0
  %1161 = vmatpush1.bf16.msra.mxu0 %v923
  %1162 = vmatprep.subr.bf16.mxu0 0
  %1163 = vmatpush1.bf16.msra.mxu0 %v924
  %1164 = vmatprep.subr.bf16.mxu0 0
  %1165 = vmatpush1.bf16.msra.mxu0 %v925
  %1166 = vmatprep.subr.bf16.mxu0 0
  %1167 = vmatpush1.bf16.msra.mxu0 %v926
  %1168 = vmatprep.mubr.bf16.mxu0 %v466
  %1169 = vmatmul.mubr.bf16.gmra.mrb[0].mxu0 %v465
  %v1170 = vpop.f32.mrb[0].mxu0
  %v1171 = vadd.f32 %v1074, %v1170
  %v1172 = vpop.f32.mrb[0].mxu0
  %v1173 = vpop.f32.mrb[0].mxu0
  %v1174 = vadd.f32 %v1077, %v1173
  %v1175 = vpop.f32.mrb[0].mxu0
  %1176 = vmatprep.mubr.bf16.mxu0 %v475
  %1177 = vmatmul.mubr.bf16.gmra.mrb[0].mxu0 %v474
  %v1178 = vpop.f32.mrb[0].mxu0
  %v1179 = vadd.f32 %v1082, %v1178
  %v1180 = vpop.f32.mrb[0].mxu0
  %v1181 = vpop.f32.mrb[0].mxu0
  %v1182 = vadd.f32 %v1085, %v1181
  %v1183 = vpop.f32.mrb[0].mxu0
  %1184 = vmatprep.mubr.bf16.mxu0 %v484
  %1185 = vmatmul.mubr.bf16.gmra.mrb[0].mxu0 %v483
  %v1186 = vpop.f32.mrb[0].mxu0
  %v1187 = vadd.f32 %v1090, %v1186
  %v1188 = vpop.f32.mrb[0].mxu0
  %v1189 = vpop.f32.mrb[0].mxu0
  %v1190 = vadd.f32 %v1093, %v1189
  %v1191 = vpop.f32.mrb[0].mxu0
  %1192 = vmatprep.mubr.bf16.mxu0 %v493
  %1193 = vmatmul.mubr.bf16.gmra.mrb[0].mxu0 %v492
  %v1194 = vpop.f32.mrb[0].mxu0
  %v1195 = vadd.f32 %v1098, %v1194
  %v1196 = vpop.f32.mrb[0].mxu0
  %v1197 = vpop.f32.mrb[0].mxu0
  %v1198 = vadd.f32 %v1101, %v1197
  %v1199 = vpop.f32.mrb[0].mxu0
  %1200 = vmatprep.mubr.bf16.mxu0 %v502
  %1201 = vmatmul.mubr.bf16.gmra.mrb[0].mxu0 %v501
  %v1202 = vpop.f32.mrb[0].mxu0
  %v1203 = vadd.f32 %v1106, %v1202
  %v1204 = vpop.f32.mrb[0].mxu0
  %v1205 = vpop.f32.mrb[0].mxu0
  %v1206 = vadd.f32 %v1109, %v1205
  %v1207 = vpop.f32.mrb[0].mxu0
  %1208 = vmatprep.mubr.bf16.mxu0 %v511
  %1209 = vmatmul.mubr.bf16.gmra.mrb[0].mxu0 %v510
  %v1210 = vpop.f32.mrb[0].mxu0
  %v1211 = vadd.f32 %v1114, %v1210
  %v1212 = vpop.f32.mrb[0].mxu0
  %v1213 = vpop.f32.mrb[0].mxu0
  %v1214 = vadd.f32 %v1117, %v1213
  %v1215 = vpop.f32.mrb[0].mxu0
  %1216 = vmatprep.mubr.bf16.mxu0 %v520
  %1217 = vmatmul.mubr.bf16.gmra.mrb[0].mxu0 %v519
  %v1218 = vpop.f32.mrb[0].mxu0
  %v1219 = vadd.f32 %v1122, %v1218
  %v1220 = vpop.f32.mrb[0].mxu0
  %v1221 = vpop.f32.mrb[0].mxu0
  %v1222 = vadd.f32 %v1125, %v1221
  %v1223 = vpop.f32.mrb[0].mxu0
  %1224 = vmatprep.mubr.bf16.mxu0 %v529
  %1225 = vmatmul.mubr.bf16.gmra.mrb[0].mxu0 %v528
  %v1226 = vpop.f32.mrb[0].mxu0
  %v1227 = vadd.f32 %v1130, %v1226
  %v1228 = vpop.f32.mrb[0].mxu0
  %v1229 = vpop.f32.mrb[0].mxu0
  %v1230 = vadd.f32 %v1133, %v1229
  %v1231 = vpop.f32.mrb[0].mxu0
  %1232 = vdwg.mxu0
  %1233 = vmatprep.subr.bf16.mxu0 0
  %1234 = vmatpush1.bf16.msra.mxu0 %v927
  %1235 = vmatprep.subr.bf16.mxu0 0
  %1236 = vmatpush1.bf16.msra.mxu0 %v928
  %1237 = vmatprep.subr.bf16.mxu0 0
  %1238 = vmatpush1.bf16.msra.mxu0 %v929
  %1239 = vmatprep.subr.bf16.mxu0 0
  %1240 = vmatpush1.bf16.msra.mxu0 %v930
  %1241 = vmatprep.subr.bf16.mxu0 0
  %1242 = vmatpush1.bf16.msra.mxu0 %v931
  %1243 = vmatprep.subr.bf16.mxu0 0
  %1244 = vmatpush1.bf16.msra.mxu0 %v932
  %1245 = vmatprep.subr.bf16.mxu0 0
  %1246 = vmatpush1.bf16.msra.mxu0 %v933
  %1247 = vmatprep.subr.bf16.mxu0 0
  %1248 = vmatpush1.bf16.msra.mxu0 %v934
  %1249 = vmatprep.subr.bf16.mxu0 0
  %1250 = vmatpush1.bf16.msra.mxu0 %v935
  %1251 = vmatprep.subr.bf16.mxu0 0
  %1252 = vmatpush1.bf16.msra.mxu0 %v936
  %1253 = vmatprep.subr.bf16.mxu0 0
  %1254 = vmatpush1.bf16.msra.mxu0 %v937
  %1255 = vmatprep.subr.bf16.mxu0 0
  %1256 = vmatpush1.bf16.msra.mxu0 %v938
  %1257 = vmatprep.subr.bf16.mxu0 0
  %1258 = vmatpush1.bf16.msra.mxu0 %v939
  %1259 = vmatprep.subr.bf16.mxu0 0
  %1260 = vmatpush1.bf16.msra.mxu0 %v940
  %1261 = vmatprep.subr.bf16.mxu0 0
  %1262 = vmatpush1.bf16.msra.mxu0 %v941
  %1263 = vmatprep.subr.bf16.mxu0 0
  %1264 = vmatpush1.bf16.msra.mxu0 %v942
  %1265 = vmatprep.mubr.bf16.mxu0 %v468
  %1266 = vmatmul.mubr.bf16.gmra.mrb[0].mxu0 %v467
  %v1267 = vpop.f32.mrb[0].mxu0
  %v1268 = vadd.f32 %v1171, %v1267
  %v1269 = vpop.f32.mrb[0].mxu0
  %v1270 = vpop.f32.mrb[0].mxu0
  %v1271 = vadd.f32 %v1174, %v1270
  %v1272 = vpop.f32.mrb[0].mxu0
  %1273 = vmatprep.mubr.bf16.mxu0 %v477
  %1274 = vmatmul.mubr.bf16.gmra.mrb[0].mxu0 %v476
  %v1275 = vpop.f32.mrb[0].mxu0
  %v1276 = vadd.f32 %v1179, %v1275
  %v1277 = vpop.f32.mrb[0].mxu0
  %v1278 = vpop.f32.mrb[0].mxu0
  %v1279 = vadd.f32 %v1182, %v1278
  %v1280 = vpop.f32.mrb[0].mxu0
  %1281 = vmatprep.mubr.bf16.mxu0 %v486
  %1282 = vmatmul.mubr.bf16.gmra.mrb[0].mxu0 %v485
  %v1283 = vpop.f32.mrb[0].mxu0
  %v1284 = vadd.f32 %v1187, %v1283
  %v1285 = vpop.f32.mrb[0].mxu0
  %v1286 = vpop.f32.mrb[0].mxu0
  %v1287 = vadd.f32 %v1190, %v1286
  %v1288 = vpop.f32.mrb[0].mxu0
  %1289 = vmatprep.mubr.bf16.mxu0 %v495
  %1290 = vmatmul.mubr.bf16.gmra.mrb[0].mxu0 %v494
  %v1291 = vpop.f32.mrb[0].mxu0
  %v1292 = vadd.f32 %v1195, %v1291
  %v1293 = vpop.f32.mrb[0].mxu0
  %v1294 = vpop.f32.mrb[0].mxu0
  %v1295 = vadd.f32 %v1198, %v1294
  %v1296 = vpop.f32.mrb[0].mxu0
  %1297 = vmatprep.mubr.bf16.mxu0 %v504
  %1298 = vmatmul.mubr.bf16.gmra.mrb[0].mxu0 %v503
  %v1299 = vpop.f32.mrb[0].mxu0
  %v1300 = vadd.f32 %v1203, %v1299
  %v1301 = vpop.f32.mrb[0].mxu0
  %v1302 = vpop.f32.mrb[0].mxu0
  %v1303 = vadd.f32 %v1206, %v1302
  %v1304 = vpop.f32.mrb[0].mxu0
  %1305 = vmatprep.mubr.bf16.mxu0 %v513
  %1306 = vmatmul.mubr.bf16.gmra.mrb[0].mxu0 %v512
  %v1307 = vpop.f32.mrb[0].mxu0
  %v1308 = vadd.f32 %v1211, %v1307
  %v1309 = vpop.f32.mrb[0].mxu0
  %v1310 = vpop.f32.mrb[0].mxu0
  %v1311 = vadd.f32 %v1214, %v1310
  %v1312 = vpop.f32.mrb[0].mxu0
  %1313 = vmatprep.mubr.bf16.mxu0 %v522
  %1314 = vmatmul.mubr.bf16.gmra.mrb[0].mxu0 %v521
  %v1315 = vpop.f32.mrb[0].mxu0
  %v1316 = vadd.f32 %v1219, %v1315
  %v1317 = vpop.f32.mrb[0].mxu0
  %v1318 = vpop.f32.mrb[0].mxu0
  %v1319 = vadd.f32 %v1222, %v1318
  %v1320 = vpop.f32.mrb[0].mxu0
  %1321 = vmatprep.mubr.bf16.mxu0 %v531
  %1322 = vmatmul.mubr.bf16.gmra.mrb[0].mxu0 %v530
  %v1323 = vpop.f32.mrb[0].mxu0
  %v1324 = vadd.f32 %v1227, %v1323
  %v1325 = vpop.f32.mrb[0].mxu0
  %v1326 = vpop.f32.mrb[0].mxu0
  %v1327 = vadd.f32 %v1230, %v1326
  %v1328 = vpop.f32.mrb[0].mxu0
  %1329 = vdwg.mxu0
  %1330 = vmatprep.subr.bf16.mxu0 0
  %1331 = vmatpush1.bf16.msra.mxu0 %v943
  %1332 = vmatprep.subr.bf16.mxu0 0
  %1333 = vmatpush1.bf16.msra.mxu0 %v944
  %1334 = vmatprep.subr.bf16.mxu0 0
  %1335 = vmatpush1.bf16.msra.mxu0 %v945
  %1336 = vmatprep.subr.bf16.mxu0 0
  %1337 = vmatpush1.bf16.msra.mxu0 %v946
  %1338 = vmatprep.subr.bf16.mxu0 0
  %1339 = vmatpush1.bf16.msra.mxu0 %v947
  %1340 = vmatprep.subr.bf16.mxu0 0
  %1341 = vmatpush1.bf16.msra.mxu0 %v948
  %1342 = vmatprep.subr.bf16.mxu0 0
  %1343 = vmatpush1.bf16.msra.mxu0 %v949
  %1344 = vmatprep.subr.bf16.mxu0 0
  %1345 = vmatpush1.bf16.msra.mxu0 %v950
  %1346 = vmatprep.subr.bf16.mxu0 0
  %1347 = vmatpush1.bf16.msra.mxu0 %v951
  %1348 = vmatprep.subr.bf16.mxu0 0
  %1349 = vmatpush1.bf16.msra.mxu0 %v952
  %1350 = vmatprep.subr.bf16.mxu0 0
  %1351 = vmatpush1.bf16.msra.mxu0 %v953
  %1352 = vmatprep.subr.bf16.mxu0 0
  %1353 = vmatpush1.bf16.msra.mxu0 %v954
  %1354 = vmatprep.subr.bf16.mxu0 0
  %1355 = vmatpush1.bf16.msra.mxu0 %v955
  %1356 = vmatprep.subr.bf16.mxu0 0
  %1357 = vmatpush1.bf16.msra.mxu0 %v956
  %1358 = vmatprep.subr.bf16.mxu0 0
  %1359 = vmatpush1.bf16.msra.mxu0 %v957
  %1360 = vmatprep.subr.bf16.mxu0 0
  %1361 = vmatpush1.bf16.msra.mxu0 %v958
  %1362 = vmatprep.mubr.bf16.mxu0 %v470
  %1363 = vmatmul.mubr.bf16.gmra.mrb[0].mxu0 %v469
  %v1364 = vpop.f32.mrb[0].mxu0
  %v1365 = vadd.f32 %v1268, %v1364
  %v1366 = vpop.f32.mrb[0].mxu0
  %v1367 = vpop.f32.mrb[0].mxu0
  %v1368 = vadd.f32 %v1271, %v1367
  %v1369 = vpop.f32.mrb[0].mxu0
  %1370 = vmatprep.mubr.bf16.mxu0 %v479
  %1371 = vmatmul.mubr.bf16.gmra.mrb[0].mxu0 %v478
  %v1372 = vpop.f32.mrb[0].mxu0
  %v1373 = vadd.f32 %v1276, %v1372
  %v1374 = vpop.f32.mrb[0].mxu0
  %v1375 = vpop.f32.mrb[0].mxu0
  %v1376 = vadd.f32 %v1279, %v1375
  %v1377 = vpop.f32.mrb[0].mxu0
  %1378 = vmatprep.mubr.bf16.mxu0 %v488
  %1379 = vmatmul.mubr.bf16.gmra.mrb[0].mxu0 %v487
  %v1380 = vpop.f32.mrb[0].mxu0
  %v1381 = vadd.f32 %v1284, %v1380
  %v1382 = vpop.f32.mrb[0].mxu0
  %v1383 = vpop.f32.mrb[0].mxu0
  %v1384 = vadd.f32 %v1287, %v1383
  %v1385 = vpop.f32.mrb[0].mxu0
  %1386 = vmatprep.mubr.bf16.mxu0 %v497
  %1387 = vmatmul.mubr.bf16.gmra.mrb[0].mxu0 %v496
  %v1388 = vpop.f32.mrb[0].mxu0
  %v1389 = vadd.f32 %v1292, %v1388
  %v1390 = vpop.f32.mrb[0].mxu0
  %v1391 = vpop.f32.mrb[0].mxu0
  %v1392 = vadd.f32 %v1295, %v1391
  %v1393 = vpop.f32.mrb[0].mxu0
  %1394 = vmatprep.mubr.bf16.mxu0 %v506
  %1395 = vmatmul.mubr.bf16.gmra.mrb[0].mxu0 %v505
  %v1396 = vpop.f32.mrb[0].mxu0
  %v1397 = vadd.f32 %v1300, %v1396
  %v1398 = vpop.f32.mrb[0].mxu0
  %v1399 = vpop.f32.mrb[0].mxu0
  %v1400 = vadd.f32 %v1303, %v1399
  %v1401 = vpop.f32.mrb[0].mxu0
  %1402 = vmatprep.mubr.bf16.mxu0 %v515
  %1403 = vmatmul.mubr.bf16.gmra.mrb[0].mxu0 %v514
  %v1404 = vpop.f32.mrb[0].mxu0
  %v1405 = vadd.f32 %v1308, %v1404
  %v1406 = vpop.f32.mrb[0].mxu0
  %v1407 = vpop.f32.mrb[0].mxu0
  %v1408 = vadd.f32 %v1311, %v1407
  %v1409 = vpop.f32.mrb[0].mxu0
  %1410 = vmatprep.mubr.bf16.mxu0 %v524
  %1411 = vmatmul.mubr.bf16.gmra.mrb[0].mxu0 %v523
  %v1412 = vpop.f32.mrb[0].mxu0
  %v1413 = vadd.f32 %v1316, %v1412
  %v1414 = vpop.f32.mrb[0].mxu0
  %v1415 = vpop.f32.mrb[0].mxu0
  %v1416 = vadd.f32 %v1319, %v1415
  %v1417 = vpop.f32.mrb[0].mxu0
  %1418 = vmatprep.mubr.bf16.mxu0 %v533
  %1419 = vmatmul.mubr.bf16.gmra.mrb[0].mxu0 %v532
  %v1420 = vpop.f32.mrb[0].mxu0
  %v1421 = vadd.f32 %v1324, %v1420
  %v1422 = vpop.f32.mrb[0].mxu0
  %v1423 = vpop.f32.mrb[0].mxu0
  %v1424 = vadd.f32 %v1327, %v1423
  %v1425 = vpop.f32.mrb[0].mxu0
  %1426 = vdwg.mxu0
  %1427 = vmatprep.subr.bf16.mxu0 0
  %1428 = vmatpush1.bf16.msra.mxu0 %v959
  %1429 = vmatprep.subr.bf16.mxu0 0
  %1430 = vmatpush1.bf16.msra.mxu0 %v960
  %1431 = vmatprep.subr.bf16.mxu0 0
  %1432 = vmatpush1.bf16.msra.mxu0 %v961
  %1433 = vmatprep.subr.bf16.mxu0 0
  %1434 = vmatpush1.bf16.msra.mxu0 %v962
  %1435 = vmatprep.subr.bf16.mxu0 0
  %1436 = vmatpush1.bf16.msra.mxu0 %v963
  %1437 = vmatprep.subr.bf16.mxu0 0
  %1438 = vmatpush1.bf16.msra.mxu0 %v964
  %1439 = vmatprep.subr.bf16.mxu0 0
  %1440 = vmatpush1.bf16.msra.mxu0 %v965
  %1441 = vmatprep.subr.bf16.mxu0 0
  %1442 = vmatpush1.bf16.msra.mxu0 %v966
  %1443 = vmatprep.subr.bf16.mxu0 0
  %1444 = vmatpush1.bf16.msra.mxu0 0
  %1445 = vmatprep.subr.bf16.mxu0 0
  %1446 = vmatpush1.bf16.msra.mxu0 0
  %1447 = vmatprep.subr.bf16.mxu0 0
  %1448 = vmatpush1.bf16.msra.mxu0 0
  %1449 = vmatprep.subr.bf16.mxu0 0
  %1450 = vmatpush1.bf16.msra.mxu0 0
  %1451 = vmatprep.subr.bf16.mxu0 0
  %1452 = vmatpush1.bf16.msra.mxu0 0
  %1453 = vmatprep.subr.bf16.mxu0 0
  %1454 = vmatpush1.bf16.msra.mxu0 0
  %1455 = vmatprep.subr.bf16.mxu0 0
  %1456 = vmatpush1.bf16.msra.mxu0 0
  %1457 = vmatprep.subr.bf16.mxu0 0
  %1458 = vmatpush1.bf16.msra.mxu0 0
  %1459 = vmatprep.mubr.bf16.mxu0 0
  %1460 = vmatmul.mubr.bf16.gmra.mrb[0].mxu0 %v471
  %v1461 = vpop.f32.mrb[0].mxu0
  %v1462 = vadd.f32 %v1365, %v1461
  %v1463 = vpop.f32.mrb[0].mxu0
  %v1464 = vpop.f32.mrb[0].mxu0
  %v1465 = vadd.f32 %v1368, %v1464
  %v1466 = vpop.f32.mrb[0].mxu0
  %1467 = vmatprep.mubr.bf16.mxu0 0
  %1468 = vmatmul.mubr.bf16.gmra.mrb[0].mxu0 %v480
  %v1469 = vpop.f32.mrb[0].mxu0
  %v1470 = vadd.f32 %v1373, %v1469
  %v1471 = vpop.f32.mrb[0].mxu0
  %v1472 = vpop.f32.mrb[0].mxu0
  %v1473 = vadd.f32 %v1376, %v1472
  %v1474 = vpop.f32.mrb[0].mxu0
  %1475 = vmatprep.mubr.bf16.mxu0 0
  %1476 = vmatmul.mubr.bf16.gmra.mrb[0].mxu0 %v489
  %v1477 = vpop.f32.mrb[0].mxu0
  %v1478 = vadd.f32 %v1381, %v1477
  %v1479 = vpop.f32.mrb[0].mxu0
  %v1480 = vpop.f32.mrb[0].mxu0
  %v1481 = vadd.f32 %v1384, %v1480
  %v1482 = vpop.f32.mrb[0].mxu0
  %1483 = vmatprep.mubr.bf16.mxu0 0
  %1484 = vmatmul.mubr.bf16.gmra.mrb[0].mxu0 %v498
  %v1485 = vpop.f32.mrb[0].mxu0
  %v1486 = vadd.f32 %v1389, %v1485
  %v1487 = vpop.f32.mrb[0].mxu0
  %v1488 = vpop.f32.mrb[0].mxu0
  %v1489 = vadd.f32 %v1392, %v1488
  %v1490 = vpop.f32.mrb[0].mxu0
  %1491 = vmatprep.mubr.bf16.mxu0 0
  %1492 = vmatmul.mubr.bf16.gmra.mrb[0].mxu0 %v507
  %v1493 = vpop.f32.mrb[0].mxu0
  %v1494 = vadd.f32 %v1397, %v1493
  %v1495 = vpop.f32.mrb[0].mxu0
  %v1496 = vpop.f32.mrb[0].mxu0
  %v1497 = vadd.f32 %v1400, %v1496
  %v1498 = vpop.f32.mrb[0].mxu0
  %1499 = vmatprep.mubr.bf16.mxu0 0
  %1500 = vmatmul.mubr.bf16.gmra.mrb[0].mxu0 %v516
  %v1501 = vpop.f32.mrb[0].mxu0
  %v1502 = vadd.f32 %v1405, %v1501
  %v1503 = vpop.f32.mrb[0].mxu0
  %v1504 = vpop.f32.mrb[0].mxu0
  %v1505 = vadd.f32 %v1408, %v1504
  %v1506 = vpop.f32.mrb[0].mxu0
  %1507 = vmatprep.mubr.bf16.mxu0 0
  %1508 = vmatmul.mubr.bf16.gmra.mrb[0].mxu0 %v525
  %v1509 = vpop.f32.mrb[0].mxu0
  %v1510 = vadd.f32 %v1413, %v1509
  %v1511 = vpop.f32.mrb[0].mxu0
  %v1512 = vpop.f32.mrb[0].mxu0
  %v1513 = vadd.f32 %v1416, %v1512
  %v1514 = vpop.f32.mrb[0].mxu0
  %1515 = vmatprep.mubr.bf16.mxu0 0
  %1516 = vmatmul.mubr.bf16.gmra.mrb[0].mxu0 %v534
  %v1517 = vpop.f32.mrb[0].mxu0
  %v1518 = vadd.f32 %v1421, %v1517
  %v1519 = vpop.f32.mrb[0].mxu0
  %v1520 = vpop.f32.mrb[0].mxu0
  %v1521 = vadd.f32 %v1424, %v1520
  %v1522 = vpop.f32.mrb[0].mxu0
  %1523 = vdwg.mxu0
  %v1524 = vmax.f32 %v1462, %v1478
  %v1525 = vmax.f32 %v1465, %v1481
  %v1526 = vmax.f32 %v1470, %v1486
  %v1527 = vmax.f32 %v1473, %v1489
  %v1528 = vmax.f32 %v1494, %v1510
  %v1529 = vmax.f32 %v1497, %v1513
  %v1530 = vmax.f32 %v1502, %v1518
  %v1531 = vmax.f32 %v1505, %v1521
  %v1532 = vmax.f32 %v1524, %v1528
  %v1533 = vmax.f32 %v1525, %v1529
  %v1534 = vmax.f32 %v1526, %v1530
  %v1535 = vmax.f32 %v1527, %v1531
  %v1536 = vld [vmem:[%s2] sm:$0x1]
  %v1538 = vlaneseq
  %v1539 = vshrl.u32 %v1538, 7
  %v1540 = vsub.s32 0, %v1539
  %v1541 = vrot.slane %v1536, %v1540
  %v1543 = vadd.f32 %v1532, %v1541
  %v1544 = vadd.f32 %v1533, %v1541
  %v1545 = vadd.f32 %v1534, %v1541
  %v1546 = vadd.f32 %v1535, %v1541
  %v1547 = vmax.f32 %v1543, 0.0
  %v1548 = vmax.f32 %v1544, 0.0
  %v1549 = vmax.f32 %v1545, 0.0
  %v1550 = vmax.f32 %v1546, 0.0
  %v1551 = vpack.c.bf16 %v1548, %v1547
  %v1552 = vpack.c.bf16 %v1550, %v1549
  %v1555 = vunpack.c.l.b16 %v1551
  %v1556 = vunpack.c.h.b16 %v1551
  %v1557 = vunpack.c.l.b16 %v1552
  %v1558 = vunpack.c.h.b16 %v1552
  %v1559 = vpack.c.b16 %v1555, %v1555
  %v1560 = vpack.c.b16 %v1556, %v1556
  %v1561 = vpack.c.b16 %v1557, %v1557
  %v1562 = vpack.c.b16 %v1558, %v1558
  %1567 = vst [vmem:[%s3] sm:$0xf] %v1559
  %1568 = vst [vmem:[%s3 + $0x4] sm:$0xf] %v1560
  %1569 = vst [vmem:[%s3 + $0x8] sm:$0xf] %v1561
  %1570 = vst [vmem:[%s3 + $0xc] sm:$0xf] %v1562
  // Predicated region
  $region14: #{alexnet_forward.6} parent=0 // pred_check
    _
  $region15: #{alexnet_forward.6} parent=0 // pred_check_branch
    %1572 = sbr.rel (0) target = $region17
  $region16: #{alexnet_forward.6} parent=0 // pred_region
    _
  $region17: #{alexnet_forward.6} parent=0 // pred_fallthru
    _
  // Predicated region
  $region18: #{alexnet_forward.6} parent=0 // pred_check
    _
  $region19: #{alexnet_forward.6} parent=0 // pred_check_branch
    %1574 = sbr.rel (0) target = $region21
  $region20: #{alexnet_forward.6} parent=0 // pred_region
    _
  $region21: #{alexnet_forward.6} parent=0 // pred_fallthru
    _

// kernel: alexnet_forward.7
$region0: #{alexnet_forward.7}
  #allocation0 [shape = 'u32[]', space=smem, size = 0x4, offset = 0x4, fixed_abs, tag = 'smem constant byte address 0x4 - core index']
  #allocation1 [shape = 'u32[144,128]{1,0:T(1,128)}', space=vmem, size = 0x12000, scoped, tag = 'internal scratch']
  %s0 = inlined_call_operand.vmem [shape: bf16[16,1152], index: 0, kind: input, shape index: {}]
  %s1 = inlined_call_operand.vmem [shape: bf16[1152,512], index: 1, kind: input, shape index: {}]
  %s2 = inlined_call_operand.vmem [shape: f32[1,512], index: 2, kind: input, shape index: {}]
  %s3 = inlined_call_operand.vmem [shape: bf16[512,512], index: 3, kind: input, shape index: {}]
  %s4 = inlined_call_operand.vmem [shape: f32[1,512], index: 4, kind: input, shape index: {}]
  %s5 = inlined_call_operand.vmem [shape: bf16[512,128], index: 5, kind: input, shape index: {}]
  %s6 = inlined_call_operand.vmem [shape: f32[1,128], index: 6, kind: input, shape index: {}]
  %s7 = inlined_call_operand.vmem [shape: f32[16,128], index: 7, kind: output, shape index: {}]
  %s8 = sld [smem:[#allocation0]]
  $region38: #{alexnet_forward.7} parent=0
    _
  %s10 = ssub.s32 1, %s8
  %s11 = scalar_select 0, %s10, %s8
  // Predicated region
  $region2: #{alexnet_forward.7} parent=0 // pred_check
    _
  $region3: #{alexnet_forward.7} parent=0 // pred_check_branch
    %13 = sbr.rel (0) target = $region5
  $region4: #{alexnet_forward.7} parent=0 // pred_region
    _
  $region5: #{alexnet_forward.7} parent=0 // pred_fallthru
    _
  // Predicated region
  $region6: #{alexnet_forward.7} parent=0 // pred_check
    _
  $region7: #{alexnet_forward.7} parent=0 // pred_check_branch
    %15 = sbr.rel (0) target = $region9
  $region8: #{alexnet_forward.7} parent=0 // pred_region
    _
  $region9: #{alexnet_forward.7} parent=0 // pred_fallthru
    _
  // Predicated region
  $region10: #{alexnet_forward.7} parent=0 // pred_check
    _
  $region11: #{alexnet_forward.7} parent=0 // pred_check_branch
    %17 = sbr.rel (0) target = $region13
  $region12: #{alexnet_forward.7} parent=0 // pred_region
    _
  $region13: #{alexnet_forward.7} parent=0 // pred_fallthru
    _
  // Predicated region
  $region14: #{alexnet_forward.7} parent=0 // pred_check
    _
  $region15: #{alexnet_forward.7} parent=0 // pred_check_branch
    %19 = sbr.rel (0) target = $region17
  $region16: #{alexnet_forward.7} parent=0 // pred_region
    _
  $region17: #{alexnet_forward.7} parent=0 // pred_fallthru
    _
  // Predicated region
  $region18: #{alexnet_forward.7} parent=0 // pred_check
    _
  $region19: #{alexnet_forward.7} parent=0 // pred_check_branch
    %21 = sbr.rel (0) target = $region21
  $region20: #{alexnet_forward.7} parent=0 // pred_region
    _
  $region21: #{alexnet_forward.7} parent=0 // pred_fallthru
    _
  // Predicated region
  $region22: #{alexnet_forward.7} parent=0 // pred_check
    _
  $region23: #{alexnet_forward.7} parent=0 // pred_check_branch
    %23 = sbr.rel (0) target = $region25
  $region24: #{alexnet_forward.7} parent=0 // pred_region
    _
  $region25: #{alexnet_forward.7} parent=0 // pred_fallthru
    _
  // Predicated region
  $region26: #{alexnet_forward.7} parent=0 // pred_check
    _
  $region27: #{alexnet_forward.7} parent=0 // pred_check_branch
    %25 = sbr.rel (0) target = $region29
  $region28: #{alexnet_forward.7} parent=0 // pred_region
    _
  $region29: #{alexnet_forward.7} parent=0 // pred_fallthru
    _
  %v27 = vld [vmem:[%s0] sm:$0xff]
  %v28 = vld [vmem:[%s0 + $0x8] sm:$0xff]
  %v29 = vld [vmem:[%s0 + $0x10] sm:$0xff]
  %v30 = vld [vmem:[%s0 + $0x18] sm:$0xff]
  %v31 = vld [vmem:[%s0 + $0x20] sm:$0xf]
  %v32 = vld [vmem:[%s0 + $0x24] sm:$0xff]
  %v33 = vld [vmem:[%s0 + $0x2c] sm:$0xff]
  %v34 = vld [vmem:[%s0 + $0x34] sm:$0xff]
  %v35 = vld [vmem:[%s0 + $0x3c] sm:$0xff]
  %v36 = vld [vmem:[%s0 + $0x44] sm:$0xf]
  %v37 = vld [vmem:[%s1] sm:$0xff]
  %v38 = vld [vmem:[%s1 + $0x8] sm:$0xff]
  %v39 = vld [vmem:[%s1 + $0x10] sm:$0xff]
  %v40 = vld [vmem:[%s1 + $0x18] sm:$0xff]
  %v41 = vld [vmem:[%s1 + $0x20] sm:$0xff]
  %v42 = vld [vmem:[%s1 + $0x28] sm:$0xff]
  %v43 = vld [vmem:[%s1 + $0x30] sm:$0xff]
  %v44 = vld [vmem:[%s1 + $0x38] sm:$0xff]
  %v45 = vld [vmem:[%s1 + $0x40] sm:$0xff]
  %v46 = vld [vmem:[%s1 + $0x48] sm:$0xff]
  %v47 = vld [vmem:[%s1 + $0x50] sm:$0xff]
  %v48 = vld [vmem:[%s1 + $0x58] sm:$0xff]
  %v49 = vld [vmem:[%s1 + $0x60] sm:$0xff]
  %v50 = vld [vmem:[%s1 + $0x68] sm:$0xff]
  %v51 = vld [vmem:[%s1 + $0x70] sm:$0xff]
  %v52 = vld [vmem:[%s1 + $0x78] sm:$0xff]
  %v53 = vld [vmem:[%s1 + $0x80] sm:$0xff]
  %v54 = vld [vmem:[%s1 + $0x88] sm:$0xff]
  %v55 = vld [vmem:[%s1 + $0x90] sm:$0xff]
  %v56 = vld [vmem:[%s1 + $0x98] sm:$0xff]
  %v57 = vld [vmem:[%s1 + $0xa0] sm:$0xff]
  %v58 = vld [vmem:[%s1 + $0xa8] sm:$0xff]
  %v59 = vld [vmem:[%s1 + $0xb0] sm:$0xff]
  %v60 = vld [vmem:[%s1 + $0xb8] sm:$0xff]
  %v61 = vld [vmem:[%s1 + $0xc0] sm:$0xff]
  %v62 = vld [vmem:[%s1 + $0xc8] sm:$0xff]
  %v63 = vld [vmem:[%s1 + $0xd0] sm:$0xff]
  %v64 = vld [vmem:[%s1 + $0xd8] sm:$0xff]
  %v65 = vld [vmem:[%s1 + $0xe0] sm:$0xff]
  %v66 = vld [vmem:[%s1 + $0xe8] sm:$0xff]
  %v67 = vld [vmem:[%s1 + $0xf0] sm:$0xff]
  %v68 = vld [vmem:[%s1 + $0xf8] sm:$0xff]
  %v69 = vld [vmem:[%s1 + $0x100] sm:$0xff]
  %v70 = vld [vmem:[%s1 + $0x108] sm:$0xff]
  %v71 = vld [vmem:[%s1 + $0x110] sm:$0xff]
  %v72 = vld [vmem:[%s1 + $0x118] sm:$0xff]
  %v73 = vld [vmem:[%s1 + $0x120] sm:$0xff]
  %v74 = vld [vmem:[%s1 + $0x128] sm:$0xff]
  %v75 = vld [vmem:[%s1 + $0x130] sm:$0xff]
  %v76 = vld [vmem:[%s1 + $0x138] sm:$0xff]
  %v77 = vld [vmem:[%s1 + $0x140] sm:$0xff]
  %v78 = vld [vmem:[%s1 + $0x148] sm:$0xff]
  %v79 = vld [vmem:[%s1 + $0x150] sm:$0xff]
  %v80 = vld [vmem:[%s1 + $0x158] sm:$0xff]
  %v81 = vld [vmem:[%s1 + $0x160] sm:$0xff]
  %v82 = vld [vmem:[%s1 + $0x168] sm:$0xff]
  %v83 = vld [vmem:[%s1 + $0x170] sm:$0xff]
  %v84 = vld [vmem:[%s1 + $0x178] sm:$0xff]
  %v85 = vld [vmem:[%s1 + $0x180] sm:$0xff]
  %v86 = vld [vmem:[%s1 + $0x188] sm:$0xff]
  %v87 = vld [vmem:[%s1 + $0x190] sm:$0xff]
  %v88 = vld [vmem:[%s1 + $0x198] sm:$0xff]
  %v89 = vld [vmem:[%s1 + $0x1a0] sm:$0xff]
  %v90 = vld [vmem:[%s1 + $0x1a8] sm:$0xff]
  %v91 = vld [vmem:[%s1 + $0x1b0] sm:$0xff]
  %v92 = vld [vmem:[%s1 + $0x1b8] sm:$0xff]
  %v93 = vld [vmem:[%s1 + $0x1c0] sm:$0xff]
  %v94 = vld [vmem:[%s1 + $0x1c8] sm:$0xff]
  %v95 = vld [vmem:[%s1 + $0x1d0] sm:$0xff]
  %v96 = vld [vmem:[%s1 + $0x1d8] sm:$0xff]
  %v97 = vld [vmem:[%s1 + $0x1e0] sm:$0xff]
  %v98 = vld [vmem:[%s1 + $0x1e8] sm:$0xff]
  %v99 = vld [vmem:[%s1 + $0x1f0] sm:$0xff]
  %v100 = vld [vmem:[%s1 + $0x1f8] sm:$0xff]
  %v101 = vld [vmem:[%s1 + $0x200] sm:$0xff]
  %v102 = vld [vmem:[%s1 + $0x208] sm:$0xff]
  %v103 = vld [vmem:[%s1 + $0x210] sm:$0xff]
  %v104 = vld [vmem:[%s1 + $0x218] sm:$0xff]
  %v105 = vld [vmem:[%s1 + $0x220] sm:$0xff]
  %v106 = vld [vmem:[%s1 + $0x228] sm:$0xff]
  %v107 = vld [vmem:[%s1 + $0x230] sm:$0xff]
  %v108 = vld [vmem:[%s1 + $0x238] sm:$0xff]
  %v109 = vld [vmem:[%s1 + $0x240] sm:$0xff]
  %v110 = vld [vmem:[%s1 + $0x248] sm:$0xff]
  %v111 = vld [vmem:[%s1 + $0x250] sm:$0xff]
  %v112 = vld [vmem:[%s1 + $0x258] sm:$0xff]
  %v113 = vld [vmem:[%s1 + $0x260] sm:$0xff]
  %v114 = vld [vmem:[%s1 + $0x268] sm:$0xff]
  %v115 = vld [vmem:[%s1 + $0x270] sm:$0xff]
  %v116 = vld [vmem:[%s1 + $0x278] sm:$0xff]
  %v117 = vld [vmem:[%s1 + $0x280] sm:$0xff]
  %v118 = vld [vmem:[%s1 + $0x288] sm:$0xff]
  %v119 = vld [vmem:[%s1 + $0x290] sm:$0xff]
  %v120 = vld [vmem:[%s1 + $0x298] sm:$0xff]
  %v121 = vld [vmem:[%s1 + $0x2a0] sm:$0xff]
  %v122 = vld [vmem:[%s1 + $0x2a8] sm:$0xff]
  %v123 = vld [vmem:[%s1 + $0x2b0] sm:$0xff]
  %v124 = vld [vmem:[%s1 + $0x2b8] sm:$0xff]
  %v125 = vld [vmem:[%s1 + $0x2c0] sm:$0xff]
  %v126 = vld [vmem:[%s1 + $0x2c8] sm:$0xff]
  %v127 = vld [vmem:[%s1 + $0x2d0] sm:$0xff]
  %v128 = vld [vmem:[%s1 + $0x2d8] sm:$0xff]
  %v129 = vld [vmem:[%s1 + $0x2e0] sm:$0xff]
  %v130 = vld [vmem:[%s1 + $0x2e8] sm:$0xff]
  %v131 = vld [vmem:[%s1 + $0x2f0] sm:$0xff]
  %v132 = vld [vmem:[%s1 + $0x2f8] sm:$0xff]
  %v133 = vld [vmem:[%s1 + $0x300] sm:$0xff]
  %v134 = vld [vmem:[%s1 + $0x308] sm:$0xff]
  %v135 = vld [vmem:[%s1 + $0x310] sm:$0xff]
  %v136 = vld [vmem:[%s1 + $0x318] sm:$0xff]
  %v137 = vld [vmem:[%s1 + $0x320] sm:$0xff]
  %v138 = vld [vmem:[%s1 + $0x328] sm:$0xff]
  %v139 = vld [vmem:[%s1 + $0x330] sm:$0xff]
  %v140 = vld [vmem:[%s1 + $0x338] sm:$0xff]
  %v141 = vld [vmem:[%s1 + $0x340] sm:$0xff]
  %v142 = vld [vmem:[%s1 + $0x348] sm:$0xff]
  %v143 = vld [vmem:[%s1 + $0x350] sm:$0xff]
  %v144 = vld [vmem:[%s1 + $0x358] sm:$0xff]
  %v145 = vld [vmem:[%s1 + $0x360] sm:$0xff]
  %v146 = vld [vmem:[%s1 + $0x368] sm:$0xff]
  %v147 = vld [vmem:[%s1 + $0x370] sm:$0xff]
  %v148 = vld [vmem:[%s1 + $0x378] sm:$0xff]
  %v149 = vld [vmem:[%s1 + $0x380] sm:$0xff]
  %v150 = vld [vmem:[%s1 + $0x388] sm:$0xff]
  %v151 = vld [vmem:[%s1 + $0x390] sm:$0xff]
  %v152 = vld [vmem:[%s1 + $0x398] sm:$0xff]
  %v153 = vld [vmem:[%s1 + $0x3a0] sm:$0xff]
  %v154 = vld [vmem:[%s1 + $0x3a8] sm:$0xff]
  %v155 = vld [vmem:[%s1 + $0x3b0] sm:$0xff]
  %v156 = vld [vmem:[%s1 + $0x3b8] sm:$0xff]
  %v157 = vld [vmem:[%s1 + $0x3c0] sm:$0xff]
  %v158 = vld [vmem:[%s1 + $0x3c8] sm:$0xff]
  %v159 = vld [vmem:[%s1 + $0x3d0] sm:$0xff]
  %v160 = vld [vmem:[%s1 + $0x3d8] sm:$0xff]
  %v161 = vld [vmem:[%s1 + $0x3e0] sm:$0xff]
  %v162 = vld [vmem:[%s1 + $0x3e8] sm:$0xff]
  %v163 = vld [vmem:[%s1 + $0x3f0] sm:$0xff]
  %v164 = vld [vmem:[%s1 + $0x3f8] sm:$0xff]
  %v165 = vld [vmem:[%s1 + $0x400] sm:$0xff]
  %v166 = vld [vmem:[%s1 + $0x408] sm:$0xff]
  %v167 = vld [vmem:[%s1 + $0x410] sm:$0xff]
  %v168 = vld [vmem:[%s1 + $0x418] sm:$0xff]
  %v169 = vld [vmem:[%s1 + $0x420] sm:$0xff]
  %v170 = vld [vmem:[%s1 + $0x428] sm:$0xff]
  %v171 = vld [vmem:[%s1 + $0x430] sm:$0xff]
  %v172 = vld [vmem:[%s1 + $0x438] sm:$0xff]
  %v173 = vld [vmem:[%s1 + $0x440] sm:$0xff]
  %v174 = vld [vmem:[%s1 + $0x448] sm:$0xff]
  %v175 = vld [vmem:[%s1 + $0x450] sm:$0xff]
  %v176 = vld [vmem:[%s1 + $0x458] sm:$0xff]
  %v177 = vld [vmem:[%s1 + $0x460] sm:$0xff]
  %v178 = vld [vmem:[%s1 + $0x468] sm:$0xff]
  %v179 = vld [vmem:[%s1 + $0x470] sm:$0xff]
  %v180 = vld [vmem:[%s1 + $0x478] sm:$0xff]
  %v181 = vld [vmem:[%s1 + $0x480] sm:$0xff]
  %v182 = vld [vmem:[%s1 + $0x488] sm:$0xff]
  %v183 = vld [vmem:[%s1 + $0x490] sm:$0xff]
  %v184 = vld [vmem:[%s1 + $0x498] sm:$0xff]
  %v185 = vld [vmem:[%s1 + $0x4a0] sm:$0xff]
  %v186 = vld [vmem:[%s1 + $0x4a8] sm:$0xff]
  %v187 = vld [vmem:[%s1 + $0x4b0] sm:$0xff]
  %v188 = vld [vmem:[%s1 + $0x4b8] sm:$0xff]
  %v189 = vld [vmem:[%s1 + $0x4c0] sm:$0xff]
  %v190 = vld [vmem:[%s1 + $0x4c8] sm:$0xff]
  %v191 = vld [vmem:[%s1 + $0x4d0] sm:$0xff]
  %v192 = vld [vmem:[%s1 + $0x4d8] sm:$0xff]
  %v193 = vld [vmem:[%s1 + $0x4e0] sm:$0xff]
  %v194 = vld [vmem:[%s1 + $0x4e8] sm:$0xff]
  %v195 = vld [vmem:[%s1 + $0x4f0] sm:$0xff]
  %v196 = vld [vmem:[%s1 + $0x4f8] sm:$0xff]
  %v197 = vld [vmem:[%s1 + $0x500] sm:$0xff]
  %v198 = vld [vmem:[%s1 + $0x508] sm:$0xff]
  %v199 = vld [vmem:[%s1 + $0x510] sm:$0xff]
  %v200 = vld [vmem:[%s1 + $0x518] sm:$0xff]
  %v201 = vld [vmem:[%s1 + $0x520] sm:$0xff]
  %v202 = vld [vmem:[%s1 + $0x528] sm:$0xff]
  %v203 = vld [vmem:[%s1 + $0x530] sm:$0xff]
  %v204 = vld [vmem:[%s1 + $0x538] sm:$0xff]
  %v205 = vld [vmem:[%s1 + $0x540] sm:$0xff]
  %v206 = vld [vmem:[%s1 + $0x548] sm:$0xff]
  %v207 = vld [vmem:[%s1 + $0x550] sm:$0xff]
  %v208 = vld [vmem:[%s1 + $0x558] sm:$0xff]
  %v209 = vld [vmem:[%s1 + $0x560] sm:$0xff]
  %v210 = vld [vmem:[%s1 + $0x568] sm:$0xff]
  %v211 = vld [vmem:[%s1 + $0x570] sm:$0xff]
  %v212 = vld [vmem:[%s1 + $0x578] sm:$0xff]
  %v213 = vld [vmem:[%s1 + $0x580] sm:$0xff]
  %v214 = vld [vmem:[%s1 + $0x588] sm:$0xff]
  %v215 = vld [vmem:[%s1 + $0x590] sm:$0xff]
  %v216 = vld [vmem:[%s1 + $0x598] sm:$0xff]
  %v217 = vld [vmem:[%s1 + $0x5a0] sm:$0xff]
  %v218 = vld [vmem:[%s1 + $0x5a8] sm:$0xff]
  %v219 = vld [vmem:[%s1 + $0x5b0] sm:$0xff]
  %v220 = vld [vmem:[%s1 + $0x5b8] sm:$0xff]
  %v221 = vld [vmem:[%s1 + $0x5c0] sm:$0xff]
  %v222 = vld [vmem:[%s1 + $0x5c8] sm:$0xff]
  %v223 = vld [vmem:[%s1 + $0x5d0] sm:$0xff]
  %v224 = vld [vmem:[%s1 + $0x5d8] sm:$0xff]
  %v225 = vld [vmem:[%s1 + $0x5e0] sm:$0xff]
  %v226 = vld [vmem:[%s1 + $0x5e8] sm:$0xff]
  %v227 = vld [vmem:[%s1 + $0x5f0] sm:$0xff]
  %v228 = vld [vmem:[%s1 + $0x5f8] sm:$0xff]
  %v229 = vld [vmem:[%s1 + $0x600] sm:$0xff]
  %v230 = vld [vmem:[%s1 + $0x608] sm:$0xff]
  %v231 = vld [vmem:[%s1 + $0x610] sm:$0xff]
  %v232 = vld [vmem:[%s1 + $0x618] sm:$0xff]
  %v233 = vld [vmem:[%s1 + $0x620] sm:$0xff]
  %v234 = vld [vmem:[%s1 + $0x628] sm:$0xff]
  %v235 = vld [vmem:[%s1 + $0x630] sm:$0xff]
  %v236 = vld [vmem:[%s1 + $0x638] sm:$0xff]
  %v237 = vld [vmem:[%s1 + $0x640] sm:$0xff]
  %v238 = vld [vmem:[%s1 + $0x648] sm:$0xff]
  %v239 = vld [vmem:[%s1 + $0x650] sm:$0xff]
  %v240 = vld [vmem:[%s1 + $0x658] sm:$0xff]
  %v241 = vld [vmem:[%s1 + $0x660] sm:$0xff]
  %v242 = vld [vmem:[%s1 + $0x668] sm:$0xff]
  %v243 = vld [vmem:[%s1 + $0x670] sm:$0xff]
  %v244 = vld [vmem:[%s1 + $0x678] sm:$0xff]
  %v245 = vld [vmem:[%s1 + $0x680] sm:$0xff]
  %v246 = vld [vmem:[%s1 + $0x688] sm:$0xff]
  %v247 = vld [vmem:[%s1 + $0x690] sm:$0xff]
  %v248 = vld [vmem:[%s1 + $0x698] sm:$0xff]
  %v249 = vld [vmem:[%s1 + $0x6a0] sm:$0xff]
  %v250 = vld [vmem:[%s1 + $0x6a8] sm:$0xff]
  %v251 = vld [vmem:[%s1 + $0x6b0] sm:$0xff]
  %v252 = vld [vmem:[%s1 + $0x6b8] sm:$0xff]
  %v253 = vld [vmem:[%s1 + $0x6c0] sm:$0xff]
  %v254 = vld [vmem:[%s1 + $0x6c8] sm:$0xff]
  %v255 = vld [vmem:[%s1 + $0x6d0] sm:$0xff]
  %v256 = vld [vmem:[%s1 + $0x6d8] sm:$0xff]
  %v257 = vld [vmem:[%s1 + $0x6e0] sm:$0xff]
  %v258 = vld [vmem:[%s1 + $0x6e8] sm:$0xff]
  %v259 = vld [vmem:[%s1 + $0x6f0] sm:$0xff]
  %v260 = vld [vmem:[%s1 + $0x6f8] sm:$0xff]
  %v261 = vld [vmem:[%s1 + $0x700] sm:$0xff]
  %v262 = vld [vmem:[%s1 + $0x708] sm:$0xff]
  %v263 = vld [vmem:[%s1 + $0x710] sm:$0xff]
  %v264 = vld [vmem:[%s1 + $0x718] sm:$0xff]
  %v265 = vld [vmem:[%s1 + $0x720] sm:$0xff]
  %v266 = vld [vmem:[%s1 + $0x728] sm:$0xff]
  %v267 = vld [vmem:[%s1 + $0x730] sm:$0xff]
  %v268 = vld [vmem:[%s1 + $0x738] sm:$0xff]
  %v269 = vld [vmem:[%s1 + $0x740] sm:$0xff]
  %v270 = vld [vmem:[%s1 + $0x748] sm:$0xff]
  %v271 = vld [vmem:[%s1 + $0x750] sm:$0xff]
  %v272 = vld [vmem:[%s1 + $0x758] sm:$0xff]
  %v273 = vld [vmem:[%s1 + $0x760] sm:$0xff]
  %v274 = vld [vmem:[%s1 + $0x768] sm:$0xff]
  %v275 = vld [vmem:[%s1 + $0x770] sm:$0xff]
  %v276 = vld [vmem:[%s1 + $0x778] sm:$0xff]
  %v277 = vld [vmem:[%s1 + $0x780] sm:$0xff]
  %v278 = vld [vmem:[%s1 + $0x788] sm:$0xff]
  %v279 = vld [vmem:[%s1 + $0x790] sm:$0xff]
  %v280 = vld [vmem:[%s1 + $0x798] sm:$0xff]
  %v281 = vld [vmem:[%s1 + $0x7a0] sm:$0xff]
  %v282 = vld [vmem:[%s1 + $0x7a8] sm:$0xff]
  %v283 = vld [vmem:[%s1 + $0x7b0] sm:$0xff]
  %v284 = vld [vmem:[%s1 + $0x7b8] sm:$0xff]
  %v285 = vld [vmem:[%s1 + $0x7c0] sm:$0xff]
  %v286 = vld [vmem:[%s1 + $0x7c8] sm:$0xff]
  %v287 = vld [vmem:[%s1 + $0x7d0] sm:$0xff]
  %v288 = vld [vmem:[%s1 + $0x7d8] sm:$0xff]
  %v289 = vld [vmem:[%s1 + $0x7e0] sm:$0xff]
  %v290 = vld [vmem:[%s1 + $0x7e8] sm:$0xff]
  %v291 = vld [vmem:[%s1 + $0x7f0] sm:$0xff]
  %v292 = vld [vmem:[%s1 + $0x7f8] sm:$0xff]
  %v293 = vld [vmem:[%s1 + $0x800] sm:$0xff]
  %v294 = vld [vmem:[%s1 + $0x808] sm:$0xff]
  %v295 = vld [vmem:[%s1 + $0x810] sm:$0xff]
  %v296 = vld [vmem:[%s1 + $0x818] sm:$0xff]
  %v297 = vld [vmem:[%s1 + $0x820] sm:$0xff]
  %v298 = vld [vmem:[%s1 + $0x828] sm:$0xff]
  %v299 = vld [vmem:[%s1 + $0x830] sm:$0xff]
  %v300 = vld [vmem:[%s1 + $0x838] sm:$0xff]
  %v301 = vld [vmem:[%s1 + $0x840] sm:$0xff]
  %v302 = vld [vmem:[%s1 + $0x848] sm:$0xff]
  %v303 = vld [vmem:[%s1 + $0x850] sm:$0xff]
  %v304 = vld [vmem:[%s1 + $0x858] sm:$0xff]
  %v305 = vld [vmem:[%s1 + $0x860] sm:$0xff]
  %v306 = vld [vmem:[%s1 + $0x868] sm:$0xff]
  %v307 = vld [vmem:[%s1 + $0x870] sm:$0xff]
  %v308 = vld [vmem:[%s1 + $0x878] sm:$0xff]
  %v309 = vld [vmem:[%s1 + $0x880] sm:$0xff]
  %v310 = vld [vmem:[%s1 + $0x888] sm:$0xff]
  %v311 = vld [vmem:[%s1 + $0x890] sm:$0xff]
  %v312 = vld [vmem:[%s1 + $0x898] sm:$0xff]
  %v313 = vld [vmem:[%s1 + $0x8a0] sm:$0xff]
  %v314 = vld [vmem:[%s1 + $0x8a8] sm:$0xff]
  %v315 = vld [vmem:[%s1 + $0x8b0] sm:$0xff]
  %v316 = vld [vmem:[%s1 + $0x8b8] sm:$0xff]
  %v317 = vld [vmem:[%s1 + $0x8c0] sm:$0xff]
  %v318 = vld [vmem:[%s1 + $0x8c8] sm:$0xff]
  %v319 = vld [vmem:[%s1 + $0x8d0] sm:$0xff]
  %v320 = vld [vmem:[%s1 + $0x8d8] sm:$0xff]
  %v321 = vld [vmem:[%s1 + $0x8e0] sm:$0xff]
  %v322 = vld [vmem:[%s1 + $0x8e8] sm:$0xff]
  %v323 = vld [vmem:[%s1 + $0x8f0] sm:$0xff]
  %v324 = vld [vmem:[%s1 + $0x8f8] sm:$0xff]
  %v325 = vld [vmem:[%s2] sm:$0xf]
  %v327 = vlaneseq
  %v328 = vshrl.u32 %v327, 7
  %v329 = vsub.s32 0, %v328
  %v330 = vrot.slane %v325, %v329
  %v331 = vlaneseq
  %v332 = vshrl.u32 %v331, 7
  %v333 = vsub.s32 1, %v332
  %v334 = vrot.slane %v325, %v333
  %v335 = vlaneseq
  %v336 = vshrl.u32 %v335, 7
  %v337 = vsub.s32 2, %v336
  %v338 = vrot.slane %v325, %v337
  %v339 = vlaneseq
  %v340 = vshrl.u32 %v339, 7
  %v341 = vsub.s32 3, %v340
  %v342 = vrot.slane %v325, %v341
  %v357 = vunpack.c.l.b16 %v27
  %v358 = vunpack.c.h.b16 %v27
  %v359 = vunpack.c.l.b16 %v28
  %v360 = vunpack.c.h.b16 %v28
  %v361 = vunpack.c.l.b16 %v29
  %v362 = vunpack.c.h.b16 %v29
  %v363 = vunpack.c.l.b16 %v30
  %v364 = vunpack.c.h.b16 %v30
  %v365 = vunpack.c.l.b16 %v31
  %v366 = vunpack.c.l.b16 %v32
  %v367 = vunpack.c.h.b16 %v32
  %v368 = vunpack.c.l.b16 %v33
  %v369 = vunpack.c.h.b16 %v33
  %v370 = vunpack.c.l.b16 %v34
  %v371 = vunpack.c.h.b16 %v34
  %v372 = vunpack.c.l.b16 %v35
  %v373 = vunpack.c.h.b16 %v35
  %v374 = vunpack.c.l.b16 %v36
  %v375 = vpack.c.b16 %v366, %v357
  %v376 = vpack.c.b16 %v367, %v358
  %v377 = vpack.c.b16 %v368, %v359
  %v378 = vpack.c.b16 %v369, %v360
  %v379 = vpack.c.b16 %v370, %v361
  %v380 = vpack.c.b16 %v371, %v362
  %v381 = vpack.c.b16 %v372, %v363
  %v382 = vpack.c.b16 %v373, %v364
  %v383 = vpack.c.b16 %v374, %v365
  %v681 = vunpack.c.l.b16 %v37
  %v682 = vunpack.c.h.b16 %v37
  %v683 = vunpack.c.l.b16 %v38
  %v684 = vunpack.c.h.b16 %v38
  %v685 = vunpack.c.l.b16 %v39
  %v686 = vunpack.c.h.b16 %v39
  %v687 = vunpack.c.l.b16 %v40
  %v688 = vunpack.c.h.b16 %v40
  %v689 = vunpack.c.l.b16 %v41
  %v690 = vunpack.c.h.b16 %v41
  %v691 = vunpack.c.l.b16 %v42
  %v692 = vunpack.c.h.b16 %v42
  %v693 = vunpack.c.l.b16 %v43
  %v694 = vunpack.c.h.b16 %v43
  %v695 = vunpack.c.l.b16 %v44
  %v696 = vunpack.c.h.b16 %v44
  %v697 = vunpack.c.l.b16 %v45
  %v698 = vunpack.c.h.b16 %v45
  %v699 = vunpack.c.l.b16 %v46
  %v700 = vunpack.c.h.b16 %v46
  %v701 = vunpack.c.l.b16 %v47
  %v702 = vunpack.c.h.b16 %v47
  %v703 = vunpack.c.l.b16 %v48
  %v704 = vunpack.c.h.b16 %v48
  %v705 = vunpack.c.l.b16 %v49
  %v706 = vunpack.c.h.b16 %v49
  %v707 = vunpack.c.l.b16 %v50
  %v708 = vunpack.c.h.b16 %v50
  %v709 = vunpack.c.l.b16 %v51
  %v710 = vunpack.c.h.b16 %v51
  %v711 = vunpack.c.l.b16 %v52
  %v712 = vunpack.c.h.b16 %v52
  %v713 = vunpack.c.l.b16 %v53
  %v714 = vunpack.c.h.b16 %v53
  %v715 = vunpack.c.l.b16 %v54
  %v716 = vunpack.c.h.b16 %v54
  %v717 = vunpack.c.l.b16 %v55
  %v718 = vunpack.c.h.b16 %v55
  %v719 = vunpack.c.l.b16 %v56
  %v720 = vunpack.c.h.b16 %v56
  %v721 = vunpack.c.l.b16 %v57
  %v722 = vunpack.c.h.b16 %v57
  %v723 = vunpack.c.l.b16 %v58
  %v724 = vunpack.c.h.b16 %v58
  %v725 = vunpack.c.l.b16 %v59
  %v726 = vunpack.c.h.b16 %v59
  %v727 = vunpack.c.l.b16 %v60
  %v728 = vunpack.c.h.b16 %v60
  %v729 = vunpack.c.l.b16 %v61
  %v730 = vunpack.c.h.b16 %v61
  %v731 = vunpack.c.l.b16 %v62
  %v732 = vunpack.c.h.b16 %v62
  %v733 = vunpack.c.l.b16 %v63
  %v734 = vunpack.c.h.b16 %v63
  %v735 = vunpack.c.l.b16 %v64
  %v736 = vunpack.c.h.b16 %v64
  %v737 = vunpack.c.l.b16 %v65
  %v738 = vunpack.c.h.b16 %v65
  %v739 = vunpack.c.l.b16 %v66
  %v740 = vunpack.c.h.b16 %v66
  %v741 = vunpack.c.l.b16 %v67
  %v742 = vunpack.c.h.b16 %v67
  %v743 = vunpack.c.l.b16 %v68
  %v744 = vunpack.c.h.b16 %v68
  %v745 = vunpack.c.l.b16 %v69
  %v746 = vunpack.c.h.b16 %v69
  %v747 = vunpack.c.l.b16 %v70
  %v748 = vunpack.c.h.b16 %v70
  %v749 = vunpack.c.l.b16 %v71
  %v750 = vunpack.c.h.b16 %v71
  %v751 = vunpack.c.l.b16 %v72
  %v752 = vunpack.c.h.b16 %v72
  %v753 = vunpack.c.l.b16 %v73
  %v754 = vunpack.c.h.b16 %v73
  %v755 = vunpack.c.l.b16 %v74
  %v756 = vunpack.c.h.b16 %v74
  %v757 = vunpack.c.l.b16 %v75
  %v758 = vunpack.c.h.b16 %v75
  %v759 = vunpack.c.l.b16 %v76
  %v760 = vunpack.c.h.b16 %v76
  %v761 = vunpack.c.l.b16 %v77
  %v762 = vunpack.c.h.b16 %v77
  %v763 = vunpack.c.l.b16 %v78
  %v764 = vunpack.c.h.b16 %v78
  %v765 = vunpack.c.l.b16 %v79
  %v766 = vunpack.c.h.b16 %v79
  %v767 = vunpack.c.l.b16 %v80
  %v768 = vunpack.c.h.b16 %v80
  %v769 = vunpack.c.l.b16 %v81
  %v770 = vunpack.c.h.b16 %v81
  %v771 = vunpack.c.l.b16 %v82
  %v772 = vunpack.c.h.b16 %v82
  %v773 = vunpack.c.l.b16 %v83
  %v774 = vunpack.c.h.b16 %v83
  %v775 = vunpack.c.l.b16 %v84
  %v776 = vunpack.c.h.b16 %v84
  %v777 = vunpack.c.l.b16 %v85
  %v778 = vunpack.c.h.b16 %v85
  %v779 = vunpack.c.l.b16 %v86
  %v780 = vunpack.c.h.b16 %v86
  %v781 = vunpack.c.l.b16 %v87
  %v782 = vunpack.c.h.b16 %v87
  %v783 = vunpack.c.l.b16 %v88
  %v784 = vunpack.c.h.b16 %v88
  %v785 = vunpack.c.l.b16 %v89
  %v786 = vunpack.c.h.b16 %v89
  %v787 = vunpack.c.l.b16 %v90
  %v788 = vunpack.c.h.b16 %v90
  %v789 = vunpack.c.l.b16 %v91
  %v790 = vunpack.c.h.b16 %v91
  %v791 = vunpack.c.l.b16 %v92
  %v792 = vunpack.c.h.b16 %v92
  %v793 = vunpack.c.l.b16 %v93
  %v794 = vunpack.c.h.b16 %v93
  %v795 = vunpack.c.l.b16 %v94
  %v796 = vunpack.c.h.b16 %v94
  %v797 = vunpack.c.l.b16 %v95
  %v798 = vunpack.c.h.b16 %v95
  %v799 = vunpack.c.l.b16 %v96
  %v800 = vunpack.c.h.b16 %v96
  %v801 = vunpack.c.l.b16 %v97
  %v802 = vunpack.c.h.b16 %v97
  %v803 = vunpack.c.l.b16 %v98
  %v804 = vunpack.c.h.b16 %v98
  %v805 = vunpack.c.l.b16 %v99
  %v806 = vunpack.c.h.b16 %v99
  %v807 = vunpack.c.l.b16 %v100
  %v808 = vunpack.c.h.b16 %v100
  %v809 = vunpack.c.l.b16 %v101
  %v810 = vunpack.c.h.b16 %v101
  %v811 = vunpack.c.l.b16 %v102
  %v812 = vunpack.c.h.b16 %v102
  %v813 = vunpack.c.l.b16 %v103
  %v814 = vunpack.c.h.b16 %v103
  %v815 = vunpack.c.l.b16 %v104
  %v816 = vunpack.c.h.b16 %v104
  %v817 = vunpack.c.l.b16 %v105
  %v818 = vunpack.c.h.b16 %v105
  %v819 = vunpack.c.l.b16 %v106
  %v820 = vunpack.c.h.b16 %v106
  %v821 = vunpack.c.l.b16 %v107
  %v822 = vunpack.c.h.b16 %v107
  %v823 = vunpack.c.l.b16 %v108
  %v824 = vunpack.c.h.b16 %v108
  %v825 = vunpack.c.l.b16 %v109
  %v826 = vunpack.c.h.b16 %v109
  %v827 = vunpack.c.l.b16 %v110
  %v828 = vunpack.c.h.b16 %v110
  %v829 = vunpack.c.l.b16 %v111
  %v830 = vunpack.c.h.b16 %v111
  %v831 = vunpack.c.l.b16 %v112
  %v832 = vunpack.c.h.b16 %v112
  %v833 = vunpack.c.l.b16 %v113
  %v834 = vunpack.c.h.b16 %v113
  %v835 = vunpack.c.l.b16 %v114
  %v836 = vunpack.c.h.b16 %v114
  %v837 = vunpack.c.l.b16 %v115
  %v838 = vunpack.c.h.b16 %v115
  %v839 = vunpack.c.l.b16 %v116
  %v840 = vunpack.c.h.b16 %v116
  %v841 = vunpack.c.l.b16 %v117
  %v842 = vunpack.c.h.b16 %v117
  %v843 = vunpack.c.l.b16 %v118
  %v844 = vunpack.c.h.b16 %v118
  %v845 = vunpack.c.l.b16 %v119
  %v846 = vunpack.c.h.b16 %v119
  %v847 = vunpack.c.l.b16 %v120
  %v848 = vunpack.c.h.b16 %v120
  %v849 = vunpack.c.l.b16 %v121
  %v850 = vunpack.c.h.b16 %v121
  %v851 = vunpack.c.l.b16 %v122
  %v852 = vunpack.c.h.b16 %v122
  %v853 = vunpack.c.l.b16 %v123
  %v854 = vunpack.c.h.b16 %v123
  %v855 = vunpack.c.l.b16 %v124
  %v856 = vunpack.c.h.b16 %v124
  %v857 = vunpack.c.l.b16 %v125
  %v858 = vunpack.c.h.b16 %v125
  %v859 = vunpack.c.l.b16 %v126
  %v860 = vunpack.c.h.b16 %v126
  %v861 = vunpack.c.l.b16 %v127
  %v862 = vunpack.c.h.b16 %v127
  %v863 = vunpack.c.l.b16 %v128
  %v864 = vunpack.c.h.b16 %v128
  %v865 = vunpack.c.l.b16 %v129
  %v866 = vunpack.c.h.b16 %v129
  %v867 = vunpack.c.l.b16 %v130
  %v868 = vunpack.c.h.b16 %v130
  %v869 = vunpack.c.l.b16 %v131
  %v870 = vunpack.c.h.b16 %v131
  %v871 = vunpack.c.l.b16 %v132
  %v872 = vunpack.c.h.b16 %v132
  %v873 = vunpack.c.l.b16 %v133
  %v874 = vunpack.c.h.b16 %v133
  %v875 = vunpack.c.l.b16 %v134
  %v876 = vunpack.c.h.b16 %v134
  %v877 = vunpack.c.l.b16 %v135
  %v878 = vunpack.c.h.b16 %v135
  %v879 = vunpack.c.l.b16 %v136
  %v880 = vunpack.c.h.b16 %v136
  %v881 = vunpack.c.l.b16 %v137
  %v882 = vunpack.c.h.b16 %v137
  %v883 = vunpack.c.l.b16 %v138
  %v884 = vunpack.c.h.b16 %v138
  %v885 = vunpack.c.l.b16 %v139
  %v886 = vunpack.c.h.b16 %v139
  %v887 = vunpack.c.l.b16 %v140
  %v888 = vunpack.c.h.b16 %v140
  %v889 = vunpack.c.l.b16 %v141
  %v890 = vunpack.c.h.b16 %v141
  %v891 = vunpack.c.l.b16 %v142
  %v892 = vunpack.c.h.b16 %v142
  %v893 = vunpack.c.l.b16 %v143
  %v894 = vunpack.c.h.b16 %v143
  %v895 = vunpack.c.l.b16 %v144
  %v896 = vunpack.c.h.b16 %v144
  %v897 = vunpack.c.l.b16 %v145
  %v898 = vunpack.c.h.b16 %v145
  %v899 = vunpack.c.l.b16 %v146
  %v900 = vunpack.c.h.b16 %v146
  %v901 = vunpack.c.l.b16 %v147
  %v902 = vunpack.c.h.b16 %v147
  %v903 = vunpack.c.l.b16 %v148
  %v904 = vunpack.c.h.b16 %v148
  %v905 = vunpack.c.l.b16 %v149
  %v906 = vunpack.c.h.b16 %v149
  %v907 = vunpack.c.l.b16 %v150
  %v908 = vunpack.c.h.b16 %v150
  %v909 = vunpack.c.l.b16 %v151
  %v910 = vunpack.c.h.b16 %v151
  %v911 = vunpack.c.l.b16 %v152
  %v912 = vunpack.c.h.b16 %v152
  %v913 = vunpack.c.l.b16 %v153
  %v914 = vunpack.c.h.b16 %v153
  %v915 = vunpack.c.l.b16 %v154
  %v916 = vunpack.c.h.b16 %v154
  %v917 = vunpack.c.l.b16 %v155
  %v918 = vunpack.c.h.b16 %v155
  %v919 = vunpack.c.l.b16 %v156
  %v920 = vunpack.c.h.b16 %v156
  %v921 = vunpack.c.l.b16 %v157
  %v922 = vunpack.c.h.b16 %v157
  %v923 = vunpack.c.l.b16 %v158
  %v924 = vunpack.c.h.b16 %v158
  %v925 = vunpack.c.l.b16 %v159
  %v926 = vunpack.c.h.b16 %v159
  %v927 = vunpack.c.l.b16 %v160
  %v928 = vunpack.c.h.b16 %v160
  %v929 = vunpack.c.l.b16 %v161
  %v930 = vunpack.c.h.b16 %v161
  %v931 = vunpack.c.l.b16 %v162
  %v932 = vunpack.c.h.b16 %v162
  %v933 = vunpack.c.l.b16 %v163
  %v934 = vunpack.c.h.b16 %v163
  %v935 = vunpack.c.l.b16 %v164
  %v936 = vunpack.c.h.b16 %v164
  %v937 = vunpack.c.l.b16 %v165
  %v938 = vunpack.c.h.b16 %v165
  %v939 = vunpack.c.l.b16 %v166
  %v940 = vunpack.c.h.b16 %v166
  %v941 = vunpack.c.l.b16 %v167
  %v942 = vunpack.c.h.b16 %v167
  %v943 = vunpack.c.l.b16 %v168
  %v944 = vunpack.c.h.b16 %v168
  %v945 = vunpack.c.l.b16 %v169
  %v946 = vunpack.c.h.b16 %v169
  %v947 = vunpack.c.l.b16 %v170
  %v948 = vunpack.c.h.b16 %v170
  %v949 = vunpack.c.l.b16 %v171
  %v950 = vunpack.c.h.b16 %v171
  %v951 = vunpack.c.l.b16 %v172
  %v952 = vunpack.c.h.b16 %v172
  %v953 = vunpack.c.l.b16 %v173
  %v954 = vunpack.c.h.b16 %v173
  %v955 = vunpack.c.l.b16 %v174
  %v956 = vunpack.c.h.b16 %v174
  %v957 = vunpack.c.l.b16 %v175
  %v958 = vunpack.c.h.b16 %v175
  %v959 = vunpack.c.l.b16 %v176
  %v960 = vunpack.c.h.b16 %v176
  %v961 = vunpack.c.l.b16 %v177
  %v962 = vunpack.c.h.b16 %v177
  %v963 = vunpack.c.l.b16 %v178
  %v964 = vunpack.c.h.b16 %v178
  %v965 = vunpack.c.l.b16 %v179
  %v966 = vunpack.c.h.b16 %v179
  %v967 = vunpack.c.l.b16 %v180
  %v968 = vunpack.c.h.b16 %v180
  %v969 = vunpack.c.l.b16 %v181
  %v970 = vunpack.c.h.b16 %v181
  %v971 = vunpack.c.l.b16 %v182
  %v972 = vunpack.c.h.b16 %v182
  %v973 = vunpack.c.l.b16 %v183
  %v974 = vunpack.c.h.b16 %v183
  %v975 = vunpack.c.l.b16 %v184
  %v976 = vunpack.c.h.b16 %v184
  %v977 = vunpack.c.l.b16 %v185
  %v978 = vunpack.c.h.b16 %v185
  %v979 = vunpack.c.l.b16 %v186
  %v980 = vunpack.c.h.b16 %v186
  %v981 = vunpack.c.l.b16 %v187
  %v982 = vunpack.c.h.b16 %v187
  %v983 = vunpack.c.l.b16 %v188
  %v984 = vunpack.c.h.b16 %v188
  %v985 = vunpack.c.l.b16 %v189
  %v986 = vunpack.c.h.b16 %v189
  %v987 = vunpack.c.l.b16 %v190
  %v988 = vunpack.c.h.b16 %v190
  %v989 = vunpack.c.l.b16 %v191
  %v990 = vunpack.c.h.b16 %v191
  %v991 = vunpack.c.l.b16 %v192
  %v992 = vunpack.c.h.b16 %v192
  %v993 = vunpack.c.l.b16 %v193
  %v994 = vunpack.c.h.b16 %v193
  %v995 = vunpack.c.l.b16 %v194
  %v996 = vunpack.c.h.b16 %v194
  %v997 = vunpack.c.l.b16 %v195
  %v998 = vunpack.c.h.b16 %v195
  %v999 = vunpack.c.l.b16 %v196
  %v1000 = vunpack.c.h.b16 %v196
  %v1001 = vunpack.c.l.b16 %v197
  %v1002 = vunpack.c.h.b16 %v197
  %v1003 = vunpack.c.l.b16 %v198
  %v1004 = vunpack.c.h.b16 %v198
  %v1005 = vunpack.c.l.b16 %v199
  %v1006 = vunpack.c.h.b16 %v199
  %v1007 = vunpack.c.l.b16 %v200
  %v1008 = vunpack.c.h.b16 %v200
  %v1009 = vunpack.c.l.b16 %v201
  %v1010 = vunpack.c.h.b16 %v201
  %v1011 = vunpack.c.l.b16 %v202
  %v1012 = vunpack.c.h.b16 %v202
  %v1013 = vunpack.c.l.b16 %v203
  %v1014 = vunpack.c.h.b16 %v203
  %v1015 = vunpack.c.l.b16 %v204
  %v1016 = vunpack.c.h.b16 %v204
  %v1017 = vunpack.c.l.b16 %v205
  %v1018 = vunpack.c.h.b16 %v205
  %v1019 = vunpack.c.l.b16 %v206
  %v1020 = vunpack.c.h.b16 %v206
  %v1021 = vunpack.c.l.b16 %v207
  %v1022 = vunpack.c.h.b16 %v207
  %v1023 = vunpack.c.l.b16 %v208
  %v1024 = vunpack.c.h.b16 %v208
  %v1025 = vunpack.c.l.b16 %v209
  %v1026 = vunpack.c.h.b16 %v209
  %v1027 = vunpack.c.l.b16 %v210
  %v1028 = vunpack.c.h.b16 %v210
  %v1029 = vunpack.c.l.b16 %v211
  %v1030 = vunpack.c.h.b16 %v211
  %v1031 = vunpack.c.l.b16 %v212
  %v1032 = vunpack.c.h.b16 %v212
  %v1033 = vunpack.c.l.b16 %v213
  %v1034 = vunpack.c.h.b16 %v213
  %v1035 = vunpack.c.l.b16 %v214
  %v1036 = vunpack.c.h.b16 %v214
  %v1037 = vunpack.c.l.b16 %v215
  %v1038 = vunpack.c.h.b16 %v215
  %v1039 = vunpack.c.l.b16 %v216
  %v1040 = vunpack.c.h.b16 %v216
  %v1041 = vunpack.c.l.b16 %v217
  %v1042 = vunpack.c.h.b16 %v217
  %v1043 = vunpack.c.l.b16 %v218
  %v1044 = vunpack.c.h.b16 %v218
  %v1045 = vunpack.c.l.b16 %v219
  %v1046 = vunpack.c.h.b16 %v219
  %v1047 = vunpack.c.l.b16 %v220
  %v1048 = vunpack.c.h.b16 %v220
  %v1049 = vunpack.c.l.b16 %v221
  %v1050 = vunpack.c.h.b16 %v221
  %v1051 = vunpack.c.l.b16 %v222
  %v1052 = vunpack.c.h.b16 %v222
  %v1053 = vunpack.c.l.b16 %v223
  %v1054 = vunpack.c.h.b16 %v223
  %v1055 = vunpack.c.l.b16 %v224
  %v1056 = vunpack.c.h.b16 %v224
  %v1057 = vunpack.c.l.b16 %v225
  %v1058 = vunpack.c.h.b16 %v225
  %v1059 = vunpack.c.l.b16 %v226
  %v1060 = vunpack.c.h.b16 %v226
  %v1061 = vunpack.c.l.b16 %v227
  %v1062 = vunpack.c.h.b16 %v227
  %v1063 = vunpack.c.l.b16 %v228
  %v1064 = vunpack.c.h.b16 %v228
  %v1065 = vunpack.c.l.b16 %v229
  %v1066 = vunpack.c.h.b16 %v229
  %v1067 = vunpack.c.l.b16 %v230
  %v1068 = vunpack.c.h.b16 %v230
  %v1069 = vunpack.c.l.b16 %v231
  %v1070 = vunpack.c.h.b16 %v231
  %v1071 = vunpack.c.l.b16 %v232
  %v1072 = vunpack.c.h.b16 %v232
  %v1073 = vunpack.c.l.b16 %v233
  %v1074 = vunpack.c.h.b16 %v233
  %v1075 = vunpack.c.l.b16 %v234
  %v1076 = vunpack.c.h.b16 %v234
  %v1077 = vunpack.c.l.b16 %v235
  %v1078 = vunpack.c.h.b16 %v235
  %v1079 = vunpack.c.l.b16 %v236
  %v1080 = vunpack.c.h.b16 %v236
  %v1081 = vunpack.c.l.b16 %v237
  %v1082 = vunpack.c.h.b16 %v237
  %v1083 = vunpack.c.l.b16 %v238
  %v1084 = vunpack.c.h.b16 %v238
  %v1085 = vunpack.c.l.b16 %v239
  %v1086 = vunpack.c.h.b16 %v239
  %v1087 = vunpack.c.l.b16 %v240
  %v1088 = vunpack.c.h.b16 %v240
  %v1089 = vunpack.c.l.b16 %v241
  %v1090 = vunpack.c.h.b16 %v241
  %v1091 = vunpack.c.l.b16 %v242
  %v1092 = vunpack.c.h.b16 %v242
  %v1093 = vunpack.c.l.b16 %v243
  %v1094 = vunpack.c.h.b16 %v243
  %v1095 = vunpack.c.l.b16 %v244
  %v1096 = vunpack.c.h.b16 %v244
  %v1097 = vunpack.c.l.b16 %v245
  %v1098 = vunpack.c.h.b16 %v245
  %v1099 = vunpack.c.l.b16 %v246
  %v1100 = vunpack.c.h.b16 %v246
  %v1101 = vunpack.c.l.b16 %v247
  %v1102 = vunpack.c.h.b16 %v247
  %v1103 = vunpack.c.l.b16 %v248
  %v1104 = vunpack.c.h.b16 %v248
  %v1105 = vunpack.c.l.b16 %v249
  %v1106 = vunpack.c.h.b16 %v249
  %v1107 = vunpack.c.l.b16 %v250
  %v1108 = vunpack.c.h.b16 %v250
  %v1109 = vunpack.c.l.b16 %v251
  %v1110 = vunpack.c.h.b16 %v251
  %v1111 = vunpack.c.l.b16 %v252
  %v1112 = vunpack.c.h.b16 %v252
  %v1113 = vunpack.c.l.b16 %v253
  %v1114 = vunpack.c.h.b16 %v253
  %v1115 = vunpack.c.l.b16 %v254
  %v1116 = vunpack.c.h.b16 %v254
  %v1117 = vunpack.c.l.b16 %v255
  %v1118 = vunpack.c.h.b16 %v255
  %v1119 = vunpack.c.l.b16 %v256
  %v1120 = vunpack.c.h.b16 %v256
  %v1121 = vunpack.c.l.b16 %v257
  %v1122 = vunpack.c.h.b16 %v257
  %v1123 = vunpack.c.l.b16 %v258
  %v1124 = vunpack.c.h.b16 %v258
  %v1125 = vunpack.c.l.b16 %v259
  %v1126 = vunpack.c.h.b16 %v259
  %v1127 = vunpack.c.l.b16 %v260
  %v1128 = vunpack.c.h.b16 %v260
  %v1129 = vunpack.c.l.b16 %v261
  %v1130 = vunpack.c.h.b16 %v261
  %v1131 = vunpack.c.l.b16 %v262
  %v1132 = vunpack.c.h.b16 %v262
  %v1133 = vunpack.c.l.b16 %v263
  %v1134 = vunpack.c.h.b16 %v263
  %v1135 = vunpack.c.l.b16 %v264
  %v1136 = vunpack.c.h.b16 %v264
  %v1137 = vunpack.c.l.b16 %v265
  %v1138 = vunpack.c.h.b16 %v265
  %v1139 = vunpack.c.l.b16 %v266
  %v1140 = vunpack.c.h.b16 %v266
  %v1141 = vunpack.c.l.b16 %v267
  %v1142 = vunpack.c.h.b16 %v267
  %v1143 = vunpack.c.l.b16 %v268
  %v1144 = vunpack.c.h.b16 %v268
  %v1145 = vunpack.c.l.b16 %v269
  %v1146 = vunpack.c.h.b16 %v269
  %v1147 = vunpack.c.l.b16 %v270
  %v1148 = vunpack.c.h.b16 %v270
  %v1149 = vunpack.c.l.b16 %v271
  %v1150 = vunpack.c.h.b16 %v271
  %v1151 = vunpack.c.l.b16 %v272
  %v1152 = vunpack.c.h.b16 %v272
  %v1153 = vunpack.c.l.b16 %v273
  %v1154 = vunpack.c.h.b16 %v273
  %v1155 = vunpack.c.l.b16 %v274
  %v1156 = vunpack.c.h.b16 %v274
  %v1157 = vunpack.c.l.b16 %v275
  %v1158 = vunpack.c.h.b16 %v275
  %v1159 = vunpack.c.l.b16 %v276
  %v1160 = vunpack.c.h.b16 %v276
  %v1161 = vunpack.c.l.b16 %v277
  %v1162 = vunpack.c.h.b16 %v277
  %v1163 = vunpack.c.l.b16 %v278
  %v1164 = vunpack.c.h.b16 %v278
  %v1165 = vunpack.c.l.b16 %v279
  %v1166 = vunpack.c.h.b16 %v279
  %v1167 = vunpack.c.l.b16 %v280
  %v1168 = vunpack.c.h.b16 %v280
  %v1169 = vunpack.c.l.b16 %v281
  %v1170 = vunpack.c.h.b16 %v281
  %v1171 = vunpack.c.l.b16 %v282
  %v1172 = vunpack.c.h.b16 %v282
  %v1173 = vunpack.c.l.b16 %v283
  %v1174 = vunpack.c.h.b16 %v283
  %v1175 = vunpack.c.l.b16 %v284
  %v1176 = vunpack.c.h.b16 %v284
  %v1177 = vunpack.c.l.b16 %v285
  %v1178 = vunpack.c.h.b16 %v285
  %v1179 = vunpack.c.l.b16 %v286
  %v1180 = vunpack.c.h.b16 %v286
  %v1181 = vunpack.c.l.b16 %v287
  %v1182 = vunpack.c.h.b16 %v287
  %v1183 = vunpack.c.l.b16 %v288
  %v1184 = vunpack.c.h.b16 %v288
  %v1185 = vunpack.c.l.b16 %v289
  %v1186 = vunpack.c.h.b16 %v289
  %v1187 = vunpack.c.l.b16 %v290
  %v1188 = vunpack.c.h.b16 %v290
  %v1189 = vunpack.c.l.b16 %v291
  %v1190 = vunpack.c.h.b16 %v291
  %v1191 = vunpack.c.l.b16 %v292
  %v1192 = vunpack.c.h.b16 %v292
  %v1193 = vunpack.c.l.b16 %v293
  %v1194 = vunpack.c.h.b16 %v293
  %v1195 = vunpack.c.l.b16 %v294
  %v1196 = vunpack.c.h.b16 %v294
  %v1197 = vunpack.c.l.b16 %v295
  %v1198 = vunpack.c.h.b16 %v295
  %v1199 = vunpack.c.l.b16 %v296
  %v1200 = vunpack.c.h.b16 %v296
  %v1201 = vunpack.c.l.b16 %v297
  %v1202 = vunpack.c.h.b16 %v297
  %v1203 = vunpack.c.l.b16 %v298
  %v1204 = vunpack.c.h.b16 %v298
  %v1205 = vunpack.c.l.b16 %v299
  %v1206 = vunpack.c.h.b16 %v299
  %v1207 = vunpack.c.l.b16 %v300
  %v1208 = vunpack.c.h.b16 %v300
  %v1209 = vunpack.c.l.b16 %v301
  %v1210 = vunpack.c.h.b16 %v301
  %v1211 = vunpack.c.l.b16 %v302
  %v1212 = vunpack.c.h.b16 %v302
  %v1213 = vunpack.c.l.b16 %v303
  %v1214 = vunpack.c.h.b16 %v303
  %v1215 = vunpack.c.l.b16 %v304
  %v1216 = vunpack.c.h.b16 %v304
  %v1217 = vunpack.c.l.b16 %v305
  %v1218 = vunpack.c.h.b16 %v305
  %v1219 = vunpack.c.l.b16 %v306
  %v1220 = vunpack.c.h.b16 %v306
  %v1221 = vunpack.c.l.b16 %v307
  %v1222 = vunpack.c.h.b16 %v307
  %v1223 = vunpack.c.l.b16 %v308
  %v1224 = vunpack.c.h.b16 %v308
  %v1225 = vunpack.c.l.b16 %v309
  %v1226 = vunpack.c.h.b16 %v309
  %v1227 = vunpack.c.l.b16 %v310
  %v1228 = vunpack.c.h.b16 %v310
  %v1229 = vunpack.c.l.b16 %v311
  %v1230 = vunpack.c.h.b16 %v311
  %v1231 = vunpack.c.l.b16 %v312
  %v1232 = vunpack.c.h.b16 %v312
  %v1233 = vunpack.c.l.b16 %v313
  %v1234 = vunpack.c.h.b16 %v313
  %v1235 = vunpack.c.l.b16 %v314
  %v1236 = vunpack.c.h.b16 %v314
  %v1237 = vunpack.c.l.b16 %v315
  %v1238 = vunpack.c.h.b16 %v315
  %v1239 = vunpack.c.l.b16 %v316
  %v1240 = vunpack.c.h.b16 %v316
  %v1241 = vunpack.c.l.b16 %v317
  %v1242 = vunpack.c.h.b16 %v317
  %v1243 = vunpack.c.l.b16 %v318
  %v1244 = vunpack.c.h.b16 %v318
  %v1245 = vunpack.c.l.b16 %v319
  %v1246 = vunpack.c.h.b16 %v319
  %v1247 = vunpack.c.l.b16 %v320
  %v1248 = vunpack.c.h.b16 %v320
  %v1249 = vunpack.c.l.b16 %v321
  %v1250 = vunpack.c.h.b16 %v321
  %v1251 = vunpack.c.l.b16 %v322
  %v1252 = vunpack.c.h.b16 %v322
  %v1253 = vunpack.c.l.b16 %v323
  %v1254 = vunpack.c.h.b16 %v323
  %v1255 = vunpack.c.l.b16 %v324
  %v1256 = vunpack.c.h.b16 %v324
  %v1257 = vpack.c.b16 %v685, %v681
  %v1258 = vpack.c.b16 %v686, %v682
  %v1259 = vpack.c.b16 %v687, %v683
  %v1260 = vpack.c.b16 %v688, %v684
  %v1261 = vpack.c.b16 %v693, %v689
  %v1262 = vpack.c.b16 %v694, %v690
  %v1263 = vpack.c.b16 %v695, %v691
  %v1264 = vpack.c.b16 %v696, %v692
  %v1265 = vpack.c.b16 %v701, %v697
  %v1266 = vpack.c.b16 %v702, %v698
  %v1267 = vpack.c.b16 %v703, %v699
  %v1268 = vpack.c.b16 %v704, %v700
  %v1269 = vpack.c.b16 %v709, %v705
  %v1270 = vpack.c.b16 %v710, %v706
  %v1271 = vpack.c.b16 %v711, %v707
  %v1272 = vpack.c.b16 %v712, %v708
  %v1273 = vpack.c.b16 %v717, %v713
  %v1274 = vpack.c.b16 %v718, %v714
  %v1275 = vpack.c.b16 %v719, %v715
  %v1276 = vpack.c.b16 %v720, %v716
  %v1277 = vpack.c.b16 %v725, %v721
  %v1278 = vpack.c.b16 %v726, %v722
  %v1279 = vpack.c.b16 %v727, %v723
  %v1280 = vpack.c.b16 %v728, %v724
  %v1281 = vpack.c.b16 %v733, %v729
  %v1282 = vpack.c.b16 %v734, %v730
  %v1283 = vpack.c.b16 %v735, %v731
  %v1284 = vpack.c.b16 %v736, %v732
  %v1285 = vpack.c.b16 %v741, %v737
  %v1286 = vpack.c.b16 %v742, %v738
  %v1287 = vpack.c.b16 %v743, %v739
  %v1288 = vpack.c.b16 %v744, %v740
  %v1289 = vpack.c.b16 %v749, %v745
  %v1290 = vpack.c.b16 %v750, %v746
  %v1291 = vpack.c.b16 %v751, %v747
  %v1292 = vpack.c.b16 %v752, %v748
  %v1293 = vpack.c.b16 %v757, %v753
  %v1294 = vpack.c.b16 %v758, %v754
  %v1295 = vpack.c.b16 %v759, %v755
  %v1296 = vpack.c.b16 %v760, %v756
  %v1297 = vpack.c.b16 %v765, %v761
  %v1298 = vpack.c.b16 %v766, %v762
  %v1299 = vpack.c.b16 %v767, %v763
  %v1300 = vpack.c.b16 %v768, %v764
  %v1301 = vpack.c.b16 %v773, %v769
  %v1302 = vpack.c.b16 %v774, %v770
  %v1303 = vpack.c.b16 %v775, %v771
  %v1304 = vpack.c.b16 %v776, %v772
  %v1305 = vpack.c.b16 %v781, %v777
  %v1306 = vpack.c.b16 %v782, %v778
  %v1307 = vpack.c.b16 %v783, %v779
  %v1308 = vpack.c.b16 %v784, %v780
  %v1309 = vpack.c.b16 %v789, %v785
  %v1310 = vpack.c.b16 %v790, %v786
  %v1311 = vpack.c.b16 %v791, %v787
  %v1312 = vpack.c.b16 %v792, %v788
  %v1313 = vpack.c.b16 %v797, %v793
  %v1314 = vpack.c.b16 %v798, %v794
  %v1315 = vpack.c.b16 %v799, %v795
  %v1316 = vpack.c.b16 %v800, %v796
  %v1317 = vpack.c.b16 %v805, %v801
  %v1318 = vpack.c.b16 %v806, %v802
  %v1319 = vpack.c.b16 %v807, %v803
  %v1320 = vpack.c.b16 %v808, %v804
  %v1321 = vpack.c.b16 %v813, %v809
  %v1322 = vpack.c.b16 %v814, %v810
  %v1323 = vpack.c.b16 %v815, %v811
  %v1324 = vpack.c.b16 %v816, %v812
  %v1325 = vpack.c.b16 %v821, %v817
  %v1326 = vpack.c.b16 %v822, %v818
  %v1327 = vpack.c.b16 %v823, %v819
  %v1328 = vpack.c.b16 %v824, %v820
  %v1329 = vpack.c.b16 %v829, %v825
  %v1330 = vpack.c.b16 %v830, %v826
  %v1331 = vpack.c.b16 %v831, %v827
  %v1332 = vpack.c.b16 %v832, %v828
  %v1333 = vpack.c.b16 %v837, %v833
  %v1334 = vpack.c.b16 %v838, %v834
  %v1335 = vpack.c.b16 %v839, %v835
  %v1336 = vpack.c.b16 %v840, %v836
  %v1337 = vpack.c.b16 %v845, %v841
  %v1338 = vpack.c.b16 %v846, %v842
  %v1339 = vpack.c.b16 %v847, %v843
  %v1340 = vpack.c.b16 %v848, %v844
  %v1341 = vpack.c.b16 %v853, %v849
  %v1342 = vpack.c.b16 %v854, %v850
  %v1343 = vpack.c.b16 %v855, %v851
  %v1344 = vpack.c.b16 %v856, %v852
  %v1345 = vpack.c.b16 %v861, %v857
  %v1346 = vpack.c.b16 %v862, %v858
  %v1347 = vpack.c.b16 %v863, %v859
  %v1348 = vpack.c.b16 %v864, %v860
  %v1349 = vpack.c.b16 %v869, %v865
  %v1350 = vpack.c.b16 %v870, %v866
  %v1351 = vpack.c.b16 %v871, %v867
  %v1352 = vpack.c.b16 %v872, %v868
  %v1353 = vpack.c.b16 %v877, %v873
  %v1354 = vpack.c.b16 %v878, %v874
  %v1355 = vpack.c.b16 %v879, %v875
  %v1356 = vpack.c.b16 %v880, %v876
  %v1357 = vpack.c.b16 %v885, %v881
  %v1358 = vpack.c.b16 %v886, %v882
  %v1359 = vpack.c.b16 %v887, %v883
  %v1360 = vpack.c.b16 %v888, %v884
  %v1361 = vpack.c.b16 %v893, %v889
  %v1362 = vpack.c.b16 %v894, %v890
  %v1363 = vpack.c.b16 %v895, %v891
  %v1364 = vpack.c.b16 %v896, %v892
  %v1365 = vpack.c.b16 %v901, %v897
  %v1366 = vpack.c.b16 %v902, %v898
  %v1367 = vpack.c.b16 %v903, %v899
  %v1368 = vpack.c.b16 %v904, %v900
  %v1369 = vpack.c.b16 %v909, %v905
  %v1370 = vpack.c.b16 %v910, %v906
  %v1371 = vpack.c.b16 %v911, %v907
  %v1372 = vpack.c.b16 %v912, %v908
  %v1373 = vpack.c.b16 %v917, %v913
  %v1374 = vpack.c.b16 %v918, %v914
  %v1375 = vpack.c.b16 %v919, %v915
  %v1376 = vpack.c.b16 %v920, %v916
  %v1377 = vpack.c.b16 %v925, %v921
  %v1378 = vpack.c.b16 %v926, %v922
  %v1379 = vpack.c.b16 %v927, %v923
  %v1380 = vpack.c.b16 %v928, %v924
  %v1381 = vpack.c.b16 %v933, %v929
  %v1382 = vpack.c.b16 %v934, %v930
  %v1383 = vpack.c.b16 %v935, %v931
  %v1384 = vpack.c.b16 %v936, %v932
  %v1385 = vpack.c.b16 %v941, %v937
  %v1386 = vpack.c.b16 %v942, %v938
  %v1387 = vpack.c.b16 %v943, %v939
  %v1388 = vpack.c.b16 %v944, %v940
  %v1389 = vpack.c.b16 %v949, %v945
  %v1390 = vpack.c.b16 %v950, %v946
  %v1391 = vpack.c.b16 %v951, %v947
  %v1392 = vpack.c.b16 %v952, %v948
  %v1393 = vpack.c.b16 %v957, %v953
  %v1394 = vpack.c.b16 %v958, %v954
  %v1395 = vpack.c.b16 %v959, %v955
  %v1396 = vpack.c.b16 %v960, %v956
  %v1397 = vpack.c.b16 %v965, %v961
  %v1398 = vpack.c.b16 %v966, %v962
  %v1399 = vpack.c.b16 %v967, %v963
  %v1400 = vpack.c.b16 %v968, %v964
  %v1401 = vpack.c.b16 %v973, %v969
  %v1402 = vpack.c.b16 %v974, %v970
  %v1403 = vpack.c.b16 %v975, %v971
  %v1404 = vpack.c.b16 %v976, %v972
  %v1405 = vpack.c.b16 %v981, %v977
  %v1406 = vpack.c.b16 %v982, %v978
  %v1407 = vpack.c.b16 %v983, %v979
  %v1408 = vpack.c.b16 %v984, %v980
  %v1409 = vpack.c.b16 %v989, %v985
  %v1410 = vpack.c.b16 %v990, %v986
  %v1411 = vpack.c.b16 %v991, %v987
  %v1412 = vpack.c.b16 %v992, %v988
  %v1413 = vpack.c.b16 %v997, %v993
  %v1414 = vpack.c.b16 %v998, %v994
  %v1415 = vpack.c.b16 %v999, %v995
  %v1416 = vpack.c.b16 %v1000, %v996
  %v1417 = vpack.c.b16 %v1005, %v1001
  %v1418 = vpack.c.b16 %v1006, %v1002
  %v1419 = vpack.c.b16 %v1007, %v1003
  %v1420 = vpack.c.b16 %v1008, %v1004
  %v1421 = vpack.c.b16 %v1013, %v1009
  %v1422 = vpack.c.b16 %v1014, %v1010
  %v1423 = vpack.c.b16 %v1015, %v1011
  %v1424 = vpack.c.b16 %v1016, %v1012
  %v1425 = vpack.c.b16 %v1021, %v1017
  %v1426 = vpack.c.b16 %v1022, %v1018
  %v1427 = vpack.c.b16 %v1023, %v1019
  %v1428 = vpack.c.b16 %v1024, %v1020
  %v1429 = vpack.c.b16 %v1029, %v1025
  %v1430 = vpack.c.b16 %v1030, %v1026
  %v1431 = vpack.c.b16 %v1031, %v1027
  %v1432 = vpack.c.b16 %v1032, %v1028
  %v1433 = vpack.c.b16 %v1037, %v1033
  %v1434 = vpack.c.b16 %v1038, %v1034
  %v1435 = vpack.c.b16 %v1039, %v1035
  %v1436 = vpack.c.b16 %v1040, %v1036
  %v1437 = vpack.c.b16 %v1045, %v1041
  %v1438 = vpack.c.b16 %v1046, %v1042
  %v1439 = vpack.c.b16 %v1047, %v1043
  %v1440 = vpack.c.b16 %v1048, %v1044
  %v1441 = vpack.c.b16 %v1053, %v1049
  %v1442 = vpack.c.b16 %v1054, %v1050
  %v1443 = vpack.c.b16 %v1055, %v1051
  %v1444 = vpack.c.b16 %v1056, %v1052
  %v1445 = vpack.c.b16 %v1061, %v1057
  %v1446 = vpack.c.b16 %v1062, %v1058
  %v1447 = vpack.c.b16 %v1063, %v1059
  %v1448 = vpack.c.b16 %v1064, %v1060
  %v1449 = vpack.c.b16 %v1069, %v1065
  %v1450 = vpack.c.b16 %v1070, %v1066
  %v1451 = vpack.c.b16 %v1071, %v1067
  %v1452 = vpack.c.b16 %v1072, %v1068
  %v1453 = vpack.c.b16 %v1077, %v1073
  %v1454 = vpack.c.b16 %v1078, %v1074
  %v1455 = vpack.c.b16 %v1079, %v1075
  %v1456 = vpack.c.b16 %v1080, %v1076
  %v1457 = vpack.c.b16 %v1085, %v1081
  %v1458 = vpack.c.b16 %v1086, %v1082
  %v1459 = vpack.c.b16 %v1087, %v1083
  %v1460 = vpack.c.b16 %v1088, %v1084
  %v1461 = vpack.c.b16 %v1093, %v1089
  %v1462 = vpack.c.b16 %v1094, %v1090
  %v1463 = vpack.c.b16 %v1095, %v1091
  %v1464 = vpack.c.b16 %v1096, %v1092
  %v1465 = vpack.c.b16 %v1101, %v1097
  %v1466 = vpack.c.b16 %v1102, %v1098
  %v1467 = vpack.c.b16 %v1103, %v1099
  %v1468 = vpack.c.b16 %v1104, %v1100
  %v1469 = vpack.c.b16 %v1109, %v1105
  %v1470 = vpack.c.b16 %v1110, %v1106
  %v1471 = vpack.c.b16 %v1111, %v1107
  %v1472 = vpack.c.b16 %v1112, %v1108
  %v1473 = vpack.c.b16 %v1117, %v1113
  %v1474 = vpack.c.b16 %v1118, %v1114
  %v1475 = vpack.c.b16 %v1119, %v1115
  %v1476 = vpack.c.b16 %v1120, %v1116
  %v1477 = vpack.c.b16 %v1125, %v1121
  %v1478 = vpack.c.b16 %v1126, %v1122
  %v1479 = vpack.c.b16 %v1127, %v1123
  %v1480 = vpack.c.b16 %v1128, %v1124
  %v1481 = vpack.c.b16 %v1133, %v1129
  %v1482 = vpack.c.b16 %v1134, %v1130
  %v1483 = vpack.c.b16 %v1135, %v1131
  %v1484 = vpack.c.b16 %v1136, %v1132
  %v1485 = vpack.c.b16 %v1141, %v1137
  %v1486 = vpack.c.b16 %v1142, %v1138
  %v1487 = vpack.c.b16 %v1143, %v1139
  %v1488 = vpack.c.b16 %v1144, %v1140
  %v1489 = vpack.c.b16 %v1149, %v1145
  %v1490 = vpack.c.b16 %v1150, %v1146
  %v1491 = vpack.c.b16 %v1151, %v1147
  %v1492 = vpack.c.b16 %v1152, %v1148
  %v1493 = vpack.c.b16 %v1157, %v1153
  %v1494 = vpack.c.b16 %v1158, %v1154
  %v1495 = vpack.c.b16 %v1159, %v1155
  %v1496 = vpack.c.b16 %v1160, %v1156
  %v1497 = vpack.c.b16 %v1165, %v1161
  %v1498 = vpack.c.b16 %v1166, %v1162
  %v1499 = vpack.c.b16 %v1167, %v1163
  %v1500 = vpack.c.b16 %v1168, %v1164
  %v1501 = vpack.c.b16 %v1173, %v1169
  %v1502 = vpack.c.b16 %v1174, %v1170
  %v1503 = vpack.c.b16 %v1175, %v1171
  %v1504 = vpack.c.b16 %v1176, %v1172
  %v1505 = vpack.c.b16 %v1181, %v1177
  %v1506 = vpack.c.b16 %v1182, %v1178
  %v1507 = vpack.c.b16 %v1183, %v1179
  %v1508 = vpack.c.b16 %v1184, %v1180
  %v1509 = vpack.c.b16 %v1189, %v1185
  %v1510 = vpack.c.b16 %v1190, %v1186
  %v1511 = vpack.c.b16 %v1191, %v1187
  %v1512 = vpack.c.b16 %v1192, %v1188
  %v1513 = vpack.c.b16 %v1197, %v1193
  %v1514 = vpack.c.b16 %v1198, %v1194
  %v1515 = vpack.c.b16 %v1199, %v1195
  %v1516 = vpack.c.b16 %v1200, %v1196
  %v1517 = vpack.c.b16 %v1205, %v1201
  %v1518 = vpack.c.b16 %v1206, %v1202
  %v1519 = vpack.c.b16 %v1207, %v1203
  %v1520 = vpack.c.b16 %v1208, %v1204
  %v1521 = vpack.c.b16 %v1213, %v1209
  %v1522 = vpack.c.b16 %v1214, %v1210
  %v1523 = vpack.c.b16 %v1215, %v1211
  %v1524 = vpack.c.b16 %v1216, %v1212
  %v1525 = vpack.c.b16 %v1221, %v1217
  %v1526 = vpack.c.b16 %v1222, %v1218
  %v1527 = vpack.c.b16 %v1223, %v1219
  %v1528 = vpack.c.b16 %v1224, %v1220
  %v1529 = vpack.c.b16 %v1229, %v1225
  %v1530 = vpack.c.b16 %v1230, %v1226
  %v1531 = vpack.c.b16 %v1231, %v1227
  %v1532 = vpack.c.b16 %v1232, %v1228
  %v1533 = vpack.c.b16 %v1237, %v1233
  %v1534 = vpack.c.b16 %v1238, %v1234
  %v1535 = vpack.c.b16 %v1239, %v1235
  %v1536 = vpack.c.b16 %v1240, %v1236
  %v1537 = vpack.c.b16 %v1245, %v1241
  %v1538 = vpack.c.b16 %v1246, %v1242
  %v1539 = vpack.c.b16 %v1247, %v1243
  %v1540 = vpack.c.b16 %v1248, %v1244
  %v1541 = vpack.c.b16 %v1253, %v1249
  %v1542 = vpack.c.b16 %v1254, %v1250
  %v1543 = vpack.c.b16 %v1255, %v1251
  %v1544 = vpack.c.b16 %v1256, %v1252
  %1833 = vmatprep.subr.bf16.mxu0 %v1258
  %1834 = vmatpush1.bf16.msra.mxu0 %v1257
  %1835 = vmatprep.subr.bf16.mxu0 %v1262
  %1836 = vmatpush1.bf16.msra.mxu0 %v1261
  %1837 = vmatprep.subr.bf16.mxu0 %v1266
  %1838 = vmatpush1.bf16.msra.mxu0 %v1265
  %1839 = vmatprep.subr.bf16.mxu0 %v1270
  %1840 = vmatpush1.bf16.msra.mxu0 %v1269
  %1841 = vmatprep.subr.bf16.mxu0 %v1274
  %1842 = vmatpush1.bf16.msra.mxu0 %v1273
  %1843 = vmatprep.subr.bf16.mxu0 %v1278
  %1844 = vmatpush1.bf16.msra.mxu0 %v1277
  %1845 = vmatprep.subr.bf16.mxu0 %v1282
  %1846 = vmatpush1.bf16.msra.mxu0 %v1281
  %1847 = vmatprep.subr.bf16.mxu0 %v1286
  %1848 = vmatpush1.bf16.msra.mxu0 %v1285
  %1849 = vmatprep.subr.bf16.mxu0 %v1290
  %1850 = vmatpush1.bf16.msra.mxu0 %v1289
  %1851 = vmatprep.subr.bf16.mxu0 %v1294
  %1852 = vmatpush1.bf16.msra.mxu0 %v1293
  %1853 = vmatprep.subr.bf16.mxu0 %v1298
  %1854 = vmatpush1.bf16.msra.mxu0 %v1297
  %1855 = vmatprep.subr.bf16.mxu0 %v1302
  %1856 = vmatpush1.bf16.msra.mxu0 %v1301
  %1857 = vmatprep.subr.bf16.mxu0 %v1306
  %1858 = vmatpush1.bf16.msra.mxu0 %v1305
  %1859 = vmatprep.subr.bf16.mxu0 %v1310
  %1860 = vmatpush1.bf16.msra.mxu0 %v1309
  %1861 = vmatprep.subr.bf16.mxu0 %v1314
  %1862 = vmatpush1.bf16.msra.mxu0 %v1313
  %1863 = vmatprep.subr.bf16.mxu0 %v1318
  %1864 = vmatpush1.bf16.msra.mxu0 %v1317
  %1865 = vmatprep.mubr.bf16.mxu0 %v376
  %1866 = vmatmul.mubr.bf16.gmra.mrb[0].mxu0 %v375
  %v1867 = vpop.f32.mrb[0].mxu0
  %v1868 = vadd.f32 %v330, %v1867
  %v1869 = vpop.f32.mrb[0].mxu0
  %v1870 = vadd.f32 %v334, %v1869
  %v1871 = vpop.f32.mrb[0].mxu0
  %v1872 = vadd.f32 %v330, %v1871
  %v1873 = vpop.f32.mrb[0].mxu0
  %v1874 = vadd.f32 %v334, %v1873
  %1875 = vdwg.mxu0
  %1876 = vmatprep.subr.bf16.mxu0 %v1322
  %1877 = vmatpush1.bf16.msra.mxu0 %v1321
  %1878 = vmatprep.subr.bf16.mxu0 %v1326
  %1879 = vmatpush1.bf16.msra.mxu0 %v1325
  %1880 = vmatprep.subr.bf16.mxu0 %v1330
  %1881 = vmatpush1.bf16.msra.mxu0 %v1329
  %1882 = vmatprep.subr.bf16.mxu0 %v1334
  %1883 = vmatpush1.bf16.msra.mxu0 %v1333
  %1884 = vmatprep.subr.bf16.mxu0 %v1338
  %1885 = vmatpush1.bf16.msra.mxu0 %v1337
  %1886 = vmatprep.subr.bf16.mxu0 %v1342
  %1887 = vmatpush1.bf16.msra.mxu0 %v1341
  %1888 = vmatprep.subr.bf16.mxu0 %v1346
  %1889 = vmatpush1.bf16.msra.mxu0 %v1345
  %1890 = vmatprep.subr.bf16.mxu0 %v1350
  %1891 = vmatpush1.bf16.msra.mxu0 %v1349
  %1892 = vmatprep.subr.bf16.mxu0 %v1354
  %1893 = vmatpush1.bf16.msra.mxu0 %v1353
  %1894 = vmatprep.subr.bf16.mxu0 %v1358
  %1895 = vmatpush1.bf16.msra.mxu0 %v1357
  %1896 = vmatprep.subr.bf16.mxu0 %v1362
  %1897 = vmatpush1.bf16.msra.mxu0 %v1361
  %1898 = vmatprep.subr.bf16.mxu0 %v1366
  %1899 = vmatpush1.bf16.msra.mxu0 %v1365
  %1900 = vmatprep.subr.bf16.mxu0 %v1370
  %1901 = vmatpush1.bf16.msra.mxu0 %v1369
  %1902 = vmatprep.subr.bf16.mxu0 %v1374
  %1903 = vmatpush1.bf16.msra.mxu0 %v1373
  %1904 = vmatprep.subr.bf16.mxu0 %v1378
  %1905 = vmatpush1.bf16.msra.mxu0 %v1377
  %1906 = vmatprep.subr.bf16.mxu0 %v1382
  %1907 = vmatpush1.bf16.msra.mxu0 %v1381
  %1908 = vmatprep.mubr.bf16.mxu0 %v378
  %1909 = vmatmul.mubr.bf16.gmra.mrb[0].mxu0 %v377
  %v1910 = vpop.f32.mrb[0].mxu0
  %v1911 = vadd.f32 %v1868, %v1910
  %v1912 = vpop.f32.mrb[0].mxu0
  %v1913 = vadd.f32 %v1870, %v1912
  %v1914 = vpop.f32.mrb[0].mxu0
  %v1915 = vadd.f32 %v1872, %v1914
  %v1916 = vpop.f32.mrb[0].mxu0
  %v1917 = vadd.f32 %v1874, %v1916
  %1918 = vdwg.mxu0
  %1919 = vmatprep.subr.bf16.mxu0 %v1386
  %1920 = vmatpush1.bf16.msra.mxu0 %v1385
  %1921 = vmatprep.subr.bf16.mxu0 %v1390
  %1922 = vmatpush1.bf16.msra.mxu0 %v1389
  %1923 = vmatprep.subr.bf16.mxu0 %v1394
  %1924 = vmatpush1.bf16.msra.mxu0 %v1393
  %1925 = vmatprep.subr.bf16.mxu0 %v1398
  %1926 = vmatpush1.bf16.msra.mxu0 %v1397
  %1927 = vmatprep.subr.bf16.mxu0 %v1402
  %1928 = vmatpush1.bf16.msra.mxu0 %v1401
  %1929 = vmatprep.subr.bf16.mxu0 %v1406
  %1930 = vmatpush1.bf16.msra.mxu0 %v1405
  %1931 = vmatprep.subr.bf16.mxu0 %v1410
  %1932 = vmatpush1.bf16.msra.mxu0 %v1409
  %1933 = vmatprep.subr.bf16.mxu0 %v1414
  %1934 = vmatpush1.bf16.msra.mxu0 %v1413
  %1935 = vmatprep.subr.bf16.mxu0 %v1418
  %1936 = vmatpush1.bf16.msra.mxu0 %v1417
  %1937 = vmatprep.subr.bf16.mxu0 %v1422
  %1938 = vmatpush1.bf16.msra.mxu0 %v1421
  %1939 = vmatprep.subr.bf16.mxu0 %v1426
  %1940 = vmatpush1.bf16.msra.mxu0 %v1425
  %1941 = vmatprep.subr.bf16.mxu0 %v1430
  %1942 = vmatpush1.bf16.msra.mxu0 %v1429
  %1943 = vmatprep.subr.bf16.mxu0 %v1434
  %1944 = vmatpush1.bf16.msra.mxu0 %v1433
  %1945 = vmatprep.subr.bf16.mxu0 %v1438
  %1946 = vmatpush1.bf16.msra.mxu0 %v1437
  %1947 = vmatprep.subr.bf16.mxu0 %v1442
  %1948 = vmatpush1.bf16.msra.mxu0 %v1441
  %1949 = vmatprep.subr.bf16.mxu0 %v1446
  %1950 = vmatpush1.bf16.msra.mxu0 %v1445
  %1951 = vmatprep.mubr.bf16.mxu0 %v380
  %1952 = vmatmul.mubr.bf16.gmra.mrb[0].mxu0 %v379
  %v1953 = vpop.f32.mrb[0].mxu0
  %v1954 = vadd.f32 %v1911, %v1953
  %v1955 = vpop.f32.mrb[0].mxu0
  %v1956 = vadd.f32 %v1913, %v1955
  %v1957 = vpop.f32.mrb[0].mxu0
  %v1958 = vadd.f32 %v1915, %v1957
  %v1959 = vpop.f32.mrb[0].mxu0
  %v1960 = vadd.f32 %v1917, %v1959
  %1961 = vdwg.mxu0
  %1962 = vmatprep.subr.bf16.mxu0 %v1450
  %1963 = vmatpush1.bf16.msra.mxu0 %v1449
  %1964 = vmatprep.subr.bf16.mxu0 %v1454
  %1965 = vmatpush1.bf16.msra.mxu0 %v1453
  %1966 = vmatprep.subr.bf16.mxu0 %v1458
  %1967 = vmatpush1.bf16.msra.mxu0 %v1457
  %1968 = vmatprep.subr.bf16.mxu0 %v1462
  %1969 = vmatpush1.bf16.msra.mxu0 %v1461
  %1970 = vmatprep.subr.bf16.mxu0 %v1466
  %1971 = vmatpush1.bf16.msra.mxu0 %v1465
  %1972 = vmatprep.subr.bf16.mxu0 %v1470
  %1973 = vmatpush1.bf16.msra.mxu0 %v1469
  %1974 = vmatprep.subr.bf16.mxu0 %v1474
  %1975 = vmatpush1.bf16.msra.mxu0 %v1473
  %1976 = vmatprep.subr.bf16.mxu0 %v1478
  %1977 = vmatpush1.bf16.msra.mxu0 %v1477
  %1978 = vmatprep.subr.bf16.mxu0 %v1482
  %1979 = vmatpush1.bf16.msra.mxu0 %v1481
  %1980 = vmatprep.subr.bf16.mxu0 %v1486
  %1981 = vmatpush1.bf16.msra.mxu0 %v1485
  %1982 = vmatprep.subr.bf16.mxu0 %v1490
  %1983 = vmatpush1.bf16.msra.mxu0 %v1489
  %1984 = vmatprep.subr.bf16.mxu0 %v1494
  %1985 = vmatpush1.bf16.msra.mxu0 %v1493
  %1986 = vmatprep.subr.bf16.mxu0 %v1498
  %1987 = vmatpush1.bf16.msra.mxu0 %v1497
  %1988 = vmatprep.subr.bf16.mxu0 %v1502
  %1989 = vmatpush1.bf16.msra.mxu0 %v1501
  %1990 = vmatprep.subr.bf16.mxu0 %v1506
  %1991 = vmatpush1.bf16.msra.mxu0 %v1505
  %1992 = vmatprep.subr.bf16.mxu0 %v1510
  %1993 = vmatpush1.bf16.msra.mxu0 %v1509
  %1994 = vmatprep.mubr.bf16.mxu0 %v382
  %1995 = vmatmul.mubr.bf16.gmra.mrb[0].mxu0 %v381
  %v1996 = vpop.f32.mrb[0].mxu0
  %v1997 = vadd.f32 %v1954, %v1996
  %v1998 = vpop.f32.mrb[0].mxu0
  %v1999 = vadd.f32 %v1956, %v1998
  %v2000 = vpop.f32.mrb[0].mxu0
  %v2001 = vadd.f32 %v1958, %v2000
  %v2002 = vpop.f32.mrb[0].mxu0
  %v2003 = vadd.f32 %v1960, %v2002
  %2004 = vdwg.mxu0
  %2005 = vmatprep.subr.bf16.mxu0 %v1514
  %2006 = vmatpush1.bf16.msra.mxu0 %v1513
  %2007 = vmatprep.subr.bf16.mxu0 %v1518
  %2008 = vmatpush1.bf16.msra.mxu0 %v1517
  %2009 = vmatprep.subr.bf16.mxu0 %v1522
  %2010 = vmatpush1.bf16.msra.mxu0 %v1521
  %2011 = vmatprep.subr.bf16.mxu0 %v1526
  %2012 = vmatpush1.bf16.msra.mxu0 %v1525
  %2013 = vmatprep.subr.bf16.mxu0 %v1530
  %2014 = vmatpush1.bf16.msra.mxu0 %v1529
  %2015 = vmatprep.subr.bf16.mxu0 %v1534
  %2016 = vmatpush1.bf16.msra.mxu0 %v1533
  %2017 = vmatprep.subr.bf16.mxu0 %v1538
  %2018 = vmatpush1.bf16.msra.mxu0 %v1537
  %2019 = vmatprep.subr.bf16.mxu0 %v1542
  %2020 = vmatpush1.bf16.msra.mxu0 %v1541
  %2021 = vmatprep.subr.bf16.mxu0 0
  %2022 = vmatpush1.bf16.msra.mxu0 0
  %2023 = vmatprep.subr.bf16.mxu0 0
  %2024 = vmatpush1.bf16.msra.mxu0 0
  %2025 = vmatprep.subr.bf16.mxu0 0
  %2026 = vmatpush1.bf16.msra.mxu0 0
  %2027 = vmatprep.subr.bf16.mxu0 0
  %2028 = vmatpush1.bf16.msra.mxu0 0
  %2029 = vmatprep.subr.bf16.mxu0 0
  %2030 = vmatpush1.bf16.msra.mxu0 0
  %2031 = vmatprep.subr.bf16.mxu0 0
  %2032 = vmatpush1.bf16.msra.mxu0 0
  %2033 = vmatprep.subr.bf16.mxu0 0
  %2034 = vmatpush1.bf16.msra.mxu0 0
  %2035 = vmatprep.subr.bf16.mxu0 0
  %2036 = vmatpush1.bf16.msra.mxu0 0
  %2037 = vmatprep.mubr.bf16.mxu0 0
  %2038 = vmatmul.mubr.bf16.gmra.mrb[0].mxu0 %v383
  %v2039 = vpop.f32.mrb[0].mxu0
  %v2040 = vadd.f32 %v1997, %v2039
  %v2041 = vpop.f32.mrb[0].mxu0
  %v2042 = vadd.f32 %v1999, %v2041
  %v2043 = vpop.f32.mrb[0].mxu0
  %v2044 = vadd.f32 %v2001, %v2043
  %v2045 = vpop.f32.mrb[0].mxu0
  %v2046 = vadd.f32 %v2003, %v2045
  %2047 = vdwg.mxu0
  %2048 = vmatprep.subr.bf16.mxu0 %v1260
  %2049 = vmatpush1.bf16.msra.mxu0 %v1259
  %2050 = vmatprep.subr.bf16.mxu0 %v1264
  %2051 = vmatpush1.bf16.msra.mxu0 %v1263
  %2052 = vmatprep.subr.bf16.mxu0 %v1268
  %2053 = vmatpush1.bf16.msra.mxu0 %v1267
  %2054 = vmatprep.subr.bf16.mxu0 %v1272
  %2055 = vmatpush1.bf16.msra.mxu0 %v1271
  %2056 = vmatprep.subr.bf16.mxu0 %v1276
  %2057 = vmatpush1.bf16.msra.mxu0 %v1275
  %2058 = vmatprep.subr.bf16.mxu0 %v1280
  %2059 = vmatpush1.bf16.msra.mxu0 %v1279
  %2060 = vmatprep.subr.bf16.mxu0 %v1284
  %2061 = vmatpush1.bf16.msra.mxu0 %v1283
  %2062 = vmatprep.subr.bf16.mxu0 %v1288
  %2063 = vmatpush1.bf16.msra.mxu0 %v1287
  %2064 = vmatprep.subr.bf16.mxu0 %v1292
  %2065 = vmatpush1.bf16.msra.mxu0 %v1291
  %2066 = vmatprep.subr.bf16.mxu0 %v1296
  %2067 = vmatpush1.bf16.msra.mxu0 %v1295
  %2068 = vmatprep.subr.bf16.mxu0 %v1300
  %2069 = vmatpush1.bf16.msra.mxu0 %v1299
  %2070 = vmatprep.subr.bf16.mxu0 %v1304
  %2071 = vmatpush1.bf16.msra.mxu0 %v1303
  %2072 = vmatprep.subr.bf16.mxu0 %v1308
  %2073 = vmatpush1.bf16.msra.mxu0 %v1307
  %2074 = vmatprep.subr.bf16.mxu0 %v1312
  %2075 = vmatpush1.bf16.msra.mxu0 %v1311
  %2076 = vmatprep.subr.bf16.mxu0 %v1316
  %2077 = vmatpush1.bf16.msra.mxu0 %v1315
  %2078 = vmatprep.subr.bf16.mxu0 %v1320
  %2079 = vmatpush1.bf16.msra.mxu0 %v1319
  %2080 = vmatprep.mubr.bf16.mxu0 %v376
  %2081 = vmatmul.mubr.bf16.gmra.mrb[0].mxu0 %v375
  %v2082 = vpop.f32.mrb[0].mxu0
  %v2083 = vadd.f32 %v338, %v2082
  %v2084 = vpop.f32.mrb[0].mxu0
  %v2085 = vadd.f32 %v342, %v2084
  %v2086 = vpop.f32.mrb[0].mxu0
  %v2087 = vadd.f32 %v338, %v2086
  %v2088 = vpop.f32.mrb[0].mxu0
  %v2089 = vadd.f32 %v342, %v2088
  %2090 = vdwg.mxu0
  %2091 = vmatprep.subr.bf16.mxu0 %v1324
  %2092 = vmatpush1.bf16.msra.mxu0 %v1323
  %2093 = vmatprep.subr.bf16.mxu0 %v1328
  %2094 = vmatpush1.bf16.msra.mxu0 %v1327
  %2095 = vmatprep.subr.bf16.mxu0 %v1332
  %2096 = vmatpush1.bf16.msra.mxu0 %v1331
  %2097 = vmatprep.subr.bf16.mxu0 %v1336
  %2098 = vmatpush1.bf16.msra.mxu0 %v1335
  %2099 = vmatprep.subr.bf16.mxu0 %v1340
  %2100 = vmatpush1.bf16.msra.mxu0 %v1339
  %2101 = vmatprep.subr.bf16.mxu0 %v1344
  %2102 = vmatpush1.bf16.msra.mxu0 %v1343
  %2103 = vmatprep.subr.bf16.mxu0 %v1348
  %2104 = vmatpush1.bf16.msra.mxu0 %v1347
  %2105 = vmatprep.subr.bf16.mxu0 %v1352
  %2106 = vmatpush1.bf16.msra.mxu0 %v1351
  %2107 = vmatprep.subr.bf16.mxu0 %v1356
  %2108 = vmatpush1.bf16.msra.mxu0 %v1355
  %2109 = vmatprep.subr.bf16.mxu0 %v1360
  %2110 = vmatpush1.bf16.msra.mxu0 %v1359
  %2111 = vmatprep.subr.bf16.mxu0 %v1364
  %2112 = vmatpush1.bf16.msra.mxu0 %v1363
  %2113 = vmatprep.subr.bf16.mxu0 %v1368
  %2114 = vmatpush1.bf16.msra.mxu0 %v1367
  %2115 = vmatprep.subr.bf16.mxu0 %v1372
  %2116 = vmatpush1.bf16.msra.mxu0 %v1371
  %2117 = vmatprep.subr.bf16.mxu0 %v1376
  %2118 = vmatpush1.bf16.msra.mxu0 %v1375
  %2119 = vmatprep.subr.bf16.mxu0 %v1380
  %2120 = vmatpush1.bf16.msra.mxu0 %v1379
  %2121 = vmatprep.subr.bf16.mxu0 %v1384
  %2122 = vmatpush1.bf16.msra.mxu0 %v1383
  %2123 = vmatprep.mubr.bf16.mxu0 %v378
  %2124 = vmatmul.mubr.bf16.gmra.mrb[0].mxu0 %v377
  %v2125 = vpop.f32.mrb[0].mxu0
  %v2126 = vadd.f32 %v2083, %v2125
  %v2127 = vpop.f32.mrb[0].mxu0
  %v2128 = vadd.f32 %v2085, %v2127
  %v2129 = vpop.f32.mrb[0].mxu0
  %v2130 = vadd.f32 %v2087, %v2129
  %v2131 = vpop.f32.mrb[0].mxu0
  %v2132 = vadd.f32 %v2089, %v2131
  %2133 = vdwg.mxu0
  %2134 = vmatprep.subr.bf16.mxu0 %v1388
  %2135 = vmatpush1.bf16.msra.mxu0 %v1387
  %2136 = vmatprep.subr.bf16.mxu0 %v1392
  %2137 = vmatpush1.bf16.msra.mxu0 %v1391
  %2138 = vmatprep.subr.bf16.mxu0 %v1396
  %2139 = vmatpush1.bf16.msra.mxu0 %v1395
  %2140 = vmatprep.subr.bf16.mxu0 %v1400
  %2141 = vmatpush1.bf16.msra.mxu0 %v1399
  %2142 = vmatprep.subr.bf16.mxu0 %v1404
  %2143 = vmatpush1.bf16.msra.mxu0 %v1403
  %2144 = vmatprep.subr.bf16.mxu0 %v1408
  %2145 = vmatpush1.bf16.msra.mxu0 %v1407
  %2146 = vmatprep.subr.bf16.mxu0 %v1412
  %2147 = vmatpush1.bf16.msra.mxu0 %v1411
  %2148 = vmatprep.subr.bf16.mxu0 %v1416
  %2149 = vmatpush1.bf16.msra.mxu0 %v1415
  %2150 = vmatprep.subr.bf16.mxu0 %v1420
  %2151 = vmatpush1.bf16.msra.mxu0 %v1419
  %2152 = vmatprep.subr.bf16.mxu0 %v1424
  %2153 = vmatpush1.bf16.msra.mxu0 %v1423
  %2154 = vmatprep.subr.bf16.mxu0 %v1428
  %2155 = vmatpush1.bf16.msra.mxu0 %v1427
  %2156 = vmatprep.subr.bf16.mxu0 %v1432
  %2157 = vmatpush1.bf16.msra.mxu0 %v1431
  %2158 = vmatprep.subr.bf16.mxu0 %v1436
  %2159 = vmatpush1.bf16.msra.mxu0 %v1435
  %2160 = vmatprep.subr.bf16.mxu0 %v1440
  %2161 = vmatpush1.bf16.msra.mxu0 %v1439
  %2162 = vmatprep.subr.bf16.mxu0 %v1444
  %2163 = vmatpush1.bf16.msra.mxu0 %v1443
  %2164 = vmatprep.subr.bf16.mxu0 %v1448
  %2165 = vmatpush1.bf16.msra.mxu0 %v1447
  %2166 = vmatprep.mubr.bf16.mxu0 %v380
  %2167 = vmatmul.mubr.bf16.gmra.mrb[0].mxu0 %v379
  %v2168 = vpop.f32.mrb[0].mxu0
  %v2169 = vadd.f32 %v2126, %v2168
  %v2170 = vpop.f32.mrb[0].mxu0
  %v2171 = vadd.f32 %v2128, %v2170
  %v2172 = vpop.f32.mrb[0].mxu0
  %v2173 = vadd.f32 %v2130, %v2172
  %v2174 = vpop.f32.mrb[0].mxu0
  %v2175 = vadd.f32 %v2132, %v2174
  %2176 = vdwg.mxu0
  %2177 = vmatprep.subr.bf16.mxu0 %v1452
  %2178 = vmatpush1.bf16.msra.mxu0 %v1451
  %2179 = vmatprep.subr.bf16.mxu0 %v1456
  %2180 = vmatpush1.bf16.msra.mxu0 %v1455
  %2181 = vmatprep.subr.bf16.mxu0 %v1460
  %2182 = vmatpush1.bf16.msra.mxu0 %v1459
  %2183 = vmatprep.subr.bf16.mxu0 %v1464
  %2184 = vmatpush1.bf16.msra.mxu0 %v1463
  %2185 = vmatprep.subr.bf16.mxu0 %v1468
  %2186 = vmatpush1.bf16.msra.mxu0 %v1467
  %2187 = vmatprep.subr.bf16.mxu0 %v1472
  %2188 = vmatpush1.bf16.msra.mxu0 %v1471
  %2189 = vmatprep.subr.bf16.mxu0 %v1476
  %2190 = vmatpush1.bf16.msra.mxu0 %v1475
  %2191 = vmatprep.subr.bf16.mxu0 %v1480
  %2192 = vmatpush1.bf16.msra.mxu0 %v1479
  %2193 = vmatprep.subr.bf16.mxu0 %v1484
  %2194 = vmatpush1.bf16.msra.mxu0 %v1483
  %2195 = vmatprep.subr.bf16.mxu0 %v1488
  %2196 = vmatpush1.bf16.msra.mxu0 %v1487
  %2197 = vmatprep.subr.bf16.mxu0 %v1492
  %2198 = vmatpush1.bf16.msra.mxu0 %v1491
  %2199 = vmatprep.subr.bf16.mxu0 %v1496
  %2200 = vmatpush1.bf16.msra.mxu0 %v1495
  %2201 = vmatprep.subr.bf16.mxu0 %v1500
  %2202 = vmatpush1.bf16.msra.mxu0 %v1499
  %2203 = vmatprep.subr.bf16.mxu0 %v1504
  %2204 = vmatpush1.bf16.msra.mxu0 %v1503
  %2205 = vmatprep.subr.bf16.mxu0 %v1508
  %2206 = vmatpush1.bf16.msra.mxu0 %v1507
  %2207 = vmatprep.subr.bf16.mxu0 %v1512
  %2208 = vmatpush1.bf16.msra.mxu0 %v1511
  %2209 = vmatprep.mubr.bf16.mxu0 %v382
  %2210 = vmatmul.mubr.bf16.gmra.mrb[0].mxu0 %v381
  %v2211 = vpop.f32.mrb[0].mxu0
  %v2212 = vadd.f32 %v2169, %v2211
  %v2213 = vpop.f32.mrb[0].mxu0
  %v2214 = vadd.f32 %v2171, %v2213
  %v2215 = vpop.f32.mrb[0].mxu0
  %v2216 = vadd.f32 %v2173, %v2215
  %v2217 = vpop.f32.mrb[0].mxu0
  %v2218 = vadd.f32 %v2175, %v2217
  %2219 = vdwg.mxu0
  %2220 = vmatprep.subr.bf16.mxu0 %v1516
  %2221 = vmatpush1.bf16.msra.mxu0 %v1515
  %2222 = vmatprep.subr.bf16.mxu0 %v1520
  %2223 = vmatpush1.bf16.msra.mxu0 %v1519
  %2224 = vmatprep.subr.bf16.mxu0 %v1524
  %2225 = vmatpush1.bf16.msra.mxu0 %v1523
  %2226 = vmatprep.subr.bf16.mxu0 %v1528
  %2227 = vmatpush1.bf16.msra.mxu0 %v1527
  %2228 = vmatprep.subr.bf16.mxu0 %v1532
  %2229 = vmatpush1.bf16.msra.mxu0 %v1531
  %2230 = vmatprep.subr.bf16.mxu0 %v1536
  %2231 = vmatpush1.bf16.msra.mxu0 %v1535
  %2232 = vmatprep.subr.bf16.mxu0 %v1540
  %2233 = vmatpush1.bf16.msra.mxu0 %v1539
  %2234 = vmatprep.subr.bf16.mxu0 %v1544
  %2235 = vmatpush1.bf16.msra.mxu0 %v1543
  %2236 = vmatprep.subr.bf16.mxu0 0
  %2237 = vmatpush1.bf16.msra.mxu0 0
  %2238 = vmatprep.subr.bf16.mxu0 0
  %2239 = vmatpush1.bf16.msra.mxu0 0
  %2240 = vmatprep.subr.bf16.mxu0 0
  %2241 = vmatpush1.bf16.msra.mxu0 0
  %2242 = vmatprep.subr.bf16.mxu0 0
  %2243 = vmatpush1.bf16.msra.mxu0 0
  %2244 = vmatprep.subr.bf16.mxu0 0
  %2245 = vmatpush1.bf16.msra.mxu0 0
  %2246 = vmatprep.subr.bf16.mxu0 0
  %2247 = vmatpush1.bf16.msra.mxu0 0
  %2248 = vmatprep.subr.bf16.mxu0 0
  %2249 = vmatpush1.bf16.msra.mxu0 0
  %2250 = vmatprep.subr.bf16.mxu0 0
  %2251 = vmatpush1.bf16.msra.mxu0 0
  %2252 = vmatprep.mubr.bf16.mxu0 0
  %2253 = vmatmul.mubr.bf16.gmra.mrb[0].mxu0 %v383
  %v2254 = vpop.f32.mrb[0].mxu0
  %v2255 = vadd.f32 %v2212, %v2254
  %v2256 = vpop.f32.mrb[0].mxu0
  %v2257 = vadd.f32 %v2214, %v2256
  %v2258 = vpop.f32.mrb[0].mxu0
  %v2259 = vadd.f32 %v2216, %v2258
  %v2260 = vpop.f32.mrb[0].mxu0
  %v2261 = vadd.f32 %v2218, %v2260
  %2262 = vdwg.mxu0
  %v2263 = vmax.f32 %v2040, 0.0
  %v2264 = vmax.f32 %v2042, 0.0
  %v2265 = vmax.f32 %v2255, 0.0
  %v2266 = vmax.f32 %v2257, 0.0
  %v2267 = vmax.f32 %v2044, 0.0
  %v2268 = vmax.f32 %v2046, 0.0
  %v2269 = vmax.f32 %v2259, 0.0
  %v2270 = vmax.f32 %v2261, 0.0
  %v2271 = vpack.c.bf16 %v2267, %v2263
  %v2272 = vpack.c.bf16 %v2268, %v2264
  %v2273 = vpack.c.bf16 %v2269, %v2265
  %v2274 = vpack.c.bf16 %v2270, %v2266
  %v2275 = vld [vmem:[%s3] sm:$0xff]
  %v2276 = vld [vmem:[%s3 + $0x8] sm:$0xff]
  %v2277 = vld [vmem:[%s3 + $0x10] sm:$0xff]
  %v2278 = vld [vmem:[%s3 + $0x18] sm:$0xff]
  %v2279 = vld [vmem:[%s3 + $0x20] sm:$0xff]
  %v2280 = vld [vmem:[%s3 + $0x28] sm:$0xff]
  %v2281 = vld [vmem:[%s3 + $0x30] sm:$0xff]
  %v2282 = vld [vmem:[%s3 + $0x38] sm:$0xff]
  %v2283 = vld [vmem:[%s3 + $0x40] sm:$0xff]
  %v2284 = vld [vmem:[%s3 + $0x48] sm:$0xff]
  %v2285 = vld [vmem:[%s3 + $0x50] sm:$0xff]
  %v2286 = vld [vmem:[%s3 + $0x58] sm:$0xff]
  %v2287 = vld [vmem:[%s3 + $0x60] sm:$0xff]
  %v2288 = vld [vmem:[%s3 + $0x68] sm:$0xff]
  %v2289 = vld [vmem:[%s3 + $0x70] sm:$0xff]
  %v2290 = vld [vmem:[%s3 + $0x78] sm:$0xff]
  %v2291 = vld [vmem:[%s3 + $0x80] sm:$0xff]
  %v2292 = vld [vmem:[%s3 + $0x88] sm:$0xff]
  %v2293 = vld [vmem:[%s3 + $0x90] sm:$0xff]
  %v2294 = vld [vmem:[%s3 + $0x98] sm:$0xff]
  %v2295 = vld [vmem:[%s3 + $0xa0] sm:$0xff]
  %v2296 = vld [vmem:[%s3 + $0xa8] sm:$0xff]
  %v2297 = vld [vmem:[%s3 + $0xb0] sm:$0xff]
  %v2298 = vld [vmem:[%s3 + $0xb8] sm:$0xff]
  %v2299 = vld [vmem:[%s3 + $0xc0] sm:$0xff]
  %v2300 = vld [vmem:[%s3 + $0xc8] sm:$0xff]
  %v2301 = vld [vmem:[%s3 + $0xd0] sm:$0xff]
  %v2302 = vld [vmem:[%s3 + $0xd8] sm:$0xff]
  %v2303 = vld [vmem:[%s3 + $0xe0] sm:$0xff]
  %v2304 = vld [vmem:[%s3 + $0xe8] sm:$0xff]
  %v2305 = vld [vmem:[%s3 + $0xf0] sm:$0xff]
  %v2306 = vld [vmem:[%s3 + $0xf8] sm:$0xff]
  %v2307 = vld [vmem:[%s3 + $0x100] sm:$0xff]
  %v2308 = vld [vmem:[%s3 + $0x108] sm:$0xff]
  %v2309 = vld [vmem:[%s3 + $0x110] sm:$0xff]
  %v2310 = vld [vmem:[%s3 + $0x118] sm:$0xff]
  %v2311 = vld [vmem:[%s3 + $0x120] sm:$0xff]
  %v2312 = vld [vmem:[%s3 + $0x128] sm:$0xff]
  %v2313 = vld [vmem:[%s3 + $0x130] sm:$0xff]
  %v2314 = vld [vmem:[%s3 + $0x138] sm:$0xff]
  %v2315 = vld [vmem:[%s3 + $0x140] sm:$0xff]
  %v2316 = vld [vmem:[%s3 + $0x148] sm:$0xff]
  %v2317 = vld [vmem:[%s3 + $0x150] sm:$0xff]
  %v2318 = vld [vmem:[%s3 + $0x158] sm:$0xff]
  %v2319 = vld [vmem:[%s3 + $0x160] sm:$0xff]
  %v2320 = vld [vmem:[%s3 + $0x168] sm:$0xff]
  %v2321 = vld [vmem:[%s3 + $0x170] sm:$0xff]
  %v2322 = vld [vmem:[%s3 + $0x178] sm:$0xff]
  %v2323 = vld [vmem:[%s3 + $0x180] sm:$0xff]
  %v2324 = vld [vmem:[%s3 + $0x188] sm:$0xff]
  %v2325 = vld [vmem:[%s3 + $0x190] sm:$0xff]
  %v2326 = vld [vmem:[%s3 + $0x198] sm:$0xff]
  %v2327 = vld [vmem:[%s3 + $0x1a0] sm:$0xff]
  %v2328 = vld [vmem:[%s3 + $0x1a8] sm:$0xff]
  %v2329 = vld [vmem:[%s3 + $0x1b0] sm:$0xff]
  %v2330 = vld [vmem:[%s3 + $0x1b8] sm:$0xff]
  %v2331 = vld [vmem:[%s3 + $0x1c0] sm:$0xff]
  %v2332 = vld [vmem:[%s3 + $0x1c8] sm:$0xff]
  %v2333 = vld [vmem:[%s3 + $0x1d0] sm:$0xff]
  %v2334 = vld [vmem:[%s3 + $0x1d8] sm:$0xff]
  %v2335 = vld [vmem:[%s3 + $0x1e0] sm:$0xff]
  %v2336 = vld [vmem:[%s3 + $0x1e8] sm:$0xff]
  %v2337 = vld [vmem:[%s3 + $0x1f0] sm:$0xff]
  %v2338 = vld [vmem:[%s3 + $0x1f8] sm:$0xff]
  %v2339 = vld [vmem:[%s3 + $0x200] sm:$0xff]
  %v2340 = vld [vmem:[%s3 + $0x208] sm:$0xff]
  %v2341 = vld [vmem:[%s3 + $0x210] sm:$0xff]
  %v2342 = vld [vmem:[%s3 + $0x218] sm:$0xff]
  %v2343 = vld [vmem:[%s3 + $0x220] sm:$0xff]
  %v2344 = vld [vmem:[%s3 + $0x228] sm:$0xff]
  %v2345 = vld [vmem:[%s3 + $0x230] sm:$0xff]
  %v2346 = vld [vmem:[%s3 + $0x238] sm:$0xff]
  %v2347 = vld [vmem:[%s3 + $0x240] sm:$0xff]
  %v2348 = vld [vmem:[%s3 + $0x248] sm:$0xff]
  %v2349 = vld [vmem:[%s3 + $0x250] sm:$0xff]
  %v2350 = vld [vmem:[%s3 + $0x258] sm:$0xff]
  %v2351 = vld [vmem:[%s3 + $0x260] sm:$0xff]
  %v2352 = vld [vmem:[%s3 + $0x268] sm:$0xff]
  %v2353 = vld [vmem:[%s3 + $0x270] sm:$0xff]
  %v2354 = vld [vmem:[%s3 + $0x278] sm:$0xff]
  %v2355 = vld [vmem:[%s3 + $0x280] sm:$0xff]
  %v2356 = vld [vmem:[%s3 + $0x288] sm:$0xff]
  %v2357 = vld [vmem:[%s3 + $0x290] sm:$0xff]
  %v2358 = vld [vmem:[%s3 + $0x298] sm:$0xff]
  %v2359 = vld [vmem:[%s3 + $0x2a0] sm:$0xff]
  %v2360 = vld [vmem:[%s3 + $0x2a8] sm:$0xff]
  %v2361 = vld [vmem:[%s3 + $0x2b0] sm:$0xff]
  %v2362 = vld [vmem:[%s3 + $0x2b8] sm:$0xff]
  %v2363 = vld [vmem:[%s3 + $0x2c0] sm:$0xff]
  %v2364 = vld [vmem:[%s3 + $0x2c8] sm:$0xff]
  %v2365 = vld [vmem:[%s3 + $0x2d0] sm:$0xff]
  %v2366 = vld [vmem:[%s3 + $0x2d8] sm:$0xff]
  %v2367 = vld [vmem:[%s3 + $0x2e0] sm:$0xff]
  %v2368 = vld [vmem:[%s3 + $0x2e8] sm:$0xff]
  %v2369 = vld [vmem:[%s3 + $0x2f0] sm:$0xff]
  %v2370 = vld [vmem:[%s3 + $0x2f8] sm:$0xff]
  %v2371 = vld [vmem:[%s3 + $0x300] sm:$0xff]
  %v2372 = vld [vmem:[%s3 + $0x308] sm:$0xff]
  %v2373 = vld [vmem:[%s3 + $0x310] sm:$0xff]
  %v2374 = vld [vmem:[%s3 + $0x318] sm:$0xff]
  %v2375 = vld [vmem:[%s3 + $0x320] sm:$0xff]
  %v2376 = vld [vmem:[%s3 + $0x328] sm:$0xff]
  %v2377 = vld [vmem:[%s3 + $0x330] sm:$0xff]
  %v2378 = vld [vmem:[%s3 + $0x338] sm:$0xff]
  %v2379 = vld [vmem:[%s3 + $0x340] sm:$0xff]
  %v2380 = vld [vmem:[%s3 + $0x348] sm:$0xff]
  %v2381 = vld [vmem:[%s3 + $0x350] sm:$0xff]
  %v2382 = vld [vmem:[%s3 + $0x358] sm:$0xff]
  %v2383 = vld [vmem:[%s3 + $0x360] sm:$0xff]
  %v2384 = vld [vmem:[%s3 + $0x368] sm:$0xff]
  %v2385 = vld [vmem:[%s3 + $0x370] sm:$0xff]
  %v2386 = vld [vmem:[%s3 + $0x378] sm:$0xff]
  %v2387 = vld [vmem:[%s3 + $0x380] sm:$0xff]
  %v2388 = vld [vmem:[%s3 + $0x388] sm:$0xff]
  %v2389 = vld [vmem:[%s3 + $0x390] sm:$0xff]
  %v2390 = vld [vmem:[%s3 + $0x398] sm:$0xff]
  %v2391 = vld [vmem:[%s3 + $0x3a0] sm:$0xff]
  %v2392 = vld [vmem:[%s3 + $0x3a8] sm:$0xff]
  %v2393 = vld [vmem:[%s3 + $0x3b0] sm:$0xff]
  %v2394 = vld [vmem:[%s3 + $0x3b8] sm:$0xff]
  %v2395 = vld [vmem:[%s3 + $0x3c0] sm:$0xff]
  %v2396 = vld [vmem:[%s3 + $0x3c8] sm:$0xff]
  %v2397 = vld [vmem:[%s3 + $0x3d0] sm:$0xff]
  %v2398 = vld [vmem:[%s3 + $0x3d8] sm:$0xff]
  %v2399 = vld [vmem:[%s3 + $0x3e0] sm:$0xff]
  %v2400 = vld [vmem:[%s3 + $0x3e8] sm:$0xff]
  %v2401 = vld [vmem:[%s3 + $0x3f0] sm:$0xff]
  %v2402 = vld [vmem:[%s3 + $0x3f8] sm:$0xff]
  %v2403 = vld [vmem:[%s4] sm:$0xf]
  %v2405 = vlaneseq
  %v2406 = vshrl.u32 %v2405, 7
  %v2407 = vsub.s32 0, %v2406
  %v2408 = vrot.slane %v2403, %v2407
  %v2409 = vlaneseq
  %v2410 = vshrl.u32 %v2409, 7
  %v2411 = vsub.s32 1, %v2410
  %v2412 = vrot.slane %v2403, %v2411
  %v2413 = vlaneseq
  %v2414 = vshrl.u32 %v2413, 7
  %v2415 = vsub.s32 2, %v2414
  %v2416 = vrot.slane %v2403, %v2415
  %v2417 = vlaneseq
  %v2418 = vshrl.u32 %v2417, 7
  %v2419 = vsub.s32 3, %v2418
  %v2420 = vrot.slane %v2403, %v2419
  %v2553 = vunpack.c.l.b16 %v2275
  %v2554 = vunpack.c.h.b16 %v2275
  %v2555 = vunpack.c.l.b16 %v2276
  %v2556 = vunpack.c.h.b16 %v2276
  %v2557 = vunpack.c.l.b16 %v2277
  %v2558 = vunpack.c.h.b16 %v2277
  %v2559 = vunpack.c.l.b16 %v2278
  %v2560 = vunpack.c.h.b16 %v2278
  %v2561 = vunpack.c.l.b16 %v2279
  %v2562 = vunpack.c.h.b16 %v2279
  %v2563 = vunpack.c.l.b16 %v2280
  %v2564 = vunpack.c.h.b16 %v2280
  %v2565 = vunpack.c.l.b16 %v2281
  %v2566 = vunpack.c.h.b16 %v2281
  %v2567 = vunpack.c.l.b16 %v2282
  %v2568 = vunpack.c.h.b16 %v2282
  %v2569 = vunpack.c.l.b16 %v2283
  %v2570 = vunpack.c.h.b16 %v2283
  %v2571 = vunpack.c.l.b16 %v2284
  %v2572 = vunpack.c.h.b16 %v2284
  %v2573 = vunpack.c.l.b16 %v2285
  %v2574 = vunpack.c.h.b16 %v2285
  %v2575 = vunpack.c.l.b16 %v2286
  %v2576 = vunpack.c.h.b16 %v2286
  %v2577 = vunpack.c.l.b16 %v2287
  %v2578 = vunpack.c.h.b16 %v2287
  %v2579 = vunpack.c.l.b16 %v2288
  %v2580 = vunpack.c.h.b16 %v2288
  %v2581 = vunpack.c.l.b16 %v2289
  %v2582 = vunpack.c.h.b16 %v2289
  %v2583 = vunpack.c.l.b16 %v2290
  %v2584 = vunpack.c.h.b16 %v2290
  %v2585 = vunpack.c.l.b16 %v2291
  %v2586 = vunpack.c.h.b16 %v2291
  %v2587 = vunpack.c.l.b16 %v2292
  %v2588 = vunpack.c.h.b16 %v2292
  %v2589 = vunpack.c.l.b16 %v2293
  %v2590 = vunpack.c.h.b16 %v2293
  %v2591 = vunpack.c.l.b16 %v2294
  %v2592 = vunpack.c.h.b16 %v2294
  %v2593 = vunpack.c.l.b16 %v2295
  %v2594 = vunpack.c.h.b16 %v2295
  %v2595 = vunpack.c.l.b16 %v2296
  %v2596 = vunpack.c.h.b16 %v2296
  %v2597 = vunpack.c.l.b16 %v2297
  %v2598 = vunpack.c.h.b16 %v2297
  %v2599 = vunpack.c.l.b16 %v2298
  %v2600 = vunpack.c.h.b16 %v2298
  %v2601 = vunpack.c.l.b16 %v2299
  %v2602 = vunpack.c.h.b16 %v2299
  %v2603 = vunpack.c.l.b16 %v2300
  %v2604 = vunpack.c.h.b16 %v2300
  %v2605 = vunpack.c.l.b16 %v2301
  %v2606 = vunpack.c.h.b16 %v2301
  %v2607 = vunpack.c.l.b16 %v2302
  %v2608 = vunpack.c.h.b16 %v2302
  %v2609 = vunpack.c.l.b16 %v2303
  %v2610 = vunpack.c.h.b16 %v2303
  %v2611 = vunpack.c.l.b16 %v2304
  %v2612 = vunpack.c.h.b16 %v2304
  %v2613 = vunpack.c.l.b16 %v2305
  %v2614 = vunpack.c.h.b16 %v2305
  %v2615 = vunpack.c.l.b16 %v2306
  %v2616 = vunpack.c.h.b16 %v2306
  %v2617 = vunpack.c.l.b16 %v2307
  %v2618 = vunpack.c.h.b16 %v2307
  %v2619 = vunpack.c.l.b16 %v2308
  %v2620 = vunpack.c.h.b16 %v2308
  %v2621 = vunpack.c.l.b16 %v2309
  %v2622 = vunpack.c.h.b16 %v2309
  %v2623 = vunpack.c.l.b16 %v2310
  %v2624 = vunpack.c.h.b16 %v2310
  %v2625 = vunpack.c.l.b16 %v2311
  %v2626 = vunpack.c.h.b16 %v2311
  %v2627 = vunpack.c.l.b16 %v2312
  %v2628 = vunpack.c.h.b16 %v2312
  %v2629 = vunpack.c.l.b16 %v2313
  %v2630 = vunpack.c.h.b16 %v2313
  %v2631 = vunpack.c.l.b16 %v2314
  %v2632 = vunpack.c.h.b16 %v2314
  %v2633 = vunpack.c.l.b16 %v2315
  %v2634 = vunpack.c.h.b16 %v2315
  %v2635 = vunpack.c.l.b16 %v2316
  %v2636 = vunpack.c.h.b16 %v2316
  %v2637 = vunpack.c.l.b16 %v2317
  %v2638 = vunpack.c.h.b16 %v2317
  %v2639 = vunpack.c.l.b16 %v2318
  %v2640 = vunpack.c.h.b16 %v2318
  %v2641 = vunpack.c.l.b16 %v2319
  %v2642 = vunpack.c.h.b16 %v2319
  %v2643 = vunpack.c.l.b16 %v2320
  %v2644 = vunpack.c.h.b16 %v2320
  %v2645 = vunpack.c.l.b16 %v2321
  %v2646 = vunpack.c.h.b16 %v2321
  %v2647 = vunpack.c.l.b16 %v2322
  %v2648 = vunpack.c.h.b16 %v2322
  %v2649 = vunpack.c.l.b16 %v2323
  %v2650 = vunpack.c.h.b16 %v2323
  %v2651 = vunpack.c.l.b16 %v2324
  %v2652 = vunpack.c.h.b16 %v2324
  %v2653 = vunpack.c.l.b16 %v2325
  %v2654 = vunpack.c.h.b16 %v2325
  %v2655 = vunpack.c.l.b16 %v2326
  %v2656 = vunpack.c.h.b16 %v2326
  %v2657 = vunpack.c.l.b16 %v2327
  %v2658 = vunpack.c.h.b16 %v2327
  %v2659 = vunpack.c.l.b16 %v2328
  %v2660 = vunpack.c.h.b16 %v2328
  %v2661 = vunpack.c.l.b16 %v2329
  %v2662 = vunpack.c.h.b16 %v2329
  %v2663 = vunpack.c.l.b16 %v2330
  %v2664 = vunpack.c.h.b16 %v2330
  %v2665 = vunpack.c.l.b16 %v2331
  %v2666 = vunpack.c.h.b16 %v2331
  %v2667 = vunpack.c.l.b16 %v2332
  %v2668 = vunpack.c.h.b16 %v2332
  %v2669 = vunpack.c.l.b16 %v2333
  %v2670 = vunpack.c.h.b16 %v2333
  %v2671 = vunpack.c.l.b16 %v2334
  %v2672 = vunpack.c.h.b16 %v2334
  %v2673 = vunpack.c.l.b16 %v2335
  %v2674 = vunpack.c.h.b16 %v2335
  %v2675 = vunpack.c.l.b16 %v2336
  %v2676 = vunpack.c.h.b16 %v2336
  %v2677 = vunpack.c.l.b16 %v2337
  %v2678 = vunpack.c.h.b16 %v2337
  %v2679 = vunpack.c.l.b16 %v2338
  %v2680 = vunpack.c.h.b16 %v2338
  %v2681 = vunpack.c.l.b16 %v2339
  %v2682 = vunpack.c.h.b16 %v2339
  %v2683 = vunpack.c.l.b16 %v2340
  %v2684 = vunpack.c.h.b16 %v2340
  %v2685 = vunpack.c.l.b16 %v2341
  %v2686 = vunpack.c.h.b16 %v2341
  %v2687 = vunpack.c.l.b16 %v2342
  %v2688 = vunpack.c.h.b16 %v2342
  %v2689 = vunpack.c.l.b16 %v2343
  %v2690 = vunpack.c.h.b16 %v2343
  %v2691 = vunpack.c.l.b16 %v2344
  %v2692 = vunpack.c.h.b16 %v2344
  %v2693 = vunpack.c.l.b16 %v2345
  %v2694 = vunpack.c.h.b16 %v2345
  %v2695 = vunpack.c.l.b16 %v2346
  %v2696 = vunpack.c.h.b16 %v2346
  %v2697 = vunpack.c.l.b16 %v2347
  %v2698 = vunpack.c.h.b16 %v2347
  %v2699 = vunpack.c.l.b16 %v2348
  %v2700 = vunpack.c.h.b16 %v2348
  %v2701 = vunpack.c.l.b16 %v2349
  %v2702 = vunpack.c.h.b16 %v2349
  %v2703 = vunpack.c.l.b16 %v2350
  %v2704 = vunpack.c.h.b16 %v2350
  %v2705 = vunpack.c.l.b16 %v2351
  %v2706 = vunpack.c.h.b16 %v2351
  %v2707 = vunpack.c.l.b16 %v2352
  %v2708 = vunpack.c.h.b16 %v2352
  %v2709 = vunpack.c.l.b16 %v2353
  %v2710 = vunpack.c.h.b16 %v2353
  %v2711 = vunpack.c.l.b16 %v2354
  %v2712 = vunpack.c.h.b16 %v2354
  %v2713 = vunpack.c.l.b16 %v2355
  %v2714 = vunpack.c.h.b16 %v2355
  %v2715 = vunpack.c.l.b16 %v2356
  %v2716 = vunpack.c.h.b16 %v2356
  %v2717 = vunpack.c.l.b16 %v2357
  %v2718 = vunpack.c.h.b16 %v2357
  %v2719 = vunpack.c.l.b16 %v2358
  %v2720 = vunpack.c.h.b16 %v2358
  %v2721 = vunpack.c.l.b16 %v2359
  %v2722 = vunpack.c.h.b16 %v2359
  %v2723 = vunpack.c.l.b16 %v2360
  %v2724 = vunpack.c.h.b16 %v2360
  %v2725 = vunpack.c.l.b16 %v2361
  %v2726 = vunpack.c.h.b16 %v2361
  %v2727 = vunpack.c.l.b16 %v2362
  %v2728 = vunpack.c.h.b16 %v2362
  %v2729 = vunpack.c.l.b16 %v2363
  %v2730 = vunpack.c.h.b16 %v2363
  %v2731 = vunpack.c.l.b16 %v2364
  %v2732 = vunpack.c.h.b16 %v2364
  %v2733 = vunpack.c.l.b16 %v2365
  %v2734 = vunpack.c.h.b16 %v2365
  %v2735 = vunpack.c.l.b16 %v2366
  %v2736 = vunpack.c.h.b16 %v2366
  %v2737 = vunpack.c.l.b16 %v2367
  %v2738 = vunpack.c.h.b16 %v2367
  %v2739 = vunpack.c.l.b16 %v2368
  %v2740 = vunpack.c.h.b16 %v2368
  %v2741 = vunpack.c.l.b16 %v2369
  %v2742 = vunpack.c.h.b16 %v2369
  %v2743 = vunpack.c.l.b16 %v2370
  %v2744 = vunpack.c.h.b16 %v2370
  %v2745 = vunpack.c.l.b16 %v2371
  %v2746 = vunpack.c.h.b16 %v2371
  %v2747 = vunpack.c.l.b16 %v2372
  %v2748 = vunpack.c.h.b16 %v2372
  %v2749 = vunpack.c.l.b16 %v2373
  %v2750 = vunpack.c.h.b16 %v2373
  %v2751 = vunpack.c.l.b16 %v2374
  %v2752 = vunpack.c.h.b16 %v2374
  %v2753 = vunpack.c.l.b16 %v2375
  %v2754 = vunpack.c.h.b16 %v2375
  %v2755 = vunpack.c.l.b16 %v2376
  %v2756 = vunpack.c.h.b16 %v2376
  %v2757 = vunpack.c.l.b16 %v2377
  %v2758 = vunpack.c.h.b16 %v2377
  %v2759 = vunpack.c.l.b16 %v2378
  %v2760 = vunpack.c.h.b16 %v2378
  %v2761 = vunpack.c.l.b16 %v2379
  %v2762 = vunpack.c.h.b16 %v2379
  %v2763 = vunpack.c.l.b16 %v2380
  %v2764 = vunpack.c.h.b16 %v2380
  %v2765 = vunpack.c.l.b16 %v2381
  %v2766 = vunpack.c.h.b16 %v2381
  %v2767 = vunpack.c.l.b16 %v2382
  %v2768 = vunpack.c.h.b16 %v2382
  %v2769 = vunpack.c.l.b16 %v2383
  %v2770 = vunpack.c.h.b16 %v2383
  %v2771 = vunpack.c.l.b16 %v2384
  %v2772 = vunpack.c.h.b16 %v2384
  %v2773 = vunpack.c.l.b16 %v2385
  %v2774 = vunpack.c.h.b16 %v2385
  %v2775 = vunpack.c.l.b16 %v2386
  %v2776 = vunpack.c.h.b16 %v2386
  %v2777 = vunpack.c.l.b16 %v2387
  %v2778 = vunpack.c.h.b16 %v2387
  %v2779 = vunpack.c.l.b16 %v2388
  %v2780 = vunpack.c.h.b16 %v2388
  %v2781 = vunpack.c.l.b16 %v2389
  %v2782 = vunpack.c.h.b16 %v2389
  %v2783 = vunpack.c.l.b16 %v2390
  %v2784 = vunpack.c.h.b16 %v2390
  %v2785 = vunpack.c.l.b16 %v2391
  %v2786 = vunpack.c.h.b16 %v2391
  %v2787 = vunpack.c.l.b16 %v2392
  %v2788 = vunpack.c.h.b16 %v2392
  %v2789 = vunpack.c.l.b16 %v2393
  %v2790 = vunpack.c.h.b16 %v2393
  %v2791 = vunpack.c.l.b16 %v2394
  %v2792 = vunpack.c.h.b16 %v2394
  %v2793 = vunpack.c.l.b16 %v2395
  %v2794 = vunpack.c.h.b16 %v2395
  %v2795 = vunpack.c.l.b16 %v2396
  %v2796 = vunpack.c.h.b16 %v2396
  %v2797 = vunpack.c.l.b16 %v2397
  %v2798 = vunpack.c.h.b16 %v2397
  %v2799 = vunpack.c.l.b16 %v2398
  %v2800 = vunpack.c.h.b16 %v2398
  %v2801 = vunpack.c.l.b16 %v2399
  %v2802 = vunpack.c.h.b16 %v2399
  %v2803 = vunpack.c.l.b16 %v2400
  %v2804 = vunpack.c.h.b16 %v2400
  %v2805 = vunpack.c.l.b16 %v2401
  %v2806 = vunpack.c.h.b16 %v2401
  %v2807 = vunpack.c.l.b16 %v2402
  %v2808 = vunpack.c.h.b16 %v2402
  %v2809 = vpack.c.b16 %v2557, %v2553
  %v2810 = vpack.c.b16 %v2558, %v2554
  %v2811 = vpack.c.b16 %v2559, %v2555
  %v2812 = vpack.c.b16 %v2560, %v2556
  %v2813 = vpack.c.b16 %v2565, %v2561
  %v2814 = vpack.c.b16 %v2566, %v2562
  %v2815 = vpack.c.b16 %v2567, %v2563
  %v2816 = vpack.c.b16 %v2568, %v2564
  %v2817 = vpack.c.b16 %v2573, %v2569
  %v2818 = vpack.c.b16 %v2574, %v2570
  %v2819 = vpack.c.b16 %v2575, %v2571
  %v2820 = vpack.c.b16 %v2576, %v2572
  %v2821 = vpack.c.b16 %v2581, %v2577
  %v2822 = vpack.c.b16 %v2582, %v2578
  %v2823 = vpack.c.b16 %v2583, %v2579
  %v2824 = vpack.c.b16 %v2584, %v2580
  %v2825 = vpack.c.b16 %v2589, %v2585
  %v2826 = vpack.c.b16 %v2590, %v2586
  %v2827 = vpack.c.b16 %v2591, %v2587
  %v2828 = vpack.c.b16 %v2592, %v2588
  %v2829 = vpack.c.b16 %v2597, %v2593
  %v2830 = vpack.c.b16 %v2598, %v2594
  %v2831 = vpack.c.b16 %v2599, %v2595
  %v2832 = vpack.c.b16 %v2600, %v2596
  %v2833 = vpack.c.b16 %v2605, %v2601
  %v2834 = vpack.c.b16 %v2606, %v2602
  %v2835 = vpack.c.b16 %v2607, %v2603
  %v2836 = vpack.c.b16 %v2608, %v2604
  %v2837 = vpack.c.b16 %v2613, %v2609
  %v2838 = vpack.c.b16 %v2614, %v2610
  %v2839 = vpack.c.b16 %v2615, %v2611
  %v2840 = vpack.c.b16 %v2616, %v2612
  %v2841 = vpack.c.b16 %v2621, %v2617
  %v2842 = vpack.c.b16 %v2622, %v2618
  %v2843 = vpack.c.b16 %v2623, %v2619
  %v2844 = vpack.c.b16 %v2624, %v2620
  %v2845 = vpack.c.b16 %v2629, %v2625
  %v2846 = vpack.c.b16 %v2630, %v2626
  %v2847 = vpack.c.b16 %v2631, %v2627
  %v2848 = vpack.c.b16 %v2632, %v2628
  %v2849 = vpack.c.b16 %v2637, %v2633
  %v2850 = vpack.c.b16 %v2638, %v2634
  %v2851 = vpack.c.b16 %v2639, %v2635
  %v2852 = vpack.c.b16 %v2640, %v2636
  %v2853 = vpack.c.b16 %v2645, %v2641
  %v2854 = vpack.c.b16 %v2646, %v2642
  %v2855 = vpack.c.b16 %v2647, %v2643
  %v2856 = vpack.c.b16 %v2648, %v2644
  %v2857 = vpack.c.b16 %v2653, %v2649
  %v2858 = vpack.c.b16 %v2654, %v2650
  %v2859 = vpack.c.b16 %v2655, %v2651
  %v2860 = vpack.c.b16 %v2656, %v2652
  %v2861 = vpack.c.b16 %v2661, %v2657
  %v2862 = vpack.c.b16 %v2662, %v2658
  %v2863 = vpack.c.b16 %v2663, %v2659
  %v2864 = vpack.c.b16 %v2664, %v2660
  %v2865 = vpack.c.b16 %v2669, %v2665
  %v2866 = vpack.c.b16 %v2670, %v2666
  %v2867 = vpack.c.b16 %v2671, %v2667
  %v2868 = vpack.c.b16 %v2672, %v2668
  %v2869 = vpack.c.b16 %v2677, %v2673
  %v2870 = vpack.c.b16 %v2678, %v2674
  %v2871 = vpack.c.b16 %v2679, %v2675
  %v2872 = vpack.c.b16 %v2680, %v2676
  %v2873 = vpack.c.b16 %v2685, %v2681
  %v2874 = vpack.c.b16 %v2686, %v2682
  %v2875 = vpack.c.b16 %v2687, %v2683
  %v2876 = vpack.c.b16 %v2688, %v2684
  %v2877 = vpack.c.b16 %v2693, %v2689
  %v2878 = vpack.c.b16 %v2694, %v2690
  %v2879 = vpack.c.b16 %v2695, %v2691
  %v2880 = vpack.c.b16 %v2696, %v2692
  %v2881 = vpack.c.b16 %v2701, %v2697
  %v2882 = vpack.c.b16 %v2702, %v2698
  %v2883 = vpack.c.b16 %v2703, %v2699
  %v2884 = vpack.c.b16 %v2704, %v2700
  %v2885 = vpack.c.b16 %v2709, %v2705
  %v2886 = vpack.c.b16 %v2710, %v2706
  %v2887 = vpack.c.b16 %v2711, %v2707
  %v2888 = vpack.c.b16 %v2712, %v2708
  %v2889 = vpack.c.b16 %v2717, %v2713
  %v2890 = vpack.c.b16 %v2718, %v2714
  %v2891 = vpack.c.b16 %v2719, %v2715
  %v2892 = vpack.c.b16 %v2720, %v2716
  %v2893 = vpack.c.b16 %v2725, %v2721
  %v2894 = vpack.c.b16 %v2726, %v2722
  %v2895 = vpack.c.b16 %v2727, %v2723
  %v2896 = vpack.c.b16 %v2728, %v2724
  %v2897 = vpack.c.b16 %v2733, %v2729
  %v2898 = vpack.c.b16 %v2734, %v2730
  %v2899 = vpack.c.b16 %v2735, %v2731
  %v2900 = vpack.c.b16 %v2736, %v2732
  %v2901 = vpack.c.b16 %v2741, %v2737
  %v2902 = vpack.c.b16 %v2742, %v2738
  %v2903 = vpack.c.b16 %v2743, %v2739
  %v2904 = vpack.c.b16 %v2744, %v2740
  %v2905 = vpack.c.b16 %v2749, %v2745
  %v2906 = vpack.c.b16 %v2750, %v2746
  %v2907 = vpack.c.b16 %v2751, %v2747
  %v2908 = vpack.c.b16 %v2752, %v2748
  %v2909 = vpack.c.b16 %v2757, %v2753
  %v2910 = vpack.c.b16 %v2758, %v2754
  %v2911 = vpack.c.b16 %v2759, %v2755
  %v2912 = vpack.c.b16 %v2760, %v2756
  %v2913 = vpack.c.b16 %v2765, %v2761
  %v2914 = vpack.c.b16 %v2766, %v2762
  %v2915 = vpack.c.b16 %v2767, %v2763
  %v2916 = vpack.c.b16 %v2768, %v2764
  %v2917 = vpack.c.b16 %v2773, %v2769
  %v2918 = vpack.c.b16 %v2774, %v2770
  %v2919 = vpack.c.b16 %v2775, %v2771
  %v2920 = vpack.c.b16 %v2776, %v2772
  %v2921 = vpack.c.b16 %v2781, %v2777
  %v2922 = vpack.c.b16 %v2782, %v2778
  %v2923 = vpack.c.b16 %v2783, %v2779
  %v2924 = vpack.c.b16 %v2784, %v2780
  %v2925 = vpack.c.b16 %v2789, %v2785
  %v2926 = vpack.c.b16 %v2790, %v2786
  %v2927 = vpack.c.b16 %v2791, %v2787
  %v2928 = vpack.c.b16 %v2792, %v2788
  %v2929 = vpack.c.b16 %v2797, %v2793
  %v2930 = vpack.c.b16 %v2798, %v2794
  %v2931 = vpack.c.b16 %v2799, %v2795
  %v2932 = vpack.c.b16 %v2800, %v2796
  %v2933 = vpack.c.b16 %v2805, %v2801
  %v2934 = vpack.c.b16 %v2806, %v2802
  %v2935 = vpack.c.b16 %v2807, %v2803
  %v2936 = vpack.c.b16 %v2808, %v2804
  %3065 = vmatprep.subr.bf16.mxu0 %v2810
  %3066 = vmatpush1.bf16.msra.mxu0 %v2809
  %3067 = vmatprep.subr.bf16.mxu0 %v2814
  %3068 = vmatpush1.bf16.msra.mxu0 %v2813
  %3069 = vmatprep.subr.bf16.mxu0 %v2818
  %3070 = vmatpush1.bf16.msra.mxu0 %v2817
  %3071 = vmatprep.subr.bf16.mxu0 %v2822
  %3072 = vmatpush1.bf16.msra.mxu0 %v2821
  %3073 = vmatprep.subr.bf16.mxu0 %v2826
  %3074 = vmatpush1.bf16.msra.mxu0 %v2825
  %3075 = vmatprep.subr.bf16.mxu0 %v2830
  %3076 = vmatpush1.bf16.msra.mxu0 %v2829
  %3077 = vmatprep.subr.bf16.mxu0 %v2834
  %3078 = vmatpush1.bf16.msra.mxu0 %v2833
  %3079 = vmatprep.subr.bf16.mxu0 %v2838
  %3080 = vmatpush1.bf16.msra.mxu0 %v2837
  %3081 = vmatprep.subr.bf16.mxu0 %v2842
  %3082 = vmatpush1.bf16.msra.mxu0 %v2841
  %3083 = vmatprep.subr.bf16.mxu0 %v2846
  %3084 = vmatpush1.bf16.msra.mxu0 %v2845
  %3085 = vmatprep.subr.bf16.mxu0 %v2850
  %3086 = vmatpush1.bf16.msra.mxu0 %v2849
  %3087 = vmatprep.subr.bf16.mxu0 %v2854
  %3088 = vmatpush1.bf16.msra.mxu0 %v2853
  %3089 = vmatprep.subr.bf16.mxu0 %v2858
  %3090 = vmatpush1.bf16.msra.mxu0 %v2857
  %3091 = vmatprep.subr.bf16.mxu0 %v2862
  %3092 = vmatpush1.bf16.msra.mxu0 %v2861
  %3093 = vmatprep.subr.bf16.mxu0 %v2866
  %3094 = vmatpush1.bf16.msra.mxu0 %v2865
  %3095 = vmatprep.subr.bf16.mxu0 %v2870
  %3096 = vmatpush1.bf16.msra.mxu0 %v2869
  %3097 = vmatprep.mubr.bf16.mxu0 %v2272
  %3098 = vmatmul.mubr.bf16.gmra.mrb[0].mxu0 %v2271
  %v3099 = vpop.f32.mrb[0].mxu0
  %v3100 = vadd.f32 %v2408, %v3099
  %v3101 = vpop.f32.mrb[0].mxu0
  %v3102 = vadd.f32 %v2412, %v3101
  %v3103 = vpop.f32.mrb[0].mxu0
  %v3104 = vadd.f32 %v2408, %v3103
  %v3105 = vpop.f32.mrb[0].mxu0
  %v3106 = vadd.f32 %v2412, %v3105
  %3107 = vdwg.mxu0
  %3108 = vmatprep.subr.bf16.mxu0 %v2874
  %3109 = vmatpush1.bf16.msra.mxu0 %v2873
  %3110 = vmatprep.subr.bf16.mxu0 %v2878
  %3111 = vmatpush1.bf16.msra.mxu0 %v2877
  %3112 = vmatprep.subr.bf16.mxu0 %v2882
  %3113 = vmatpush1.bf16.msra.mxu0 %v2881
  %3114 = vmatprep.subr.bf16.mxu0 %v2886
  %3115 = vmatpush1.bf16.msra.mxu0 %v2885
  %3116 = vmatprep.subr.bf16.mxu0 %v2890
  %3117 = vmatpush1.bf16.msra.mxu0 %v2889
  %3118 = vmatprep.subr.bf16.mxu0 %v2894
  %3119 = vmatpush1.bf16.msra.mxu0 %v2893
  %3120 = vmatprep.subr.bf16.mxu0 %v2898
  %3121 = vmatpush1.bf16.msra.mxu0 %v2897
  %3122 = vmatprep.subr.bf16.mxu0 %v2902
  %3123 = vmatpush1.bf16.msra.mxu0 %v2901
  %3124 = vmatprep.subr.bf16.mxu0 %v2906
  %3125 = vmatpush1.bf16.msra.mxu0 %v2905
  %3126 = vmatprep.subr.bf16.mxu0 %v2910
  %3127 = vmatpush1.bf16.msra.mxu0 %v2909
  %3128 = vmatprep.subr.bf16.mxu0 %v2914
  %3129 = vmatpush1.bf16.msra.mxu0 %v2913
  %3130 = vmatprep.subr.bf16.mxu0 %v2918
  %3131 = vmatpush1.bf16.msra.mxu0 %v2917
  %3132 = vmatprep.subr.bf16.mxu0 %v2922
  %3133 = vmatpush1.bf16.msra.mxu0 %v2921
  %3134 = vmatprep.subr.bf16.mxu0 %v2926
  %3135 = vmatpush1.bf16.msra.mxu0 %v2925
  %3136 = vmatprep.subr.bf16.mxu0 %v2930
  %3137 = vmatpush1.bf16.msra.mxu0 %v2929
  %3138 = vmatprep.subr.bf16.mxu0 %v2934
  %3139 = vmatpush1.bf16.msra.mxu0 %v2933
  %3140 = vmatprep.mubr.bf16.mxu0 %v2274
  %3141 = vmatmul.mubr.bf16.gmra.mrb[0].mxu0 %v2273
  %v3142 = vpop.f32.mrb[0].mxu0
  %v3143 = vadd.f32 %v3100, %v3142
  %v3144 = vpop.f32.mrb[0].mxu0
  %v3145 = vadd.f32 %v3102, %v3144
  %v3146 = vpop.f32.mrb[0].mxu0
  %v3147 = vadd.f32 %v3104, %v3146
  %v3148 = vpop.f32.mrb[0].mxu0
  %v3149 = vadd.f32 %v3106, %v3148
  %3150 = vdwg.mxu0
  %3151 = vmatprep.subr.bf16.mxu0 %v2812
  %3152 = vmatpush1.bf16.msra.mxu0 %v2811
  %3153 = vmatprep.subr.bf16.mxu0 %v2816
  %3154 = vmatpush1.bf16.msra.mxu0 %v2815
  %3155 = vmatprep.subr.bf16.mxu0 %v2820
  %3156 = vmatpush1.bf16.msra.mxu0 %v2819
  %3157 = vmatprep.subr.bf16.mxu0 %v2824
  %3158 = vmatpush1.bf16.msra.mxu0 %v2823
  %3159 = vmatprep.subr.bf16.mxu0 %v2828
  %3160 = vmatpush1.bf16.msra.mxu0 %v2827
  %3161 = vmatprep.subr.bf16.mxu0 %v2832
  %3162 = vmatpush1.bf16.msra.mxu0 %v2831
  %3163 = vmatprep.subr.bf16.mxu0 %v2836
  %3164 = vmatpush1.bf16.msra.mxu0 %v2835
  %3165 = vmatprep.subr.bf16.mxu0 %v2840
  %3166 = vmatpush1.bf16.msra.mxu0 %v2839
  %3167 = vmatprep.subr.bf16.mxu0 %v2844
  %3168 = vmatpush1.bf16.msra.mxu0 %v2843
  %3169 = vmatprep.subr.bf16.mxu0 %v2848
  %3170 = vmatpush1.bf16.msra.mxu0 %v2847
  %3171 = vmatprep.subr.bf16.mxu0 %v2852
  %3172 = vmatpush1.bf16.msra.mxu0 %v2851
  %3173 = vmatprep.subr.bf16.mxu0 %v2856
  %3174 = vmatpush1.bf16.msra.mxu0 %v2855
  %3175 = vmatprep.subr.bf16.mxu0 %v2860
  %3176 = vmatpush1.bf16.msra.mxu0 %v2859
  %3177 = vmatprep.subr.bf16.mxu0 %v2864
  %3178 = vmatpush1.bf16.msra.mxu0 %v2863
  %3179 = vmatprep.subr.bf16.mxu0 %v2868
  %3180 = vmatpush1.bf16.msra.mxu0 %v2867
  %3181 = vmatprep.subr.bf16.mxu0 %v2872
  %3182 = vmatpush1.bf16.msra.mxu0 %v2871
  %3183 = vmatprep.mubr.bf16.mxu0 %v2272
  %3184 = vmatmul.mubr.bf16.gmra.mrb[0].mxu0 %v2271
  %v3185 = vpop.f32.mrb[0].mxu0
  %v3186 = vadd.f32 %v2416, %v3185
  %v3187 = vpop.f32.mrb[0].mxu0
  %v3188 = vadd.f32 %v2420, %v3187
  %v3189 = vpop.f32.mrb[0].mxu0
  %v3190 = vadd.f32 %v2416, %v3189
  %v3191 = vpop.f32.mrb[0].mxu0
  %v3192 = vadd.f32 %v2420, %v3191
  %3193 = vdwg.mxu0
  %3194 = vmatprep.subr.bf16.mxu0 %v2876
  %3195 = vmatpush1.bf16.msra.mxu0 %v2875
  %3196 = vmatprep.subr.bf16.mxu0 %v2880
  %3197 = vmatpush1.bf16.msra.mxu0 %v2879
  %3198 = vmatprep.subr.bf16.mxu0 %v2884
  %3199 = vmatpush1.bf16.msra.mxu0 %v2883
  %3200 = vmatprep.subr.bf16.mxu0 %v2888
  %3201 = vmatpush1.bf16.msra.mxu0 %v2887
  %3202 = vmatprep.subr.bf16.mxu0 %v2892
  %3203 = vmatpush1.bf16.msra.mxu0 %v2891
  %3204 = vmatprep.subr.bf16.mxu0 %v2896
  %3205 = vmatpush1.bf16.msra.mxu0 %v2895
  %3206 = vmatprep.subr.bf16.mxu0 %v2900
  %3207 = vmatpush1.bf16.msra.mxu0 %v2899
  %3208 = vmatprep.subr.bf16.mxu0 %v2904
  %3209 = vmatpush1.bf16.msra.mxu0 %v2903
  %3210 = vmatprep.subr.bf16.mxu0 %v2908
  %3211 = vmatpush1.bf16.msra.mxu0 %v2907
  %3212 = vmatprep.subr.bf16.mxu0 %v2912
  %3213 = vmatpush1.bf16.msra.mxu0 %v2911
  %3214 = vmatprep.subr.bf16.mxu0 %v2916
  %3215 = vmatpush1.bf16.msra.mxu0 %v2915
  %3216 = vmatprep.subr.bf16.mxu0 %v2920
  %3217 = vmatpush1.bf16.msra.mxu0 %v2919
  %3218 = vmatprep.subr.bf16.mxu0 %v2924
  %3219 = vmatpush1.bf16.msra.mxu0 %v2923
  %3220 = vmatprep.subr.bf16.mxu0 %v2928
  %3221 = vmatpush1.bf16.msra.mxu0 %v2927
  %3222 = vmatprep.subr.bf16.mxu0 %v2932
  %3223 = vmatpush1.bf16.msra.mxu0 %v2931
  %3224 = vmatprep.subr.bf16.mxu0 %v2936
  %3225 = vmatpush1.bf16.msra.mxu0 %v2935
  %3226 = vmatprep.mubr.bf16.mxu0 %v2274
  %3227 = vmatmul.mubr.bf16.gmra.mrb[0].mxu0 %v2273
  %v3228 = vpop.f32.mrb[0].mxu0
  %v3229 = vadd.f32 %v3186, %v3228
  %v3230 = vpop.f32.mrb[0].mxu0
  %v3231 = vadd.f32 %v3188, %v3230
  %v3232 = vpop.f32.mrb[0].mxu0
  %v3233 = vadd.f32 %v3190, %v3232
  %v3234 = vpop.f32.mrb[0].mxu0
  %v3235 = vadd.f32 %v3192, %v3234
  %3236 = vdwg.mxu0
  %v3237 = vmax.f32 %v3143, 0.0
  %v3238 = vmax.f32 %v3145, 0.0
  %v3239 = vmax.f32 %v3229, 0.0
  %v3240 = vmax.f32 %v3231, 0.0
  %v3241 = vmax.f32 %v3147, 0.0
  %v3242 = vmax.f32 %v3149, 0.0
  %v3243 = vmax.f32 %v3233, 0.0
  %v3244 = vmax.f32 %v3235, 0.0
  %v3245 = vpack.c.bf16 %v3241, %v3237
  %v3246 = vpack.c.bf16 %v3242, %v3238
  %v3247 = vpack.c.bf16 %v3243, %v3239
  %v3248 = vpack.c.bf16 %v3244, %v3240
  %v3249 = vld [vmem:[%s5] sm:$0xf]
  %v3250 = vld [vmem:[%s5 + $0x4] sm:$0xf]
  %v3251 = vld [vmem:[%s5 + $0x8] sm:$0xf]
  %v3252 = vld [vmem:[%s5 + $0xc] sm:$0xf]
  %v3253 = vld [vmem:[%s5 + $0x10] sm:$0xf]
  %v3254 = vld [vmem:[%s5 + $0x14] sm:$0xf]
  %v3255 = vld [vmem:[%s5 + $0x18] sm:$0xf]
  %v3256 = vld [vmem:[%s5 + $0x1c] sm:$0xf]
  %v3257 = vld [vmem:[%s5 + $0x20] sm:$0xf]
  %v3258 = vld [vmem:[%s5 + $0x24] sm:$0xf]
  %v3259 = vld [vmem:[%s5 + $0x28] sm:$0xf]
  %v3260 = vld [vmem:[%s5 + $0x2c] sm:$0xf]
  %v3261 = vld [vmem:[%s5 + $0x30] sm:$0xf]
  %v3262 = vld [vmem:[%s5 + $0x34] sm:$0xf]
  %v3263 = vld [vmem:[%s5 + $0x38] sm:$0xf]
  %v3264 = vld [vmem:[%s5 + $0x3c] sm:$0xf]
  %v3265 = vld [vmem:[%s5 + $0x40] sm:$0xf]
  %v3266 = vld [vmem:[%s5 + $0x44] sm:$0xf]
  %v3267 = vld [vmem:[%s5 + $0x48] sm:$0xf]
  %v3268 = vld [vmem:[%s5 + $0x4c] sm:$0xf]
  %v3269 = vld [vmem:[%s5 + $0x50] sm:$0xf]
  %v3270 = vld [vmem:[%s5 + $0x54] sm:$0xf]
  %v3271 = vld [vmem:[%s5 + $0x58] sm:$0xf]
  %v3272 = vld [vmem:[%s5 + $0x5c] sm:$0xf]
  %v3273 = vld [vmem:[%s5 + $0x60] sm:$0xf]
  %v3274 = vld [vmem:[%s5 + $0x64] sm:$0xf]
  %v3275 = vld [vmem:[%s5 + $0x68] sm:$0xf]
  %v3276 = vld [vmem:[%s5 + $0x6c] sm:$0xf]
  %v3277 = vld [vmem:[%s5 + $0x70] sm:$0xf]
  %v3278 = vld [vmem:[%s5 + $0x74] sm:$0xf]
  %v3279 = vld [vmem:[%s5 + $0x78] sm:$0xf]
  %v3280 = vld [vmem:[%s5 + $0x7c] sm:$0xf]
  %v3281 = vld [vmem:[%s5 + $0x80] sm:$0xf]
  %v3282 = vld [vmem:[%s5 + $0x84] sm:$0xf]
  %v3283 = vld [vmem:[%s5 + $0x88] sm:$0xf]
  %v3284 = vld [vmem:[%s5 + $0x8c] sm:$0xf]
  %v3285 = vld [vmem:[%s5 + $0x90] sm:$0xf]
  %v3286 = vld [vmem:[%s5 + $0x94] sm:$0xf]
  %v3287 = vld [vmem:[%s5 + $0x98] sm:$0xf]
  %v3288 = vld [vmem:[%s5 + $0x9c] sm:$0xf]
  %v3289 = vld [vmem:[%s5 + $0xa0] sm:$0xf]
  %v3290 = vld [vmem:[%s5 + $0xa4] sm:$0xf]
  %v3291 = vld [vmem:[%s5 + $0xa8] sm:$0xf]
  %v3292 = vld [vmem:[%s5 + $0xac] sm:$0xf]
  %v3293 = vld [vmem:[%s5 + $0xb0] sm:$0xf]
  %v3294 = vld [vmem:[%s5 + $0xb4] sm:$0xf]
  %v3295 = vld [vmem:[%s5 + $0xb8] sm:$0xf]
  %v3296 = vld [vmem:[%s5 + $0xbc] sm:$0xf]
  %v3297 = vld [vmem:[%s5 + $0xc0] sm:$0xf]
  %v3298 = vld [vmem:[%s5 + $0xc4] sm:$0xf]
  %v3299 = vld [vmem:[%s5 + $0xc8] sm:$0xf]
  %v3300 = vld [vmem:[%s5 + $0xcc] sm:$0xf]
  %v3301 = vld [vmem:[%s5 + $0xd0] sm:$0xf]
  %v3302 = vld [vmem:[%s5 + $0xd4] sm:$0xf]
  %v3303 = vld [vmem:[%s5 + $0xd8] sm:$0xf]
  %v3304 = vld [vmem:[%s5 + $0xdc] sm:$0xf]
  %v3305 = vld [vmem:[%s5 + $0xe0] sm:$0xf]
  %v3306 = vld [vmem:[%s5 + $0xe4] sm:$0xf]
  %v3307 = vld [vmem:[%s5 + $0xe8] sm:$0xf]
  %v3308 = vld [vmem:[%s5 + $0xec] sm:$0xf]
  %v3309 = vld [vmem:[%s5 + $0xf0] sm:$0xf]
  %v3310 = vld [vmem:[%s5 + $0xf4] sm:$0xf]
  %v3311 = vld [vmem:[%s5 + $0xf8] sm:$0xf]
  %v3312 = vld [vmem:[%s5 + $0xfc] sm:$0xf]
  %v3313 = vld [vmem:[%s6] sm:$0x1]
  %v3315 = vlaneseq
  %v3316 = vshrl.u32 %v3315, 7
  %v3317 = vsub.s32 0, %v3316
  %v3318 = vrot.slane %v3313, %v3317
  %v3384 = vunpack.c.l.b16 %v3249
  %v3385 = vunpack.c.l.b16 %v3250
  %v3386 = vunpack.c.l.b16 %v3251
  %v3387 = vunpack.c.l.b16 %v3252
  %v3388 = vunpack.c.l.b16 %v3253
  %v3389 = vunpack.c.l.b16 %v3254
  %v3390 = vunpack.c.l.b16 %v3255
  %v3391 = vunpack.c.l.b16 %v3256
  %v3392 = vunpack.c.l.b16 %v3257
  %v3393 = vunpack.c.l.b16 %v3258
  %v3394 = vunpack.c.l.b16 %v3259
  %v3395 = vunpack.c.l.b16 %v3260
  %v3396 = vunpack.c.l.b16 %v3261
  %v3397 = vunpack.c.l.b16 %v3262
  %v3398 = vunpack.c.l.b16 %v3263
  %v3399 = vunpack.c.l.b16 %v3264
  %v3400 = vunpack.c.l.b16 %v3265
  %v3401 = vunpack.c.l.b16 %v3266
  %v3402 = vunpack.c.l.b16 %v3267
  %v3403 = vunpack.c.l.b16 %v3268
  %v3404 = vunpack.c.l.b16 %v3269
  %v3405 = vunpack.c.l.b16 %v3270
  %v3406 = vunpack.c.l.b16 %v3271
  %v3407 = vunpack.c.l.b16 %v3272
  %v3408 = vunpack.c.l.b16 %v3273
  %v3409 = vunpack.c.l.b16 %v3274
  %v3410 = vunpack.c.l.b16 %v3275
  %v3411 = vunpack.c.l.b16 %v3276
  %v3412 = vunpack.c.l.b16 %v3277
  %v3413 = vunpack.c.l.b16 %v3278
  %v3414 = vunpack.c.l.b16 %v3279
  %v3415 = vunpack.c.l.b16 %v3280
  %v3416 = vunpack.c.l.b16 %v3281
  %v3417 = vunpack.c.l.b16 %v3282
  %v3418 = vunpack.c.l.b16 %v3283
  %v3419 = vunpack.c.l.b16 %v3284
  %v3420 = vunpack.c.l.b16 %v3285
  %v3421 = vunpack.c.l.b16 %v3286
  %v3422 = vunpack.c.l.b16 %v3287
  %v3423 = vunpack.c.l.b16 %v3288
  %v3424 = vunpack.c.l.b16 %v3289
  %v3425 = vunpack.c.l.b16 %v3290
  %v3426 = vunpack.c.l.b16 %v3291
  %v3427 = vunpack.c.l.b16 %v3292
  %v3428 = vunpack.c.l.b16 %v3293
  %v3429 = vunpack.c.l.b16 %v3294
  %v3430 = vunpack.c.l.b16 %v3295
  %v3431 = vunpack.c.l.b16 %v3296
  %v3432 = vunpack.c.l.b16 %v3297
  %v3433 = vunpack.c.l.b16 %v3298
  %v3434 = vunpack.c.l.b16 %v3299
  %v3435 = vunpack.c.l.b16 %v3300
  %v3436 = vunpack.c.l.b16 %v3301
  %v3437 = vunpack.c.l.b16 %v3302
  %v3438 = vunpack.c.l.b16 %v3303
  %v3439 = vunpack.c.l.b16 %v3304
  %v3440 = vunpack.c.l.b16 %v3305
  %v3441 = vunpack.c.l.b16 %v3306
  %v3442 = vunpack.c.l.b16 %v3307
  %v3443 = vunpack.c.l.b16 %v3308
  %v3444 = vunpack.c.l.b16 %v3309
  %v3445 = vunpack.c.l.b16 %v3310
  %v3446 = vunpack.c.l.b16 %v3311
  %v3447 = vunpack.c.l.b16 %v3312
  %v3448 = vpack.c.b16 %v3385, %v3384
  %v3449 = vpack.c.b16 %v3387, %v3386
  %v3450 = vpack.c.b16 %v3389, %v3388
  %v3451 = vpack.c.b16 %v3391, %v3390
  %v3452 = vpack.c.b16 %v3393, %v3392
  %v3453 = vpack.c.b16 %v3395, %v3394
  %v3454 = vpack.c.b16 %v3397, %v3396
  %v3455 = vpack.c.b16 %v3399, %v3398
  %v3456 = vpack.c.b16 %v3401, %v3400
  %v3457 = vpack.c.b16 %v3403, %v3402
  %v3458 = vpack.c.b16 %v3405, %v3404
  %v3459 = vpack.c.b16 %v3407, %v3406
  %v3460 = vpack.c.b16 %v3409, %v3408
  %v3461 = vpack.c.b16 %v3411, %v3410
  %v3462 = vpack.c.b16 %v3413, %v3412
  %v3463 = vpack.c.b16 %v3415, %v3414
  %v3464 = vpack.c.b16 %v3417, %v3416
  %v3465 = vpack.c.b16 %v3419, %v3418
  %v3466 = vpack.c.b16 %v3421, %v3420
  %v3467 = vpack.c.b16 %v3423, %v3422
  %v3468 = vpack.c.b16 %v3425, %v3424
  %v3469 = vpack.c.b16 %v3427, %v3426
  %v3470 = vpack.c.b16 %v3429, %v3428
  %v3471 = vpack.c.b16 %v3431, %v3430
  %v3472 = vpack.c.b16 %v3433, %v3432
  %v3473 = vpack.c.b16 %v3435, %v3434
  %v3474 = vpack.c.b16 %v3437, %v3436
  %v3475 = vpack.c.b16 %v3439, %v3438
  %v3476 = vpack.c.b16 %v3441, %v3440
  %v3477 = vpack.c.b16 %v3443, %v3442
  %v3478 = vpack.c.b16 %v3445, %v3444
  %v3479 = vpack.c.b16 %v3447, %v3446
  %3512 = vmatprep.subr.bf16.mxu0 0
  %3513 = vmatpush1.bf16.msra.mxu0 %v3448
  %3514 = vmatprep.subr.bf16.mxu0 0
  %3515 = vmatpush1.bf16.msra.mxu0 %v3449
  %3516 = vmatprep.subr.bf16.mxu0 0
  %3517 = vmatpush1.bf16.msra.mxu0 %v3450
  %3518 = vmatprep.subr.bf16.mxu0 0
  %3519 = vmatpush1.bf16.msra.mxu0 %v3451
  %3520 = vmatprep.subr.bf16.mxu0 0
  %3521 = vmatpush1.bf16.msra.mxu0 %v3452
  %3522 = vmatprep.subr.bf16.mxu0 0
  %3523 = vmatpush1.bf16.msra.mxu0 %v3453
  %3524 = vmatprep.subr.bf16.mxu0 0
  %3525 = vmatpush1.bf16.msra.mxu0 %v3454
  %3526 = vmatprep.subr.bf16.mxu0 0
  %3527 = vmatpush1.bf16.msra.mxu0 %v3455
  %3528 = vmatprep.subr.bf16.mxu0 0
  %3529 = vmatpush1.bf16.msra.mxu0 %v3456
  %3530 = vmatprep.subr.bf16.mxu0 0
  %3531 = vmatpush1.bf16.msra.mxu0 %v3457
  %3532 = vmatprep.subr.bf16.mxu0 0
  %3533 = vmatpush1.bf16.msra.mxu0 %v3458
  %3534 = vmatprep.subr.bf16.mxu0 0
  %3535 = vmatpush1.bf16.msra.mxu0 %v3459
  %3536 = vmatprep.subr.bf16.mxu0 0
  %3537 = vmatpush1.bf16.msra.mxu0 %v3460
  %3538 = vmatprep.subr.bf16.mxu0 0
  %3539 = vmatpush1.bf16.msra.mxu0 %v3461
  %3540 = vmatprep.subr.bf16.mxu0 0
  %3541 = vmatpush1.bf16.msra.mxu0 %v3462
  %3542 = vmatprep.subr.bf16.mxu0 0
  %3543 = vmatpush1.bf16.msra.mxu0 %v3463
  %3544 = vmatprep.mubr.bf16.mxu0 %v3246
  %3545 = vmatmul.mubr.bf16.gmra.mrb[0].mxu0 %v3245
  %v3546 = vpop.f32.mrb[0].mxu0
  %v3547 = vadd.f32 %v3318, %v3546
  %v3548 = vpop.f32.mrb[0].mxu0
  %v3549 = vpop.f32.mrb[0].mxu0
  %v3550 = vadd.f32 %v3318, %v3549
  %v3551 = vpop.f32.mrb[0].mxu0
  %3552 = vdwg.mxu0
  %3553 = vmatprep.subr.bf16.mxu0 0
  %3554 = vmatpush1.bf16.msra.mxu0 %v3464
  %3555 = vmatprep.subr.bf16.mxu0 0
  %3556 = vmatpush1.bf16.msra.mxu0 %v3465
  %3557 = vmatprep.subr.bf16.mxu0 0
  %3558 = vmatpush1.bf16.msra.mxu0 %v3466
  %3559 = vmatprep.subr.bf16.mxu0 0
  %3560 = vmatpush1.bf16.msra.mxu0 %v3467
  %3561 = vmatprep.subr.bf16.mxu0 0
  %3562 = vmatpush1.bf16.msra.mxu0 %v3468
  %3563 = vmatprep.subr.bf16.mxu0 0
  %3564 = vmatpush1.bf16.msra.mxu0 %v3469
  %3565 = vmatprep.subr.bf16.mxu0 0
  %3566 = vmatpush1.bf16.msra.mxu0 %v3470
  %3567 = vmatprep.subr.bf16.mxu0 0
  %3568 = vmatpush1.bf16.msra.mxu0 %v3471
  %3569 = vmatprep.subr.bf16.mxu0 0
  %3570 = vmatpush1.bf16.msra.mxu0 %v3472
  %3571 = vmatprep.subr.bf16.mxu0 0
  %3572 = vmatpush1.bf16.msra.mxu0 %v3473
  %3573 = vmatprep.subr.bf16.mxu0 0
  %3574 = vmatpush1.bf16.msra.mxu0 %v3474
  %3575 = vmatprep.subr.bf16.mxu0 0
  %3576 = vmatpush1.bf16.msra.mxu0 %v3475
  %3577 = vmatprep.subr.bf16.mxu0 0
  %3578 = vmatpush1.bf16.msra.mxu0 %v3476
  %3579 = vmatprep.subr.bf16.mxu0 0
  %3580 = vmatpush1.bf16.msra.mxu0 %v3477
  %3581 = vmatprep.subr.bf16.mxu0 0
  %3582 = vmatpush1.bf16.msra.mxu0 %v3478
  %3583 = vmatprep.subr.bf16.mxu0 0
  %3584 = vmatpush1.bf16.msra.mxu0 %v3479
  %3585 = vmatprep.mubr.bf16.mxu0 %v3248
  %3586 = vmatmul.mubr.bf16.gmra.mrb[0].mxu0 %v3247
  %v3587 = vpop.f32.mrb[0].mxu0
  %v3588 = vadd.f32 %v3547, %v3587
  %v3589 = vpop.f32.mrb[0].mxu0
  %v3590 = vpop.f32.mrb[0].mxu0
  %v3591 = vadd.f32 %v3550, %v3590
  %v3592 = vpop.f32.mrb[0].mxu0
  %3593 = vdwg.mxu0
  %3594 = vst [vmem:[%s7] sm:$0xff] %v3588
  %3595 = vst [vmem:[%s7 + $0x8] sm:$0xff] %v3591
  // Predicated region
  $region30: #{alexnet_forward.7} parent=0 // pred_check
    _
  $region31: #{alexnet_forward.7} parent=0 // pred_check_branch
    %3597 = sbr.rel (0) target = $region33
  $region32: #{alexnet_forward.7} parent=0 // pred_region
    _
  $region33: #{alexnet_forward.7} parent=0 // pred_fallthru
    _
  // Predicated region
  $region34: #{alexnet_forward.7} parent=0 // pred_check
    _
  $region35: #{alexnet_forward.7} parent=0 // pred_check_branch
    %3599 = sbr.rel (0) target = $region37
  $region36: #{alexnet_forward.7} parent=0 // pred_region
    _
  $region37: #{alexnet_forward.7} parent=0 // pred_fallthru
    _

</llo_original>
